<compile_context>
chip_gen: v7x
topology: tpu7x:2x2x1
jax: 0.10.0
libtpu: 0.0.40
codegen_flags: <defaults>
</compile_context>

<pallas_src>
import functools

import jax
import jax.numpy as jnp
from jax.experimental import pallas as pl
from jax.experimental.pallas import tpu as pltpu

SLOPE = 0.2


def _round_up(v, m):
    return ((v + m - 1) // m) * m


# ----------------------------------------------------------------------------
# Pallas kernel: matmul + bias (+ residual) (+ LeakyReLU) epilogue
# ----------------------------------------------------------------------------
def _mm_bias_act_kernel(a_ref, b_ref, c_ref, *rest, act_slope, has_residual):
    if has_residual:
        r_ref, o_ref = rest
    else:
        (o_ref,) = rest
    y = jnp.dot(a_ref[...], b_ref[...], preferred_element_type=jnp.float32)
    y = y + c_ref[...]
    if has_residual:
        y = y + r_ref[...]
    if act_slope is not None:
        y = jnp.where(y >= 0, y, act_slope * y)
    o_ref[...] = y.astype(o_ref.dtype)


def fused_matmul(a, b, bias, residual=None, act_slope=None):
    """a: (Mp, Kp) bf16, b: (Kp, Np) bf16, bias: (1, Np) f32,
    residual: (Mp, Np) f32 or None.  Returns (Mp, Np) f32:
        leaky( a @ b + bias [+ residual] ).
    Mp must be a multiple of 16 (or >=8-aligned), Np a multiple of 128."""
    Mp, Kp = a.shape
    Kp2, Np = b.shape
    assert Kp == Kp2 and bias.shape == (1, Np)

    tm = 128 if Mp % 128 == 0 else Mp          # small-M layers: one full-M block
    tn = 256 if Np % 256 == 0 else 128         # 256-wide N tiles for the big layers

    in_specs = [
        pl.BlockSpec((tm, Kp), lambda i, j: (i, 0)),   # A row-panel, full K
        pl.BlockSpec((Kp, tn), lambda i, j: (0, j)),   # B col-panel, full K
        pl.BlockSpec((1, tn), lambda i, j: (0, j)),    # bias
    ]
    args = [a, b, bias]
    if residual is not None:
        assert residual.shape == (Mp, Np)
        in_specs.append(pl.BlockSpec((tm, tn), lambda i, j: (i, j)))
        args.append(residual)

    kernel = functools.partial(_mm_bias_act_kernel,
                               act_slope=act_slope,
                               has_residual=residual is not None)
    out = pl.pallas_call(
        kernel,
        out_shape=jax.ShapeDtypeStruct((Mp, Np), jnp.float32),
        grid=(Mp // tm, Np // tn),
        in_specs=in_specs,
        out_specs=pl.BlockSpec((tm, tn), lambda i, j: (i, j)),
        compiler_params=pltpu.CompilerParams(
            dimension_semantics=("parallel", "parallel")),
    )(*args)
    return out


# ----------------------------------------------------------------------------
# Conv wrapper (im2col glue feeding the Pallas hot path)
# ----------------------------------------------------------------------------
def conv_layer(x, prep, stride, pad, act_slope, residual=None):
    """x: NHWC f32.  prep: pre-folded/pre-padded weight dict.  Returns NHWC f32."""
    N, H, W, Cin = x.shape
    kh, kw = prep['kh'], prep['kw']
    Ho = (H + 2 * pad - kh) // stride + 1
    Wo = (W + 2 * pad - kw) // stride + 1

    if kh == 1 and kw == 1 and stride == 1 and pad == 0:
        patches = x
    else:
        # TODO(synk): 3x3 patches still materialized in HBM; could be replaced by
        # shifted-window BlockSpec reads of the padded NHWC input.
        xp = jnp.pad(x, ((0, 0), (pad, pad), (pad, pad), (0, 0)))
        cols = []
        for i in range(kh):
            for j in range(kw):
                cols.append(xp[:, i:i + stride * Ho:stride,
                               j:j + stride * Wo:stride, :])
        patches = jnp.concatenate(cols, axis=-1)       # (N, Ho, Wo, kh*kw*Cin)

    M = N * Ho * Wo
    K, Cout, Kp, Np = prep['K'], prep['Cout'], prep['Kp'], prep['Np']
    Mp = _round_up(M, 16)

    A = patches.reshape(M, K).astype(jnp.bfloat16)
    A = jnp.pad(A, ((0, Mp - M), (0, Kp - K)))

    res_p = None
    if residual is not None:
        R = residual.reshape(M, Cout).astype(jnp.float32)
        res_p = jnp.pad(R, ((0, Mp - M), (0, Np - Cout)))

    out = fused_matmul(A, prep['B'], prep['bias'], res_p, act_slope)
    return out[:M, :Cout].reshape(N, Ho, Wo, Cout)


def bilinear_resize_nhwc(x, out_h, out_w):
    """Matches F.interpolate(mode='bilinear', align_corners=False)."""
    # TODO(synk): gather-based bilinear resize kept in plain JAX (not a matmul hot path).
    N, H, W, C = x.shape

    def idx_w(in_size, out_size):
        i = jnp.arange(out_size, dtype=jnp.float32)
        src = (i + 0.5) * (in_size / out_size) - 0.5
        src = jnp.clip(src, 0.0, in_size - 1)
        i0 = jnp.floor(src).astype(jnp.int32)
        i1 = jnp.minimum(i0 + 1, in_size - 1)
        w1 = src - i0.astype(jnp.float32)
        return i0, i1, 1.0 - w1, w1

    h0, h1, wh0, wh1 = idx_w(H, out_h)
    w0, w1, ww0, ww1 = idx_w(W, out_w)
    top = (x[:, h0, :, :] * wh0[None, :, None, None]
           + x[:, h1, :, :] * wh1[None, :, None, None])
    out = (top[:, :, w0, :] * ww0[None, None, :, None]
           + top[:, :, w1, :] * ww1[None, None, :, None])
    return out


# ----------------------------------------------------------------------------
# Model blocks (residual add + LeakyReLU fused into the c3 matmul epilogue)
# ----------------------------------------------------------------------------
def bottleneck_fwd(x, p):
    y = conv_layer(x, p['c1'], 1, 0, SLOPE)
    y = conv_layer(y, p['c2'], 1, 1, SLOPE)
    return conv_layer(y, p['c3'], 1, 0, SLOPE, residual=x)


def down_bottleneck_fwd(x, p):
    y1 = conv_layer(x, p['c1'], 1, 0, SLOPE)
    y1 = conv_layer(y1, p['c2'], 2, 1, SLOPE)
    x_rs = bilinear_resize_nhwc(x, y1.shape[1], y1.shape[2])
    y2 = conv_layer(x_rs, p['sc'], 1, 0, None)                   # shortcut: BN only
    return conv_layer(y1, p['c3'], 1, 0, SLOPE, residual=y2)     # fused add + act


def my_resnet_forward(prep, x_nchw):
    x = jnp.transpose(x_nchw, (0, 2, 3, 1)).astype(jnp.float32)  # NCHW -> NHWC
    y = conv_layer(x, prep['stem'], 2, 1, SLOPE)
    for bp in prep['part1']:
        y = bottleneck_fwd(y, bp)
    for name in ('part2', 'part3', 'part4', 'part5', 'part6'):
        pp = prep[name]
        y = down_bottleneck_fwd(y, pp['down'])
        for bp in pp['blocks']:
            y = bottleneck_fwd(y, bp)
    y = jnp.mean(y, axis=(1, 2))                                  # AdaptiveAvgPool2d((1,1))
    # Final FC through the same kernel with minimal M padding (batch -> mult of 16).
    Bsz = y.shape[0]
    fc = prep['fc']
    Mp = _round_up(Bsz, 16)
    A = jnp.pad(y.astype(jnp.bfloat16), ((0, Mp - Bsz), (0, fc['Kp'] - fc['K'])))
    out = fused_matmul(A, fc['B'], fc['bias'], None, None)
    return out[:Bsz, :fc['N']]                                    # (N, 1000)


# ----------------------------------------------------------------------------
# Parameter construction (PyTorch-style) + one-time kernel-ready preparation
# ----------------------------------------------------------------------------
def make_params(key):
    keys = iter(jax.random.split(key, 256))

    def cbn(cin, cout, k):
        k1, k2, k3, k4, k5 = jax.random.split(next(keys), 5)
        w = jax.random.normal(k1, (cout, cin, k, k), jnp.float32) / jnp.sqrt(cin * k * k)
        gamma = jax.random.uniform(k2, (cout,), jnp.float32, 0.8, 1.2)
        beta = jax.random.normal(k3, (cout,), jnp.float32) * 0.1
        rmean = jax.random.normal(k4, (cout,), jnp.float32) * 0.1
        rvar = jax.random.uniform(k5, (cout,), jnp.float32, 0.5, 1.5)
        scale = gamma / jnp.sqrt(rvar + 1e-5)          # inference-mode BN fold
        bias = beta - rmean * scale
        return {'w': w, 'scale': scale, 'bias': bias}

    def bottleneck_p(cin, cint):
        return {'c1': cbn(cin, cint, 1), 'c2': cbn(cint, cint, 3), 'c3': cbn(cint, cin, 1)}

    def down_p(cin, cint, cout):
        return {'c1': cbn(cin, cint, 1), 'c2': cbn(cint, cint, 3),
                'c3': cbn(cint, cout, 1), 'sc': cbn(cin, cout, 1)}

    input_chs = (16, 64, 128, 256, 512, 512)
    inter_chs = (4, 16, 32, 64, 128, 128)

    params = {}
    params['stem'] = cbn(3, input_chs[0], 3)
    params['part1'] = [bottleneck_p(input_chs[0], inter_chs[0]) for _ in range(2)]
    params['part2'] = {'down': down_p(input_chs[0], inter_chs[1], input_chs[1]),
                       'blocks': [bottleneck_p(input_chs[1], inter_chs[1]) for _ in range(2)]}
    params['part3'] = {'down': down_p(input_chs[1], inter_chs[2], input_chs[2]),
                       'blocks': [bottleneck_p(input_chs[2], inter_chs[2]) for _ in range(2)]}
    params['part4'] = {'down': down_p(input_chs[2], inter_chs[3], input_chs[3]),
                       'blocks': [bottleneck_p(input_chs[3], inter_chs[3]) for _ in range(2)]}
    params['part5'] = {'down': down_p(input_chs[3], inter_chs[4], input_chs[4]),
                       'blocks': [bottleneck_p(input_chs[4], inter_chs[4]) for _ in range(2)]}
    params['part6'] = {'down': down_p(input_chs[4], inter_chs[5], input_chs[5]),
                       'blocks': [bottleneck_p(input_chs[5], inter_chs[5]) for _ in range(1)]}
    kf1, kf2 = jax.random.split(next(keys))
    params['fc_w'] = jax.random.normal(kf1, (1000, 512), jnp.float32) / jnp.sqrt(512.0)
    params['fc_b'] = jax.random.normal(kf2, (1000,), jnp.float32) * 0.01
    return params


def _prep_conv(p, k):
    """Fold BN scale into weight, transpose to (K, Cout), pad (Kp, Np), cast bf16."""
    w = p['w']                                          # (Cout, Cin, kh, kw)
    Cout, Cin = w.shape[0], w.shape[1]
    K = k * k * Cin
    B = jnp.transpose(w, (2, 3, 1, 0)).reshape(K, Cout) * p['scale'][None, :]
    Kp, Np = _round_up(K, 128), _round_up(Cout, 128)
    B = jnp.pad(B, ((0, Kp - K), (0, Np - Cout))).astype(jnp.bfloat16)
    bias = jnp.pad(p['bias'], (0, Np - Cout)).astype(jnp.float32).reshape(1, Np)
    return {'B': B, 'bias': bias, 'K': K, 'Cout': Cout, 'Kp': Kp, 'Np': Np,
            'kh': k, 'kw': k}


def prepare_params(params):
    def prep_bn(bp):
        return {'c1': _prep_conv(bp['c1'], 1), 'c2': _prep_conv(bp['c2'], 3),
                'c3': _prep_conv(bp['c3'], 1)}

    def prep_down(dp):
        return {'c1': _prep_conv(dp['c1'], 1), 'c2': _prep_conv(dp['c2'], 3),
                'c3': _prep_conv(dp['c3'], 1), 'sc': _prep_conv(dp['sc'], 1)}

    prep = {'stem': _prep_conv(params['stem'], 3),
            'part1': [prep_bn(bp) for bp in params['part1']]}
    for name in ('part2', 'part3', 'part4', 'part5', 'part6'):
        pp = params[name]
        prep[name] = {'down': prep_down(pp['down']),
                      'blocks': [prep_bn(bp) for bp in pp['blocks']]}
    N, K = params['fc_w'].shape                          # (1000, 512)
    Kp, Np = _round_up(K, 128), _round_up(N, 128)
    fcB = jnp.pad(params['fc_w'].T, ((0, Kp - K), (0, Np - N))).astype(jnp.bfloat16)
    fcb = jnp.pad(params['fc_b'], (0, Np - N)).astype(jnp.float32).reshape(1, Np)
    prep['fc'] = {'B': fcB, 'bias': fcb, 'K': K, 'N': N, 'Kp': Kp, 'Np': Np}
    return prep


# ----------------------------------------------------------------------------
if __name__ == "__main__":
    key = jax.random.PRNGKey(0)
    k_x, k_p = jax.random.split(key)
    x = jax.random.normal(k_x, (2, 3, 32, 32), jnp.float32)   # NCHW like PyTorch
    params = make_params(k_p)
    prep = prepare_params(params)                              # one-time weight prep

    fwd = jax.jit(lambda xin: my_resnet_forward(prep, xin))
    out = jax.block_until_ready(fwd(x))
    assert out.shape == (2, 1000), out.shape
    assert bool(jnp.all(jnp.isfinite(out)))
    print("KERNEL_OK")
</pallas_src>

<mosaic_0001>
module attributes {stable_mosaic.version = 11 : i64} {
  func.func @_mm_bias_act_kernel(%arg0: i32, %arg1: i32, %arg2: memref<128x128xbf16, #tpu.memory_space<vmem>>, %arg3: memref<128x128xbf16, #tpu.memory_space<vmem>>, %arg4: memref<1x128xf32, #tpu.memory_space<vmem>>, %arg5: memref<128x128xf32, #tpu.memory_space<vmem>>) attributes {dimension_semantics = [#tpu.dimension_semantics<parallel>, #tpu.dimension_semantics<parallel>], iteration_bounds = array<i64: 4, 1>, scalar_prefetch = 0 : i64, scratch_operands = 0 : i64, tpu.core_type = #tpu.core_type<tc>, window_params = [{transform_indices = @transform_0, window_bounds = array<i64: 128, 128>}, {transform_indices = @transform_1, window_bounds = array<i64: 128, 128>}, {transform_indices = @transform_2, window_bounds = array<i64: 1, 128>}, {transform_indices = @transform_3, window_bounds = array<i64: 128, 128>}]} {
    %c0 = arith.constant 0 : index
    %c0_0 = arith.constant 0 : index
    %0 = vector.load %arg2[%c0, %c0_0] : memref<128x128xbf16, #tpu.memory_space<vmem>>, vector<128x128xbf16>
    %c0_1 = arith.constant 0 : index
    %c0_2 = arith.constant 0 : index
    %1 = vector.load %arg3[%c0_1, %c0_2] : memref<128x128xbf16, #tpu.memory_space<vmem>>, vector<128x128xbf16>
    %cst = arith.constant dense<0.000000e+00> : vector<128x128xf32>
    %2 = tpu.matmul %0, %1, %cst {dimension_numbers = #tpu.dot_dimension_numbers<[1], [0], [0], [1], [0, 0, 1, 1], [], []>} : vector<128x128xbf16>, vector<128x128xbf16>, vector<128x128xf32> -> vector<128x128xf32>
    %c0_3 = arith.constant 0 : index
    %c0_4 = arith.constant 0 : index
    %3 = vector.load %arg4[%c0_3, %c0_4] : memref<1x128xf32, #tpu.memory_space<vmem>>, vector<1x128xf32>
    %4 = vector.broadcast %3 : vector<1x128xf32> to vector<128x128xf32>
    %5 = arith.addf %2, %4 : vector<128x128xf32>
    %cst_5 = arith.constant 0.000000e+00 : f32
    %6 = vector.broadcast %cst_5 : f32 to vector<128x128xf32>
    %7 = arith.cmpf oge, %5, %6 : vector<128x128xf32>
    %cst_6 = arith.constant 2.000000e-01 : f32
    %8 = vector.broadcast %cst_6 : f32 to vector<128x128xf32>
    %9 = arith.mulf %8, %5 : vector<128x128xf32>
    %10 = arith.select %7, %5, %9 : vector<128x128xi1>, vector<128x128xf32>
    %c0_7 = arith.constant 0 : index
    %c0_8 = arith.constant 0 : index
    %11 = vector.load %arg5[%c0_7, %c0_8] : memref<128x128xf32, #tpu.memory_space<vmem>>, vector<128x128xf32>
    tpu.vector_store %arg5[%c0_7, %c0_8], %10 {strides = array<i32>} : memref<128x128xf32, #tpu.memory_space<vmem>>, vector<128x128xf32>,
    return
  }
  func.func @transform_0(%arg0: i32, %arg1: i32) -> (i32, i32) {
    %c0_i32 = arith.constant 0 : i32
    %c0_i32_0 = arith.constant 0 : i32
    return %arg0, %c0_i32 : i32, i32
  }
  func.func @transform_1(%arg0: i32, %arg1: i32) -> (i32, i32) {
    %c0_i32 = arith.constant 0 : i32
    %c0_i32_0 = arith.constant 0 : i32
    return %c0_i32, %arg1 : i32, i32
  }
  func.func @transform_2(%arg0: i32, %arg1: i32) -> (i32, i32) {
    %c0_i32 = arith.constant 0 : i32
    %c0_i32_0 = arith.constant 0 : i32
    return %c0_i32, %arg1 : i32, i32
  }
  func.func @transform_3(%arg0: i32, %arg1: i32) -> (i32, i32) {
    %c0_i32 = arith.constant 0 : i32
    return %arg0, %arg1 : i32, i32
  }
}

module attributes {stable_mosaic.version = 11 : i64} {
  func.func @_mm_bias_act_kernel(%arg0: i32, %arg1: i32, %arg2: memref<128x128xbf16, #tpu.memory_space<vmem>>, %arg3: memref<128x128xbf16, #tpu.memory_space<vmem>>, %arg4: memref<1x128xf32, #tpu.memory_space<vmem>>, %arg5: memref<128x128xf32, #tpu.memory_space<vmem>>, %arg6: memref<128x128xf32, #tpu.memory_space<vmem>>) attributes {dimension_semantics = [#tpu.dimension_semantics<parallel>, #tpu.dimension_semantics<parallel>], iteration_bounds = array<i64: 4, 1>, scalar_prefetch = 0 : i64, scratch_operands = 0 : i64, tpu.core_type = #tpu.core_type<tc>, window_params = [{transform_indices = @transform_0, window_bounds = array<i64: 128, 128>}, {transform_indices = @transform_1, window_bounds = array<i64: 128, 128>}, {transform_indices = @transform_2, window_bounds = array<i64: 1, 128>}, {transform_indices = @transform_3, window_bounds = array<i64: 128, 128>}, {transform_indices = @transform_4, window_bounds = array<i64: 128, 128>}]} {
    %c0 = arith.constant 0 : index
    %c0_0 = arith.constant 0 : index
    %0 = vector.load %arg2[%c0, %c0_0] : memref<128x128xbf16, #tpu.memory_space<vmem>>, vector<128x128xbf16>
    %c0_1 = arith.constant 0 : index
    %c0_2 = arith.constant 0 : index
    %1 = vector.load %arg3[%c0_1, %c0_2] : memref<128x128xbf16, #tpu.memory_space<vmem>>, vector<128x128xbf16>
    %cst = arith.constant dense<0.000000e+00> : vector<128x128xf32>
    %2 = tpu.matmul %0, %1, %cst {dimension_numbers = #tpu.dot_dimension_numbers<[1], [0], [0], [1], [0, 0, 1, 1], [], []>} : vector<128x128xbf16>, vector<128x128xbf16>, vector<128x128xf32> -> vector<128x128xf32>
    %c0_3 = arith.constant 0 : index
    %c0_4 = arith.constant 0 : index
    %3 = vector.load %arg4[%c0_3, %c0_4] : memref<1x128xf32, #tpu.memory_space<vmem>>, vector<1x128xf32>
    %4 = vector.broadcast %3 : vector<1x128xf32> to vector<128x128xf32>
    %5 = arith.addf %2, %4 : vector<128x128xf32>
    %c0_5 = arith.constant 0 : index
    %c0_6 = arith.constant 0 : index
    %6 = vector.load %arg5[%c0_5, %c0_6] : memref<128x128xf32, #tpu.memory_space<vmem>>, vector<128x128xf32>
    %7 = arith.addf %5, %6 : vector<128x128xf32>
    %cst_7 = arith.constant 0.000000e+00 : f32
    %8 = vector.broadcast %cst_7 : f32 to vector<128x128xf32>
    %9 = arith.cmpf oge, %7, %8 : vector<128x128xf32>
    %cst_8 = arith.constant 2.000000e-01 : f32
    %10 = vector.broadcast %cst_8 : f32 to vector<128x128xf32>
    %11 = arith.mulf %10, %7 : vector<128x128xf32>
    %12 = arith.select %9, %7, %11 : vector<128x128xi1>, vector<128x128xf32>
    %c0_9 = arith.constant 0 : index
    %c0_10 = arith.constant 0 : index
    %13 = vector.load %arg6[%c0_9, %c0_10] : memref<128x128xf32, #tpu.memory_space<vmem>>, vector<128x128xf32>
    tpu.vector_store %arg6[%c0_9, %c0_10], %12 {strides = array<i32>} : memref<128x128xf32, #tpu.memory_space<vmem>>, vector<128x128xf32>,
    return
  }
  func.func @transform_0(%arg0: i32, %arg1: i32) -> (i32, i32) {
    %c0_i32 = arith.constant 0 : i32
    %c0_i32_0 = arith.constant 0 : i32
    return %arg0, %c0_i32 : i32, i32
  }
  func.func @transform_1(%arg0: i32, %arg1: i32) -> (i32, i32) {
    %c0_i32 = arith.constant 0 : i32
    %c0_i32_0 = arith.constant 0 : i32
    return %c0_i32, %arg1 : i32, i32
  }
  func.func @transform_2(%arg0: i32, %arg1: i32) -> (i32, i32) {
    %c0_i32 = arith.constant 0 : i32
    %c0_i32_0 = arith.constant 0 : i32
    return %c0_i32, %arg1 : i32, i32
  }
  func.func @transform_3(%arg0: i32, %arg1: i32) -> (i32, i32) {
    %c0_i32 = arith.constant 0 : i32
    return %arg0, %arg1 : i32, i32
  }
  func.func @transform_4(%arg0: i32, %arg1: i32) -> (i32, i32) {
    %c0_i32 = arith.constant 0 : i32
    return %arg0, %arg1 : i32, i32
  }
}

module attributes {stable_mosaic.version = 11 : i64} {
  func.func @_mm_bias_act_kernel(%arg0: i32, %arg1: i32, %arg2: memref<128x128xbf16, #tpu.memory_space<vmem>>, %arg3: memref<128x128xbf16, #tpu.memory_space<vmem>>, %arg4: memref<1x128xf32, #tpu.memory_space<vmem>>, %arg5: memref<128x128xf32, #tpu.memory_space<vmem>>) attributes {dimension_semantics = [#tpu.dimension_semantics<parallel>, #tpu.dimension_semantics<parallel>], iteration_bounds = array<i64: 1, 1>, scalar_prefetch = 0 : i64, scratch_operands = 0 : i64, tpu.core_type = #tpu.core_type<tc>, window_params = [{transform_indices = @transform_0, window_bounds = array<i64: 128, 128>}, {transform_indices = @transform_1, window_bounds = array<i64: 128, 128>}, {transform_indices = @transform_2, window_bounds = array<i64: 1, 128>}, {transform_indices = @transform_3, window_bounds = array<i64: 128, 128>}]} {
    %c0 = arith.constant 0 : index
    %c0_0 = arith.constant 0 : index
    %0 = vector.load %arg2[%c0, %c0_0] : memref<128x128xbf16, #tpu.memory_space<vmem>>, vector<128x128xbf16>
    %c0_1 = arith.constant 0 : index
    %c0_2 = arith.constant 0 : index
    %1 = vector.load %arg3[%c0_1, %c0_2] : memref<128x128xbf16, #tpu.memory_space<vmem>>, vector<128x128xbf16>
    %cst = arith.constant dense<0.000000e+00> : vector<128x128xf32>
    %2 = tpu.matmul %0, %1, %cst {dimension_numbers = #tpu.dot_dimension_numbers<[1], [0], [0], [1], [0, 0, 1, 1], [], []>} : vector<128x128xbf16>, vector<128x128xbf16>, vector<128x128xf32> -> vector<128x128xf32>
    %c0_3 = arith.constant 0 : index
    %c0_4 = arith.constant 0 : index
    %3 = vector.load %arg4[%c0_3, %c0_4] : memref<1x128xf32, #tpu.memory_space<vmem>>, vector<1x128xf32>
    %4 = vector.broadcast %3 : vector<1x128xf32> to vector<128x128xf32>
    %5 = arith.addf %2, %4 : vector<128x128xf32>
    %c0_5 = arith.constant 0 : index
    %c0_6 = arith.constant 0 : index
    %6 = vector.load %arg5[%c0_5, %c0_6] : memref<128x128xf32, #tpu.memory_space<vmem>>, vector<128x128xf32>
    tpu.vector_store %arg5[%c0_5, %c0_6], %5 {strides = array<i32>} : memref<128x128xf32, #tpu.memory_space<vmem>>, vector<128x128xf32>,
    return
  }
  func.func @transform_0(%arg0: i32, %arg1: i32) -> (i32, i32) {
    %c0_i32 = arith.constant 0 : i32
    %c0_i32_0 = arith.constant 0 : i32
    return %arg0, %c0_i32 : i32, i32
  }
  func.func @transform_1(%arg0: i32, %arg1: i32) -> (i32, i32) {
    %c0_i32 = arith.constant 0 : i32
    %c0_i32_0 = arith.constant 0 : i32
    return %c0_i32, %arg1 : i32, i32
  }
  func.func @transform_2(%arg0: i32, %arg1: i32) -> (i32, i32) {
    %c0_i32 = arith.constant 0 : i32
    %c0_i32_0 = arith.constant 0 : i32
    return %c0_i32, %arg1 : i32, i32
  }
  func.func @transform_3(%arg0: i32, %arg1: i32) -> (i32, i32) {
    %c0_i32 = arith.constant 0 : i32
    return %arg0, %arg1 : i32, i32
  }
}

module attributes {stable_mosaic.version = 11 : i64} {
  func.func @_mm_bias_act_kernel(%arg0: i32, %arg1: i32, %arg2: memref<128x256xbf16, #tpu.memory_space<vmem>>, %arg3: memref<256x128xbf16, #tpu.memory_space<vmem>>, %arg4: memref<1x128xf32, #tpu.memory_space<vmem>>, %arg5: memref<128x128xf32, #tpu.memory_space<vmem>>) attributes {dimension_semantics = [#tpu.dimension_semantics<parallel>, #tpu.dimension_semantics<parallel>], iteration_bounds = array<i64: 1, 1>, scalar_prefetch = 0 : i64, scratch_operands = 0 : i64, tpu.core_type = #tpu.core_type<tc>, window_params = [{transform_indices = @transform_0, window_bounds = array<i64: 128, 256>}, {transform_indices = @transform_1, window_bounds = array<i64: 256, 128>}, {transform_indices = @transform_2, window_bounds = array<i64: 1, 128>}, {transform_indices = @transform_3, window_bounds = array<i64: 128, 128>}]} {
    %c0 = arith.constant 0 : index
    %c0_0 = arith.constant 0 : index
    %0 = vector.load %arg2[%c0, %c0_0] : memref<128x256xbf16, #tpu.memory_space<vmem>>, vector<128x256xbf16>
    %c0_1 = arith.constant 0 : index
    %c0_2 = arith.constant 0 : index
    %1 = vector.load %arg3[%c0_1, %c0_2] : memref<256x128xbf16, #tpu.memory_space<vmem>>, vector<256x128xbf16>
    %cst = arith.constant dense<0.000000e+00> : vector<128x128xf32>
    %2 = tpu.matmul %0, %1, %cst {dimension_numbers = #tpu.dot_dimension_numbers<[1], [0], [0], [1], [0, 0, 1, 1], [], []>} : vector<128x256xbf16>, vector<256x128xbf16>, vector<128x128xf32> -> vector<128x128xf32>
    %c0_3 = arith.constant 0 : index
    %c0_4 = arith.constant 0 : index
    %3 = vector.load %arg4[%c0_3, %c0_4] : memref<1x128xf32, #tpu.memory_space<vmem>>, vector<1x128xf32>
    %4 = vector.broadcast %3 : vector<1x128xf32> to vector<128x128xf32>
    %5 = arith.addf %2, %4 : vector<128x128xf32>
    %cst_5 = arith.constant 0.000000e+00 : f32
    %6 = vector.broadcast %cst_5 : f32 to vector<128x128xf32>
    %7 = arith.cmpf oge, %5, %6 : vector<128x128xf32>
    %cst_6 = arith.constant 2.000000e-01 : f32
    %8 = vector.broadcast %cst_6 : f32 to vector<128x128xf32>
    %9 = arith.mulf %8, %5 : vector<128x128xf32>
    %10 = arith.select %7, %5, %9 : vector<128x128xi1>, vector<128x128xf32>
    %c0_7 = arith.constant 0 : index
    %c0_8 = arith.constant 0 : index
    %11 = vector.load %arg5[%c0_7, %c0_8] : memref<128x128xf32, #tpu.memory_space<vmem>>, vector<128x128xf32>
    tpu.vector_store %arg5[%c0_7, %c0_8], %10 {strides = array<i32>} : memref<128x128xf32, #tpu.memory_space<vmem>>, vector<128x128xf32>,
    return
  }
  func.func @transform_0(%arg0: i32, %arg1: i32) -> (i32, i32) {
    %c0_i32 = arith.constant 0 : i32
    %c0_i32_0 = arith.constant 0 : i32
    return %arg0, %c0_i32 : i32, i32
  }
  func.func @transform_1(%arg0: i32, %arg1: i32) -> (i32, i32) {
    %c0_i32 = arith.constant 0 : i32
    %c0_i32_0 = arith.constant 0 : i32
    return %c0_i32, %arg1 : i32, i32
  }
  func.func @transform_2(%arg0: i32, %arg1: i32) -> (i32, i32) {
    %c0_i32 = arith.constant 0 : i32
    %c0_i32_0 = arith.constant 0 : i32
    return %c0_i32, %arg1 : i32, i32
  }
  func.func @transform_3(%arg0: i32, %arg1: i32) -> (i32, i32) {
    %c0_i32 = arith.constant 0 : i32
    return %arg0, %arg1 : i32, i32
  }
}

module attributes {stable_mosaic.version = 11 : i64} {
  func.func @_mm_bias_act_kernel(%arg0: i32, %arg1: i32, %arg2: memref<128x128xbf16, #tpu.memory_space<vmem>>, %arg3: memref<128x128xbf16, #tpu.memory_space<vmem>>, %arg4: memref<1x128xf32, #tpu.memory_space<vmem>>, %arg5: memref<128x128xf32, #tpu.memory_space<vmem>>, %arg6: memref<128x128xf32, #tpu.memory_space<vmem>>) attributes {dimension_semantics = [#tpu.dimension_semantics<parallel>, #tpu.dimension_semantics<parallel>], iteration_bounds = array<i64: 1, 1>, scalar_prefetch = 0 : i64, scratch_operands = 0 : i64, tpu.core_type = #tpu.core_type<tc>, window_params = [{transform_indices = @transform_0, window_bounds = array<i64: 128, 128>}, {transform_indices = @transform_1, window_bounds = array<i64: 128, 128>}, {transform_indices = @transform_2, window_bounds = array<i64: 1, 128>}, {transform_indices = @transform_3, window_bounds = array<i64: 128, 128>}, {transform_indices = @transform_4, window_bounds = array<i64: 128, 128>}]} {
    %c0 = arith.constant 0 : index
    %c0_0 = arith.constant 0 : index
    %0 = vector.load %arg2[%c0, %c0_0] : memref<128x128xbf16, #tpu.memory_space<vmem>>, vector<128x128xbf16>
    %c0_1 = arith.constant 0 : index
    %c0_2 = arith.constant 0 : index
    %1 = vector.load %arg3[%c0_1, %c0_2] : memref<128x128xbf16, #tpu.memory_space<vmem>>, vector<128x128xbf16>
    %cst = arith.constant dense<0.000000e+00> : vector<128x128xf32>
    %2 = tpu.matmul %0, %1, %cst {dimension_numbers = #tpu.dot_dimension_numbers<[1], [0], [0], [1], [0, 0, 1, 1], [], []>} : vector<128x128xbf16>, vector<128x128xbf16>, vector<128x128xf32> -> vector<128x128xf32>
    %c0_3 = arith.constant 0 : index
    %c0_4 = arith.constant 0 : index
    %3 = vector.load %arg4[%c0_3, %c0_4] : memref<1x128xf32, #tpu.memory_space<vmem>>, vector<1x128xf32>
    %4 = vector.broadcast %3 : vector<1x128xf32> to vector<128x128xf32>
    %5 = arith.addf %2, %4 : vector<128x128xf32>
    %c0_5 = arith.constant 0 : index
    %c0_6 = arith.constant 0 : index
    %6 = vector.load %arg5[%c0_5, %c0_6] : memref<128x128xf32, #tpu.memory_space<vmem>>, vector<128x128xf32>
    %7 = arith.addf %5, %6 : vector<128x128xf32>
    %cst_7 = arith.constant 0.000000e+00 : f32
    %8 = vector.broadcast %cst_7 : f32 to vector<128x128xf32>
    %9 = arith.cmpf oge, %7, %8 : vector<128x128xf32>
    %cst_8 = arith.constant 2.000000e-01 : f32
    %10 = vector.broadcast %cst_8 : f32 to vector<128x128xf32>
    %11 = arith.mulf %10, %7 : vector<128x128xf32>
    %12 = arith.select %9, %7, %11 : vector<128x128xi1>, vector<128x128xf32>
    %c0_9 = arith.constant 0 : index
    %c0_10 = arith.constant 0 : index
    %13 = vector.load %arg6[%c0_9, %c0_10] : memref<128x128xf32, #tpu.memory_space<vmem>>, vector<128x128xf32>
    tpu.vector_store %arg6[%c0_9, %c0_10], %12 {strides = array<i32>} : memref<128x128xf32, #tpu.memory_space<vmem>>, vector<128x128xf32>,
    return
  }
  func.func @transform_0(%arg0: i32, %arg1: i32) -> (i32, i32) {
    %c0_i32 = arith.constant 0 : i32
    %c0_i32_0 = arith.constant 0 : i32
    return %arg0, %c0_i32 : i32, i32
  }
  func.func @transform_1(%arg0: i32, %arg1: i32) -> (i32, i32) {
    %c0_i32 = arith.constant 0 : i32
    %c0_i32_0 = arith.constant 0 : i32
    return %c0_i32, %arg1 : i32, i32
  }
  func.func @transform_2(%arg0: i32, %arg1: i32) -> (i32, i32) {
    %c0_i32 = arith.constant 0 : i32
    %c0_i32_0 = arith.constant 0 : i32
    return %c0_i32, %arg1 : i32, i32
  }
  func.func @transform_3(%arg0: i32, %arg1: i32) -> (i32, i32) {
    %c0_i32 = arith.constant 0 : i32
    return %arg0, %arg1 : i32, i32
  }
  func.func @transform_4(%arg0: i32, %arg1: i32) -> (i32, i32) {
    %c0_i32 = arith.constant 0 : i32
    return %arg0, %arg1 : i32, i32
  }
}

module attributes {stable_mosaic.version = 11 : i64} {
  func.func @_mm_bias_act_kernel(%arg0: i32, %arg1: i32, %arg2: memref<128x128xbf16, #tpu.memory_space<vmem>>, %arg3: memref<128x128xbf16, #tpu.memory_space<vmem>>, %arg4: memref<1x128xf32, #tpu.memory_space<vmem>>, %arg5: memref<128x128xf32, #tpu.memory_space<vmem>>) attributes {dimension_semantics = [#tpu.dimension_semantics<parallel>, #tpu.dimension_semantics<parallel>], iteration_bounds = array<i64: 1, 1>, scalar_prefetch = 0 : i64, scratch_operands = 0 : i64, tpu.core_type = #tpu.core_type<tc>, window_params = [{transform_indices = @transform_0, window_bounds = array<i64: 128, 128>}, {transform_indices = @transform_1, window_bounds = array<i64: 128, 128>}, {transform_indices = @transform_2, window_bounds = array<i64: 1, 128>}, {transform_indices = @transform_3, window_bounds = array<i64: 128, 128>}]} {
    %c0 = arith.constant 0 : index
    %c0_0 = arith.constant 0 : index
    %0 = vector.load %arg2[%c0, %c0_0] : memref<128x128xbf16, #tpu.memory_space<vmem>>, vector<128x128xbf16>
    %c0_1 = arith.constant 0 : index
    %c0_2 = arith.constant 0 : index
    %1 = vector.load %arg3[%c0_1, %c0_2] : memref<128x128xbf16, #tpu.memory_space<vmem>>, vector<128x128xbf16>
    %cst = arith.constant dense<0.000000e+00> : vector<128x128xf32>
    %2 = tpu.matmul %0, %1, %cst {dimension_numbers = #tpu.dot_dimension_numbers<[1], [0], [0], [1], [0, 0, 1, 1], [], []>} : vector<128x128xbf16>, vector<128x128xbf16>, vector<128x128xf32> -> vector<128x128xf32>
    %c0_3 = arith.constant 0 : index
    %c0_4 = arith.constant 0 : index
    %3 = vector.load %arg4[%c0_3, %c0_4] : memref<1x128xf32, #tpu.memory_space<vmem>>, vector<1x128xf32>
    %4 = vector.broadcast %3 : vector<1x128xf32> to vector<128x128xf32>
    %5 = arith.addf %2, %4 : vector<128x128xf32>
    %cst_5 = arith.constant 0.000000e+00 : f32
    %6 = vector.broadcast %cst_5 : f32 to vector<128x128xf32>
    %7 = arith.cmpf oge, %5, %6 : vector<128x128xf32>
    %cst_6 = arith.constant 2.000000e-01 : f32
    %8 = vector.broadcast %cst_6 : f32 to vector<128x128xf32>
    %9 = arith.mulf %8, %5 : vector<128x128xf32>
    %10 = arith.select %7, %5, %9 : vector<128x128xi1>, vector<128x128xf32>
    %c0_7 = arith.constant 0 : index
    %c0_8 = arith.constant 0 : index
    %11 = vector.load %arg5[%c0_7, %c0_8] : memref<128x128xf32, #tpu.memory_space<vmem>>, vector<128x128xf32>
    tpu.vector_store %arg5[%c0_7, %c0_8], %10 {strides = array<i32>} : memref<128x128xf32, #tpu.memory_space<vmem>>, vector<128x128xf32>,
    return
  }
  func.func @transform_0(%arg0: i32, %arg1: i32) -> (i32, i32) {
    %c0_i32 = arith.constant 0 : i32
    %c0_i32_0 = arith.constant 0 : i32
    return %arg0, %c0_i32 : i32, i32
  }
  func.func @transform_1(%arg0: i32, %arg1: i32) -> (i32, i32) {
    %c0_i32 = arith.constant 0 : i32
    %c0_i32_0 = arith.constant 0 : i32
    return %c0_i32, %arg1 : i32, i32
  }
  func.func @transform_2(%arg0: i32, %arg1: i32) -> (i32, i32) {
    %c0_i32 = arith.constant 0 : i32
    %c0_i32_0 = arith.constant 0 : i32
    return %c0_i32, %arg1 : i32, i32
  }
  func.func @transform_3(%arg0: i32, %arg1: i32) -> (i32, i32) {
    %c0_i32 = arith.constant 0 : i32
    return %arg0, %arg1 : i32, i32
  }
}

module attributes {stable_mosaic.version = 11 : i64} {
  func.func @_mm_bias_act_kernel(%arg0: i32, %arg1: i32, %arg2: memref<32x128xbf16, #tpu.memory_space<vmem>>, %arg3: memref<128x128xbf16, #tpu.memory_space<vmem>>, %arg4: memref<1x128xf32, #tpu.memory_space<vmem>>, %arg5: memref<32x128xf32, #tpu.memory_space<vmem>>) attributes {dimension_semantics = [#tpu.dimension_semantics<parallel>, #tpu.dimension_semantics<parallel>], iteration_bounds = array<i64: 1, 1>, scalar_prefetch = 0 : i64, scratch_operands = 0 : i64, tpu.core_type = #tpu.core_type<tc>, window_params = [{transform_indices = @transform_0, window_bounds = array<i64: 32, 128>}, {transform_indices = @transform_1, window_bounds = array<i64: 128, 128>}, {transform_indices = @transform_2, window_bounds = array<i64: 1, 128>}, {transform_indices = @transform_3, window_bounds = array<i64: 32, 128>}]} {
    %c0 = arith.constant 0 : index
    %c0_0 = arith.constant 0 : index
    %0 = vector.load %arg2[%c0, %c0_0] : memref<32x128xbf16, #tpu.memory_space<vmem>>, vector<32x128xbf16>
    %c0_1 = arith.constant 0 : index
    %c0_2 = arith.constant 0 : index
    %1 = vector.load %arg3[%c0_1, %c0_2] : memref<128x128xbf16, #tpu.memory_space<vmem>>, vector<128x128xbf16>
    %cst = arith.constant dense<0.000000e+00> : vector<32x128xf32>
    %2 = tpu.matmul %0, %1, %cst {dimension_numbers = #tpu.dot_dimension_numbers<[1], [0], [0], [1], [0, 0, 1, 1], [], []>} : vector<32x128xbf16>, vector<128x128xbf16>, vector<32x128xf32> -> vector<32x128xf32>
    %c0_3 = arith.constant 0 : index
    %c0_4 = arith.constant 0 : index
    %3 = vector.load %arg4[%c0_3, %c0_4] : memref<1x128xf32, #tpu.memory_space<vmem>>, vector<1x128xf32>
    %4 = vector.broadcast %3 : vector<1x128xf32> to vector<32x128xf32>
    %5 = arith.addf %2, %4 : vector<32x128xf32>
    %c0_5 = arith.constant 0 : index
    %c0_6 = arith.constant 0 : index
    %6 = vector.load %arg5[%c0_5, %c0_6] : memref<32x128xf32, #tpu.memory_space<vmem>>, vector<32x128xf32>
    tpu.vector_store %arg5[%c0_5, %c0_6], %5 {strides = array<i32>} : memref<32x128xf32, #tpu.memory_space<vmem>>, vector<32x128xf32>,
    return
  }
  func.func @transform_0(%arg0: i32, %arg1: i32) -> (i32, i32) {
    %c0_i32 = arith.constant 0 : i32
    %c0_i32_0 = arith.constant 0 : i32
    return %arg0, %c0_i32 : i32, i32
  }
  func.func @transform_1(%arg0: i32, %arg1: i32) -> (i32, i32) {
    %c0_i32 = arith.constant 0 : i32
    %c0_i32_0 = arith.constant 0 : i32
    return %c0_i32, %arg1 : i32, i32
  }
  func.func @transform_2(%arg0: i32, %arg1: i32) -> (i32, i32) {
    %c0_i32 = arith.constant 0 : i32
    %c0_i32_0 = arith.constant 0 : i32
    return %c0_i32, %arg1 : i32, i32
  }
  func.func @transform_3(%arg0: i32, %arg1: i32) -> (i32, i32) {
    %c0_i32 = arith.constant 0 : i32
    return %arg0, %arg1 : i32, i32
  }
}

module attributes {stable_mosaic.version = 11 : i64} {
  func.func @_mm_bias_act_kernel(%arg0: i32, %arg1: i32, %arg2: memref<32x128xbf16, #tpu.memory_space<vmem>>, %arg3: memref<128x128xbf16, #tpu.memory_space<vmem>>, %arg4: memref<1x128xf32, #tpu.memory_space<vmem>>, %arg5: memref<32x128xf32, #tpu.memory_space<vmem>>, %arg6: memref<32x128xf32, #tpu.memory_space<vmem>>) attributes {dimension_semantics = [#tpu.dimension_semantics<parallel>, #tpu.dimension_semantics<parallel>], iteration_bounds = array<i64: 1, 1>, scalar_prefetch = 0 : i64, scratch_operands = 0 : i64, tpu.core_type = #tpu.core_type<tc>, window_params = [{transform_indices = @transform_0, window_bounds = array<i64: 32, 128>}, {transform_indices = @transform_1, window_bounds = array<i64: 128, 128>}, {transform_indices = @transform_2, window_bounds = array<i64: 1, 128>}, {transform_indices = @transform_3, window_bounds = array<i64: 32, 128>}, {transform_indices = @transform_4, window_bounds = array<i64: 32, 128>}]} {
    %c0 = arith.constant 0 : index
    %c0_0 = arith.constant 0 : index
    %0 = vector.load %arg2[%c0, %c0_0] : memref<32x128xbf16, #tpu.memory_space<vmem>>, vector<32x128xbf16>
    %c0_1 = arith.constant 0 : index
    %c0_2 = arith.constant 0 : index
    %1 = vector.load %arg3[%c0_1, %c0_2] : memref<128x128xbf16, #tpu.memory_space<vmem>>, vector<128x128xbf16>
    %cst = arith.constant dense<0.000000e+00> : vector<32x128xf32>
    %2 = tpu.matmul %0, %1, %cst {dimension_numbers = #tpu.dot_dimension_numbers<[1], [0], [0], [1], [0, 0, 1, 1], [], []>} : vector<32x128xbf16>, vector<128x128xbf16>, vector<32x128xf32> -> vector<32x128xf32>
    %c0_3 = arith.constant 0 : index
    %c0_4 = arith.constant 0 : index
    %3 = vector.load %arg4[%c0_3, %c0_4] : memref<1x128xf32, #tpu.memory_space<vmem>>, vector<1x128xf32>
    %4 = vector.broadcast %3 : vector<1x128xf32> to vector<32x128xf32>
    %5 = arith.addf %2, %4 : vector<32x128xf32>
    %c0_5 = arith.constant 0 : index
    %c0_6 = arith.constant 0 : index
    %6 = vector.load %arg5[%c0_5, %c0_6] : memref<32x128xf32, #tpu.memory_space<vmem>>, vector<32x128xf32>
    %7 = arith.addf %5, %6 : vector<32x128xf32>
    %cst_7 = arith.constant 0.000000e+00 : f32
    %8 = vector.broadcast %cst_7 : f32 to vector<32x128xf32>
    %9 = arith.cmpf oge, %7, %8 : vector<32x128xf32>
    %cst_8 = arith.constant 2.000000e-01 : f32
    %10 = vector.broadcast %cst_8 : f32 to vector<32x128xf32>
    %11 = arith.mulf %10, %7 : vector<32x128xf32>
    %12 = arith.select %9, %7, %11 : vector<32x128xi1>, vector<32x128xf32>
    %c0_9 = arith.constant 0 : index
    %c0_10 = arith.constant 0 : index
    %13 = vector.load %arg6[%c0_9, %c0_10] : memref<32x128xf32, #tpu.memory_space<vmem>>, vector<32x128xf32>
    tpu.vector_store %arg6[%c0_9, %c0_10], %12 {strides = array<i32>} : memref<32x128xf32, #tpu.memory_space<vmem>>, vector<32x128xf32>,
    return
  }
  func.func @transform_0(%arg0: i32, %arg1: i32) -> (i32, i32) {
    %c0_i32 = arith.constant 0 : i32
    %c0_i32_0 = arith.constant 0 : i32
    return %arg0, %c0_i32 : i32, i32
  }
  func.func @transform_1(%arg0: i32, %arg1: i32) -> (i32, i32) {
    %c0_i32 = arith.constant 0 : i32
    %c0_i32_0 = arith.constant 0 : i32
    return %c0_i32, %arg1 : i32, i32
  }
  func.func @transform_2(%arg0: i32, %arg1: i32) -> (i32, i32) {
    %c0_i32 = arith.constant 0 : i32
    %c0_i32_0 = arith.constant 0 : i32
    return %c0_i32, %arg1 : i32, i32
  }
  func.func @transform_3(%arg0: i32, %arg1: i32) -> (i32, i32) {
    %c0_i32 = arith.constant 0 : i32
    return %arg0, %arg1 : i32, i32
  }
  func.func @transform_4(%arg0: i32, %arg1: i32) -> (i32, i32) {
    %c0_i32 = arith.constant 0 : i32
    return %arg0, %arg1 : i32, i32
  }
}

module attributes {stable_mosaic.version = 11 : i64} {
  func.func @_mm_bias_act_kernel(%arg0: i32, %arg1: i32, %arg2: memref<32x128xbf16, #tpu.memory_space<vmem>>, %arg3: memref<128x128xbf16, #tpu.memory_space<vmem>>, %arg4: memref<1x128xf32, #tpu.memory_space<vmem>>, %arg5: memref<32x128xf32, #tpu.memory_space<vmem>>) attributes {dimension_semantics = [#tpu.dimension_semantics<parallel>, #tpu.dimension_semantics<parallel>], iteration_bounds = array<i64: 1, 1>, scalar_prefetch = 0 : i64, scratch_operands = 0 : i64, tpu.core_type = #tpu.core_type<tc>, window_params = [{transform_indices = @transform_0, window_bounds = array<i64: 32, 128>}, {transform_indices = @transform_1, window_bounds = array<i64: 128, 128>}, {transform_indices = @transform_2, window_bounds = array<i64: 1, 128>}, {transform_indices = @transform_3, window_bounds = array<i64: 32, 128>}]} {
    %c0 = arith.constant 0 : index
    %c0_0 = arith.constant 0 : index
    %0 = vector.load %arg2[%c0, %c0_0] : memref<32x128xbf16, #tpu.memory_space<vmem>>, vector<32x128xbf16>
    %c0_1 = arith.constant 0 : index
    %c0_2 = arith.constant 0 : index
    %1 = vector.load %arg3[%c0_1, %c0_2] : memref<128x128xbf16, #tpu.memory_space<vmem>>, vector<128x128xbf16>
    %cst = arith.constant dense<0.000000e+00> : vector<32x128xf32>
    %2 = tpu.matmul %0, %1, %cst {dimension_numbers = #tpu.dot_dimension_numbers<[1], [0], [0], [1], [0, 0, 1, 1], [], []>} : vector<32x128xbf16>, vector<128x128xbf16>, vector<32x128xf32> -> vector<32x128xf32>
    %c0_3 = arith.constant 0 : index
    %c0_4 = arith.constant 0 : index
    %3 = vector.load %arg4[%c0_3, %c0_4] : memref<1x128xf32, #tpu.memory_space<vmem>>, vector<1x128xf32>
    %4 = vector.broadcast %3 : vector<1x128xf32> to vector<32x128xf32>
    %5 = arith.addf %2, %4 : vector<32x128xf32>
    %cst_5 = arith.constant 0.000000e+00 : f32
    %6 = vector.broadcast %cst_5 : f32 to vector<32x128xf32>
    %7 = arith.cmpf oge, %5, %6 : vector<32x128xf32>
    %cst_6 = arith.constant 2.000000e-01 : f32
    %8 = vector.broadcast %cst_6 : f32 to vector<32x128xf32>
    %9 = arith.mulf %8, %5 : vector<32x128xf32>
    %10 = arith.select %7, %5, %9 : vector<32x128xi1>, vector<32x128xf32>
    %c0_7 = arith.constant 0 : index
    %c0_8 = arith.constant 0 : index
    %11 = vector.load %arg5[%c0_7, %c0_8] : memref<32x128xf32, #tpu.memory_space<vmem>>, vector<32x128xf32>
    tpu.vector_store %arg5[%c0_7, %c0_8], %10 {strides = array<i32>} : memref<32x128xf32, #tpu.memory_space<vmem>>, vector<32x128xf32>,
    return
  }
  func.func @transform_0(%arg0: i32, %arg1: i32) -> (i32, i32) {
    %c0_i32 = arith.constant 0 : i32
    %c0_i32_0 = arith.constant 0 : i32
    return %arg0, %c0_i32 : i32, i32
  }
  func.func @transform_1(%arg0: i32, %arg1: i32) -> (i32, i32) {
    %c0_i32 = arith.constant 0 : i32
    %c0_i32_0 = arith.constant 0 : i32
    return %c0_i32, %arg1 : i32, i32
  }
  func.func @transform_2(%arg0: i32, %arg1: i32) -> (i32, i32) {
    %c0_i32 = arith.constant 0 : i32
    %c0_i32_0 = arith.constant 0 : i32
    return %c0_i32, %arg1 : i32, i32
  }
  func.func @transform_3(%arg0: i32, %arg1: i32) -> (i32, i32) {
    %c0_i32 = arith.constant 0 : i32
    return %arg0, %arg1 : i32, i32
  }
}

module attributes {stable_mosaic.version = 11 : i64} {
  func.func @_mm_bias_act_kernel(%arg0: i32, %arg1: i32, %arg2: memref<32x384xbf16, #tpu.memory_space<vmem>>, %arg3: memref<384x128xbf16, #tpu.memory_space<vmem>>, %arg4: memref<1x128xf32, #tpu.memory_space<vmem>>, %arg5: memref<32x128xf32, #tpu.memory_space<vmem>>) attributes {dimension_semantics = [#tpu.dimension_semantics<parallel>, #tpu.dimension_semantics<parallel>], iteration_bounds = array<i64: 1, 1>, scalar_prefetch = 0 : i64, scratch_operands = 0 : i64, tpu.core_type = #tpu.core_type<tc>, window_params = [{transform_indices = @transform_0, window_bounds = array<i64: 32, 384>}, {transform_indices = @transform_1, window_bounds = array<i64: 384, 128>}, {transform_indices = @transform_2, window_bounds = array<i64: 1, 128>}, {transform_indices = @transform_3, window_bounds = array<i64: 32, 128>}]} {
    %c0 = arith.constant 0 : index
    %c0_0 = arith.constant 0 : index
    %0 = vector.load %arg2[%c0, %c0_0] : memref<32x384xbf16, #tpu.memory_space<vmem>>, vector<32x384xbf16>
    %c0_1 = arith.constant 0 : index
    %c0_2 = arith.constant 0 : index
    %1 = vector.load %arg3[%c0_1, %c0_2] : memref<384x128xbf16, #tpu.memory_space<vmem>>, vector<384x128xbf16>
    %cst = arith.constant dense<0.000000e+00> : vector<32x128xf32>
    %2 = tpu.matmul %0, %1, %cst {dimension_numbers = #tpu.dot_dimension_numbers<[1], [0], [0], [1], [0, 0, 1, 1], [], []>} : vector<32x384xbf16>, vector<384x128xbf16>, vector<32x128xf32> -> vector<32x128xf32>
    %c0_3 = arith.constant 0 : index
    %c0_4 = arith.constant 0 : index
    %3 = vector.load %arg4[%c0_3, %c0_4] : memref<1x128xf32, #tpu.memory_space<vmem>>, vector<1x128xf32>
    %4 = vector.broadcast %3 : vector<1x128xf32> to vector<32x128xf32>
    %5 = arith.addf %2, %4 : vector<32x128xf32>
    %cst_5 = arith.constant 0.000000e+00 : f32
    %6 = vector.broadcast %cst_5 : f32 to vector<32x128xf32>
    %7 = arith.cmpf oge, %5, %6 : vector<32x128xf32>
    %cst_6 = arith.constant 2.000000e-01 : f32
    %8 = vector.broadcast %cst_6 : f32 to vector<32x128xf32>
    %9 = arith.mulf %8, %5 : vector<32x128xf32>
    %10 = arith.select %7, %5, %9 : vector<32x128xi1>, vector<32x128xf32>
    %c0_7 = arith.constant 0 : index
    %c0_8 = arith.constant 0 : index
    %11 = vector.load %arg5[%c0_7, %c0_8] : memref<32x128xf32, #tpu.memory_space<vmem>>, vector<32x128xf32>
    tpu.vector_store %arg5[%c0_7, %c0_8], %10 {strides = array<i32>} : memref<32x128xf32, #tpu.memory_space<vmem>>, vector<32x128xf32>,
    return
  }
  func.func @transform_0(%arg0: i32, %arg1: i32) -> (i32, i32) {
    %c0_i32 = arith.constant 0 : i32
    %c0_i32_0 = arith.constant 0 : i32
    return %arg0, %c0_i32 : i32, i32
  }
  func.func @transform_1(%arg0: i32, %arg1: i32) -> (i32, i32) {
    %c0_i32 = arith.constant 0 : i32
    %c0_i32_0 = arith.constant 0 : i32
    return %c0_i32, %arg1 : i32, i32
  }
  func.func @transform_2(%arg0: i32, %arg1: i32) -> (i32, i32) {
    %c0_i32 = arith.constant 0 : i32
    %c0_i32_0 = arith.constant 0 : i32
    return %c0_i32, %arg1 : i32, i32
  }
  func.func @transform_3(%arg0: i32, %arg1: i32) -> (i32, i32) {
    %c0_i32 = arith.constant 0 : i32
    return %arg0, %arg1 : i32, i32
  }
}

module attributes {stable_mosaic.version = 11 : i64} {
  func.func @_mm_bias_act_kernel(%arg0: i32, %arg1: i32, %arg2: memref<16x128xbf16, #tpu.memory_space<vmem>>, %arg3: memref<128x256xbf16, #tpu.memory_space<vmem>>, %arg4: memref<1x256xf32, #tpu.memory_space<vmem>>, %arg5: memref<16x256xf32, #tpu.memory_space<vmem>>) attributes {dimension_semantics = [#tpu.dimension_semantics<parallel>, #tpu.dimension_semantics<parallel>], iteration_bounds = array<i64: 1, 1>, scalar_prefetch = 0 : i64, scratch_operands = 0 : i64, tpu.core_type = #tpu.core_type<tc>, window_params = [{transform_indices = @transform_0, window_bounds = array<i64: 16, 128>}, {transform_indices = @transform_1, window_bounds = array<i64: 128, 256>}, {transform_indices = @transform_2, window_bounds = array<i64: 1, 256>}, {transform_indices = @transform_3, window_bounds = array<i64: 16, 256>}]} {
    %c0 = arith.constant 0 : index
    %c0_0 = arith.constant 0 : index
    %0 = vector.load %arg2[%c0, %c0_0] : memref<16x128xbf16, #tpu.memory_space<vmem>>, vector<16x128xbf16>
    %c0_1 = arith.constant 0 : index
    %c0_2 = arith.constant 0 : index
    %1 = vector.load %arg3[%c0_1, %c0_2] : memref<128x256xbf16, #tpu.memory_space<vmem>>, vector<128x256xbf16>
    %cst = arith.constant dense<0.000000e+00> : vector<16x256xf32>
    %2 = tpu.matmul %0, %1, %cst {dimension_numbers = #tpu.dot_dimension_numbers<[1], [0], [0], [1], [0, 0, 1, 1], [], []>} : vector<16x128xbf16>, vector<128x256xbf16>, vector<16x256xf32> -> vector<16x256xf32>
    %c0_3 = arith.constant 0 : index
    %c0_4 = arith.constant 0 : index
    %3 = vector.load %arg4[%c0_3, %c0_4] : memref<1x256xf32, #tpu.memory_space<vmem>>, vector<1x256xf32>
    %4 = vector.broadcast %3 : vector<1x256xf32> to vector<16x256xf32>
    %5 = arith.addf %2, %4 : vector<16x256xf32>
    %c0_5 = arith.constant 0 : index
    %c0_6 = arith.constant 0 : index
    %6 = vector.load %arg5[%c0_5, %c0_6] : memref<16x256xf32, #tpu.memory_space<vmem>>, vector<16x256xf32>
    tpu.vector_store %arg5[%c0_5, %c0_6], %5 {strides = array<i32>} : memref<16x256xf32, #tpu.memory_space<vmem>>, vector<16x256xf32>,
    return
  }
  func.func @transform_0(%arg0: i32, %arg1: i32) -> (i32, i32) {
    %c0_i32 = arith.constant 0 : i32
    %c0_i32_0 = arith.constant 0 : i32
    return %arg0, %c0_i32 : i32, i32
  }
  func.func @transform_1(%arg0: i32, %arg1: i32) -> (i32, i32) {
    %c0_i32 = arith.constant 0 : i32
    %c0_i32_0 = arith.constant 0 : i32
    return %c0_i32, %arg1 : i32, i32
  }
  func.func @transform_2(%arg0: i32, %arg1: i32) -> (i32, i32) {
    %c0_i32 = arith.constant 0 : i32
    %c0_i32_0 = arith.constant 0 : i32
    return %c0_i32, %arg1 : i32, i32
  }
  func.func @transform_3(%arg0: i32, %arg1: i32) -> (i32, i32) {
    %c0_i32 = arith.constant 0 : i32
    return %arg0, %arg1 : i32, i32
  }
}

module attributes {stable_mosaic.version = 11 : i64} {
  func.func @_mm_bias_act_kernel(%arg0: i32, %arg1: i32, %arg2: memref<16x640xbf16, #tpu.memory_space<vmem>>, %arg3: memref<640x128xbf16, #tpu.memory_space<vmem>>, %arg4: memref<1x128xf32, #tpu.memory_space<vmem>>, %arg5: memref<16x128xf32, #tpu.memory_space<vmem>>) attributes {dimension_semantics = [#tpu.dimension_semantics<parallel>, #tpu.dimension_semantics<parallel>], iteration_bounds = array<i64: 1, 1>, scalar_prefetch = 0 : i64, scratch_operands = 0 : i64, tpu.core_type = #tpu.core_type<tc>, window_params = [{transform_indices = @transform_0, window_bounds = array<i64: 16, 640>}, {transform_indices = @transform_1, window_bounds = array<i64: 640, 128>}, {transform_indices = @transform_2, window_bounds = array<i64: 1, 128>}, {transform_indices = @transform_3, window_bounds = array<i64: 16, 128>}]} {
    %c0 = arith.constant 0 : index
    %c0_0 = arith.constant 0 : index
    %0 = vector.load %arg2[%c0, %c0_0] : memref<16x640xbf16, #tpu.memory_space<vmem>>, vector<16x640xbf16>
    %c0_1 = arith.constant 0 : index
    %c0_2 = arith.constant 0 : index
    %1 = vector.load %arg3[%c0_1, %c0_2] : memref<640x128xbf16, #tpu.memory_space<vmem>>, vector<640x128xbf16>
    %cst = arith.constant dense<0.000000e+00> : vector<16x128xf32>
    %2 = tpu.matmul %0, %1, %cst {dimension_numbers = #tpu.dot_dimension_numbers<[1], [0], [0], [1], [0, 0, 1, 1], [], []>} : vector<16x640xbf16>, vector<640x128xbf16>, vector<16x128xf32> -> vector<16x128xf32>
    %c0_3 = arith.constant 0 : index
    %c0_4 = arith.constant 0 : index
    %3 = vector.load %arg4[%c0_3, %c0_4] : memref<1x128xf32, #tpu.memory_space<vmem>>, vector<1x128xf32>
    %4 = vector.broadcast %3 : vector<1x128xf32> to vector<16x128xf32>
    %5 = arith.addf %2, %4 : vector<16x128xf32>
    %cst_5 = arith.constant 0.000000e+00 : f32
    %6 = vector.broadcast %cst_5 : f32 to vector<16x128xf32>
    %7 = arith.cmpf oge, %5, %6 : vector<16x128xf32>
    %cst_6 = arith.constant 2.000000e-01 : f32
    %8 = vector.broadcast %cst_6 : f32 to vector<16x128xf32>
    %9 = arith.mulf %8, %5 : vector<16x128xf32>
    %10 = arith.select %7, %5, %9 : vector<16x128xi1>, vector<16x128xf32>
    %c0_7 = arith.constant 0 : index
    %c0_8 = arith.constant 0 : index
    %11 = vector.load %arg5[%c0_7, %c0_8] : memref<16x128xf32, #tpu.memory_space<vmem>>, vector<16x128xf32>
    tpu.vector_store %arg5[%c0_7, %c0_8], %10 {strides = array<i32>} : memref<16x128xf32, #tpu.memory_space<vmem>>, vector<16x128xf32>,
    return
  }
  func.func @transform_0(%arg0: i32, %arg1: i32) -> (i32, i32) {
    %c0_i32 = arith.constant 0 : i32
    %c0_i32_0 = arith.constant 0 : i32
    return %arg0, %c0_i32 : i32, i32
  }
  func.func @transform_1(%arg0: i32, %arg1: i32) -> (i32, i32) {
    %c0_i32 = arith.constant 0 : i32
    %c0_i32_0 = arith.constant 0 : i32
    return %c0_i32, %arg1 : i32, i32
  }
  func.func @transform_2(%arg0: i32, %arg1: i32) -> (i32, i32) {
    %c0_i32 = arith.constant 0 : i32
    %c0_i32_0 = arith.constant 0 : i32
    return %c0_i32, %arg1 : i32, i32
  }
  func.func @transform_3(%arg0: i32, %arg1: i32) -> (i32, i32) {
    %c0_i32 = arith.constant 0 : i32
    return %arg0, %arg1 : i32, i32
  }
}

module attributes {stable_mosaic.version = 11 : i64} {
  func.func @_mm_bias_act_kernel(%arg0: i32, %arg1: i32, %arg2: memref<16x256xbf16, #tpu.memory_space<vmem>>, %arg3: memref<256x128xbf16, #tpu.memory_space<vmem>>, %arg4: memref<1x128xf32, #tpu.memory_space<vmem>>, %arg5: memref<16x128xf32, #tpu.memory_space<vmem>>) attributes {dimension_semantics = [#tpu.dimension_semantics<parallel>, #tpu.dimension_semantics<parallel>], iteration_bounds = array<i64: 1, 1>, scalar_prefetch = 0 : i64, scratch_operands = 0 : i64, tpu.core_type = #tpu.core_type<tc>, window_params = [{transform_indices = @transform_0, window_bounds = array<i64: 16, 256>}, {transform_indices = @transform_1, window_bounds = array<i64: 256, 128>}, {transform_indices = @transform_2, window_bounds = array<i64: 1, 128>}, {transform_indices = @transform_3, window_bounds = array<i64: 16, 128>}]} {
    %c0 = arith.constant 0 : index
    %c0_0 = arith.constant 0 : index
    %0 = vector.load %arg2[%c0, %c0_0] : memref<16x256xbf16, #tpu.memory_space<vmem>>, vector<16x256xbf16>
    %c0_1 = arith.constant 0 : index
    %c0_2 = arith.constant 0 : index
    %1 = vector.load %arg3[%c0_1, %c0_2] : memref<256x128xbf16, #tpu.memory_space<vmem>>, vector<256x128xbf16>
    %cst = arith.constant dense<0.000000e+00> : vector<16x128xf32>
    %2 = tpu.matmul %0, %1, %cst {dimension_numbers = #tpu.dot_dimension_numbers<[1], [0], [0], [1], [0, 0, 1, 1], [], []>} : vector<16x256xbf16>, vector<256x128xbf16>, vector<16x128xf32> -> vector<16x128xf32>
    %c0_3 = arith.constant 0 : index
    %c0_4 = arith.constant 0 : index
    %3 = vector.load %arg4[%c0_3, %c0_4] : memref<1x128xf32, #tpu.memory_space<vmem>>, vector<1x128xf32>
    %4 = vector.broadcast %3 : vector<1x128xf32> to vector<16x128xf32>
    %5 = arith.addf %2, %4 : vector<16x128xf32>
    %cst_5 = arith.constant 0.000000e+00 : f32
    %6 = vector.broadcast %cst_5 : f32 to vector<16x128xf32>
    %7 = arith.cmpf oge, %5, %6 : vector<16x128xf32>
    %cst_6 = arith.constant 2.000000e-01 : f32
    %8 = vector.broadcast %cst_6 : f32 to vector<16x128xf32>
    %9 = arith.mulf %8, %5 : vector<16x128xf32>
    %10 = arith.select %7, %5, %9 : vector<16x128xi1>, vector<16x128xf32>
    %c0_7 = arith.constant 0 : index
    %c0_8 = arith.constant 0 : index
    %11 = vector.load %arg5[%c0_7, %c0_8] : memref<16x128xf32, #tpu.memory_space<vmem>>, vector<16x128xf32>
    tpu.vector_store %arg5[%c0_7, %c0_8], %10 {strides = array<i32>} : memref<16x128xf32, #tpu.memory_space<vmem>>, vector<16x128xf32>,
    return
  }
  func.func @transform_0(%arg0: i32, %arg1: i32) -> (i32, i32) {
    %c0_i32 = arith.constant 0 : i32
    %c0_i32_0 = arith.constant 0 : i32
    return %arg0, %c0_i32 : i32, i32
  }
  func.func @transform_1(%arg0: i32, %arg1: i32) -> (i32, i32) {
    %c0_i32 = arith.constant 0 : i32
    %c0_i32_0 = arith.constant 0 : i32
    return %c0_i32, %arg1 : i32, i32
  }
  func.func @transform_2(%arg0: i32, %arg1: i32) -> (i32, i32) {
    %c0_i32 = arith.constant 0 : i32
    %c0_i32_0 = arith.constant 0 : i32
    return %c0_i32, %arg1 : i32, i32
  }
  func.func @transform_3(%arg0: i32, %arg1: i32) -> (i32, i32) {
    %c0_i32 = arith.constant 0 : i32
    return %arg0, %arg1 : i32, i32
  }
}

module attributes {stable_mosaic.version = 11 : i64} {
  func.func @_mm_bias_act_kernel(%arg0: i32, %arg1: i32, %arg2: memref<16x128xbf16, #tpu.memory_space<vmem>>, %arg3: memref<128x256xbf16, #tpu.memory_space<vmem>>, %arg4: memref<1x256xf32, #tpu.memory_space<vmem>>, %arg5: memref<16x256xf32, #tpu.memory_space<vmem>>, %arg6: memref<16x256xf32, #tpu.memory_space<vmem>>) attributes {dimension_semantics = [#tpu.dimension_semantics<parallel>, #tpu.dimension_semantics<parallel>], iteration_bounds = array<i64: 1, 1>, scalar_prefetch = 0 : i64, scratch_operands = 0 : i64, tpu.core_type = #tpu.core_type<tc>, window_params = [{transform_indices = @transform_0, window_bounds = array<i64: 16, 128>}, {transform_indices = @transform_1, window_bounds = array<i64: 128, 256>}, {transform_indices = @transform_2, window_bounds = array<i64: 1, 256>}, {transform_indices = @transform_3, window_bounds = array<i64: 16, 256>}, {transform_indices = @transform_4, window_bounds = array<i64: 16, 256>}]} {
    %c0 = arith.constant 0 : index
    %c0_0 = arith.constant 0 : index
    %0 = vector.load %arg2[%c0, %c0_0] : memref<16x128xbf16, #tpu.memory_space<vmem>>, vector<16x128xbf16>
    %c0_1 = arith.constant 0 : index
    %c0_2 = arith.constant 0 : index
    %1 = vector.load %arg3[%c0_1, %c0_2] : memref<128x256xbf16, #tpu.memory_space<vmem>>, vector<128x256xbf16>
    %cst = arith.constant dense<0.000000e+00> : vector<16x256xf32>
    %2 = tpu.matmul %0, %1, %cst {dimension_numbers = #tpu.dot_dimension_numbers<[1], [0], [0], [1], [0, 0, 1, 1], [], []>} : vector<16x128xbf16>, vector<128x256xbf16>, vector<16x256xf32> -> vector<16x256xf32>
    %c0_3 = arith.constant 0 : index
    %c0_4 = arith.constant 0 : index
    %3 = vector.load %arg4[%c0_3, %c0_4] : memref<1x256xf32, #tpu.memory_space<vmem>>, vector<1x256xf32>
    %4 = vector.broadcast %3 : vector<1x256xf32> to vector<16x256xf32>
    %5 = arith.addf %2, %4 : vector<16x256xf32>
    %c0_5 = arith.constant 0 : index
    %c0_6 = arith.constant 0 : index
    %6 = vector.load %arg5[%c0_5, %c0_6] : memref<16x256xf32, #tpu.memory_space<vmem>>, vector<16x256xf32>
    %7 = arith.addf %5, %6 : vector<16x256xf32>
    %cst_7 = arith.constant 0.000000e+00 : f32
    %8 = vector.broadcast %cst_7 : f32 to vector<16x256xf32>
    %9 = arith.cmpf oge, %7, %8 : vector<16x256xf32>
    %cst_8 = arith.constant 2.000000e-01 : f32
    %10 = vector.broadcast %cst_8 : f32 to vector<16x256xf32>
    %11 = arith.mulf %10, %7 : vector<16x256xf32>
    %12 = arith.select %9, %7, %11 : vector<16x256xi1>, vector<16x256xf32>
    %c0_9 = arith.constant 0 : index
    %c0_10 = arith.constant 0 : index
    %13 = vector.load %arg6[%c0_9, %c0_10] : memref<16x256xf32, #tpu.memory_space<vmem>>, vector<16x256xf32>
    tpu.vector_store %arg6[%c0_9, %c0_10], %12 {strides = array<i32>} : memref<16x256xf32, #tpu.memory_space<vmem>>, vector<16x256xf32>,
    return
  }
  func.func @transform_0(%arg0: i32, %arg1: i32) -> (i32, i32) {
    %c0_i32 = arith.constant 0 : i32
    %c0_i32_0 = arith.constant 0 : i32
    return %arg0, %c0_i32 : i32, i32
  }
  func.func @transform_1(%arg0: i32, %arg1: i32) -> (i32, i32) {
    %c0_i32 = arith.constant 0 : i32
    %c0_i32_0 = arith.constant 0 : i32
    return %c0_i32, %arg1 : i32, i32
  }
  func.func @transform_2(%arg0: i32, %arg1: i32) -> (i32, i32) {
    %c0_i32 = arith.constant 0 : i32
    %c0_i32_0 = arith.constant 0 : i32
    return %c0_i32, %arg1 : i32, i32
  }
  func.func @transform_3(%arg0: i32, %arg1: i32) -> (i32, i32) {
    %c0_i32 = arith.constant 0 : i32
    return %arg0, %arg1 : i32, i32
  }
  func.func @transform_4(%arg0: i32, %arg1: i32) -> (i32, i32) {
    %c0_i32 = arith.constant 0 : i32
    return %arg0, %arg1 : i32, i32
  }
}

module attributes {stable_mosaic.version = 11 : i64} {
  func.func @_mm_bias_act_kernel(%arg0: i32, %arg1: i32, %arg2: memref<16x256xbf16, #tpu.memory_space<vmem>>, %arg3: memref<256x256xbf16, #tpu.memory_space<vmem>>, %arg4: memref<1x256xf32, #tpu.memory_space<vmem>>, %arg5: memref<16x256xf32, #tpu.memory_space<vmem>>) attributes {dimension_semantics = [#tpu.dimension_semantics<parallel>, #tpu.dimension_semantics<parallel>], iteration_bounds = array<i64: 1, 2>, scalar_prefetch = 0 : i64, scratch_operands = 0 : i64, tpu.core_type = #tpu.core_type<tc>, window_params = [{transform_indices = @transform_0, window_bounds = array<i64: 16, 256>}, {transform_indices = @transform_1, window_bounds = array<i64: 256, 256>}, {transform_indices = @transform_2, window_bounds = array<i64: 1, 256>}, {transform_indices = @transform_3, window_bounds = array<i64: 16, 256>}]} {
    %c0 = arith.constant 0 : index
    %c0_0 = arith.constant 0 : index
    %0 = vector.load %arg2[%c0, %c0_0] : memref<16x256xbf16, #tpu.memory_space<vmem>>, vector<16x256xbf16>
    %c0_1 = arith.constant 0 : index
    %c0_2 = arith.constant 0 : index
    %1 = vector.load %arg3[%c0_1, %c0_2] : memref<256x256xbf16, #tpu.memory_space<vmem>>, vector<256x256xbf16>
    %cst = arith.constant dense<0.000000e+00> : vector<16x256xf32>
    %2 = tpu.matmul %0, %1, %cst {dimension_numbers = #tpu.dot_dimension_numbers<[1], [0], [0], [1], [0, 0, 1, 1], [], []>} : vector<16x256xbf16>, vector<256x256xbf16>, vector<16x256xf32> -> vector<16x256xf32>
    %c0_3 = arith.constant 0 : index
    %c0_4 = arith.constant 0 : index
    %3 = vector.load %arg4[%c0_3, %c0_4] : memref<1x256xf32, #tpu.memory_space<vmem>>, vector<1x256xf32>
    %4 = vector.broadcast %3 : vector<1x256xf32> to vector<16x256xf32>
    %5 = arith.addf %2, %4 : vector<16x256xf32>
    %c0_5 = arith.constant 0 : index
    %c0_6 = arith.constant 0 : index
    %6 = vector.load %arg5[%c0_5, %c0_6] : memref<16x256xf32, #tpu.memory_space<vmem>>, vector<16x256xf32>
    tpu.vector_store %arg5[%c0_5, %c0_6], %5 {strides = array<i32>} : memref<16x256xf32, #tpu.memory_space<vmem>>, vector<16x256xf32>,
    return
  }
  func.func @transform_0(%arg0: i32, %arg1: i32) -> (i32, i32) {
    %c0_i32 = arith.constant 0 : i32
    %c0_i32_0 = arith.constant 0 : i32
    return %arg0, %c0_i32 : i32, i32
  }
  func.func @transform_1(%arg0: i32, %arg1: i32) -> (i32, i32) {
    %c0_i32 = arith.constant 0 : i32
    %c0_i32_0 = arith.constant 0 : i32
    return %c0_i32, %arg1 : i32, i32
  }
  func.func @transform_2(%arg0: i32, %arg1: i32) -> (i32, i32) {
    %c0_i32 = arith.constant 0 : i32
    %c0_i32_0 = arith.constant 0 : i32
    return %c0_i32, %arg1 : i32, i32
  }
  func.func @transform_3(%arg0: i32, %arg1: i32) -> (i32, i32) {
    %c0_i32 = arith.constant 0 : i32
    return %arg0, %arg1 : i32, i32
  }
}

module attributes {stable_mosaic.version = 11 : i64} {
  func.func @_mm_bias_act_kernel(%arg0: i32, %arg1: i32, %arg2: memref<16x1152xbf16, #tpu.memory_space<vmem>>, %arg3: memref<1152x128xbf16, #tpu.memory_space<vmem>>, %arg4: memref<1x128xf32, #tpu.memory_space<vmem>>, %arg5: memref<16x128xf32, #tpu.memory_space<vmem>>) attributes {dimension_semantics = [#tpu.dimension_semantics<parallel>, #tpu.dimension_semantics<parallel>], iteration_bounds = array<i64: 1, 1>, scalar_prefetch = 0 : i64, scratch_operands = 0 : i64, tpu.core_type = #tpu.core_type<tc>, window_params = [{transform_indices = @transform_0, window_bounds = array<i64: 16, 1152>}, {transform_indices = @transform_1, window_bounds = array<i64: 1152, 128>}, {transform_indices = @transform_2, window_bounds = array<i64: 1, 128>}, {transform_indices = @transform_3, window_bounds = array<i64: 16, 128>}]} {
    %c0 = arith.constant 0 : index
    %c0_0 = arith.constant 0 : index
    %0 = vector.load %arg2[%c0, %c0_0] : memref<16x1152xbf16, #tpu.memory_space<vmem>>, vector<16x1152xbf16>
    %c0_1 = arith.constant 0 : index
    %c0_2 = arith.constant 0 : index
    %1 = vector.load %arg3[%c0_1, %c0_2] : memref<1152x128xbf16, #tpu.memory_space<vmem>>, vector<1152x128xbf16>
    %cst = arith.constant dense<0.000000e+00> : vector<16x128xf32>
    %2 = tpu.matmul %0, %1, %cst {dimension_numbers = #tpu.dot_dimension_numbers<[1], [0], [0], [1], [0, 0, 1, 1], [], []>} : vector<16x1152xbf16>, vector<1152x128xbf16>, vector<16x128xf32> -> vector<16x128xf32>
    %c0_3 = arith.constant 0 : index
    %c0_4 = arith.constant 0 : index
    %3 = vector.load %arg4[%c0_3, %c0_4] : memref<1x128xf32, #tpu.memory_space<vmem>>, vector<1x128xf32>
    %4 = vector.broadcast %3 : vector<1x128xf32> to vector<16x128xf32>
    %5 = arith.addf %2, %4 : vector<16x128xf32>
    %cst_5 = arith.constant 0.000000e+00 : f32
    %6 = vector.broadcast %cst_5 : f32 to vector<16x128xf32>
    %7 = arith.cmpf oge, %5, %6 : vector<16x128xf32>
    %cst_6 = arith.constant 2.000000e-01 : f32
    %8 = vector.broadcast %cst_6 : f32 to vector<16x128xf32>
    %9 = arith.mulf %8, %5 : vector<16x128xf32>
    %10 = arith.select %7, %5, %9 : vector<16x128xi1>, vector<16x128xf32>
    %c0_7 = arith.constant 0 : index
    %c0_8 = arith.constant 0 : index
    %11 = vector.load %arg5[%c0_7, %c0_8] : memref<16x128xf32, #tpu.memory_space<vmem>>, vector<16x128xf32>
    tpu.vector_store %arg5[%c0_7, %c0_8], %10 {strides = array<i32>} : memref<16x128xf32, #tpu.memory_space<vmem>>, vector<16x128xf32>,
    return
  }
  func.func @transform_0(%arg0: i32, %arg1: i32) -> (i32, i32) {
    %c0_i32 = arith.constant 0 : i32
    %c0_i32_0 = arith.constant 0 : i32
    return %arg0, %c0_i32 : i32, i32
  }
  func.func @transform_1(%arg0: i32, %arg1: i32) -> (i32, i32) {
    %c0_i32 = arith.constant 0 : i32
    %c0_i32_0 = arith.constant 0 : i32
    return %c0_i32, %arg1 : i32, i32
  }
  func.func @transform_2(%arg0: i32, %arg1: i32) -> (i32, i32) {
    %c0_i32 = arith.constant 0 : i32
    %c0_i32_0 = arith.constant 0 : i32
    return %c0_i32, %arg1 : i32, i32
  }
  func.func @transform_3(%arg0: i32, %arg1: i32) -> (i32, i32) {
    %c0_i32 = arith.constant 0 : i32
    return %arg0, %arg1 : i32, i32
  }
}

module attributes {stable_mosaic.version = 11 : i64} {
  func.func @_mm_bias_act_kernel(%arg0: i32, %arg1: i32, %arg2: memref<16x512xbf16, #tpu.memory_space<vmem>>, %arg3: memref<512x128xbf16, #tpu.memory_space<vmem>>, %arg4: memref<1x128xf32, #tpu.memory_space<vmem>>, %arg5: memref<16x128xf32, #tpu.memory_space<vmem>>) attributes {dimension_semantics = [#tpu.dimension_semantics<parallel>, #tpu.dimension_semantics<parallel>], iteration_bounds = array<i64: 1, 1>, scalar_prefetch = 0 : i64, scratch_operands = 0 : i64, tpu.core_type = #tpu.core_type<tc>, window_params = [{transform_indices = @transform_0, window_bounds = array<i64: 16, 512>}, {transform_indices = @transform_1, window_bounds = array<i64: 512, 128>}, {transform_indices = @transform_2, window_bounds = array<i64: 1, 128>}, {transform_indices = @transform_3, window_bounds = array<i64: 16, 128>}]} {
    %c0 = arith.constant 0 : index
    %c0_0 = arith.constant 0 : index
    %0 = vector.load %arg2[%c0, %c0_0] : memref<16x512xbf16, #tpu.memory_space<vmem>>, vector<16x512xbf16>
    %c0_1 = arith.constant 0 : index
    %c0_2 = arith.constant 0 : index
    %1 = vector.load %arg3[%c0_1, %c0_2] : memref<512x128xbf16, #tpu.memory_space<vmem>>, vector<512x128xbf16>
    %cst = arith.constant dense<0.000000e+00> : vector<16x128xf32>
    %2 = tpu.matmul %0, %1, %cst {dimension_numbers = #tpu.dot_dimension_numbers<[1], [0], [0], [1], [0, 0, 1, 1], [], []>} : vector<16x512xbf16>, vector<512x128xbf16>, vector<16x128xf32> -> vector<16x128xf32>
    %c0_3 = arith.constant 0 : index
    %c0_4 = arith.constant 0 : index
    %3 = vector.load %arg4[%c0_3, %c0_4] : memref<1x128xf32, #tpu.memory_space<vmem>>, vector<1x128xf32>
    %4 = vector.broadcast %3 : vector<1x128xf32> to vector<16x128xf32>
    %5 = arith.addf %2, %4 : vector<16x128xf32>
    %cst_5 = arith.constant 0.000000e+00 : f32
    %6 = vector.broadcast %cst_5 : f32 to vector<16x128xf32>
    %7 = arith.cmpf oge, %5, %6 : vector<16x128xf32>
    %cst_6 = arith.constant 2.000000e-01 : f32
    %8 = vector.broadcast %cst_6 : f32 to vector<16x128xf32>
    %9 = arith.mulf %8, %5 : vector<16x128xf32>
    %10 = arith.select %7, %5, %9 : vector<16x128xi1>, vector<16x128xf32>
    %c0_7 = arith.constant 0 : index
    %c0_8 = arith.constant 0 : index
    %11 = vector.load %arg5[%c0_7, %c0_8] : memref<16x128xf32, #tpu.memory_space<vmem>>, vector<16x128xf32>
    tpu.vector_store %arg5[%c0_7, %c0_8], %10 {strides = array<i32>} : memref<16x128xf32, #tpu.memory_space<vmem>>, vector<16x128xf32>,
    return
  }
  func.func @transform_0(%arg0: i32, %arg1: i32) -> (i32, i32) {
    %c0_i32 = arith.constant 0 : i32
    %c0_i32_0 = arith.constant 0 : i32
    return %arg0, %c0_i32 : i32, i32
  }
  func.func @transform_1(%arg0: i32, %arg1: i32) -> (i32, i32) {
    %c0_i32 = arith.constant 0 : i32
    %c0_i32_0 = arith.constant 0 : i32
    return %c0_i32, %arg1 : i32, i32
  }
  func.func @transform_2(%arg0: i32, %arg1: i32) -> (i32, i32) {
    %c0_i32 = arith.constant 0 : i32
    %c0_i32_0 = arith.constant 0 : i32
    return %c0_i32, %arg1 : i32, i32
  }
  func.func @transform_3(%arg0: i32, %arg1: i32) -> (i32, i32) {
    %c0_i32 = arith.constant 0 : i32
    return %arg0, %arg1 : i32, i32
  }
}

module attributes {stable_mosaic.version = 11 : i64} {
  func.func @_mm_bias_act_kernel(%arg0: i32, %arg1: i32, %arg2: memref<16x128xbf16, #tpu.memory_space<vmem>>, %arg3: memref<128x256xbf16, #tpu.memory_space<vmem>>, %arg4: memref<1x256xf32, #tpu.memory_space<vmem>>, %arg5: memref<16x256xf32, #tpu.memory_space<vmem>>, %arg6: memref<16x256xf32, #tpu.memory_space<vmem>>) attributes {dimension_semantics = [#tpu.dimension_semantics<parallel>, #tpu.dimension_semantics<parallel>], iteration_bounds = array<i64: 1, 2>, scalar_prefetch = 0 : i64, scratch_operands = 0 : i64, tpu.core_type = #tpu.core_type<tc>, window_params = [{transform_indices = @transform_0, window_bounds = array<i64: 16, 128>}, {transform_indices = @transform_1, window_bounds = array<i64: 128, 256>}, {transform_indices = @transform_2, window_bounds = array<i64: 1, 256>}, {transform_indices = @transform_3, window_bounds = array<i64: 16, 256>}, {transform_indices = @transform_4, window_bounds = array<i64: 16, 256>}]} {
    %c0 = arith.constant 0 : index
    %c0_0 = arith.constant 0 : index
    %0 = vector.load %arg2[%c0, %c0_0] : memref<16x128xbf16, #tpu.memory_space<vmem>>, vector<16x128xbf16>
    %c0_1 = arith.constant 0 : index
    %c0_2 = arith.constant 0 : index
    %1 = vector.load %arg3[%c0_1, %c0_2] : memref<128x256xbf16, #tpu.memory_space<vmem>>, vector<128x256xbf16>
    %cst = arith.constant dense<0.000000e+00> : vector<16x256xf32>
    %2 = tpu.matmul %0, %1, %cst {dimension_numbers = #tpu.dot_dimension_numbers<[1], [0], [0], [1], [0, 0, 1, 1], [], []>} : vector<16x128xbf16>, vector<128x256xbf16>, vector<16x256xf32> -> vector<16x256xf32>
    %c0_3 = arith.constant 0 : index
    %c0_4 = arith.constant 0 : index
    %3 = vector.load %arg4[%c0_3, %c0_4] : memref<1x256xf32, #tpu.memory_space<vmem>>, vector<1x256xf32>
    %4 = vector.broadcast %3 : vector<1x256xf32> to vector<16x256xf32>
    %5 = arith.addf %2, %4 : vector<16x256xf32>
    %c0_5 = arith.constant 0 : index
    %c0_6 = arith.constant 0 : index
    %6 = vector.load %arg5[%c0_5, %c0_6] : memref<16x256xf32, #tpu.memory_space<vmem>>, vector<16x256xf32>
    %7 = arith.addf %5, %6 : vector<16x256xf32>
    %cst_7 = arith.constant 0.000000e+00 : f32
    %8 = vector.broadcast %cst_7 : f32 to vector<16x256xf32>
    %9 = arith.cmpf oge, %7, %8 : vector<16x256xf32>
    %cst_8 = arith.constant 2.000000e-01 : f32
    %10 = vector.broadcast %cst_8 : f32 to vector<16x256xf32>
    %11 = arith.mulf %10, %7 : vector<16x256xf32>
    %12 = arith.select %9, %7, %11 : vector<16x256xi1>, vector<16x256xf32>
    %c0_9 = arith.constant 0 : index
    %c0_10 = arith.constant 0 : index
    %13 = vector.load %arg6[%c0_9, %c0_10] : memref<16x256xf32, #tpu.memory_space<vmem>>, vector<16x256xf32>
    tpu.vector_store %arg6[%c0_9, %c0_10], %12 {strides = array<i32>} : memref<16x256xf32, #tpu.memory_space<vmem>>, vector<16x256xf32>,
    return
  }
  func.func @transform_0(%arg0: i32, %arg1: i32) -> (i32, i32) {
    %c0_i32 = arith.constant 0 : i32
    %c0_i32_0 = arith.constant 0 : i32
    return %arg0, %c0_i32 : i32, i32
  }
  func.func @transform_1(%arg0: i32, %arg1: i32) -> (i32, i32) {
    %c0_i32 = arith.constant 0 : i32
    %c0_i32_0 = arith.constant 0 : i32
    return %c0_i32, %arg1 : i32, i32
  }
  func.func @transform_2(%arg0: i32, %arg1: i32) -> (i32, i32) {
    %c0_i32 = arith.constant 0 : i32
    %c0_i32_0 = arith.constant 0 : i32
    return %c0_i32, %arg1 : i32, i32
  }
  func.func @transform_3(%arg0: i32, %arg1: i32) -> (i32, i32) {
    %c0_i32 = arith.constant 0 : i32
    return %arg0, %arg1 : i32, i32
  }
  func.func @transform_4(%arg0: i32, %arg1: i32) -> (i32, i32) {
    %c0_i32 = arith.constant 0 : i32
    return %arg0, %arg1 : i32, i32
  }
}

module attributes {stable_mosaic.version = 11 : i64} {
  func.func @_mm_bias_act_kernel(%arg0: i32, %arg1: i32, %arg2: memref<16x512xbf16, #tpu.memory_space<vmem>>, %arg3: memref<512x256xbf16, #tpu.memory_space<vmem>>, %arg4: memref<1x256xf32, #tpu.memory_space<vmem>>, %arg5: memref<16x256xf32, #tpu.memory_space<vmem>>) attributes {dimension_semantics = [#tpu.dimension_semantics<parallel>, #tpu.dimension_semantics<parallel>], iteration_bounds = array<i64: 1, 4>, scalar_prefetch = 0 : i64, scratch_operands = 0 : i64, tpu.core_type = #tpu.core_type<tc>, window_params = [{transform_indices = @transform_0, window_bounds = array<i64: 16, 512>}, {transform_indices = @transform_1, window_bounds = array<i64: 512, 256>}, {transform_indices = @transform_2, window_bounds = array<i64: 1, 256>}, {transform_indices = @transform_3, window_bounds = array<i64: 16, 256>}]} {
    %c0 = arith.constant 0 : index
    %c0_0 = arith.constant 0 : index
    %0 = vector.load %arg2[%c0, %c0_0] : memref<16x512xbf16, #tpu.memory_space<vmem>>, vector<16x512xbf16>
    %c0_1 = arith.constant 0 : index
    %c0_2 = arith.constant 0 : index
    %1 = vector.load %arg3[%c0_1, %c0_2] : memref<512x256xbf16, #tpu.memory_space<vmem>>, vector<512x256xbf16>
    %cst = arith.constant dense<0.000000e+00> : vector<16x256xf32>
    %2 = tpu.matmul %0, %1, %cst {dimension_numbers = #tpu.dot_dimension_numbers<[1], [0], [0], [1], [0, 0, 1, 1], [], []>} : vector<16x512xbf16>, vector<512x256xbf16>, vector<16x256xf32> -> vector<16x256xf32>
    %c0_3 = arith.constant 0 : index
    %c0_4 = arith.constant 0 : index
    %3 = vector.load %arg4[%c0_3, %c0_4] : memref<1x256xf32, #tpu.memory_space<vmem>>, vector<1x256xf32>
    %4 = vector.broadcast %3 : vector<1x256xf32> to vector<16x256xf32>
    %5 = arith.addf %2, %4 : vector<16x256xf32>
    %c0_5 = arith.constant 0 : index
    %c0_6 = arith.constant 0 : index
    %6 = vector.load %arg5[%c0_5, %c0_6] : memref<16x256xf32, #tpu.memory_space<vmem>>, vector<16x256xf32>
    tpu.vector_store %arg5[%c0_5, %c0_6], %5 {strides = array<i32>} : memref<16x256xf32, #tpu.memory_space<vmem>>, vector<16x256xf32>,
    return
  }
  func.func @transform_0(%arg0: i32, %arg1: i32) -> (i32, i32) {
    %c0_i32 = arith.constant 0 : i32
    %c0_i32_0 = arith.constant 0 : i32
    return %arg0, %c0_i32 : i32, i32
  }
  func.func @transform_1(%arg0: i32, %arg1: i32) -> (i32, i32) {
    %c0_i32 = arith.constant 0 : i32
    %c0_i32_0 = arith.constant 0 : i32
    return %c0_i32, %arg1 : i32, i32
  }
  func.func @transform_2(%arg0: i32, %arg1: i32) -> (i32, i32) {
    %c0_i32 = arith.constant 0 : i32
    %c0_i32_0 = arith.constant 0 : i32
    return %c0_i32, %arg1 : i32, i32
  }
  func.func @transform_3(%arg0: i32, %arg1: i32) -> (i32, i32) {
    %c0_i32 = arith.constant 0 : i32
    return %arg0, %arg1 : i32, i32
  }
}

module attributes {stable_mosaic.version = 11 : i64} {
  func.func @_mm_bias_act_kernel(%arg0: i32, %arg1: i32, %arg2: memref<16x512xbf16, #tpu.memory_space<vmem>>, %arg3: memref<512x256xbf16, #tpu.memory_space<vmem>>, %arg4: memref<1x256xf32, #tpu.memory_space<vmem>>, %arg5: memref<16x256xf32, #tpu.memory_space<vmem>>) attributes {dimension_semantics = [#tpu.dimension_semantics<parallel>, #tpu.dimension_semantics<parallel>], iteration_bounds = array<i64: 1, 2>, scalar_prefetch = 0 : i64, scratch_operands = 0 : i64, tpu.core_type = #tpu.core_type<tc>, window_params = [{transform_indices = @transform_0, window_bounds = array<i64: 16, 512>}, {transform_indices = @transform_1, window_bounds = array<i64: 512, 256>}, {transform_indices = @transform_2, window_bounds = array<i64: 1, 256>}, {transform_indices = @transform_3, window_bounds = array<i64: 16, 256>}]} {
    %c0 = arith.constant 0 : index
    %c0_0 = arith.constant 0 : index
    %0 = vector.load %arg2[%c0, %c0_0] : memref<16x512xbf16, #tpu.memory_space<vmem>>, vector<16x512xbf16>
    %c0_1 = arith.constant 0 : index
    %c0_2 = arith.constant 0 : index
    %1 = vector.load %arg3[%c0_1, %c0_2] : memref<512x256xbf16, #tpu.memory_space<vmem>>, vector<512x256xbf16>
    %cst = arith.constant dense<0.000000e+00> : vector<16x256xf32>
    %2 = tpu.matmul %0, %1, %cst {dimension_numbers = #tpu.dot_dimension_numbers<[1], [0], [0], [1], [0, 0, 1, 1], [], []>} : vector<16x512xbf16>, vector<512x256xbf16>, vector<16x256xf32> -> vector<16x256xf32>
    %c0_3 = arith.constant 0 : index
    %c0_4 = arith.constant 0 : index
    %3 = vector.load %arg4[%c0_3, %c0_4] : memref<1x256xf32, #tpu.memory_space<vmem>>, vector<1x256xf32>
    %4 = vector.broadcast %3 : vector<1x256xf32> to vector<16x256xf32>
    %5 = arith.addf %2, %4 : vector<16x256xf32>
    %c0_5 = arith.constant 0 : index
    %c0_6 = arith.constant 0 : index
    %6 = vector.load %arg5[%c0_5, %c0_6] : memref<16x256xf32, #tpu.memory_space<vmem>>, vector<16x256xf32>
    tpu.vector_store %arg5[%c0_5, %c0_6], %5 {strides = array<i32>} : memref<16x256xf32, #tpu.memory_space<vmem>>, vector<16x256xf32>,
    return
  }
  func.func @transform_0(%arg0: i32, %arg1: i32) -> (i32, i32) {
    %c0_i32 = arith.constant 0 : i32
    %c0_i32_0 = arith.constant 0 : i32
    return %arg0, %c0_i32 : i32, i32
  }
  func.func @transform_1(%arg0: i32, %arg1: i32) -> (i32, i32) {
    %c0_i32 = arith.constant 0 : i32
    %c0_i32_0 = arith.constant 0 : i32
    return %c0_i32, %arg1 : i32, i32
  }
  func.func @transform_2(%arg0: i32, %arg1: i32) -> (i32, i32) {
    %c0_i32 = arith.constant 0 : i32
    %c0_i32_0 = arith.constant 0 : i32
    return %c0_i32, %arg1 : i32, i32
  }
  func.func @transform_3(%arg0: i32, %arg1: i32) -> (i32, i32) {
    %c0_i32 = arith.constant 0 : i32
    return %arg0, %arg1 : i32, i32
  }
}

</mosaic_0001>

<llo_original>
// kernel: _lambda_.55
$region0: #{_lambda_.55}
  #allocation0 [shape = 'u32[]', space=smem, size = 0x4, offset = 0x4, fixed_abs, tag = 'smem constant byte address 0x4 - core index']
  #allocation1 [shape = 'u32[144,128]{1,0:T(1,128)}', space=vmem, size = 0x12000, scoped, tag = 'internal scratch']
  %s0 = inlined_call_operand.vmem [shape: bf16[512,128], index: 0, kind: input, shape index: {}]
  %s1 = inlined_call_operand.vmem [shape: bf16[128,128], index: 1, kind: input, shape index: {}]
  %s2 = inlined_call_operand.vmem [shape: f32[1,128], index: 2, kind: input, shape index: {}]
  %s3 = inlined_call_operand.vmem [shape: f32[512,128], index: 3, kind: output, shape index: {}]
  %s4 = sld [smem:[#allocation0]]
  $region45: #{_lambda_.55} parent=0
    _
  %s6 = ssub.s32 1, %s4
  %s7 = scalar_select 0, %s6, %s4
  loop: start=0, step=1, limit=6
  $region2: #{_lambda_.55} parent=0 // loop_pre_header
    _
  $region3: #{_lambda_.55} parent=0 // loop_header
    %s9 = sphi 0, %s13
    %p10 = scmp.ge.s32.totalorder %s9, 6
    %s16 = sphi 0, %s28
    %s17 = sphi 0, %s24
    %s18 = sphi 0, %s16
    %s19 = sphi 0, %s17
    %s20 = sphi 0, %s18
    %s21 = sphi 0, %s19
    %s31 = sphi 0, %s33
    %s34 = sphi 0, %s31
    %s35 = sphi 0, %s34
    %s51 = sphi 0, %s35
    %s57 = sphi 0, %s59
    %s60 = sphi 0, %s57
    %s61 = sphi 0, %s60
    %s77 = sphi 0, %s61
    %s83 = sphi 0, %s85
    %s86 = sphi 0, %s83
    %s87 = sphi 0, %s86
    %s103 = sphi 0, %s87
    %s111 = sphi 0, %s113
    %s114 = sphi 0, %s111
    %s115 = sphi 0, %s114
    %s131 = sphi 0, %s115
  $region4: #{_lambda_.55} parent=0 // loop_header_branch
    %12 = sbr.rel (%p10) target = $region8
  $region5: #{_lambda_.55} parent=0 // loop_body
    %s14 = ssub.s32 %s9, 1
    %s15 = ssub.s32 %s9, 2
    %s22 = sadd.s32 1, %s17
    %p23 = scmp.ge.s32.totalorder %s22, 1
    %s24 = scalar_select %p23, 0, %s22
    %s25 = sadd.s32 1, %s16
    %s26 = scalar_select %p23, %s25, %s16
    %p27 = scmp.ge.s32.totalorder %s26, 4
    %s28 = scalar_select %p27, 0, %s26
    %s29 = ssub.s32 %s16, %s28
    %p30 = scmp.eq.s32.totalorder %s29, 0
    %s32 = sadd.s32 %s31, 1
    %s33 = scalar_select %p30, %s31, %s32
    %p36 = pneg %p30
    %p37 = scmp.eq.s32.totalorder %s9, 3
    %p38 = por %p36, %p37
    %p39 = scmp.ne.s32.totalorder %s31, %s34
    %p40 = scmp.eq.s32.totalorder %s9, 0
    %p41 = por %p39, %p40
    %p42 = scmp.ne.s32.totalorder %s31, %s34
    %p43 = scmp.eq.s32.totalorder %s14, 3
    %p44 = por %p42, %p43
    %p45 = scmp.ne.s32.totalorder %s34, %s35
    %p46 = scmp.eq.s32.totalorder %s14, 0
    %p47 = por %p45, %p46
    %p48 = scmp.ne.s32.totalorder %s34, %s35
    %p49 = scmp.eq.s32.totalorder %s15, 3
    %p50 = por %p48, %p49
    %p52 = scmp.ne.s32.totalorder %s35, %s51
    %p53 = scmp.eq.s32.totalorder %s15, 0
    %p54 = por %p52, %p53
    %s55 = ssub.s32 %s17, %s24
    %p56 = scmp.eq.s32.totalorder %s55, 0
    %s58 = sadd.s32 %s57, 1
    %s59 = scalar_select %p56, %s57, %s58
    %p62 = pneg %p56
    %p63 = scmp.eq.s32.totalorder %s9, 3
    %p64 = por %p62, %p63
    %p65 = scmp.ne.s32.totalorder %s57, %s60
    %p66 = scmp.eq.s32.totalorder %s9, 0
    %p67 = por %p65, %p66
    %p68 = scmp.ne.s32.totalorder %s57, %s60
    %p69 = scmp.eq.s32.totalorder %s14, 3
    %p70 = por %p68, %p69
    %p71 = scmp.ne.s32.totalorder %s60, %s61
    %p72 = scmp.eq.s32.totalorder %s14, 0
    %p73 = por %p71, %p72
    %p74 = scmp.ne.s32.totalorder %s60, %s61
    %p75 = scmp.eq.s32.totalorder %s15, 3
    %p76 = por %p74, %p75
    %p78 = scmp.ne.s32.totalorder %s61, %s77
    %p79 = scmp.eq.s32.totalorder %s15, 0
    %p80 = por %p78, %p79
    %s81 = ssub.s32 %s17, %s24
    %p82 = scmp.eq.s32.totalorder %s81, 0
    %s84 = sadd.s32 %s83, 1
    %s85 = scalar_select %p82, %s83, %s84
    %p88 = pneg %p82
    %p89 = scmp.eq.s32.totalorder %s9, 3
    %p90 = por %p88, %p89
    %p91 = scmp.ne.s32.totalorder %s83, %s86
    %p92 = scmp.eq.s32.totalorder %s9, 0
    %p93 = por %p91, %p92
    %p94 = scmp.ne.s32.totalorder %s83, %s86
    %p95 = scmp.eq.s32.totalorder %s14, 3
    %p96 = por %p94, %p95
    %p97 = scmp.ne.s32.totalorder %s86, %s87
    %p98 = scmp.eq.s32.totalorder %s14, 0
    %p99 = por %p97, %p98
    %p100 = scmp.ne.s32.totalorder %s86, %s87
    %p101 = scmp.eq.s32.totalorder %s15, 3
    %p102 = por %p100, %p101
    %p104 = scmp.ne.s32.totalorder %s87, %s103
    %p105 = scmp.eq.s32.totalorder %s15, 0
    %p106 = por %p104, %p105
    %s107 = ssub.s32 %s16, %s28
    %s108 = ssub.s32 %s17, %s24
    %s109 = sor.u32 %s107, %s108
    %p110 = scmp.eq.s32.totalorder %s109, 0
    %s112 = sadd.s32 %s111, 1
    %s113 = scalar_select %p110, %s111, %s112
    %p116 = pneg %p110
    %p117 = scmp.eq.s32.totalorder %s9, 3
    %p118 = por %p116, %p117
    %p119 = scmp.ne.s32.totalorder %s111, %s114
    %p120 = scmp.eq.s32.totalorder %s9, 0
    %p121 = por %p119, %p120
    %p122 = scmp.ne.s32.totalorder %s111, %s114
    %p123 = scmp.eq.s32.totalorder %s14, 3
    %p124 = por %p122, %p123
    %p125 = scmp.ne.s32.totalorder %s114, %s115
    %p126 = scmp.eq.s32.totalorder %s14, 0
    %p127 = por %p125, %p126
    %p128 = scmp.ne.s32.totalorder %s114, %s115
    %p129 = scmp.eq.s32.totalorder %s15, 3
    %p130 = por %p128, %p129
    %p132 = scmp.ne.s32.totalorder %s115, %s131
    %p133 = scmp.eq.s32.totalorder %s15, 0
    %p134 = por %p132, %p133
    %p135 = scmp.le.s32.totalorder 1, %s9
    %p136 = scmp.lt.s32.totalorder %s9, 5
    %p137 = pnand %p135, %p136
    %p138 = pneg %p137
    // Predicated region
    $region9: #{_lambda_.55} parent=5 // pred_check
      _
    $region10: #{_lambda_.55} parent=5 // pred_check_branch
      %140 = sbr.rel (%p137) target = $region12
    $region11: #{_lambda_.55} parent=5 // pred_region
      %s141 = ssub.s32 %s9, 1
      // Predicated region
      $region13: #{_lambda_.55} parent=11 // pred_check
        %p142 = pneg %p73
      $region14: #{_lambda_.55} parent=11 // pred_check_branch
        %144 = sbr.rel (%p142) target = $region16
      $region15: #{_lambda_.55} parent=11 // pred_region
        %p145 = scmp.lt.s32.totalorder %s19, 0
        %s146 = scalar_select %p145, %s19, 0
        %s147 = smul.addr %s146, 4
        %s148 = scalar_lea.vmem %s1, %s147
      $region16: #{_lambda_.55} parent=11 // pred_fallthru
        _
      // Predicated region
      $region17: #{_lambda_.55} parent=11 // pred_check
        %p149 = pneg %p99
      $region18: #{_lambda_.55} parent=11 // pred_check_branch
        %151 = sbr.rel (%p149) target = $region20
      $region19: #{_lambda_.55} parent=11 // pred_region
        %p152 = scmp.lt.s32.totalorder %s19, 0
        %s153 = scalar_select %p152, %s19, 0
        %s154 = scalar_lea.vmem %s2, %s153
      $region20: #{_lambda_.55} parent=11 // pred_fallthru
        _
    $region12: #{_lambda_.55} parent=5 // pred_fallthru
      _
    %p155 = scmp.lt.s32.totalorder %s9, 4
    // Predicated region
    $region21: #{_lambda_.55} parent=5 // pred_check
      %p156 = pneg %p155
    $region22: #{_lambda_.55} parent=5 // pred_check_branch
      %158 = sbr.rel (%p156) target = $region24
    $region23: #{_lambda_.55} parent=5 // pred_region
      // Predicated region
      $region25: #{_lambda_.55} parent=23 // pred_check
        %p159 = pneg %p41
      $region26: #{_lambda_.55} parent=23 // pred_check_branch
        %161 = sbr.rel (%p159) target = $region28
      $region27: #{_lambda_.55} parent=23 // pred_region
        %s162 = smul.u32 16, %s16
        %p163 = scmp.lt.s32.totalorder %s162, 63
        %s164 = scalar_select %p163, %s162, 63
        %s165 = smul.addr %s164, 4
        %s166 = scalar_lea.vmem %s0, %s165
        %s167 = smul.u32 16, %s16
      $region28: #{_lambda_.55} parent=23 // pred_fallthru
        _
    $region24: #{_lambda_.55} parent=5 // pred_fallthru
      _
    %p168 = scmp.le.s32.totalorder 1, %s9
    %p169 = scmp.lt.s32.totalorder %s9, 5
    %p170 = pnand %p168, %p169
    %p171 = pneg %p170
    // Predicated region
    $region29: #{_lambda_.55} parent=5 // pred_check
      _
    $region30: #{_lambda_.55} parent=5 // pred_check_branch
      %173 = sbr.rel (%p170) target = $region32
    $region31: #{_lambda_.55} parent=5 // pred_region
      %s174 = ssub.s32 %s9, 1
      %s175 = smul.u32 16, %s18
      %p176 = scmp.lt.s32.totalorder %s175, 63
      %s177 = scalar_select %p176, %s175, 63
      %s178 = smul.addr %s177, 4
      %s179 = scalar_lea.vmem %s0, %s178
      %p180 = pneg %p47
      %p181 = pneg %p44
      %p182 = scmp.lt.s32.totalorder %s19, 0
      %s183 = scalar_select %p182, %s19, 0
      %s184 = smul.addr %s183, 4
      %s185 = scalar_lea.vmem %s1, %s184
      %p186 = pneg %p73
      %p187 = pneg %p70
      %p188 = scmp.lt.s32.totalorder %s19, 0
      %s189 = scalar_select %p188, %s19, 0
      %s190 = scalar_lea.vmem %s2, %s189
      %p191 = pneg %p99
      %p192 = pneg %p96
      %p193 = pneg %p127
      %p194 = pneg %p124
      %s195 = smul.u32 16, %s18
      %p196 = scmp.lt.s32.totalorder %s195, 63
      %s197 = scalar_select %p196, %s195, 63
      %p198 = scmp.lt.s32.totalorder %s19, 0
      %s199 = scalar_select %p198, %s19, 0
      %s200 = sadd.s32 %s199, %s197
      %s201 = smul.addr %s200, 8
      %s202 = scalar_lea.vmem %s3, %s201
      %s203 = smul.u32 16, %s18
      %p204 = scmp.lt.s32.totalorder %s203, 63
      %s205 = scalar_select %p204, %s203, 63
      %s206 = smul.addr %s205, 4
      %s207 = scalar_lea.vmem %s0, %s206
      %s208 = smul.u32 16, %s18
      %p209 = scmp.lt.s32.totalorder %s19, 0
      %s210 = scalar_select %p209, %s19, 0
      %s211 = smul.addr %s210, 4
      %s212 = scalar_lea.vmem %s1, %s211
      %p213 = scmp.lt.s32.totalorder %s19, 0
      %s214 = scalar_select %p213, %s19, 0
      %s215 = scalar_lea.vmem %s2, %s214
      %s216 = smul.u32 16, %s18
      %p217 = scmp.lt.s32.totalorder %s216, 63
      %s218 = scalar_select %p217, %s216, 63
      %p219 = scmp.lt.s32.totalorder %s19, 0
      %s220 = scalar_select %p219, %s19, 0
      %s221 = sadd.s32 %s220, %s218
      %s222 = smul.addr %s221, 8
      %s223 = scalar_lea.vmem %s3, %s222
      %s224 = smul.u32 16, %s18
      %v226 = vld [vmem:[%s207] sm:$0xf]
      %v227 = vld [vmem:[%s207 + $0x4] sm:$0xf]
      %v228 = vld [vmem:[%s207 + $0x8] sm:$0xf]
      %v229 = vld [vmem:[%s207 + $0xc] sm:$0xf]
      %v230 = vld [vmem:[%s207 + $0x10] sm:$0xf]
      %v231 = vld [vmem:[%s207 + $0x14] sm:$0xf]
      %v232 = vld [vmem:[%s207 + $0x18] sm:$0xf]
      %v233 = vld [vmem:[%s207 + $0x1c] sm:$0xf]
      %v234 = vld [vmem:[%s207 + $0x20] sm:$0xf]
      %v235 = vld [vmem:[%s207 + $0x24] sm:$0xf]
      %v236 = vld [vmem:[%s207 + $0x28] sm:$0xf]
      %v237 = vld [vmem:[%s207 + $0x2c] sm:$0xf]
      %v238 = vld [vmem:[%s207 + $0x30] sm:$0xf]
      %v239 = vld [vmem:[%s207 + $0x34] sm:$0xf]
      %v240 = vld [vmem:[%s207 + $0x38] sm:$0xf]
      %v241 = vld [vmem:[%s207 + $0x3c] sm:$0xf]
      %v242 = vld [vmem:[%s212] sm:$0xf]
      %v243 = vld [vmem:[%s212 + $0x4] sm:$0xf]
      %v244 = vld [vmem:[%s212 + $0x8] sm:$0xf]
      %v245 = vld [vmem:[%s212 + $0xc] sm:$0xf]
      %v246 = vld [vmem:[%s212 + $0x10] sm:$0xf]
      %v247 = vld [vmem:[%s212 + $0x14] sm:$0xf]
      %v248 = vld [vmem:[%s212 + $0x18] sm:$0xf]
      %v249 = vld [vmem:[%s212 + $0x1c] sm:$0xf]
      %v250 = vld [vmem:[%s212 + $0x20] sm:$0xf]
      %v251 = vld [vmem:[%s212 + $0x24] sm:$0xf]
      %v252 = vld [vmem:[%s212 + $0x28] sm:$0xf]
      %v253 = vld [vmem:[%s212 + $0x2c] sm:$0xf]
      %v254 = vld [vmem:[%s212 + $0x30] sm:$0xf]
      %v255 = vld [vmem:[%s212 + $0x34] sm:$0xf]
      %v256 = vld [vmem:[%s212 + $0x38] sm:$0xf]
      %v257 = vld [vmem:[%s212 + $0x3c] sm:$0xf]
      %v258 = vld [vmem:[%s215] sm:$0x1]
      %v260 = vlaneseq
      %v261 = vshrl.u32 %v260, 7
      %v262 = vsub.s32 0, %v261
      %v263 = vrot.slane %v258, %v262
      %v281 = vunpack.c.l.b16 %v226
      %v282 = vunpack.c.l.b16 %v227
      %v283 = vunpack.c.l.b16 %v228
      %v284 = vunpack.c.l.b16 %v229
      %v285 = vunpack.c.l.b16 %v230
      %v286 = vunpack.c.l.b16 %v231
      %v287 = vunpack.c.l.b16 %v232
      %v288 = vunpack.c.l.b16 %v233
      %v289 = vunpack.c.l.b16 %v234
      %v290 = vunpack.c.l.b16 %v235
      %v291 = vunpack.c.l.b16 %v236
      %v292 = vunpack.c.l.b16 %v237
      %v293 = vunpack.c.l.b16 %v238
      %v294 = vunpack.c.l.b16 %v239
      %v295 = vunpack.c.l.b16 %v240
      %v296 = vunpack.c.l.b16 %v241
      %v297 = vpack.c.b16 %v282, %v281
      %v298 = vpack.c.b16 %v284, %v283
      %v299 = vpack.c.b16 %v286, %v285
      %v300 = vpack.c.b16 %v288, %v287
      %v301 = vpack.c.b16 %v290, %v289
      %v302 = vpack.c.b16 %v292, %v291
      %v303 = vpack.c.b16 %v294, %v293
      %v304 = vpack.c.b16 %v296, %v295
      %v329 = vunpack.c.l.b16 %v242
      %v330 = vunpack.c.l.b16 %v243
      %v331 = vunpack.c.l.b16 %v244
      %v332 = vunpack.c.l.b16 %v245
      %v333 = vunpack.c.l.b16 %v246
      %v334 = vunpack.c.l.b16 %v247
      %v335 = vunpack.c.l.b16 %v248
      %v336 = vunpack.c.l.b16 %v249
      %v337 = vunpack.c.l.b16 %v250
      %v338 = vunpack.c.l.b16 %v251
      %v339 = vunpack.c.l.b16 %v252
      %v340 = vunpack.c.l.b16 %v253
      %v341 = vunpack.c.l.b16 %v254
      %v342 = vunpack.c.l.b16 %v255
      %v343 = vunpack.c.l.b16 %v256
      %v344 = vunpack.c.l.b16 %v257
      %v345 = vpack.c.b16 %v330, %v329
      %v346 = vpack.c.b16 %v332, %v331
      %v347 = vpack.c.b16 %v334, %v333
      %v348 = vpack.c.b16 %v336, %v335
      %v349 = vpack.c.b16 %v338, %v337
      %v350 = vpack.c.b16 %v340, %v339
      %v351 = vpack.c.b16 %v342, %v341
      %v352 = vpack.c.b16 %v344, %v343
      %361 = vmatprep.subr.bf16.mxu0 0
      %362 = vmatpush1.bf16.msra.mxu0 %v345
      %363 = vmatprep.subr.bf16.mxu0 0
      %364 = vmatpush1.bf16.msra.mxu0 %v346
      %365 = vmatprep.subr.bf16.mxu0 0
      %366 = vmatpush1.bf16.msra.mxu0 %v347
      %367 = vmatprep.subr.bf16.mxu0 0
      %368 = vmatpush1.bf16.msra.mxu0 %v348
      %369 = vmatprep.subr.bf16.mxu0 0
      %370 = vmatpush1.bf16.msra.mxu0 %v349
      %371 = vmatprep.subr.bf16.mxu0 0
      %372 = vmatpush1.bf16.msra.mxu0 %v350
      %373 = vmatprep.subr.bf16.mxu0 0
      %374 = vmatpush1.bf16.msra.mxu0 %v351
      %375 = vmatprep.subr.bf16.mxu0 0
      %376 = vmatpush1.bf16.msra.mxu0 %v352
      %377 = vmatprep.subr.bf16.mxu0 0
      %378 = vmatpush1.bf16.msra.mxu0 0
      %379 = vmatprep.subr.bf16.mxu0 0
      %380 = vmatpush1.bf16.msra.mxu0 0
      %381 = vmatprep.subr.bf16.mxu0 0
      %382 = vmatpush1.bf16.msra.mxu0 0
      %383 = vmatprep.subr.bf16.mxu0 0
      %384 = vmatpush1.bf16.msra.mxu0 0
      %385 = vmatprep.subr.bf16.mxu0 0
      %386 = vmatpush1.bf16.msra.mxu0 0
      %387 = vmatprep.subr.bf16.mxu0 0
      %388 = vmatpush1.bf16.msra.mxu0 0
      %389 = vmatprep.subr.bf16.mxu0 0
      %390 = vmatpush1.bf16.msra.mxu0 0
      %391 = vmatprep.subr.bf16.mxu0 0
      %392 = vmatpush1.bf16.msra.mxu0 0
      %393 = vmatprep.mubr.bf16.mxu0 0
      %394 = vmatmul.mubr.bf16.gmra.mrb[0].mxu0 %v297
      %v395 = vpop.f32.mrb[0].mxu0
      %v396 = vadd.f32 %v263, %v395
      %v397 = vpop.f32.mrb[0].mxu0
      %v398 = vpop.f32.mrb[0].mxu0
      %v399 = vadd.f32 %v263, %v398
      %v400 = vpop.f32.mrb[0].mxu0
      %401 = vmatprep.mubr.bf16.mxu0 0
      %402 = vmatmul.mubr.bf16.gmra.mrb[0].mxu0 %v298
      %v403 = vpop.f32.mrb[0].mxu0
      %v404 = vadd.f32 %v263, %v403
      %v405 = vpop.f32.mrb[0].mxu0
      %v406 = vpop.f32.mrb[0].mxu0
      %v407 = vadd.f32 %v263, %v406
      %v408 = vpop.f32.mrb[0].mxu0
      %409 = vmatprep.mubr.bf16.mxu0 0
      %410 = vmatmul.mubr.bf16.gmra.mrb[0].mxu0 %v299
      %v411 = vpop.f32.mrb[0].mxu0
      %v412 = vadd.f32 %v263, %v411
      %v413 = vpop.f32.mrb[0].mxu0
      %v414 = vpop.f32.mrb[0].mxu0
      %v415 = vadd.f32 %v263, %v414
      %v416 = vpop.f32.mrb[0].mxu0
      %417 = vmatprep.mubr.bf16.mxu0 0
      %418 = vmatmul.mubr.bf16.gmra.mrb[0].mxu0 %v300
      %v419 = vpop.f32.mrb[0].mxu0
      %v420 = vadd.f32 %v263, %v419
      %v421 = vpop.f32.mrb[0].mxu0
      %v422 = vpop.f32.mrb[0].mxu0
      %v423 = vadd.f32 %v263, %v422
      %v424 = vpop.f32.mrb[0].mxu0
      %425 = vmatprep.mubr.bf16.mxu0 0
      %426 = vmatmul.mubr.bf16.gmra.mrb[0].mxu0 %v301
      %v427 = vpop.f32.mrb[0].mxu0
      %v428 = vadd.f32 %v263, %v427
      %v429 = vpop.f32.mrb[0].mxu0
      %v430 = vpop.f32.mrb[0].mxu0
      %v431 = vadd.f32 %v263, %v430
      %v432 = vpop.f32.mrb[0].mxu0
      %433 = vmatprep.mubr.bf16.mxu0 0
      %434 = vmatmul.mubr.bf16.gmra.mrb[0].mxu0 %v302
      %v435 = vpop.f32.mrb[0].mxu0
      %v436 = vadd.f32 %v263, %v435
      %v437 = vpop.f32.mrb[0].mxu0
      %v438 = vpop.f32.mrb[0].mxu0
      %v439 = vadd.f32 %v263, %v438
      %v440 = vpop.f32.mrb[0].mxu0
      %441 = vmatprep.mubr.bf16.mxu0 0
      %442 = vmatmul.mubr.bf16.gmra.mrb[0].mxu0 %v303
      %v443 = vpop.f32.mrb[0].mxu0
      %v444 = vadd.f32 %v263, %v443
      %v445 = vpop.f32.mrb[0].mxu0
      %v446 = vpop.f32.mrb[0].mxu0
      %v447 = vadd.f32 %v263, %v446
      %v448 = vpop.f32.mrb[0].mxu0
      %449 = vmatprep.mubr.bf16.mxu0 0
      %450 = vmatmul.mubr.bf16.gmra.mrb[0].mxu0 %v304
      %v451 = vpop.f32.mrb[0].mxu0
      %v452 = vadd.f32 %v263, %v451
      %v453 = vpop.f32.mrb[0].mxu0
      %v454 = vpop.f32.mrb[0].mxu0
      %v455 = vadd.f32 %v263, %v454
      %v456 = vpop.f32.mrb[0].mxu0
      %457 = vdwg.mxu0
      %vm458 = vcmp.ge.f32.partialorder %v396, 0.0
      %vm459 = vcmp.ge.f32.partialorder %v399, 0.0
      %vm460 = vcmp.ge.f32.partialorder %v404, 0.0
      %vm461 = vcmp.ge.f32.partialorder %v407, 0.0
      %vm462 = vcmp.ge.f32.partialorder %v412, 0.0
      %vm463 = vcmp.ge.f32.partialorder %v415, 0.0
      %vm464 = vcmp.ge.f32.partialorder %v420, 0.0
      %vm465 = vcmp.ge.f32.partialorder %v423, 0.0
      %vm466 = vcmp.ge.f32.partialorder %v428, 0.0
      %vm467 = vcmp.ge.f32.partialorder %v431, 0.0
      %vm468 = vcmp.ge.f32.partialorder %v436, 0.0
      %vm469 = vcmp.ge.f32.partialorder %v439, 0.0
      %vm470 = vcmp.ge.f32.partialorder %v444, 0.0
      %vm471 = vcmp.ge.f32.partialorder %v447, 0.0
      %vm472 = vcmp.ge.f32.partialorder %v452, 0.0
      %vm473 = vcmp.ge.f32.partialorder %v455, 0.0
      %v474 = vmul.f32 %v396, 0.2
      %v475 = vmul.f32 %v399, 0.2
      %v476 = vmul.f32 %v404, 0.2
      %v477 = vmul.f32 %v407, 0.2
      %v478 = vmul.f32 %v412, 0.2
      %v479 = vmul.f32 %v415, 0.2
      %v480 = vmul.f32 %v420, 0.2
      %v481 = vmul.f32 %v423, 0.2
      %v482 = vmul.f32 %v428, 0.2
      %v483 = vmul.f32 %v431, 0.2
      %v484 = vmul.f32 %v436, 0.2
      %v485 = vmul.f32 %v439, 0.2
      %v486 = vmul.f32 %v444, 0.2
      %v487 = vmul.f32 %v447, 0.2
      %v488 = vmul.f32 %v452, 0.2
      %v489 = vmul.f32 %v455, 0.2
      %v490 = vsel %vm458, %v396, %v474
      %v491 = vsel %vm459, %v399, %v475
      %v492 = vsel %vm460, %v404, %v476
      %v493 = vsel %vm461, %v407, %v477
      %v494 = vsel %vm462, %v412, %v478
      %v495 = vsel %vm463, %v415, %v479
      %v496 = vsel %vm464, %v420, %v480
      %v497 = vsel %vm465, %v423, %v481
      %v498 = vsel %vm466, %v428, %v482
      %v499 = vsel %vm467, %v431, %v483
      %v500 = vsel %vm468, %v436, %v484
      %v501 = vsel %vm469, %v439, %v485
      %v502 = vsel %vm470, %v444, %v486
      %v503 = vsel %vm471, %v447, %v487
      %v504 = vsel %vm472, %v452, %v488
      %v505 = vsel %vm473, %v455, %v489
      %506 = vst [vmem:[%s223] sm:$0xff] %v490
      %507 = vst [vmem:[%s223 + $0x8] sm:$0xff] %v491
      %508 = vst [vmem:[%s223 + $0x10] sm:$0xff] %v492
      %509 = vst [vmem:[%s223 + $0x18] sm:$0xff] %v493
      %510 = vst [vmem:[%s223 + $0x20] sm:$0xff] %v494
      %511 = vst [vmem:[%s223 + $0x28] sm:$0xff] %v495
      %512 = vst [vmem:[%s223 + $0x30] sm:$0xff] %v496
      %513 = vst [vmem:[%s223 + $0x38] sm:$0xff] %v497
      %514 = vst [vmem:[%s223 + $0x40] sm:$0xff] %v498
      %515 = vst [vmem:[%s223 + $0x48] sm:$0xff] %v499
      %516 = vst [vmem:[%s223 + $0x50] sm:$0xff] %v500
      %517 = vst [vmem:[%s223 + $0x58] sm:$0xff] %v501
      %518 = vst [vmem:[%s223 + $0x60] sm:$0xff] %v502
      %519 = vst [vmem:[%s223 + $0x68] sm:$0xff] %v503
      %520 = vst [vmem:[%s223 + $0x70] sm:$0xff] %v504
      %521 = vst [vmem:[%s223 + $0x78] sm:$0xff] %v505
      %s522 = smul.u32 16, %s18
      %p523 = scmp.lt.s32.totalorder %s522, 63
      %s524 = scalar_select %p523, %s522, 63
      %p525 = scmp.lt.s32.totalorder %s19, 0
      %s526 = scalar_select %p525, %s19, 0
      %s527 = sadd.s32 %s526, %s524
      %s528 = smul.addr %s527, 8
      %s529 = scalar_lea.vmem %s3, %s528
      // Predicated region
      $region33: #{_lambda_.55} parent=31 // pred_check
        %p530 = pneg %p124
      $region34: #{_lambda_.55} parent=31 // pred_check_branch
        %532 = sbr.rel (%p530) target = $region36
      $region35: #{_lambda_.55} parent=31 // pred_region
        %s533 = smul.u32 16, %s18
      $region36: #{_lambda_.55} parent=31 // pred_fallthru
        _
    $region32: #{_lambda_.55} parent=5 // pred_fallthru
      _
    %p534 = scmp.le.s32.totalorder 2, %s9
    // Predicated region
    $region37: #{_lambda_.55} parent=5 // pred_check
      %p535 = pneg %p534
    $region38: #{_lambda_.55} parent=5 // pred_check_branch
      %537 = sbr.rel (%p535) target = $region40
    $region39: #{_lambda_.55} parent=5 // pred_region
      %s538 = ssub.s32 %s9, 2
      // Predicated region
      $region41: #{_lambda_.55} parent=39 // pred_check
        %p539 = pneg %p130
      $region42: #{_lambda_.55} parent=39 // pred_check_branch
        %541 = sbr.rel (%p539) target = $region44
      $region43: #{_lambda_.55} parent=39 // pred_region
        %s542 = smul.u32 16, %s20
        %p543 = scmp.lt.s32.totalorder %s542, 63
        %s544 = scalar_select %p543, %s542, 63
        %p545 = scmp.lt.s32.totalorder %s21, 0
        %s546 = scalar_select %p545, %s21, 0
        %s547 = sadd.s32 %s546, %s544
        %s548 = smul.addr %s547, 8
        %s549 = scalar_lea.vmem %s3, %s548
      $region44: #{_lambda_.55} parent=39 // pred_fallthru
        _
    $region40: #{_lambda_.55} parent=5 // pred_fallthru
      _
  $region6: #{_lambda_.55} parent=0 // loop_footer
    %s13 = sadd.s32 1, %s9
  $region7: #{_lambda_.55} parent=0 // loop_footer_branch
    %8 = sbr.rel target = $region3
  $region8: #{_lambda_.55} parent=0 // loop_exit
    _

// kernel: _lambda_.58
$region0: #{_lambda_.58}
  #allocation0 [shape = 'u32[]', space=smem, size = 0x4, offset = 0x4, fixed_abs, tag = 'smem constant byte address 0x4 - core index']
  #allocation1 [shape = 'u32[144,128]{1,0:T(1,128)}', space=vmem, size = 0x12000, scoped, tag = 'internal scratch']
  %s0 = inlined_call_operand.vmem [shape: bf16[512,128], index: 0, kind: input, shape index: {}]
  %s1 = inlined_call_operand.vmem [shape: bf16[128,128], index: 1, kind: input, shape index: {}]
  %s2 = inlined_call_operand.vmem [shape: f32[1,128], index: 2, kind: input, shape index: {}]
  %s3 = inlined_call_operand.vmem [shape: f32[512,128], index: 3, kind: input, shape index: {}]
  %s4 = inlined_call_operand.vmem [shape: f32[512,128], index: 4, kind: output, shape index: {}]
  %s5 = sld [smem:[#allocation0]]
  $region49: #{_lambda_.58} parent=0
    _
  %s7 = ssub.s32 1, %s5
  %s8 = scalar_select 0, %s7, %s5
  loop: start=0, step=1, limit=6
  $region2: #{_lambda_.58} parent=0 // loop_pre_header
    _
  $region3: #{_lambda_.58} parent=0 // loop_header
    %s10 = sphi 0, %s14
    %p11 = scmp.ge.s32.totalorder %s10, 6
    %s17 = sphi 0, %s29
    %s18 = sphi 0, %s25
    %s19 = sphi 0, %s17
    %s20 = sphi 0, %s18
    %s21 = sphi 0, %s19
    %s22 = sphi 0, %s20
    %s32 = sphi 0, %s34
    %s35 = sphi 0, %s32
    %s36 = sphi 0, %s35
    %s52 = sphi 0, %s36
    %s58 = sphi 0, %s60
    %s61 = sphi 0, %s58
    %s62 = sphi 0, %s61
    %s78 = sphi 0, %s62
    %s84 = sphi 0, %s86
    %s87 = sphi 0, %s84
    %s88 = sphi 0, %s87
    %s104 = sphi 0, %s88
    %s112 = sphi 0, %s114
    %s115 = sphi 0, %s112
    %s116 = sphi 0, %s115
    %s132 = sphi 0, %s116
    %s140 = sphi 0, %s142
    %s143 = sphi 0, %s140
    %s144 = sphi 0, %s143
    %s160 = sphi 0, %s144
  $region4: #{_lambda_.58} parent=0 // loop_header_branch
    %13 = sbr.rel (%p11) target = $region8
  $region5: #{_lambda_.58} parent=0 // loop_body
    %s15 = ssub.s32 %s10, 1
    %s16 = ssub.s32 %s10, 2
    %s23 = sadd.s32 1, %s18
    %p24 = scmp.ge.s32.totalorder %s23, 1
    %s25 = scalar_select %p24, 0, %s23
    %s26 = sadd.s32 1, %s17
    %s27 = scalar_select %p24, %s26, %s17
    %p28 = scmp.ge.s32.totalorder %s27, 4
    %s29 = scalar_select %p28, 0, %s27
    %s30 = ssub.s32 %s17, %s29
    %p31 = scmp.eq.s32.totalorder %s30, 0
    %s33 = sadd.s32 %s32, 1
    %s34 = scalar_select %p31, %s32, %s33
    %p37 = pneg %p31
    %p38 = scmp.eq.s32.totalorder %s10, 3
    %p39 = por %p37, %p38
    %p40 = scmp.ne.s32.totalorder %s32, %s35
    %p41 = scmp.eq.s32.totalorder %s10, 0
    %p42 = por %p40, %p41
    %p43 = scmp.ne.s32.totalorder %s32, %s35
    %p44 = scmp.eq.s32.totalorder %s15, 3
    %p45 = por %p43, %p44
    %p46 = scmp.ne.s32.totalorder %s35, %s36
    %p47 = scmp.eq.s32.totalorder %s15, 0
    %p48 = por %p46, %p47
    %p49 = scmp.ne.s32.totalorder %s35, %s36
    %p50 = scmp.eq.s32.totalorder %s16, 3
    %p51 = por %p49, %p50
    %p53 = scmp.ne.s32.totalorder %s36, %s52
    %p54 = scmp.eq.s32.totalorder %s16, 0
    %p55 = por %p53, %p54
    %s56 = ssub.s32 %s18, %s25
    %p57 = scmp.eq.s32.totalorder %s56, 0
    %s59 = sadd.s32 %s58, 1
    %s60 = scalar_select %p57, %s58, %s59
    %p63 = pneg %p57
    %p64 = scmp.eq.s32.totalorder %s10, 3
    %p65 = por %p63, %p64
    %p66 = scmp.ne.s32.totalorder %s58, %s61
    %p67 = scmp.eq.s32.totalorder %s10, 0
    %p68 = por %p66, %p67
    %p69 = scmp.ne.s32.totalorder %s58, %s61
    %p70 = scmp.eq.s32.totalorder %s15, 3
    %p71 = por %p69, %p70
    %p72 = scmp.ne.s32.totalorder %s61, %s62
    %p73 = scmp.eq.s32.totalorder %s15, 0
    %p74 = por %p72, %p73
    %p75 = scmp.ne.s32.totalorder %s61, %s62
    %p76 = scmp.eq.s32.totalorder %s16, 3
    %p77 = por %p75, %p76
    %p79 = scmp.ne.s32.totalorder %s62, %s78
    %p80 = scmp.eq.s32.totalorder %s16, 0
    %p81 = por %p79, %p80
    %s82 = ssub.s32 %s18, %s25
    %p83 = scmp.eq.s32.totalorder %s82, 0
    %s85 = sadd.s32 %s84, 1
    %s86 = scalar_select %p83, %s84, %s85
    %p89 = pneg %p83
    %p90 = scmp.eq.s32.totalorder %s10, 3
    %p91 = por %p89, %p90
    %p92 = scmp.ne.s32.totalorder %s84, %s87
    %p93 = scmp.eq.s32.totalorder %s10, 0
    %p94 = por %p92, %p93
    %p95 = scmp.ne.s32.totalorder %s84, %s87
    %p96 = scmp.eq.s32.totalorder %s15, 3
    %p97 = por %p95, %p96
    %p98 = scmp.ne.s32.totalorder %s87, %s88
    %p99 = scmp.eq.s32.totalorder %s15, 0
    %p100 = por %p98, %p99
    %p101 = scmp.ne.s32.totalorder %s87, %s88
    %p102 = scmp.eq.s32.totalorder %s16, 3
    %p103 = por %p101, %p102
    %p105 = scmp.ne.s32.totalorder %s88, %s104
    %p106 = scmp.eq.s32.totalorder %s16, 0
    %p107 = por %p105, %p106
    %s108 = ssub.s32 %s17, %s29
    %s109 = ssub.s32 %s18, %s25
    %s110 = sor.u32 %s108, %s109
    %p111 = scmp.eq.s32.totalorder %s110, 0
    %s113 = sadd.s32 %s112, 1
    %s114 = scalar_select %p111, %s112, %s113
    %p117 = pneg %p111
    %p118 = scmp.eq.s32.totalorder %s10, 3
    %p119 = por %p117, %p118
    %p120 = scmp.ne.s32.totalorder %s112, %s115
    %p121 = scmp.eq.s32.totalorder %s10, 0
    %p122 = por %p120, %p121
    %p123 = scmp.ne.s32.totalorder %s112, %s115
    %p124 = scmp.eq.s32.totalorder %s15, 3
    %p125 = por %p123, %p124
    %p126 = scmp.ne.s32.totalorder %s115, %s116
    %p127 = scmp.eq.s32.totalorder %s15, 0
    %p128 = por %p126, %p127
    %p129 = scmp.ne.s32.totalorder %s115, %s116
    %p130 = scmp.eq.s32.totalorder %s16, 3
    %p131 = por %p129, %p130
    %p133 = scmp.ne.s32.totalorder %s116, %s132
    %p134 = scmp.eq.s32.totalorder %s16, 0
    %p135 = por %p133, %p134
    %s136 = ssub.s32 %s17, %s29
    %s137 = ssub.s32 %s18, %s25
    %s138 = sor.u32 %s136, %s137
    %p139 = scmp.eq.s32.totalorder %s138, 0
    %s141 = sadd.s32 %s140, 1
    %s142 = scalar_select %p139, %s140, %s141
    %p145 = pneg %p139
    %p146 = scmp.eq.s32.totalorder %s10, 3
    %p147 = por %p145, %p146
    %p148 = scmp.ne.s32.totalorder %s140, %s143
    %p149 = scmp.eq.s32.totalorder %s10, 0
    %p150 = por %p148, %p149
    %p151 = scmp.ne.s32.totalorder %s140, %s143
    %p152 = scmp.eq.s32.totalorder %s15, 3
    %p153 = por %p151, %p152
    %p154 = scmp.ne.s32.totalorder %s143, %s144
    %p155 = scmp.eq.s32.totalorder %s15, 0
    %p156 = por %p154, %p155
    %p157 = scmp.ne.s32.totalorder %s143, %s144
    %p158 = scmp.eq.s32.totalorder %s16, 3
    %p159 = por %p157, %p158
    %p161 = scmp.ne.s32.totalorder %s144, %s160
    %p162 = scmp.eq.s32.totalorder %s16, 0
    %p163 = por %p161, %p162
    %p164 = scmp.le.s32.totalorder 1, %s10
    %p165 = scmp.lt.s32.totalorder %s10, 5
    %p166 = pnand %p164, %p165
    %p167 = pneg %p166
    // Predicated region
    $region9: #{_lambda_.58} parent=5 // pred_check
      _
    $region10: #{_lambda_.58} parent=5 // pred_check_branch
      %169 = sbr.rel (%p166) target = $region12
    $region11: #{_lambda_.58} parent=5 // pred_region
      %s170 = ssub.s32 %s10, 1
      // Predicated region
      $region13: #{_lambda_.58} parent=11 // pred_check
        %p171 = pneg %p74
      $region14: #{_lambda_.58} parent=11 // pred_check_branch
        %173 = sbr.rel (%p171) target = $region16
      $region15: #{_lambda_.58} parent=11 // pred_region
        %p174 = scmp.lt.s32.totalorder %s20, 0
        %s175 = scalar_select %p174, %s20, 0
        %s176 = smul.addr %s175, 4
        %s177 = scalar_lea.vmem %s1, %s176
      $region16: #{_lambda_.58} parent=11 // pred_fallthru
        _
      // Predicated region
      $region17: #{_lambda_.58} parent=11 // pred_check
        %p178 = pneg %p100
      $region18: #{_lambda_.58} parent=11 // pred_check_branch
        %180 = sbr.rel (%p178) target = $region20
      $region19: #{_lambda_.58} parent=11 // pred_region
        %p181 = scmp.lt.s32.totalorder %s20, 0
        %s182 = scalar_select %p181, %s20, 0
        %s183 = scalar_lea.vmem %s2, %s182
      $region20: #{_lambda_.58} parent=11 // pred_fallthru
        _
    $region12: #{_lambda_.58} parent=5 // pred_fallthru
      _
    %p184 = scmp.lt.s32.totalorder %s10, 4
    // Predicated region
    $region21: #{_lambda_.58} parent=5 // pred_check
      %p185 = pneg %p184
    $region22: #{_lambda_.58} parent=5 // pred_check_branch
      %187 = sbr.rel (%p185) target = $region24
    $region23: #{_lambda_.58} parent=5 // pred_region
      // Predicated region
      $region25: #{_lambda_.58} parent=23 // pred_check
        %p188 = pneg %p42
      $region26: #{_lambda_.58} parent=23 // pred_check_branch
        %190 = sbr.rel (%p188) target = $region28
      $region27: #{_lambda_.58} parent=23 // pred_region
        %s191 = smul.u32 16, %s17
        %p192 = scmp.lt.s32.totalorder %s191, 63
        %s193 = scalar_select %p192, %s191, 63
        %s194 = smul.addr %s193, 4
        %s195 = scalar_lea.vmem %s0, %s194
        %s196 = smul.u32 16, %s17
      $region28: #{_lambda_.58} parent=23 // pred_fallthru
        _
      // Predicated region
      $region29: #{_lambda_.58} parent=23 // pred_check
        %p197 = pneg %p122
      $region30: #{_lambda_.58} parent=23 // pred_check_branch
        %199 = sbr.rel (%p197) target = $region32
      $region31: #{_lambda_.58} parent=23 // pred_region
        %s200 = smul.u32 16, %s17
        %p201 = scmp.lt.s32.totalorder %s200, 63
        %s202 = scalar_select %p201, %s200, 63
        %p203 = scmp.lt.s32.totalorder %s18, 0
        %s204 = scalar_select %p203, %s18, 0
        %s205 = sadd.s32 %s204, %s202
        %s206 = smul.addr %s205, 8
        %s207 = scalar_lea.vmem %s3, %s206
        %s208 = smul.u32 16, %s17
      $region32: #{_lambda_.58} parent=23 // pred_fallthru
        _
    $region24: #{_lambda_.58} parent=5 // pred_fallthru
      _
    %p209 = scmp.le.s32.totalorder 1, %s10
    %p210 = scmp.lt.s32.totalorder %s10, 5
    %p211 = pnand %p209, %p210
    %p212 = pneg %p211
    // Predicated region
    $region33: #{_lambda_.58} parent=5 // pred_check
      _
    $region34: #{_lambda_.58} parent=5 // pred_check_branch
      %214 = sbr.rel (%p211) target = $region36
    $region35: #{_lambda_.58} parent=5 // pred_region
      %s215 = ssub.s32 %s10, 1
      %s216 = smul.u32 16, %s19
      %p217 = scmp.lt.s32.totalorder %s216, 63
      %s218 = scalar_select %p217, %s216, 63
      %s219 = smul.addr %s218, 4
      %s220 = scalar_lea.vmem %s0, %s219
      %p221 = pneg %p48
      %p222 = pneg %p45
      %p223 = scmp.lt.s32.totalorder %s20, 0
      %s224 = scalar_select %p223, %s20, 0
      %s225 = smul.addr %s224, 4
      %s226 = scalar_lea.vmem %s1, %s225
      %p227 = pneg %p74
      %p228 = pneg %p71
      %p229 = scmp.lt.s32.totalorder %s20, 0
      %s230 = scalar_select %p229, %s20, 0
      %s231 = scalar_lea.vmem %s2, %s230
      %p232 = pneg %p100
      %p233 = pneg %p97
      %s234 = smul.u32 16, %s19
      %p235 = scmp.lt.s32.totalorder %s234, 63
      %s236 = scalar_select %p235, %s234, 63
      %p237 = scmp.lt.s32.totalorder %s20, 0
      %s238 = scalar_select %p237, %s20, 0
      %s239 = sadd.s32 %s238, %s236
      %s240 = smul.addr %s239, 8
      %s241 = scalar_lea.vmem %s3, %s240
      %p242 = pneg %p128
      %p243 = pneg %p125
      %p244 = pneg %p156
      %p245 = pneg %p153
      %s246 = smul.u32 16, %s19
      %p247 = scmp.lt.s32.totalorder %s246, 63
      %s248 = scalar_select %p247, %s246, 63
      %p249 = scmp.lt.s32.totalorder %s20, 0
      %s250 = scalar_select %p249, %s20, 0
      %s251 = sadd.s32 %s250, %s248
      %s252 = smul.addr %s251, 8
      %s253 = scalar_lea.vmem %s4, %s252
      %s254 = smul.u32 16, %s19
      %p255 = scmp.lt.s32.totalorder %s254, 63
      %s256 = scalar_select %p255, %s254, 63
      %s257 = smul.addr %s256, 4
      %s258 = scalar_lea.vmem %s0, %s257
      %s259 = smul.u32 16, %s19
      %p260 = scmp.lt.s32.totalorder %s20, 0
      %s261 = scalar_select %p260, %s20, 0
      %s262 = smul.addr %s261, 4
      %s263 = scalar_lea.vmem %s1, %s262
      %p264 = scmp.lt.s32.totalorder %s20, 0
      %s265 = scalar_select %p264, %s20, 0
      %s266 = scalar_lea.vmem %s2, %s265
      %s267 = smul.u32 16, %s19
      %p268 = scmp.lt.s32.totalorder %s267, 63
      %s269 = scalar_select %p268, %s267, 63
      %p270 = scmp.lt.s32.totalorder %s20, 0
      %s271 = scalar_select %p270, %s20, 0
      %s272 = sadd.s32 %s271, %s269
      %s273 = smul.addr %s272, 8
      %s274 = scalar_lea.vmem %s3, %s273
      %s275 = smul.u32 16, %s19
      %s276 = smul.u32 16, %s19
      %p277 = scmp.lt.s32.totalorder %s276, 63
      %s278 = scalar_select %p277, %s276, 63
      %p279 = scmp.lt.s32.totalorder %s20, 0
      %s280 = scalar_select %p279, %s20, 0
      %s281 = sadd.s32 %s280, %s278
      %s282 = smul.addr %s281, 8
      %s283 = scalar_lea.vmem %s4, %s282
      %s284 = smul.u32 16, %s19
      %v286 = vld [vmem:[%s258] sm:$0xf]
      %v287 = vld [vmem:[%s258 + $0x4] sm:$0xf]
      %v288 = vld [vmem:[%s258 + $0x8] sm:$0xf]
      %v289 = vld [vmem:[%s258 + $0xc] sm:$0xf]
      %v290 = vld [vmem:[%s258 + $0x10] sm:$0xf]
      %v291 = vld [vmem:[%s258 + $0x14] sm:$0xf]
      %v292 = vld [vmem:[%s258 + $0x18] sm:$0xf]
      %v293 = vld [vmem:[%s258 + $0x1c] sm:$0xf]
      %v294 = vld [vmem:[%s258 + $0x20] sm:$0xf]
      %v295 = vld [vmem:[%s258 + $0x24] sm:$0xf]
      %v296 = vld [vmem:[%s258 + $0x28] sm:$0xf]
      %v297 = vld [vmem:[%s258 + $0x2c] sm:$0xf]
      %v298 = vld [vmem:[%s258 + $0x30] sm:$0xf]
      %v299 = vld [vmem:[%s258 + $0x34] sm:$0xf]
      %v300 = vld [vmem:[%s258 + $0x38] sm:$0xf]
      %v301 = vld [vmem:[%s258 + $0x3c] sm:$0xf]
      %v302 = vld [vmem:[%s263] sm:$0xf]
      %v303 = vld [vmem:[%s263 + $0x4] sm:$0xf]
      %v304 = vld [vmem:[%s263 + $0x8] sm:$0xf]
      %v305 = vld [vmem:[%s263 + $0xc] sm:$0xf]
      %v306 = vld [vmem:[%s263 + $0x10] sm:$0xf]
      %v307 = vld [vmem:[%s263 + $0x14] sm:$0xf]
      %v308 = vld [vmem:[%s263 + $0x18] sm:$0xf]
      %v309 = vld [vmem:[%s263 + $0x1c] sm:$0xf]
      %v310 = vld [vmem:[%s263 + $0x20] sm:$0xf]
      %v311 = vld [vmem:[%s263 + $0x24] sm:$0xf]
      %v312 = vld [vmem:[%s263 + $0x28] sm:$0xf]
      %v313 = vld [vmem:[%s263 + $0x2c] sm:$0xf]
      %v314 = vld [vmem:[%s263 + $0x30] sm:$0xf]
      %v315 = vld [vmem:[%s263 + $0x34] sm:$0xf]
      %v316 = vld [vmem:[%s263 + $0x38] sm:$0xf]
      %v317 = vld [vmem:[%s263 + $0x3c] sm:$0xf]
      %v318 = vld [vmem:[%s266] sm:$0x1]
      %v320 = vlaneseq
      %v321 = vshrl.u32 %v320, 7
      %v322 = vsub.s32 0, %v321
      %v323 = vrot.slane %v318, %v322
      %v341 = vunpack.c.l.b16 %v286
      %v342 = vunpack.c.l.b16 %v287
      %v343 = vunpack.c.l.b16 %v288
      %v344 = vunpack.c.l.b16 %v289
      %v345 = vunpack.c.l.b16 %v290
      %v346 = vunpack.c.l.b16 %v291
      %v347 = vunpack.c.l.b16 %v292
      %v348 = vunpack.c.l.b16 %v293
      %v349 = vunpack.c.l.b16 %v294
      %v350 = vunpack.c.l.b16 %v295
      %v351 = vunpack.c.l.b16 %v296
      %v352 = vunpack.c.l.b16 %v297
      %v353 = vunpack.c.l.b16 %v298
      %v354 = vunpack.c.l.b16 %v299
      %v355 = vunpack.c.l.b16 %v300
      %v356 = vunpack.c.l.b16 %v301
      %v357 = vpack.c.b16 %v342, %v341
      %v358 = vpack.c.b16 %v344, %v343
      %v359 = vpack.c.b16 %v346, %v345
      %v360 = vpack.c.b16 %v348, %v347
      %v361 = vpack.c.b16 %v350, %v349
      %v362 = vpack.c.b16 %v352, %v351
      %v363 = vpack.c.b16 %v354, %v353
      %v364 = vpack.c.b16 %v356, %v355
      %v389 = vunpack.c.l.b16 %v302
      %v390 = vunpack.c.l.b16 %v303
      %v391 = vunpack.c.l.b16 %v304
      %v392 = vunpack.c.l.b16 %v305
      %v393 = vunpack.c.l.b16 %v306
      %v394 = vunpack.c.l.b16 %v307
      %v395 = vunpack.c.l.b16 %v308
      %v396 = vunpack.c.l.b16 %v309
      %v397 = vunpack.c.l.b16 %v310
      %v398 = vunpack.c.l.b16 %v311
      %v399 = vunpack.c.l.b16 %v312
      %v400 = vunpack.c.l.b16 %v313
      %v401 = vunpack.c.l.b16 %v314
      %v402 = vunpack.c.l.b16 %v315
      %v403 = vunpack.c.l.b16 %v316
      %v404 = vunpack.c.l.b16 %v317
      %v405 = vpack.c.b16 %v390, %v389
      %v406 = vpack.c.b16 %v392, %v391
      %v407 = vpack.c.b16 %v394, %v393
      %v408 = vpack.c.b16 %v396, %v395
      %v409 = vpack.c.b16 %v398, %v397
      %v410 = vpack.c.b16 %v400, %v399
      %v411 = vpack.c.b16 %v402, %v401
      %v412 = vpack.c.b16 %v404, %v403
      %421 = vmatprep.subr.bf16.mxu0 0
      %422 = vmatpush1.bf16.msra.mxu0 %v405
      %423 = vmatprep.subr.bf16.mxu0 0
      %424 = vmatpush1.bf16.msra.mxu0 %v406
      %425 = vmatprep.subr.bf16.mxu0 0
      %426 = vmatpush1.bf16.msra.mxu0 %v407
      %427 = vmatprep.subr.bf16.mxu0 0
      %428 = vmatpush1.bf16.msra.mxu0 %v408
      %429 = vmatprep.subr.bf16.mxu0 0
      %430 = vmatpush1.bf16.msra.mxu0 %v409
      %431 = vmatprep.subr.bf16.mxu0 0
      %432 = vmatpush1.bf16.msra.mxu0 %v410
      %433 = vmatprep.subr.bf16.mxu0 0
      %434 = vmatpush1.bf16.msra.mxu0 %v411
      %435 = vmatprep.subr.bf16.mxu0 0
      %436 = vmatpush1.bf16.msra.mxu0 %v412
      %437 = vmatprep.subr.bf16.mxu0 0
      %438 = vmatpush1.bf16.msra.mxu0 0
      %439 = vmatprep.subr.bf16.mxu0 0
      %440 = vmatpush1.bf16.msra.mxu0 0
      %441 = vmatprep.subr.bf16.mxu0 0
      %442 = vmatpush1.bf16.msra.mxu0 0
      %443 = vmatprep.subr.bf16.mxu0 0
      %444 = vmatpush1.bf16.msra.mxu0 0
      %445 = vmatprep.subr.bf16.mxu0 0
      %446 = vmatpush1.bf16.msra.mxu0 0
      %447 = vmatprep.subr.bf16.mxu0 0
      %448 = vmatpush1.bf16.msra.mxu0 0
      %449 = vmatprep.subr.bf16.mxu0 0
      %450 = vmatpush1.bf16.msra.mxu0 0
      %451 = vmatprep.subr.bf16.mxu0 0
      %452 = vmatpush1.bf16.msra.mxu0 0
      %453 = vmatprep.mubr.bf16.mxu0 0
      %454 = vmatmul.mubr.bf16.gmra.mrb[0].mxu0 %v357
      %v455 = vpop.f32.mrb[0].mxu0
      %v456 = vadd.f32 %v323, %v455
      %v457 = vpop.f32.mrb[0].mxu0
      %v458 = vpop.f32.mrb[0].mxu0
      %v459 = vadd.f32 %v323, %v458
      %v460 = vpop.f32.mrb[0].mxu0
      %461 = vmatprep.mubr.bf16.mxu0 0
      %462 = vmatmul.mubr.bf16.gmra.mrb[0].mxu0 %v358
      %v463 = vpop.f32.mrb[0].mxu0
      %v464 = vadd.f32 %v323, %v463
      %v465 = vpop.f32.mrb[0].mxu0
      %v466 = vpop.f32.mrb[0].mxu0
      %v467 = vadd.f32 %v323, %v466
      %v468 = vpop.f32.mrb[0].mxu0
      %469 = vmatprep.mubr.bf16.mxu0 0
      %470 = vmatmul.mubr.bf16.gmra.mrb[0].mxu0 %v359
      %v471 = vpop.f32.mrb[0].mxu0
      %v472 = vadd.f32 %v323, %v471
      %v473 = vpop.f32.mrb[0].mxu0
      %v474 = vpop.f32.mrb[0].mxu0
      %v475 = vadd.f32 %v323, %v474
      %v476 = vpop.f32.mrb[0].mxu0
      %477 = vmatprep.mubr.bf16.mxu0 0
      %478 = vmatmul.mubr.bf16.gmra.mrb[0].mxu0 %v360
      %v479 = vpop.f32.mrb[0].mxu0
      %v480 = vadd.f32 %v323, %v479
      %v481 = vpop.f32.mrb[0].mxu0
      %v482 = vpop.f32.mrb[0].mxu0
      %v483 = vadd.f32 %v323, %v482
      %v484 = vpop.f32.mrb[0].mxu0
      %485 = vmatprep.mubr.bf16.mxu0 0
      %486 = vmatmul.mubr.bf16.gmra.mrb[0].mxu0 %v361
      %v487 = vpop.f32.mrb[0].mxu0
      %v488 = vadd.f32 %v323, %v487
      %v489 = vpop.f32.mrb[0].mxu0
      %v490 = vpop.f32.mrb[0].mxu0
      %v491 = vadd.f32 %v323, %v490
      %v492 = vpop.f32.mrb[0].mxu0
      %493 = vmatprep.mubr.bf16.mxu0 0
      %494 = vmatmul.mubr.bf16.gmra.mrb[0].mxu0 %v362
      %v495 = vpop.f32.mrb[0].mxu0
      %v496 = vadd.f32 %v323, %v495
      %v497 = vpop.f32.mrb[0].mxu0
      %v498 = vpop.f32.mrb[0].mxu0
      %v499 = vadd.f32 %v323, %v498
      %v500 = vpop.f32.mrb[0].mxu0
      %501 = vmatprep.mubr.bf16.mxu0 0
      %502 = vmatmul.mubr.bf16.gmra.mrb[0].mxu0 %v363
      %v503 = vpop.f32.mrb[0].mxu0
      %v504 = vadd.f32 %v323, %v503
      %v505 = vpop.f32.mrb[0].mxu0
      %v506 = vpop.f32.mrb[0].mxu0
      %v507 = vadd.f32 %v323, %v506
      %v508 = vpop.f32.mrb[0].mxu0
      %509 = vmatprep.mubr.bf16.mxu0 0
      %510 = vmatmul.mubr.bf16.gmra.mrb[0].mxu0 %v364
      %v511 = vpop.f32.mrb[0].mxu0
      %v512 = vadd.f32 %v323, %v511
      %v513 = vpop.f32.mrb[0].mxu0
      %v514 = vpop.f32.mrb[0].mxu0
      %v515 = vadd.f32 %v323, %v514
      %v516 = vpop.f32.mrb[0].mxu0
      %517 = vdwg.mxu0
      %v518 = vld [vmem:[%s274] sm:$0xff]
      %v519 = vld [vmem:[%s274 + $0x8] sm:$0xff]
      %v520 = vld [vmem:[%s274 + $0x10] sm:$0xff]
      %v521 = vld [vmem:[%s274 + $0x18] sm:$0xff]
      %v522 = vld [vmem:[%s274 + $0x20] sm:$0xff]
      %v523 = vld [vmem:[%s274 + $0x28] sm:$0xff]
      %v524 = vld [vmem:[%s274 + $0x30] sm:$0xff]
      %v525 = vld [vmem:[%s274 + $0x38] sm:$0xff]
      %v526 = vld [vmem:[%s274 + $0x40] sm:$0xff]
      %v527 = vld [vmem:[%s274 + $0x48] sm:$0xff]
      %v528 = vld [vmem:[%s274 + $0x50] sm:$0xff]
      %v529 = vld [vmem:[%s274 + $0x58] sm:$0xff]
      %v530 = vld [vmem:[%s274 + $0x60] sm:$0xff]
      %v531 = vld [vmem:[%s274 + $0x68] sm:$0xff]
      %v532 = vld [vmem:[%s274 + $0x70] sm:$0xff]
      %v533 = vld [vmem:[%s274 + $0x78] sm:$0xff]
      %v534 = vadd.f32 %v456, %v518
      %v535 = vadd.f32 %v459, %v519
      %v536 = vadd.f32 %v464, %v520
      %v537 = vadd.f32 %v467, %v521
      %v538 = vadd.f32 %v472, %v522
      %v539 = vadd.f32 %v475, %v523
      %v540 = vadd.f32 %v480, %v524
      %v541 = vadd.f32 %v483, %v525
      %v542 = vadd.f32 %v488, %v526
      %v543 = vadd.f32 %v491, %v527
      %v544 = vadd.f32 %v496, %v528
      %v545 = vadd.f32 %v499, %v529
      %v546 = vadd.f32 %v504, %v530
      %v547 = vadd.f32 %v507, %v531
      %v548 = vadd.f32 %v512, %v532
      %v549 = vadd.f32 %v515, %v533
      %vm550 = vcmp.ge.f32.partialorder %v534, 0.0
      %vm551 = vcmp.ge.f32.partialorder %v535, 0.0
      %vm552 = vcmp.ge.f32.partialorder %v536, 0.0
      %vm553 = vcmp.ge.f32.partialorder %v537, 0.0
      %vm554 = vcmp.ge.f32.partialorder %v538, 0.0
      %vm555 = vcmp.ge.f32.partialorder %v539, 0.0
      %vm556 = vcmp.ge.f32.partialorder %v540, 0.0
      %vm557 = vcmp.ge.f32.partialorder %v541, 0.0
      %vm558 = vcmp.ge.f32.partialorder %v542, 0.0
      %vm559 = vcmp.ge.f32.partialorder %v543, 0.0
      %vm560 = vcmp.ge.f32.partialorder %v544, 0.0
      %vm561 = vcmp.ge.f32.partialorder %v545, 0.0
      %vm562 = vcmp.ge.f32.partialorder %v546, 0.0
      %vm563 = vcmp.ge.f32.partialorder %v547, 0.0
      %vm564 = vcmp.ge.f32.partialorder %v548, 0.0
      %vm565 = vcmp.ge.f32.partialorder %v549, 0.0
      %v566 = vmul.f32 %v534, 0.2
      %v567 = vmul.f32 %v535, 0.2
      %v568 = vmul.f32 %v536, 0.2
      %v569 = vmul.f32 %v537, 0.2
      %v570 = vmul.f32 %v538, 0.2
      %v571 = vmul.f32 %v539, 0.2
      %v572 = vmul.f32 %v540, 0.2
      %v573 = vmul.f32 %v541, 0.2
      %v574 = vmul.f32 %v542, 0.2
      %v575 = vmul.f32 %v543, 0.2
      %v576 = vmul.f32 %v544, 0.2
      %v577 = vmul.f32 %v545, 0.2
      %v578 = vmul.f32 %v546, 0.2
      %v579 = vmul.f32 %v547, 0.2
      %v580 = vmul.f32 %v548, 0.2
      %v581 = vmul.f32 %v549, 0.2
      %v582 = vsel %vm550, %v534, %v566
      %v583 = vsel %vm551, %v535, %v567
      %v584 = vsel %vm552, %v536, %v568
      %v585 = vsel %vm553, %v537, %v569
      %v586 = vsel %vm554, %v538, %v570
      %v587 = vsel %vm555, %v539, %v571
      %v588 = vsel %vm556, %v540, %v572
      %v589 = vsel %vm557, %v541, %v573
      %v590 = vsel %vm558, %v542, %v574
      %v591 = vsel %vm559, %v543, %v575
      %v592 = vsel %vm560, %v544, %v576
      %v593 = vsel %vm561, %v545, %v577
      %v594 = vsel %vm562, %v546, %v578
      %v595 = vsel %vm563, %v547, %v579
      %v596 = vsel %vm564, %v548, %v580
      %v597 = vsel %vm565, %v549, %v581
      %598 = vst [vmem:[%s283] sm:$0xff] %v582
      %599 = vst [vmem:[%s283 + $0x8] sm:$0xff] %v583
      %600 = vst [vmem:[%s283 + $0x10] sm:$0xff] %v584
      %601 = vst [vmem:[%s283 + $0x18] sm:$0xff] %v585
      %602 = vst [vmem:[%s283 + $0x20] sm:$0xff] %v586
      %603 = vst [vmem:[%s283 + $0x28] sm:$0xff] %v587
      %604 = vst [vmem:[%s283 + $0x30] sm:$0xff] %v588
      %605 = vst [vmem:[%s283 + $0x38] sm:$0xff] %v589
      %606 = vst [vmem:[%s283 + $0x40] sm:$0xff] %v590
      %607 = vst [vmem:[%s283 + $0x48] sm:$0xff] %v591
      %608 = vst [vmem:[%s283 + $0x50] sm:$0xff] %v592
      %609 = vst [vmem:[%s283 + $0x58] sm:$0xff] %v593
      %610 = vst [vmem:[%s283 + $0x60] sm:$0xff] %v594
      %611 = vst [vmem:[%s283 + $0x68] sm:$0xff] %v595
      %612 = vst [vmem:[%s283 + $0x70] sm:$0xff] %v596
      %613 = vst [vmem:[%s283 + $0x78] sm:$0xff] %v597
      %s614 = smul.u32 16, %s19
      %p615 = scmp.lt.s32.totalorder %s614, 63
      %s616 = scalar_select %p615, %s614, 63
      %p617 = scmp.lt.s32.totalorder %s20, 0
      %s618 = scalar_select %p617, %s20, 0
      %s619 = sadd.s32 %s618, %s616
      %s620 = smul.addr %s619, 8
      %s621 = scalar_lea.vmem %s4, %s620
      // Predicated region
      $region37: #{_lambda_.58} parent=35 // pred_check
        %p622 = pneg %p153
      $region38: #{_lambda_.58} parent=35 // pred_check_branch
        %624 = sbr.rel (%p622) target = $region40
      $region39: #{_lambda_.58} parent=35 // pred_region
        %s625 = smul.u32 16, %s19
      $region40: #{_lambda_.58} parent=35 // pred_fallthru
        _
    $region36: #{_lambda_.58} parent=5 // pred_fallthru
      _
    %p626 = scmp.le.s32.totalorder 2, %s10
    // Predicated region
    $region41: #{_lambda_.58} parent=5 // pred_check
      %p627 = pneg %p626
    $region42: #{_lambda_.58} parent=5 // pred_check_branch
      %629 = sbr.rel (%p627) target = $region44
    $region43: #{_lambda_.58} parent=5 // pred_region
      %s630 = ssub.s32 %s10, 2
      // Predicated region
      $region45: #{_lambda_.58} parent=43 // pred_check
        %p631 = pneg %p159
      $region46: #{_lambda_.58} parent=43 // pred_check_branch
        %633 = sbr.rel (%p631) target = $region48
      $region47: #{_lambda_.58} parent=43 // pred_region
        %s634 = smul.u32 16, %s21
        %p635 = scmp.lt.s32.totalorder %s634, 63
        %s636 = scalar_select %p635, %s634, 63
        %p637 = scmp.lt.s32.totalorder %s22, 0
        %s638 = scalar_select %p637, %s22, 0
        %s639 = sadd.s32 %s638, %s636
        %s640 = smul.addr %s639, 8
        %s641 = scalar_lea.vmem %s4, %s640
      $region48: #{_lambda_.58} parent=43 // pred_fallthru
        _
    $region44: #{_lambda_.58} parent=5 // pred_fallthru
      _
  $region6: #{_lambda_.58} parent=0 // loop_footer
    %s14 = sadd.s32 1, %s10
  $region7: #{_lambda_.58} parent=0 // loop_footer_branch
    %9 = sbr.rel target = $region3
  $region8: #{_lambda_.58} parent=0 // loop_exit
    _

// kernel: _lambda_.64
$region0: #{_lambda_.64}
  #allocation0 [shape = 'u32[]', space=smem, size = 0x4, offset = 0x4, fixed_abs, tag = 'smem constant byte address 0x4 - core index']
  #allocation1 [shape = 'u32[144,128]{1,0:T(1,128)}', space=vmem, size = 0x12000, scoped, tag = 'internal scratch']
  %s0 = inlined_call_operand.vmem [shape: bf16[128,128], index: 0, kind: input, shape index: {}]
  %s1 = inlined_call_operand.vmem [shape: bf16[128,128], index: 1, kind: input, shape index: {}]
  %s2 = inlined_call_operand.vmem [shape: f32[1,128], index: 2, kind: input, shape index: {}]
  %s3 = inlined_call_operand.vmem [shape: f32[128,128], index: 3, kind: output, shape index: {}]
  %s4 = sld [smem:[#allocation0]]
  $region22: #{_lambda_.64} parent=0
    _
  %s6 = ssub.s32 1, %s4
  %s7 = scalar_select 0, %s6, %s4
  // Predicated region
  $region2: #{_lambda_.64} parent=0 // pred_check
    _
  $region3: #{_lambda_.64} parent=0 // pred_check_branch
    %9 = sbr.rel (0) target = $region5
  $region4: #{_lambda_.64} parent=0 // pred_region
    _
  $region5: #{_lambda_.64} parent=0 // pred_fallthru
    _
  // Predicated region
  $region6: #{_lambda_.64} parent=0 // pred_check
    _
  $region7: #{_lambda_.64} parent=0 // pred_check_branch
    %11 = sbr.rel (0) target = $region9
  $region8: #{_lambda_.64} parent=0 // pred_region
    _
  $region9: #{_lambda_.64} parent=0 // pred_fallthru
    _
  // Predicated region
  $region10: #{_lambda_.64} parent=0 // pred_check
    _
  $region11: #{_lambda_.64} parent=0 // pred_check_branch
    %13 = sbr.rel (0) target = $region13
  $region12: #{_lambda_.64} parent=0 // pred_region
    _
  $region13: #{_lambda_.64} parent=0 // pred_fallthru
    _
  %v15 = vld [vmem:[%s0] sm:$0xf]
  %v16 = vld [vmem:[%s0 + $0x4] sm:$0xf]
  %v17 = vld [vmem:[%s0 + $0x8] sm:$0xf]
  %v18 = vld [vmem:[%s0 + $0xc] sm:$0xf]
  %v19 = vld [vmem:[%s0 + $0x10] sm:$0xf]
  %v20 = vld [vmem:[%s0 + $0x14] sm:$0xf]
  %v21 = vld [vmem:[%s0 + $0x18] sm:$0xf]
  %v22 = vld [vmem:[%s0 + $0x1c] sm:$0xf]
  %v23 = vld [vmem:[%s0 + $0x20] sm:$0xf]
  %v24 = vld [vmem:[%s0 + $0x24] sm:$0xf]
  %v25 = vld [vmem:[%s0 + $0x28] sm:$0xf]
  %v26 = vld [vmem:[%s0 + $0x2c] sm:$0xf]
  %v27 = vld [vmem:[%s0 + $0x30] sm:$0xf]
  %v28 = vld [vmem:[%s0 + $0x34] sm:$0xf]
  %v29 = vld [vmem:[%s0 + $0x38] sm:$0xf]
  %v30 = vld [vmem:[%s0 + $0x3c] sm:$0xf]
  %v31 = vld [vmem:[%s1] sm:$0xf]
  %v32 = vld [vmem:[%s1 + $0x4] sm:$0xf]
  %v33 = vld [vmem:[%s1 + $0x8] sm:$0xf]
  %v34 = vld [vmem:[%s1 + $0xc] sm:$0xf]
  %v35 = vld [vmem:[%s1 + $0x10] sm:$0xf]
  %v36 = vld [vmem:[%s1 + $0x14] sm:$0xf]
  %v37 = vld [vmem:[%s1 + $0x18] sm:$0xf]
  %v38 = vld [vmem:[%s1 + $0x1c] sm:$0xf]
  %v39 = vld [vmem:[%s1 + $0x20] sm:$0xf]
  %v40 = vld [vmem:[%s1 + $0x24] sm:$0xf]
  %v41 = vld [vmem:[%s1 + $0x28] sm:$0xf]
  %v42 = vld [vmem:[%s1 + $0x2c] sm:$0xf]
  %v43 = vld [vmem:[%s1 + $0x30] sm:$0xf]
  %v44 = vld [vmem:[%s1 + $0x34] sm:$0xf]
  %v45 = vld [vmem:[%s1 + $0x38] sm:$0xf]
  %v46 = vld [vmem:[%s1 + $0x3c] sm:$0xf]
  %v47 = vld [vmem:[%s2] sm:$0x1]
  %v49 = vlaneseq
  %v50 = vshrl.u32 %v49, 7
  %v51 = vsub.s32 0, %v50
  %v52 = vrot.slane %v47, %v51
  %v70 = vunpack.c.l.b16 %v15
  %v71 = vunpack.c.l.b16 %v16
  %v72 = vunpack.c.l.b16 %v17
  %v73 = vunpack.c.l.b16 %v18
  %v74 = vunpack.c.l.b16 %v19
  %v75 = vunpack.c.l.b16 %v20
  %v76 = vunpack.c.l.b16 %v21
  %v77 = vunpack.c.l.b16 %v22
  %v78 = vunpack.c.l.b16 %v23
  %v79 = vunpack.c.l.b16 %v24
  %v80 = vunpack.c.l.b16 %v25
  %v81 = vunpack.c.l.b16 %v26
  %v82 = vunpack.c.l.b16 %v27
  %v83 = vunpack.c.l.b16 %v28
  %v84 = vunpack.c.l.b16 %v29
  %v85 = vunpack.c.l.b16 %v30
  %v86 = vpack.c.b16 %v71, %v70
  %v87 = vpack.c.b16 %v73, %v72
  %v88 = vpack.c.b16 %v75, %v74
  %v89 = vpack.c.b16 %v77, %v76
  %v90 = vpack.c.b16 %v79, %v78
  %v91 = vpack.c.b16 %v81, %v80
  %v92 = vpack.c.b16 %v83, %v82
  %v93 = vpack.c.b16 %v85, %v84
  %v118 = vunpack.c.l.b16 %v31
  %v119 = vunpack.c.l.b16 %v32
  %v120 = vunpack.c.l.b16 %v33
  %v121 = vunpack.c.l.b16 %v34
  %v122 = vunpack.c.l.b16 %v35
  %v123 = vunpack.c.l.b16 %v36
  %v124 = vunpack.c.l.b16 %v37
  %v125 = vunpack.c.l.b16 %v38
  %v126 = vunpack.c.l.b16 %v39
  %v127 = vunpack.c.l.b16 %v40
  %v128 = vunpack.c.l.b16 %v41
  %v129 = vunpack.c.l.b16 %v42
  %v130 = vunpack.c.l.b16 %v43
  %v131 = vunpack.c.l.b16 %v44
  %v132 = vunpack.c.l.b16 %v45
  %v133 = vunpack.c.l.b16 %v46
  %v134 = vpack.c.b16 %v119, %v118
  %v135 = vpack.c.b16 %v121, %v120
  %v136 = vpack.c.b16 %v123, %v122
  %v137 = vpack.c.b16 %v125, %v124
  %v138 = vpack.c.b16 %v127, %v126
  %v139 = vpack.c.b16 %v129, %v128
  %v140 = vpack.c.b16 %v131, %v130
  %v141 = vpack.c.b16 %v133, %v132
  %150 = vmatprep.subr.bf16.mxu0 0
  %151 = vmatpush1.bf16.msra.mxu0 %v134
  %152 = vmatprep.subr.bf16.mxu0 0
  %153 = vmatpush1.bf16.msra.mxu0 %v135
  %154 = vmatprep.subr.bf16.mxu0 0
  %155 = vmatpush1.bf16.msra.mxu0 %v136
  %156 = vmatprep.subr.bf16.mxu0 0
  %157 = vmatpush1.bf16.msra.mxu0 %v137
  %158 = vmatprep.subr.bf16.mxu0 0
  %159 = vmatpush1.bf16.msra.mxu0 %v138
  %160 = vmatprep.subr.bf16.mxu0 0
  %161 = vmatpush1.bf16.msra.mxu0 %v139
  %162 = vmatprep.subr.bf16.mxu0 0
  %163 = vmatpush1.bf16.msra.mxu0 %v140
  %164 = vmatprep.subr.bf16.mxu0 0
  %165 = vmatpush1.bf16.msra.mxu0 %v141
  %166 = vmatprep.subr.bf16.mxu0 0
  %167 = vmatpush1.bf16.msra.mxu0 0
  %168 = vmatprep.subr.bf16.mxu0 0
  %169 = vmatpush1.bf16.msra.mxu0 0
  %170 = vmatprep.subr.bf16.mxu0 0
  %171 = vmatpush1.bf16.msra.mxu0 0
  %172 = vmatprep.subr.bf16.mxu0 0
  %173 = vmatpush1.bf16.msra.mxu0 0
  %174 = vmatprep.subr.bf16.mxu0 0
  %175 = vmatpush1.bf16.msra.mxu0 0
  %176 = vmatprep.subr.bf16.mxu0 0
  %177 = vmatpush1.bf16.msra.mxu0 0
  %178 = vmatprep.subr.bf16.mxu0 0
  %179 = vmatpush1.bf16.msra.mxu0 0
  %180 = vmatprep.subr.bf16.mxu0 0
  %181 = vmatpush1.bf16.msra.mxu0 0
  %182 = vmatprep.mubr.bf16.mxu0 0
  %183 = vmatmul.mubr.bf16.gmra.mrb[0].mxu0 %v86
  %v184 = vpop.f32.mrb[0].mxu0
  %v185 = vadd.f32 %v52, %v184
  %v186 = vpop.f32.mrb[0].mxu0
  %v187 = vpop.f32.mrb[0].mxu0
  %v188 = vadd.f32 %v52, %v187
  %v189 = vpop.f32.mrb[0].mxu0
  %190 = vmatprep.mubr.bf16.mxu0 0
  %191 = vmatmul.mubr.bf16.gmra.mrb[0].mxu0 %v87
  %v192 = vpop.f32.mrb[0].mxu0
  %v193 = vadd.f32 %v52, %v192
  %v194 = vpop.f32.mrb[0].mxu0
  %v195 = vpop.f32.mrb[0].mxu0
  %v196 = vadd.f32 %v52, %v195
  %v197 = vpop.f32.mrb[0].mxu0
  %198 = vmatprep.mubr.bf16.mxu0 0
  %199 = vmatmul.mubr.bf16.gmra.mrb[0].mxu0 %v88
  %v200 = vpop.f32.mrb[0].mxu0
  %v201 = vadd.f32 %v52, %v200
  %v202 = vpop.f32.mrb[0].mxu0
  %v203 = vpop.f32.mrb[0].mxu0
  %v204 = vadd.f32 %v52, %v203
  %v205 = vpop.f32.mrb[0].mxu0
  %206 = vmatprep.mubr.bf16.mxu0 0
  %207 = vmatmul.mubr.bf16.gmra.mrb[0].mxu0 %v89
  %v208 = vpop.f32.mrb[0].mxu0
  %v209 = vadd.f32 %v52, %v208
  %v210 = vpop.f32.mrb[0].mxu0
  %v211 = vpop.f32.mrb[0].mxu0
  %v212 = vadd.f32 %v52, %v211
  %v213 = vpop.f32.mrb[0].mxu0
  %214 = vmatprep.mubr.bf16.mxu0 0
  %215 = vmatmul.mubr.bf16.gmra.mrb[0].mxu0 %v90
  %v216 = vpop.f32.mrb[0].mxu0
  %v217 = vadd.f32 %v52, %v216
  %v218 = vpop.f32.mrb[0].mxu0
  %v219 = vpop.f32.mrb[0].mxu0
  %v220 = vadd.f32 %v52, %v219
  %v221 = vpop.f32.mrb[0].mxu0
  %222 = vmatprep.mubr.bf16.mxu0 0
  %223 = vmatmul.mubr.bf16.gmra.mrb[0].mxu0 %v91
  %v224 = vpop.f32.mrb[0].mxu0
  %v225 = vadd.f32 %v52, %v224
  %v226 = vpop.f32.mrb[0].mxu0
  %v227 = vpop.f32.mrb[0].mxu0
  %v228 = vadd.f32 %v52, %v227
  %v229 = vpop.f32.mrb[0].mxu0
  %230 = vmatprep.mubr.bf16.mxu0 0
  %231 = vmatmul.mubr.bf16.gmra.mrb[0].mxu0 %v92
  %v232 = vpop.f32.mrb[0].mxu0
  %v233 = vadd.f32 %v52, %v232
  %v234 = vpop.f32.mrb[0].mxu0
  %v235 = vpop.f32.mrb[0].mxu0
  %v236 = vadd.f32 %v52, %v235
  %v237 = vpop.f32.mrb[0].mxu0
  %238 = vmatprep.mubr.bf16.mxu0 0
  %239 = vmatmul.mubr.bf16.gmra.mrb[0].mxu0 %v93
  %v240 = vpop.f32.mrb[0].mxu0
  %v241 = vadd.f32 %v52, %v240
  %v242 = vpop.f32.mrb[0].mxu0
  %v243 = vpop.f32.mrb[0].mxu0
  %v244 = vadd.f32 %v52, %v243
  %v245 = vpop.f32.mrb[0].mxu0
  %246 = vdwg.mxu0
  %247 = vst [vmem:[%s3] sm:$0xff] %v185
  %248 = vst [vmem:[%s3 + $0x8] sm:$0xff] %v188
  %249 = vst [vmem:[%s3 + $0x10] sm:$0xff] %v193
  %250 = vst [vmem:[%s3 + $0x18] sm:$0xff] %v196
  %251 = vst [vmem:[%s3 + $0x20] sm:$0xff] %v201
  %252 = vst [vmem:[%s3 + $0x28] sm:$0xff] %v204
  %253 = vst [vmem:[%s3 + $0x30] sm:$0xff] %v209
  %254 = vst [vmem:[%s3 + $0x38] sm:$0xff] %v212
  %255 = vst [vmem:[%s3 + $0x40] sm:$0xff] %v217
  %256 = vst [vmem:[%s3 + $0x48] sm:$0xff] %v220
  %257 = vst [vmem:[%s3 + $0x50] sm:$0xff] %v225
  %258 = vst [vmem:[%s3 + $0x58] sm:$0xff] %v228
  %259 = vst [vmem:[%s3 + $0x60] sm:$0xff] %v233
  %260 = vst [vmem:[%s3 + $0x68] sm:$0xff] %v236
  %261 = vst [vmem:[%s3 + $0x70] sm:$0xff] %v241
  %262 = vst [vmem:[%s3 + $0x78] sm:$0xff] %v244
  // Predicated region
  $region14: #{_lambda_.64} parent=0 // pred_check
    _
  $region15: #{_lambda_.64} parent=0 // pred_check_branch
    %264 = sbr.rel (0) target = $region17
  $region16: #{_lambda_.64} parent=0 // pred_region
    _
  $region17: #{_lambda_.64} parent=0 // pred_fallthru
    _
  // Predicated region
  $region18: #{_lambda_.64} parent=0 // pred_check
    _
  $region19: #{_lambda_.64} parent=0 // pred_check_branch
    %266 = sbr.rel (0) target = $region21
  $region20: #{_lambda_.64} parent=0 // pred_region
    _
  $region21: #{_lambda_.64} parent=0 // pred_fallthru
    _

// kernel: _lambda_.63
$region0: #{_lambda_.63}
  #allocation0 [shape = 'u32[]', space=smem, size = 0x4, offset = 0x4, fixed_abs, tag = 'smem constant byte address 0x4 - core index']
  #allocation1 [shape = 'u32[144,128]{1,0:T(1,128)}', space=vmem, size = 0x12000, scoped, tag = 'internal scratch']
  %s0 = inlined_call_operand.vmem [shape: bf16[128,256], index: 0, kind: input, shape index: {}]
  %s1 = inlined_call_operand.vmem [shape: bf16[256,128], index: 1, kind: input, shape index: {}]
  %s2 = inlined_call_operand.vmem [shape: f32[1,128], index: 2, kind: input, shape index: {}]
  %s3 = inlined_call_operand.vmem [shape: f32[128,128], index: 3, kind: output, shape index: {}]
  %s4 = sld [smem:[#allocation0]]
  $region22: #{_lambda_.63} parent=0
    _
  %s6 = ssub.s32 1, %s4
  %s7 = scalar_select 0, %s6, %s4
  // Predicated region
  $region2: #{_lambda_.63} parent=0 // pred_check
    _
  $region3: #{_lambda_.63} parent=0 // pred_check_branch
    %9 = sbr.rel (0) target = $region5
  $region4: #{_lambda_.63} parent=0 // pred_region
    _
  $region5: #{_lambda_.63} parent=0 // pred_fallthru
    _
  // Predicated region
  $region6: #{_lambda_.63} parent=0 // pred_check
    _
  $region7: #{_lambda_.63} parent=0 // pred_check_branch
    %11 = sbr.rel (0) target = $region9
  $region8: #{_lambda_.63} parent=0 // pred_region
    _
  $region9: #{_lambda_.63} parent=0 // pred_fallthru
    _
  // Predicated region
  $region10: #{_lambda_.63} parent=0 // pred_check
    _
  $region11: #{_lambda_.63} parent=0 // pred_check_branch
    %13 = sbr.rel (0) target = $region13
  $region12: #{_lambda_.63} parent=0 // pred_region
    _
  $region13: #{_lambda_.63} parent=0 // pred_fallthru
    _
  %v15 = vld [vmem:[%s0] sm:$0xff]
  %v16 = vld [vmem:[%s0 + $0x8] sm:$0xff]
  %v17 = vld [vmem:[%s0 + $0x10] sm:$0xff]
  %v18 = vld [vmem:[%s0 + $0x18] sm:$0xff]
  %v19 = vld [vmem:[%s0 + $0x20] sm:$0xff]
  %v20 = vld [vmem:[%s0 + $0x28] sm:$0xff]
  %v21 = vld [vmem:[%s0 + $0x30] sm:$0xff]
  %v22 = vld [vmem:[%s0 + $0x38] sm:$0xff]
  %v23 = vld [vmem:[%s0 + $0x40] sm:$0xff]
  %v24 = vld [vmem:[%s0 + $0x48] sm:$0xff]
  %v25 = vld [vmem:[%s0 + $0x50] sm:$0xff]
  %v26 = vld [vmem:[%s0 + $0x58] sm:$0xff]
  %v27 = vld [vmem:[%s0 + $0x60] sm:$0xff]
  %v28 = vld [vmem:[%s0 + $0x68] sm:$0xff]
  %v29 = vld [vmem:[%s0 + $0x70] sm:$0xff]
  %v30 = vld [vmem:[%s0 + $0x78] sm:$0xff]
  %v31 = vld [vmem:[%s1] sm:$0xf]
  %v32 = vld [vmem:[%s1 + $0x4] sm:$0xf]
  %v33 = vld [vmem:[%s1 + $0x8] sm:$0xf]
  %v34 = vld [vmem:[%s1 + $0xc] sm:$0xf]
  %v35 = vld [vmem:[%s1 + $0x10] sm:$0xf]
  %v36 = vld [vmem:[%s1 + $0x14] sm:$0xf]
  %v37 = vld [vmem:[%s1 + $0x18] sm:$0xf]
  %v38 = vld [vmem:[%s1 + $0x1c] sm:$0xf]
  %v39 = vld [vmem:[%s1 + $0x20] sm:$0xf]
  %v40 = vld [vmem:[%s1 + $0x24] sm:$0xf]
  %v41 = vld [vmem:[%s1 + $0x28] sm:$0xf]
  %v42 = vld [vmem:[%s1 + $0x2c] sm:$0xf]
  %v43 = vld [vmem:[%s1 + $0x30] sm:$0xf]
  %v44 = vld [vmem:[%s1 + $0x34] sm:$0xf]
  %v45 = vld [vmem:[%s1 + $0x38] sm:$0xf]
  %v46 = vld [vmem:[%s1 + $0x3c] sm:$0xf]
  %v47 = vld [vmem:[%s1 + $0x40] sm:$0xf]
  %v48 = vld [vmem:[%s1 + $0x44] sm:$0xf]
  %v49 = vld [vmem:[%s1 + $0x48] sm:$0xf]
  %v50 = vld [vmem:[%s1 + $0x4c] sm:$0xf]
  %v51 = vld [vmem:[%s1 + $0x50] sm:$0xf]
  %v52 = vld [vmem:[%s1 + $0x54] sm:$0xf]
  %v53 = vld [vmem:[%s1 + $0x58] sm:$0xf]
  %v54 = vld [vmem:[%s1 + $0x5c] sm:$0xf]
  %v55 = vld [vmem:[%s1 + $0x60] sm:$0xf]
  %v56 = vld [vmem:[%s1 + $0x64] sm:$0xf]
  %v57 = vld [vmem:[%s1 + $0x68] sm:$0xf]
  %v58 = vld [vmem:[%s1 + $0x6c] sm:$0xf]
  %v59 = vld [vmem:[%s1 + $0x70] sm:$0xf]
  %v60 = vld [vmem:[%s1 + $0x74] sm:$0xf]
  %v61 = vld [vmem:[%s1 + $0x78] sm:$0xf]
  %v62 = vld [vmem:[%s1 + $0x7c] sm:$0xf]
  %v63 = vld [vmem:[%s2] sm:$0x1]
  %v65 = vlaneseq
  %v66 = vshrl.u32 %v65, 7
  %v67 = vsub.s32 0, %v66
  %v68 = vrot.slane %v63, %v67
  %v86 = vunpack.c.l.b16 %v15
  %v87 = vunpack.c.h.b16 %v15
  %v88 = vunpack.c.l.b16 %v16
  %v89 = vunpack.c.h.b16 %v16
  %v90 = vunpack.c.l.b16 %v17
  %v91 = vunpack.c.h.b16 %v17
  %v92 = vunpack.c.l.b16 %v18
  %v93 = vunpack.c.h.b16 %v18
  %v94 = vunpack.c.l.b16 %v19
  %v95 = vunpack.c.h.b16 %v19
  %v96 = vunpack.c.l.b16 %v20
  %v97 = vunpack.c.h.b16 %v20
  %v98 = vunpack.c.l.b16 %v21
  %v99 = vunpack.c.h.b16 %v21
  %v100 = vunpack.c.l.b16 %v22
  %v101 = vunpack.c.h.b16 %v22
  %v102 = vunpack.c.l.b16 %v23
  %v103 = vunpack.c.h.b16 %v23
  %v104 = vunpack.c.l.b16 %v24
  %v105 = vunpack.c.h.b16 %v24
  %v106 = vunpack.c.l.b16 %v25
  %v107 = vunpack.c.h.b16 %v25
  %v108 = vunpack.c.l.b16 %v26
  %v109 = vunpack.c.h.b16 %v26
  %v110 = vunpack.c.l.b16 %v27
  %v111 = vunpack.c.h.b16 %v27
  %v112 = vunpack.c.l.b16 %v28
  %v113 = vunpack.c.h.b16 %v28
  %v114 = vunpack.c.l.b16 %v29
  %v115 = vunpack.c.h.b16 %v29
  %v116 = vunpack.c.l.b16 %v30
  %v117 = vunpack.c.h.b16 %v30
  %v118 = vpack.c.b16 %v88, %v86
  %v119 = vpack.c.b16 %v89, %v87
  %v120 = vpack.c.b16 %v92, %v90
  %v121 = vpack.c.b16 %v93, %v91
  %v122 = vpack.c.b16 %v96, %v94
  %v123 = vpack.c.b16 %v97, %v95
  %v124 = vpack.c.b16 %v100, %v98
  %v125 = vpack.c.b16 %v101, %v99
  %v126 = vpack.c.b16 %v104, %v102
  %v127 = vpack.c.b16 %v105, %v103
  %v128 = vpack.c.b16 %v108, %v106
  %v129 = vpack.c.b16 %v109, %v107
  %v130 = vpack.c.b16 %v112, %v110
  %v131 = vpack.c.b16 %v113, %v111
  %v132 = vpack.c.b16 %v116, %v114
  %v133 = vpack.c.b16 %v117, %v115
  %v182 = vunpack.c.l.b16 %v31
  %v183 = vunpack.c.l.b16 %v32
  %v184 = vunpack.c.l.b16 %v33
  %v185 = vunpack.c.l.b16 %v34
  %v186 = vunpack.c.l.b16 %v35
  %v187 = vunpack.c.l.b16 %v36
  %v188 = vunpack.c.l.b16 %v37
  %v189 = vunpack.c.l.b16 %v38
  %v190 = vunpack.c.l.b16 %v39
  %v191 = vunpack.c.l.b16 %v40
  %v192 = vunpack.c.l.b16 %v41
  %v193 = vunpack.c.l.b16 %v42
  %v194 = vunpack.c.l.b16 %v43
  %v195 = vunpack.c.l.b16 %v44
  %v196 = vunpack.c.l.b16 %v45
  %v197 = vunpack.c.l.b16 %v46
  %v198 = vunpack.c.l.b16 %v47
  %v199 = vunpack.c.l.b16 %v48
  %v200 = vunpack.c.l.b16 %v49
  %v201 = vunpack.c.l.b16 %v50
  %v202 = vunpack.c.l.b16 %v51
  %v203 = vunpack.c.l.b16 %v52
  %v204 = vunpack.c.l.b16 %v53
  %v205 = vunpack.c.l.b16 %v54
  %v206 = vunpack.c.l.b16 %v55
  %v207 = vunpack.c.l.b16 %v56
  %v208 = vunpack.c.l.b16 %v57
  %v209 = vunpack.c.l.b16 %v58
  %v210 = vunpack.c.l.b16 %v59
  %v211 = vunpack.c.l.b16 %v60
  %v212 = vunpack.c.l.b16 %v61
  %v213 = vunpack.c.l.b16 %v62
  %v214 = vpack.c.b16 %v183, %v182
  %v215 = vpack.c.b16 %v185, %v184
  %v216 = vpack.c.b16 %v187, %v186
  %v217 = vpack.c.b16 %v189, %v188
  %v218 = vpack.c.b16 %v191, %v190
  %v219 = vpack.c.b16 %v193, %v192
  %v220 = vpack.c.b16 %v195, %v194
  %v221 = vpack.c.b16 %v197, %v196
  %v222 = vpack.c.b16 %v199, %v198
  %v223 = vpack.c.b16 %v201, %v200
  %v224 = vpack.c.b16 %v203, %v202
  %v225 = vpack.c.b16 %v205, %v204
  %v226 = vpack.c.b16 %v207, %v206
  %v227 = vpack.c.b16 %v209, %v208
  %v228 = vpack.c.b16 %v211, %v210
  %v229 = vpack.c.b16 %v213, %v212
  %246 = vmatprep.subr.bf16.mxu0 0
  %247 = vmatpush1.bf16.msra.mxu0 %v214
  %248 = vmatprep.subr.bf16.mxu0 0
  %249 = vmatpush1.bf16.msra.mxu0 %v215
  %250 = vmatprep.subr.bf16.mxu0 0
  %251 = vmatpush1.bf16.msra.mxu0 %v216
  %252 = vmatprep.subr.bf16.mxu0 0
  %253 = vmatpush1.bf16.msra.mxu0 %v217
  %254 = vmatprep.subr.bf16.mxu0 0
  %255 = vmatpush1.bf16.msra.mxu0 %v218
  %256 = vmatprep.subr.bf16.mxu0 0
  %257 = vmatpush1.bf16.msra.mxu0 %v219
  %258 = vmatprep.subr.bf16.mxu0 0
  %259 = vmatpush1.bf16.msra.mxu0 %v220
  %260 = vmatprep.subr.bf16.mxu0 0
  %261 = vmatpush1.bf16.msra.mxu0 %v221
  %262 = vmatprep.subr.bf16.mxu0 0
  %263 = vmatpush1.bf16.msra.mxu0 %v222
  %264 = vmatprep.subr.bf16.mxu0 0
  %265 = vmatpush1.bf16.msra.mxu0 %v223
  %266 = vmatprep.subr.bf16.mxu0 0
  %267 = vmatpush1.bf16.msra.mxu0 %v224
  %268 = vmatprep.subr.bf16.mxu0 0
  %269 = vmatpush1.bf16.msra.mxu0 %v225
  %270 = vmatprep.subr.bf16.mxu0 0
  %271 = vmatpush1.bf16.msra.mxu0 %v226
  %272 = vmatprep.subr.bf16.mxu0 0
  %273 = vmatpush1.bf16.msra.mxu0 %v227
  %274 = vmatprep.subr.bf16.mxu0 0
  %275 = vmatpush1.bf16.msra.mxu0 %v228
  %276 = vmatprep.subr.bf16.mxu0 0
  %277 = vmatpush1.bf16.msra.mxu0 %v229
  %278 = vmatprep.mubr.bf16.mxu0 %v119
  %279 = vmatmul.mubr.bf16.gmra.mrb[0].mxu0 %v118
  %v280 = vpop.f32.mrb[0].mxu0
  %v281 = vadd.f32 %v68, %v280
  %v282 = vpop.f32.mrb[0].mxu0
  %v283 = vpop.f32.mrb[0].mxu0
  %v284 = vadd.f32 %v68, %v283
  %v285 = vpop.f32.mrb[0].mxu0
  %286 = vmatprep.mubr.bf16.mxu0 %v121
  %287 = vmatmul.mubr.bf16.gmra.mrb[0].mxu0 %v120
  %v288 = vpop.f32.mrb[0].mxu0
  %v289 = vadd.f32 %v68, %v288
  %v290 = vpop.f32.mrb[0].mxu0
  %v291 = vpop.f32.mrb[0].mxu0
  %v292 = vadd.f32 %v68, %v291
  %v293 = vpop.f32.mrb[0].mxu0
  %294 = vmatprep.mubr.bf16.mxu0 %v123
  %295 = vmatmul.mubr.bf16.gmra.mrb[0].mxu0 %v122
  %v296 = vpop.f32.mrb[0].mxu0
  %v297 = vadd.f32 %v68, %v296
  %v298 = vpop.f32.mrb[0].mxu0
  %v299 = vpop.f32.mrb[0].mxu0
  %v300 = vadd.f32 %v68, %v299
  %v301 = vpop.f32.mrb[0].mxu0
  %302 = vmatprep.mubr.bf16.mxu0 %v125
  %303 = vmatmul.mubr.bf16.gmra.mrb[0].mxu0 %v124
  %v304 = vpop.f32.mrb[0].mxu0
  %v305 = vadd.f32 %v68, %v304
  %v306 = vpop.f32.mrb[0].mxu0
  %v307 = vpop.f32.mrb[0].mxu0
  %v308 = vadd.f32 %v68, %v307
  %v309 = vpop.f32.mrb[0].mxu0
  %310 = vmatprep.mubr.bf16.mxu0 %v127
  %311 = vmatmul.mubr.bf16.gmra.mrb[0].mxu0 %v126
  %v312 = vpop.f32.mrb[0].mxu0
  %v313 = vadd.f32 %v68, %v312
  %v314 = vpop.f32.mrb[0].mxu0
  %v315 = vpop.f32.mrb[0].mxu0
  %v316 = vadd.f32 %v68, %v315
  %v317 = vpop.f32.mrb[0].mxu0
  %318 = vmatprep.mubr.bf16.mxu0 %v129
  %319 = vmatmul.mubr.bf16.gmra.mrb[0].mxu0 %v128
  %v320 = vpop.f32.mrb[0].mxu0
  %v321 = vadd.f32 %v68, %v320
  %v322 = vpop.f32.mrb[0].mxu0
  %v323 = vpop.f32.mrb[0].mxu0
  %v324 = vadd.f32 %v68, %v323
  %v325 = vpop.f32.mrb[0].mxu0
  %326 = vmatprep.mubr.bf16.mxu0 %v131
  %327 = vmatmul.mubr.bf16.gmra.mrb[0].mxu0 %v130
  %v328 = vpop.f32.mrb[0].mxu0
  %v329 = vadd.f32 %v68, %v328
  %v330 = vpop.f32.mrb[0].mxu0
  %v331 = vpop.f32.mrb[0].mxu0
  %v332 = vadd.f32 %v68, %v331
  %v333 = vpop.f32.mrb[0].mxu0
  %334 = vmatprep.mubr.bf16.mxu0 %v133
  %335 = vmatmul.mubr.bf16.gmra.mrb[0].mxu0 %v132
  %v336 = vpop.f32.mrb[0].mxu0
  %v337 = vadd.f32 %v68, %v336
  %v338 = vpop.f32.mrb[0].mxu0
  %v339 = vpop.f32.mrb[0].mxu0
  %v340 = vadd.f32 %v68, %v339
  %v341 = vpop.f32.mrb[0].mxu0
  %342 = vdwg.mxu0
  %vm343 = vcmp.ge.f32.partialorder %v281, 0.0
  %vm344 = vcmp.ge.f32.partialorder %v284, 0.0
  %vm345 = vcmp.ge.f32.partialorder %v289, 0.0
  %vm346 = vcmp.ge.f32.partialorder %v292, 0.0
  %vm347 = vcmp.ge.f32.partialorder %v297, 0.0
  %vm348 = vcmp.ge.f32.partialorder %v300, 0.0
  %vm349 = vcmp.ge.f32.partialorder %v305, 0.0
  %vm350 = vcmp.ge.f32.partialorder %v308, 0.0
  %vm351 = vcmp.ge.f32.partialorder %v313, 0.0
  %vm352 = vcmp.ge.f32.partialorder %v316, 0.0
  %vm353 = vcmp.ge.f32.partialorder %v321, 0.0
  %vm354 = vcmp.ge.f32.partialorder %v324, 0.0
  %vm355 = vcmp.ge.f32.partialorder %v329, 0.0
  %vm356 = vcmp.ge.f32.partialorder %v332, 0.0
  %vm357 = vcmp.ge.f32.partialorder %v337, 0.0
  %vm358 = vcmp.ge.f32.partialorder %v340, 0.0
  %v359 = vmul.f32 %v281, 0.2
  %v360 = vmul.f32 %v284, 0.2
  %v361 = vmul.f32 %v289, 0.2
  %v362 = vmul.f32 %v292, 0.2
  %v363 = vmul.f32 %v297, 0.2
  %v364 = vmul.f32 %v300, 0.2
  %v365 = vmul.f32 %v305, 0.2
  %v366 = vmul.f32 %v308, 0.2
  %v367 = vmul.f32 %v313, 0.2
  %v368 = vmul.f32 %v316, 0.2
  %v369 = vmul.f32 %v321, 0.2
  %v370 = vmul.f32 %v324, 0.2
  %v371 = vmul.f32 %v329, 0.2
  %v372 = vmul.f32 %v332, 0.2
  %v373 = vmul.f32 %v337, 0.2
  %v374 = vmul.f32 %v340, 0.2
  %v375 = vsel %vm343, %v281, %v359
  %v376 = vsel %vm344, %v284, %v360
  %v377 = vsel %vm345, %v289, %v361
  %v378 = vsel %vm346, %v292, %v362
  %v379 = vsel %vm347, %v297, %v363
  %v380 = vsel %vm348, %v300, %v364
  %v381 = vsel %vm349, %v305, %v365
  %v382 = vsel %vm350, %v308, %v366
  %v383 = vsel %vm351, %v313, %v367
  %v384 = vsel %vm352, %v316, %v368
  %v385 = vsel %vm353, %v321, %v369
  %v386 = vsel %vm354, %v324, %v370
  %v387 = vsel %vm355, %v329, %v371
  %v388 = vsel %vm356, %v332, %v372
  %v389 = vsel %vm357, %v337, %v373
  %v390 = vsel %vm358, %v340, %v374
  %391 = vst [vmem:[%s3] sm:$0xff] %v375
  %392 = vst [vmem:[%s3 + $0x8] sm:$0xff] %v376
  %393 = vst [vmem:[%s3 + $0x10] sm:$0xff] %v377
  %394 = vst [vmem:[%s3 + $0x18] sm:$0xff] %v378
  %395 = vst [vmem:[%s3 + $0x20] sm:$0xff] %v379
  %396 = vst [vmem:[%s3 + $0x28] sm:$0xff] %v380
  %397 = vst [vmem:[%s3 + $0x30] sm:$0xff] %v381
  %398 = vst [vmem:[%s3 + $0x38] sm:$0xff] %v382
  %399 = vst [vmem:[%s3 + $0x40] sm:$0xff] %v383
  %400 = vst [vmem:[%s3 + $0x48] sm:$0xff] %v384
  %401 = vst [vmem:[%s3 + $0x50] sm:$0xff] %v385
  %402 = vst [vmem:[%s3 + $0x58] sm:$0xff] %v386
  %403 = vst [vmem:[%s3 + $0x60] sm:$0xff] %v387
  %404 = vst [vmem:[%s3 + $0x68] sm:$0xff] %v388
  %405 = vst [vmem:[%s3 + $0x70] sm:$0xff] %v389
  %406 = vst [vmem:[%s3 + $0x78] sm:$0xff] %v390
  // Predicated region
  $region14: #{_lambda_.63} parent=0 // pred_check
    _
  $region15: #{_lambda_.63} parent=0 // pred_check_branch
    %408 = sbr.rel (0) target = $region17
  $region16: #{_lambda_.63} parent=0 // pred_region
    _
  $region17: #{_lambda_.63} parent=0 // pred_fallthru
    _
  // Predicated region
  $region18: #{_lambda_.63} parent=0 // pred_check
    _
  $region19: #{_lambda_.63} parent=0 // pred_check_branch
    %410 = sbr.rel (0) target = $region21
  $region20: #{_lambda_.63} parent=0 // pred_region
    _
  $region21: #{_lambda_.63} parent=0 // pred_fallthru
    _

// kernel: _lambda_.65
$region0: #{_lambda_.65}
  #allocation0 [shape = 'u32[]', space=smem, size = 0x4, offset = 0x4, fixed_abs, tag = 'smem constant byte address 0x4 - core index']
  #allocation1 [shape = 'u32[144,128]{1,0:T(1,128)}', space=vmem, size = 0x12000, scoped, tag = 'internal scratch']
  %s0 = inlined_call_operand.vmem [shape: bf16[128,128], index: 0, kind: input, shape index: {}]
  %s1 = inlined_call_operand.vmem [shape: bf16[128,128], index: 1, kind: input, shape index: {}]
  %s2 = inlined_call_operand.vmem [shape: f32[1,128], index: 2, kind: input, shape index: {}]
  %s3 = inlined_call_operand.vmem [shape: f32[128,128], index: 3, kind: input, shape index: {}]
  %s4 = inlined_call_operand.vmem [shape: f32[128,128], index: 4, kind: output, shape index: {}]
  %s5 = sld [smem:[#allocation0]]
  $region26: #{_lambda_.65} parent=0
    _
  %s7 = ssub.s32 1, %s5
  %s8 = scalar_select 0, %s7, %s5
  // Predicated region
  $region2: #{_lambda_.65} parent=0 // pred_check
    _
  $region3: #{_lambda_.65} parent=0 // pred_check_branch
    %10 = sbr.rel (0) target = $region5
  $region4: #{_lambda_.65} parent=0 // pred_region
    _
  $region5: #{_lambda_.65} parent=0 // pred_fallthru
    _
  // Predicated region
  $region6: #{_lambda_.65} parent=0 // pred_check
    _
  $region7: #{_lambda_.65} parent=0 // pred_check_branch
    %12 = sbr.rel (0) target = $region9
  $region8: #{_lambda_.65} parent=0 // pred_region
    _
  $region9: #{_lambda_.65} parent=0 // pred_fallthru
    _
  // Predicated region
  $region10: #{_lambda_.65} parent=0 // pred_check
    _
  $region11: #{_lambda_.65} parent=0 // pred_check_branch
    %14 = sbr.rel (0) target = $region13
  $region12: #{_lambda_.65} parent=0 // pred_region
    _
  $region13: #{_lambda_.65} parent=0 // pred_fallthru
    _
  // Predicated region
  $region14: #{_lambda_.65} parent=0 // pred_check
    _
  $region15: #{_lambda_.65} parent=0 // pred_check_branch
    %16 = sbr.rel (0) target = $region17
  $region16: #{_lambda_.65} parent=0 // pred_region
    _
  $region17: #{_lambda_.65} parent=0 // pred_fallthru
    _
  %v18 = vld [vmem:[%s0] sm:$0xf]
  %v19 = vld [vmem:[%s0 + $0x4] sm:$0xf]
  %v20 = vld [vmem:[%s0 + $0x8] sm:$0xf]
  %v21 = vld [vmem:[%s0 + $0xc] sm:$0xf]
  %v22 = vld [vmem:[%s0 + $0x10] sm:$0xf]
  %v23 = vld [vmem:[%s0 + $0x14] sm:$0xf]
  %v24 = vld [vmem:[%s0 + $0x18] sm:$0xf]
  %v25 = vld [vmem:[%s0 + $0x1c] sm:$0xf]
  %v26 = vld [vmem:[%s0 + $0x20] sm:$0xf]
  %v27 = vld [vmem:[%s0 + $0x24] sm:$0xf]
  %v28 = vld [vmem:[%s0 + $0x28] sm:$0xf]
  %v29 = vld [vmem:[%s0 + $0x2c] sm:$0xf]
  %v30 = vld [vmem:[%s0 + $0x30] sm:$0xf]
  %v31 = vld [vmem:[%s0 + $0x34] sm:$0xf]
  %v32 = vld [vmem:[%s0 + $0x38] sm:$0xf]
  %v33 = vld [vmem:[%s0 + $0x3c] sm:$0xf]
  %v34 = vld [vmem:[%s1] sm:$0xf]
  %v35 = vld [vmem:[%s1 + $0x4] sm:$0xf]
  %v36 = vld [vmem:[%s1 + $0x8] sm:$0xf]
  %v37 = vld [vmem:[%s1 + $0xc] sm:$0xf]
  %v38 = vld [vmem:[%s1 + $0x10] sm:$0xf]
  %v39 = vld [vmem:[%s1 + $0x14] sm:$0xf]
  %v40 = vld [vmem:[%s1 + $0x18] sm:$0xf]
  %v41 = vld [vmem:[%s1 + $0x1c] sm:$0xf]
  %v42 = vld [vmem:[%s1 + $0x20] sm:$0xf]
  %v43 = vld [vmem:[%s1 + $0x24] sm:$0xf]
  %v44 = vld [vmem:[%s1 + $0x28] sm:$0xf]
  %v45 = vld [vmem:[%s1 + $0x2c] sm:$0xf]
  %v46 = vld [vmem:[%s1 + $0x30] sm:$0xf]
  %v47 = vld [vmem:[%s1 + $0x34] sm:$0xf]
  %v48 = vld [vmem:[%s1 + $0x38] sm:$0xf]
  %v49 = vld [vmem:[%s1 + $0x3c] sm:$0xf]
  %v50 = vld [vmem:[%s2] sm:$0x1]
  %v52 = vlaneseq
  %v53 = vshrl.u32 %v52, 7
  %v54 = vsub.s32 0, %v53
  %v55 = vrot.slane %v50, %v54
  %v73 = vunpack.c.l.b16 %v18
  %v74 = vunpack.c.l.b16 %v19
  %v75 = vunpack.c.l.b16 %v20
  %v76 = vunpack.c.l.b16 %v21
  %v77 = vunpack.c.l.b16 %v22
  %v78 = vunpack.c.l.b16 %v23
  %v79 = vunpack.c.l.b16 %v24
  %v80 = vunpack.c.l.b16 %v25
  %v81 = vunpack.c.l.b16 %v26
  %v82 = vunpack.c.l.b16 %v27
  %v83 = vunpack.c.l.b16 %v28
  %v84 = vunpack.c.l.b16 %v29
  %v85 = vunpack.c.l.b16 %v30
  %v86 = vunpack.c.l.b16 %v31
  %v87 = vunpack.c.l.b16 %v32
  %v88 = vunpack.c.l.b16 %v33
  %v89 = vpack.c.b16 %v74, %v73
  %v90 = vpack.c.b16 %v76, %v75
  %v91 = vpack.c.b16 %v78, %v77
  %v92 = vpack.c.b16 %v80, %v79
  %v93 = vpack.c.b16 %v82, %v81
  %v94 = vpack.c.b16 %v84, %v83
  %v95 = vpack.c.b16 %v86, %v85
  %v96 = vpack.c.b16 %v88, %v87
  %v121 = vunpack.c.l.b16 %v34
  %v122 = vunpack.c.l.b16 %v35
  %v123 = vunpack.c.l.b16 %v36
  %v124 = vunpack.c.l.b16 %v37
  %v125 = vunpack.c.l.b16 %v38
  %v126 = vunpack.c.l.b16 %v39
  %v127 = vunpack.c.l.b16 %v40
  %v128 = vunpack.c.l.b16 %v41
  %v129 = vunpack.c.l.b16 %v42
  %v130 = vunpack.c.l.b16 %v43
  %v131 = vunpack.c.l.b16 %v44
  %v132 = vunpack.c.l.b16 %v45
  %v133 = vunpack.c.l.b16 %v46
  %v134 = vunpack.c.l.b16 %v47
  %v135 = vunpack.c.l.b16 %v48
  %v136 = vunpack.c.l.b16 %v49
  %v137 = vpack.c.b16 %v122, %v121
  %v138 = vpack.c.b16 %v124, %v123
  %v139 = vpack.c.b16 %v126, %v125
  %v140 = vpack.c.b16 %v128, %v127
  %v141 = vpack.c.b16 %v130, %v129
  %v142 = vpack.c.b16 %v132, %v131
  %v143 = vpack.c.b16 %v134, %v133
  %v144 = vpack.c.b16 %v136, %v135
  %153 = vmatprep.subr.bf16.mxu0 0
  %154 = vmatpush1.bf16.msra.mxu0 %v137
  %155 = vmatprep.subr.bf16.mxu0 0
  %156 = vmatpush1.bf16.msra.mxu0 %v138
  %157 = vmatprep.subr.bf16.mxu0 0
  %158 = vmatpush1.bf16.msra.mxu0 %v139
  %159 = vmatprep.subr.bf16.mxu0 0
  %160 = vmatpush1.bf16.msra.mxu0 %v140
  %161 = vmatprep.subr.bf16.mxu0 0
  %162 = vmatpush1.bf16.msra.mxu0 %v141
  %163 = vmatprep.subr.bf16.mxu0 0
  %164 = vmatpush1.bf16.msra.mxu0 %v142
  %165 = vmatprep.subr.bf16.mxu0 0
  %166 = vmatpush1.bf16.msra.mxu0 %v143
  %167 = vmatprep.subr.bf16.mxu0 0
  %168 = vmatpush1.bf16.msra.mxu0 %v144
  %169 = vmatprep.subr.bf16.mxu0 0
  %170 = vmatpush1.bf16.msra.mxu0 0
  %171 = vmatprep.subr.bf16.mxu0 0
  %172 = vmatpush1.bf16.msra.mxu0 0
  %173 = vmatprep.subr.bf16.mxu0 0
  %174 = vmatpush1.bf16.msra.mxu0 0
  %175 = vmatprep.subr.bf16.mxu0 0
  %176 = vmatpush1.bf16.msra.mxu0 0
  %177 = vmatprep.subr.bf16.mxu0 0
  %178 = vmatpush1.bf16.msra.mxu0 0
  %179 = vmatprep.subr.bf16.mxu0 0
  %180 = vmatpush1.bf16.msra.mxu0 0
  %181 = vmatprep.subr.bf16.mxu0 0
  %182 = vmatpush1.bf16.msra.mxu0 0
  %183 = vmatprep.subr.bf16.mxu0 0
  %184 = vmatpush1.bf16.msra.mxu0 0
  %185 = vmatprep.mubr.bf16.mxu0 0
  %186 = vmatmul.mubr.bf16.gmra.mrb[0].mxu0 %v89
  %v187 = vpop.f32.mrb[0].mxu0
  %v188 = vadd.f32 %v55, %v187
  %v189 = vpop.f32.mrb[0].mxu0
  %v190 = vpop.f32.mrb[0].mxu0
  %v191 = vadd.f32 %v55, %v190
  %v192 = vpop.f32.mrb[0].mxu0
  %193 = vmatprep.mubr.bf16.mxu0 0
  %194 = vmatmul.mubr.bf16.gmra.mrb[0].mxu0 %v90
  %v195 = vpop.f32.mrb[0].mxu0
  %v196 = vadd.f32 %v55, %v195
  %v197 = vpop.f32.mrb[0].mxu0
  %v198 = vpop.f32.mrb[0].mxu0
  %v199 = vadd.f32 %v55, %v198
  %v200 = vpop.f32.mrb[0].mxu0
  %201 = vmatprep.mubr.bf16.mxu0 0
  %202 = vmatmul.mubr.bf16.gmra.mrb[0].mxu0 %v91
  %v203 = vpop.f32.mrb[0].mxu0
  %v204 = vadd.f32 %v55, %v203
  %v205 = vpop.f32.mrb[0].mxu0
  %v206 = vpop.f32.mrb[0].mxu0
  %v207 = vadd.f32 %v55, %v206
  %v208 = vpop.f32.mrb[0].mxu0
  %209 = vmatprep.mubr.bf16.mxu0 0
  %210 = vmatmul.mubr.bf16.gmra.mrb[0].mxu0 %v92
  %v211 = vpop.f32.mrb[0].mxu0
  %v212 = vadd.f32 %v55, %v211
  %v213 = vpop.f32.mrb[0].mxu0
  %v214 = vpop.f32.mrb[0].mxu0
  %v215 = vadd.f32 %v55, %v214
  %v216 = vpop.f32.mrb[0].mxu0
  %217 = vmatprep.mubr.bf16.mxu0 0
  %218 = vmatmul.mubr.bf16.gmra.mrb[0].mxu0 %v93
  %v219 = vpop.f32.mrb[0].mxu0
  %v220 = vadd.f32 %v55, %v219
  %v221 = vpop.f32.mrb[0].mxu0
  %v222 = vpop.f32.mrb[0].mxu0
  %v223 = vadd.f32 %v55, %v222
  %v224 = vpop.f32.mrb[0].mxu0
  %225 = vmatprep.mubr.bf16.mxu0 0
  %226 = vmatmul.mubr.bf16.gmra.mrb[0].mxu0 %v94
  %v227 = vpop.f32.mrb[0].mxu0
  %v228 = vadd.f32 %v55, %v227
  %v229 = vpop.f32.mrb[0].mxu0
  %v230 = vpop.f32.mrb[0].mxu0
  %v231 = vadd.f32 %v55, %v230
  %v232 = vpop.f32.mrb[0].mxu0
  %233 = vmatprep.mubr.bf16.mxu0 0
  %234 = vmatmul.mubr.bf16.gmra.mrb[0].mxu0 %v95
  %v235 = vpop.f32.mrb[0].mxu0
  %v236 = vadd.f32 %v55, %v235
  %v237 = vpop.f32.mrb[0].mxu0
  %v238 = vpop.f32.mrb[0].mxu0
  %v239 = vadd.f32 %v55, %v238
  %v240 = vpop.f32.mrb[0].mxu0
  %241 = vmatprep.mubr.bf16.mxu0 0
  %242 = vmatmul.mubr.bf16.gmra.mrb[0].mxu0 %v96
  %v243 = vpop.f32.mrb[0].mxu0
  %v244 = vadd.f32 %v55, %v243
  %v245 = vpop.f32.mrb[0].mxu0
  %v246 = vpop.f32.mrb[0].mxu0
  %v247 = vadd.f32 %v55, %v246
  %v248 = vpop.f32.mrb[0].mxu0
  %249 = vdwg.mxu0
  %v250 = vld [vmem:[%s3] sm:$0xff]
  %v251 = vld [vmem:[%s3 + $0x8] sm:$0xff]
  %v252 = vld [vmem:[%s3 + $0x10] sm:$0xff]
  %v253 = vld [vmem:[%s3 + $0x18] sm:$0xff]
  %v254 = vld [vmem:[%s3 + $0x20] sm:$0xff]
  %v255 = vld [vmem:[%s3 + $0x28] sm:$0xff]
  %v256 = vld [vmem:[%s3 + $0x30] sm:$0xff]
  %v257 = vld [vmem:[%s3 + $0x38] sm:$0xff]
  %v258 = vld [vmem:[%s3 + $0x40] sm:$0xff]
  %v259 = vld [vmem:[%s3 + $0x48] sm:$0xff]
  %v260 = vld [vmem:[%s3 + $0x50] sm:$0xff]
  %v261 = vld [vmem:[%s3 + $0x58] sm:$0xff]
  %v262 = vld [vmem:[%s3 + $0x60] sm:$0xff]
  %v263 = vld [vmem:[%s3 + $0x68] sm:$0xff]
  %v264 = vld [vmem:[%s3 + $0x70] sm:$0xff]
  %v265 = vld [vmem:[%s3 + $0x78] sm:$0xff]
  %v266 = vadd.f32 %v188, %v250
  %v267 = vadd.f32 %v191, %v251
  %v268 = vadd.f32 %v196, %v252
  %v269 = vadd.f32 %v199, %v253
  %v270 = vadd.f32 %v204, %v254
  %v271 = vadd.f32 %v207, %v255
  %v272 = vadd.f32 %v212, %v256
  %v273 = vadd.f32 %v215, %v257
  %v274 = vadd.f32 %v220, %v258
  %v275 = vadd.f32 %v223, %v259
  %v276 = vadd.f32 %v228, %v260
  %v277 = vadd.f32 %v231, %v261
  %v278 = vadd.f32 %v236, %v262
  %v279 = vadd.f32 %v239, %v263
  %v280 = vadd.f32 %v244, %v264
  %v281 = vadd.f32 %v247, %v265
  %vm282 = vcmp.ge.f32.partialorder %v266, 0.0
  %vm283 = vcmp.ge.f32.partialorder %v267, 0.0
  %vm284 = vcmp.ge.f32.partialorder %v268, 0.0
  %vm285 = vcmp.ge.f32.partialorder %v269, 0.0
  %vm286 = vcmp.ge.f32.partialorder %v270, 0.0
  %vm287 = vcmp.ge.f32.partialorder %v271, 0.0
  %vm288 = vcmp.ge.f32.partialorder %v272, 0.0
  %vm289 = vcmp.ge.f32.partialorder %v273, 0.0
  %vm290 = vcmp.ge.f32.partialorder %v274, 0.0
  %vm291 = vcmp.ge.f32.partialorder %v275, 0.0
  %vm292 = vcmp.ge.f32.partialorder %v276, 0.0
  %vm293 = vcmp.ge.f32.partialorder %v277, 0.0
  %vm294 = vcmp.ge.f32.partialorder %v278, 0.0
  %vm295 = vcmp.ge.f32.partialorder %v279, 0.0
  %vm296 = vcmp.ge.f32.partialorder %v280, 0.0
  %vm297 = vcmp.ge.f32.partialorder %v281, 0.0
  %v298 = vmul.f32 %v266, 0.2
  %v299 = vmul.f32 %v267, 0.2
  %v300 = vmul.f32 %v268, 0.2
  %v301 = vmul.f32 %v269, 0.2
  %v302 = vmul.f32 %v270, 0.2
  %v303 = vmul.f32 %v271, 0.2
  %v304 = vmul.f32 %v272, 0.2
  %v305 = vmul.f32 %v273, 0.2
  %v306 = vmul.f32 %v274, 0.2
  %v307 = vmul.f32 %v275, 0.2
  %v308 = vmul.f32 %v276, 0.2
  %v309 = vmul.f32 %v277, 0.2
  %v310 = vmul.f32 %v278, 0.2
  %v311 = vmul.f32 %v279, 0.2
  %v312 = vmul.f32 %v280, 0.2
  %v313 = vmul.f32 %v281, 0.2
  %v314 = vsel %vm282, %v266, %v298
  %v315 = vsel %vm283, %v267, %v299
  %v316 = vsel %vm284, %v268, %v300
  %v317 = vsel %vm285, %v269, %v301
  %v318 = vsel %vm286, %v270, %v302
  %v319 = vsel %vm287, %v271, %v303
  %v320 = vsel %vm288, %v272, %v304
  %v321 = vsel %vm289, %v273, %v305
  %v322 = vsel %vm290, %v274, %v306
  %v323 = vsel %vm291, %v275, %v307
  %v324 = vsel %vm292, %v276, %v308
  %v325 = vsel %vm293, %v277, %v309
  %v326 = vsel %vm294, %v278, %v310
  %v327 = vsel %vm295, %v279, %v311
  %v328 = vsel %vm296, %v280, %v312
  %v329 = vsel %vm297, %v281, %v313
  %330 = vst [vmem:[%s4] sm:$0xff] %v314
  %331 = vst [vmem:[%s4 + $0x8] sm:$0xff] %v315
  %332 = vst [vmem:[%s4 + $0x10] sm:$0xff] %v316
  %333 = vst [vmem:[%s4 + $0x18] sm:$0xff] %v317
  %334 = vst [vmem:[%s4 + $0x20] sm:$0xff] %v318
  %335 = vst [vmem:[%s4 + $0x28] sm:$0xff] %v319
  %336 = vst [vmem:[%s4 + $0x30] sm:$0xff] %v320
  %337 = vst [vmem:[%s4 + $0x38] sm:$0xff] %v321
  %338 = vst [vmem:[%s4 + $0x40] sm:$0xff] %v322
  %339 = vst [vmem:[%s4 + $0x48] sm:$0xff] %v323
  %340 = vst [vmem:[%s4 + $0x50] sm:$0xff] %v324
  %341 = vst [vmem:[%s4 + $0x58] sm:$0xff] %v325
  %342 = vst [vmem:[%s4 + $0x60] sm:$0xff] %v326
  %343 = vst [vmem:[%s4 + $0x68] sm:$0xff] %v327
  %344 = vst [vmem:[%s4 + $0x70] sm:$0xff] %v328
  %345 = vst [vmem:[%s4 + $0x78] sm:$0xff] %v329
  // Predicated region
  $region18: #{_lambda_.65} parent=0 // pred_check
    _
  $region19: #{_lambda_.65} parent=0 // pred_check_branch
    %347 = sbr.rel (0) target = $region21
  $region20: #{_lambda_.65} parent=0 // pred_region
    _
  $region21: #{_lambda_.65} parent=0 // pred_fallthru
    _
  // Predicated region
  $region22: #{_lambda_.65} parent=0 // pred_check
    _
  $region23: #{_lambda_.65} parent=0 // pred_check_branch
    %349 = sbr.rel (0) target = $region25
  $region24: #{_lambda_.65} parent=0 // pred_region
    _
  $region25: #{_lambda_.65} parent=0 // pred_fallthru
    _

// kernel: _lambda_.66
$region0: #{_lambda_.66}
  #allocation0 [shape = 'u32[]', space=smem, size = 0x4, offset = 0x4, fixed_abs, tag = 'smem constant byte address 0x4 - core index']
  #allocation1 [shape = 'u32[144,128]{1,0:T(1,128)}', space=vmem, size = 0x12000, scoped, tag = 'internal scratch']
  %s0 = inlined_call_operand.vmem [shape: bf16[128,128], index: 0, kind: input, shape index: {}]
  %s1 = inlined_call_operand.vmem [shape: bf16[128,128], index: 1, kind: input, shape index: {}]
  %s2 = inlined_call_operand.vmem [shape: f32[1,128], index: 2, kind: input, shape index: {}]
  %s3 = inlined_call_operand.vmem [shape: f32[128,128], index: 3, kind: output, shape index: {}]
  %s4 = sld [smem:[#allocation0]]
  $region22: #{_lambda_.66} parent=0
    _
  %s6 = ssub.s32 1, %s4
  %s7 = scalar_select 0, %s6, %s4
  // Predicated region
  $region2: #{_lambda_.66} parent=0 // pred_check
    _
  $region3: #{_lambda_.66} parent=0 // pred_check_branch
    %9 = sbr.rel (0) target = $region5
  $region4: #{_lambda_.66} parent=0 // pred_region
    _
  $region5: #{_lambda_.66} parent=0 // pred_fallthru
    _
  // Predicated region
  $region6: #{_lambda_.66} parent=0 // pred_check
    _
  $region7: #{_lambda_.66} parent=0 // pred_check_branch
    %11 = sbr.rel (0) target = $region9
  $region8: #{_lambda_.66} parent=0 // pred_region
    _
  $region9: #{_lambda_.66} parent=0 // pred_fallthru
    _
  // Predicated region
  $region10: #{_lambda_.66} parent=0 // pred_check
    _
  $region11: #{_lambda_.66} parent=0 // pred_check_branch
    %13 = sbr.rel (0) target = $region13
  $region12: #{_lambda_.66} parent=0 // pred_region
    _
  $region13: #{_lambda_.66} parent=0 // pred_fallthru
    _
  %v15 = vld [vmem:[%s0] sm:$0xf]
  %v16 = vld [vmem:[%s0 + $0x4] sm:$0xf]
  %v17 = vld [vmem:[%s0 + $0x8] sm:$0xf]
  %v18 = vld [vmem:[%s0 + $0xc] sm:$0xf]
  %v19 = vld [vmem:[%s0 + $0x10] sm:$0xf]
  %v20 = vld [vmem:[%s0 + $0x14] sm:$0xf]
  %v21 = vld [vmem:[%s0 + $0x18] sm:$0xf]
  %v22 = vld [vmem:[%s0 + $0x1c] sm:$0xf]
  %v23 = vld [vmem:[%s0 + $0x20] sm:$0xf]
  %v24 = vld [vmem:[%s0 + $0x24] sm:$0xf]
  %v25 = vld [vmem:[%s0 + $0x28] sm:$0xf]
  %v26 = vld [vmem:[%s0 + $0x2c] sm:$0xf]
  %v27 = vld [vmem:[%s0 + $0x30] sm:$0xf]
  %v28 = vld [vmem:[%s0 + $0x34] sm:$0xf]
  %v29 = vld [vmem:[%s0 + $0x38] sm:$0xf]
  %v30 = vld [vmem:[%s0 + $0x3c] sm:$0xf]
  %v31 = vld [vmem:[%s1] sm:$0xf]
  %v32 = vld [vmem:[%s1 + $0x4] sm:$0xf]
  %v33 = vld [vmem:[%s1 + $0x8] sm:$0xf]
  %v34 = vld [vmem:[%s1 + $0xc] sm:$0xf]
  %v35 = vld [vmem:[%s1 + $0x10] sm:$0xf]
  %v36 = vld [vmem:[%s1 + $0x14] sm:$0xf]
  %v37 = vld [vmem:[%s1 + $0x18] sm:$0xf]
  %v38 = vld [vmem:[%s1 + $0x1c] sm:$0xf]
  %v39 = vld [vmem:[%s1 + $0x20] sm:$0xf]
  %v40 = vld [vmem:[%s1 + $0x24] sm:$0xf]
  %v41 = vld [vmem:[%s1 + $0x28] sm:$0xf]
  %v42 = vld [vmem:[%s1 + $0x2c] sm:$0xf]
  %v43 = vld [vmem:[%s1 + $0x30] sm:$0xf]
  %v44 = vld [vmem:[%s1 + $0x34] sm:$0xf]
  %v45 = vld [vmem:[%s1 + $0x38] sm:$0xf]
  %v46 = vld [vmem:[%s1 + $0x3c] sm:$0xf]
  %v47 = vld [vmem:[%s2] sm:$0x1]
  %v49 = vlaneseq
  %v50 = vshrl.u32 %v49, 7
  %v51 = vsub.s32 0, %v50
  %v52 = vrot.slane %v47, %v51
  %v70 = vunpack.c.l.b16 %v15
  %v71 = vunpack.c.l.b16 %v16
  %v72 = vunpack.c.l.b16 %v17
  %v73 = vunpack.c.l.b16 %v18
  %v74 = vunpack.c.l.b16 %v19
  %v75 = vunpack.c.l.b16 %v20
  %v76 = vunpack.c.l.b16 %v21
  %v77 = vunpack.c.l.b16 %v22
  %v78 = vunpack.c.l.b16 %v23
  %v79 = vunpack.c.l.b16 %v24
  %v80 = vunpack.c.l.b16 %v25
  %v81 = vunpack.c.l.b16 %v26
  %v82 = vunpack.c.l.b16 %v27
  %v83 = vunpack.c.l.b16 %v28
  %v84 = vunpack.c.l.b16 %v29
  %v85 = vunpack.c.l.b16 %v30
  %v86 = vpack.c.b16 %v71, %v70
  %v87 = vpack.c.b16 %v73, %v72
  %v88 = vpack.c.b16 %v75, %v74
  %v89 = vpack.c.b16 %v77, %v76
  %v90 = vpack.c.b16 %v79, %v78
  %v91 = vpack.c.b16 %v81, %v80
  %v92 = vpack.c.b16 %v83, %v82
  %v93 = vpack.c.b16 %v85, %v84
  %v118 = vunpack.c.l.b16 %v31
  %v119 = vunpack.c.l.b16 %v32
  %v120 = vunpack.c.l.b16 %v33
  %v121 = vunpack.c.l.b16 %v34
  %v122 = vunpack.c.l.b16 %v35
  %v123 = vunpack.c.l.b16 %v36
  %v124 = vunpack.c.l.b16 %v37
  %v125 = vunpack.c.l.b16 %v38
  %v126 = vunpack.c.l.b16 %v39
  %v127 = vunpack.c.l.b16 %v40
  %v128 = vunpack.c.l.b16 %v41
  %v129 = vunpack.c.l.b16 %v42
  %v130 = vunpack.c.l.b16 %v43
  %v131 = vunpack.c.l.b16 %v44
  %v132 = vunpack.c.l.b16 %v45
  %v133 = vunpack.c.l.b16 %v46
  %v134 = vpack.c.b16 %v119, %v118
  %v135 = vpack.c.b16 %v121, %v120
  %v136 = vpack.c.b16 %v123, %v122
  %v137 = vpack.c.b16 %v125, %v124
  %v138 = vpack.c.b16 %v127, %v126
  %v139 = vpack.c.b16 %v129, %v128
  %v140 = vpack.c.b16 %v131, %v130
  %v141 = vpack.c.b16 %v133, %v132
  %150 = vmatprep.subr.bf16.mxu0 0
  %151 = vmatpush1.bf16.msra.mxu0 %v134
  %152 = vmatprep.subr.bf16.mxu0 0
  %153 = vmatpush1.bf16.msra.mxu0 %v135
  %154 = vmatprep.subr.bf16.mxu0 0
  %155 = vmatpush1.bf16.msra.mxu0 %v136
  %156 = vmatprep.subr.bf16.mxu0 0
  %157 = vmatpush1.bf16.msra.mxu0 %v137
  %158 = vmatprep.subr.bf16.mxu0 0
  %159 = vmatpush1.bf16.msra.mxu0 %v138
  %160 = vmatprep.subr.bf16.mxu0 0
  %161 = vmatpush1.bf16.msra.mxu0 %v139
  %162 = vmatprep.subr.bf16.mxu0 0
  %163 = vmatpush1.bf16.msra.mxu0 %v140
  %164 = vmatprep.subr.bf16.mxu0 0
  %165 = vmatpush1.bf16.msra.mxu0 %v141
  %166 = vmatprep.subr.bf16.mxu0 0
  %167 = vmatpush1.bf16.msra.mxu0 0
  %168 = vmatprep.subr.bf16.mxu0 0
  %169 = vmatpush1.bf16.msra.mxu0 0
  %170 = vmatprep.subr.bf16.mxu0 0
  %171 = vmatpush1.bf16.msra.mxu0 0
  %172 = vmatprep.subr.bf16.mxu0 0
  %173 = vmatpush1.bf16.msra.mxu0 0
  %174 = vmatprep.subr.bf16.mxu0 0
  %175 = vmatpush1.bf16.msra.mxu0 0
  %176 = vmatprep.subr.bf16.mxu0 0
  %177 = vmatpush1.bf16.msra.mxu0 0
  %178 = vmatprep.subr.bf16.mxu0 0
  %179 = vmatpush1.bf16.msra.mxu0 0
  %180 = vmatprep.subr.bf16.mxu0 0
  %181 = vmatpush1.bf16.msra.mxu0 0
  %182 = vmatprep.mubr.bf16.mxu0 0
  %183 = vmatmul.mubr.bf16.gmra.mrb[0].mxu0 %v86
  %v184 = vpop.f32.mrb[0].mxu0
  %v185 = vadd.f32 %v52, %v184
  %v186 = vpop.f32.mrb[0].mxu0
  %v187 = vpop.f32.mrb[0].mxu0
  %v188 = vadd.f32 %v52, %v187
  %v189 = vpop.f32.mrb[0].mxu0
  %190 = vmatprep.mubr.bf16.mxu0 0
  %191 = vmatmul.mubr.bf16.gmra.mrb[0].mxu0 %v87
  %v192 = vpop.f32.mrb[0].mxu0
  %v193 = vadd.f32 %v52, %v192
  %v194 = vpop.f32.mrb[0].mxu0
  %v195 = vpop.f32.mrb[0].mxu0
  %v196 = vadd.f32 %v52, %v195
  %v197 = vpop.f32.mrb[0].mxu0
  %198 = vmatprep.mubr.bf16.mxu0 0
  %199 = vmatmul.mubr.bf16.gmra.mrb[0].mxu0 %v88
  %v200 = vpop.f32.mrb[0].mxu0
  %v201 = vadd.f32 %v52, %v200
  %v202 = vpop.f32.mrb[0].mxu0
  %v203 = vpop.f32.mrb[0].mxu0
  %v204 = vadd.f32 %v52, %v203
  %v205 = vpop.f32.mrb[0].mxu0
  %206 = vmatprep.mubr.bf16.mxu0 0
  %207 = vmatmul.mubr.bf16.gmra.mrb[0].mxu0 %v89
  %v208 = vpop.f32.mrb[0].mxu0
  %v209 = vadd.f32 %v52, %v208
  %v210 = vpop.f32.mrb[0].mxu0
  %v211 = vpop.f32.mrb[0].mxu0
  %v212 = vadd.f32 %v52, %v211
  %v213 = vpop.f32.mrb[0].mxu0
  %214 = vmatprep.mubr.bf16.mxu0 0
  %215 = vmatmul.mubr.bf16.gmra.mrb[0].mxu0 %v90
  %v216 = vpop.f32.mrb[0].mxu0
  %v217 = vadd.f32 %v52, %v216
  %v218 = vpop.f32.mrb[0].mxu0
  %v219 = vpop.f32.mrb[0].mxu0
  %v220 = vadd.f32 %v52, %v219
  %v221 = vpop.f32.mrb[0].mxu0
  %222 = vmatprep.mubr.bf16.mxu0 0
  %223 = vmatmul.mubr.bf16.gmra.mrb[0].mxu0 %v91
  %v224 = vpop.f32.mrb[0].mxu0
  %v225 = vadd.f32 %v52, %v224
  %v226 = vpop.f32.mrb[0].mxu0
  %v227 = vpop.f32.mrb[0].mxu0
  %v228 = vadd.f32 %v52, %v227
  %v229 = vpop.f32.mrb[0].mxu0
  %230 = vmatprep.mubr.bf16.mxu0 0
  %231 = vmatmul.mubr.bf16.gmra.mrb[0].mxu0 %v92
  %v232 = vpop.f32.mrb[0].mxu0
  %v233 = vadd.f32 %v52, %v232
  %v234 = vpop.f32.mrb[0].mxu0
  %v235 = vpop.f32.mrb[0].mxu0
  %v236 = vadd.f32 %v52, %v235
  %v237 = vpop.f32.mrb[0].mxu0
  %238 = vmatprep.mubr.bf16.mxu0 0
  %239 = vmatmul.mubr.bf16.gmra.mrb[0].mxu0 %v93
  %v240 = vpop.f32.mrb[0].mxu0
  %v241 = vadd.f32 %v52, %v240
  %v242 = vpop.f32.mrb[0].mxu0
  %v243 = vpop.f32.mrb[0].mxu0
  %v244 = vadd.f32 %v52, %v243
  %v245 = vpop.f32.mrb[0].mxu0
  %246 = vdwg.mxu0
  %vm247 = vcmp.ge.f32.partialorder %v185, 0.0
  %vm248 = vcmp.ge.f32.partialorder %v188, 0.0
  %vm249 = vcmp.ge.f32.partialorder %v193, 0.0
  %vm250 = vcmp.ge.f32.partialorder %v196, 0.0
  %vm251 = vcmp.ge.f32.partialorder %v201, 0.0
  %vm252 = vcmp.ge.f32.partialorder %v204, 0.0
  %vm253 = vcmp.ge.f32.partialorder %v209, 0.0
  %vm254 = vcmp.ge.f32.partialorder %v212, 0.0
  %vm255 = vcmp.ge.f32.partialorder %v217, 0.0
  %vm256 = vcmp.ge.f32.partialorder %v220, 0.0
  %vm257 = vcmp.ge.f32.partialorder %v225, 0.0
  %vm258 = vcmp.ge.f32.partialorder %v228, 0.0
  %vm259 = vcmp.ge.f32.partialorder %v233, 0.0
  %vm260 = vcmp.ge.f32.partialorder %v236, 0.0
  %vm261 = vcmp.ge.f32.partialorder %v241, 0.0
  %vm262 = vcmp.ge.f32.partialorder %v244, 0.0
  %v263 = vmul.f32 %v185, 0.2
  %v264 = vmul.f32 %v188, 0.2
  %v265 = vmul.f32 %v193, 0.2
  %v266 = vmul.f32 %v196, 0.2
  %v267 = vmul.f32 %v201, 0.2
  %v268 = vmul.f32 %v204, 0.2
  %v269 = vmul.f32 %v209, 0.2
  %v270 = vmul.f32 %v212, 0.2
  %v271 = vmul.f32 %v217, 0.2
  %v272 = vmul.f32 %v220, 0.2
  %v273 = vmul.f32 %v225, 0.2
  %v274 = vmul.f32 %v228, 0.2
  %v275 = vmul.f32 %v233, 0.2
  %v276 = vmul.f32 %v236, 0.2
  %v277 = vmul.f32 %v241, 0.2
  %v278 = vmul.f32 %v244, 0.2
  %v279 = vsel %vm247, %v185, %v263
  %v280 = vsel %vm248, %v188, %v264
  %v281 = vsel %vm249, %v193, %v265
  %v282 = vsel %vm250, %v196, %v266
  %v283 = vsel %vm251, %v201, %v267
  %v284 = vsel %vm252, %v204, %v268
  %v285 = vsel %vm253, %v209, %v269
  %v286 = vsel %vm254, %v212, %v270
  %v287 = vsel %vm255, %v217, %v271
  %v288 = vsel %vm256, %v220, %v272
  %v289 = vsel %vm257, %v225, %v273
  %v290 = vsel %vm258, %v228, %v274
  %v291 = vsel %vm259, %v233, %v275
  %v292 = vsel %vm260, %v236, %v276
  %v293 = vsel %vm261, %v241, %v277
  %v294 = vsel %vm262, %v244, %v278
  %295 = vst [vmem:[%s3] sm:$0xff] %v279
  %296 = vst [vmem:[%s3 + $0x8] sm:$0xff] %v280
  %297 = vst [vmem:[%s3 + $0x10] sm:$0xff] %v281
  %298 = vst [vmem:[%s3 + $0x18] sm:$0xff] %v282
  %299 = vst [vmem:[%s3 + $0x20] sm:$0xff] %v283
  %300 = vst [vmem:[%s3 + $0x28] sm:$0xff] %v284
  %301 = vst [vmem:[%s3 + $0x30] sm:$0xff] %v285
  %302 = vst [vmem:[%s3 + $0x38] sm:$0xff] %v286
  %303 = vst [vmem:[%s3 + $0x40] sm:$0xff] %v287
  %304 = vst [vmem:[%s3 + $0x48] sm:$0xff] %v288
  %305 = vst [vmem:[%s3 + $0x50] sm:$0xff] %v289
  %306 = vst [vmem:[%s3 + $0x58] sm:$0xff] %v290
  %307 = vst [vmem:[%s3 + $0x60] sm:$0xff] %v291
  %308 = vst [vmem:[%s3 + $0x68] sm:$0xff] %v292
  %309 = vst [vmem:[%s3 + $0x70] sm:$0xff] %v293
  %310 = vst [vmem:[%s3 + $0x78] sm:$0xff] %v294
  // Predicated region
  $region14: #{_lambda_.66} parent=0 // pred_check
    _
  $region15: #{_lambda_.66} parent=0 // pred_check_branch
    %312 = sbr.rel (0) target = $region17
  $region16: #{_lambda_.66} parent=0 // pred_region
    _
  $region17: #{_lambda_.66} parent=0 // pred_fallthru
    _
  // Predicated region
  $region18: #{_lambda_.66} parent=0 // pred_check
    _
  $region19: #{_lambda_.66} parent=0 // pred_check_branch
    %314 = sbr.rel (0) target = $region21
  $region20: #{_lambda_.66} parent=0 // pred_region
    _
  $region21: #{_lambda_.66} parent=0 // pred_fallthru
    _

// kernel: _lambda_.74
$region0: #{_lambda_.74}
  #allocation0 [shape = 'u32[]', space=smem, size = 0x4, offset = 0x4, fixed_abs, tag = 'smem constant byte address 0x4 - core index']
  #allocation1 [shape = 'u32[144,128]{1,0:T(1,128)}', space=vmem, size = 0x12000, scoped, tag = 'internal scratch']
  %s0 = inlined_call_operand.vmem [shape: bf16[32,128], index: 0, kind: input, shape index: {}]
  %s1 = inlined_call_operand.vmem [shape: bf16[128,128], index: 1, kind: input, shape index: {}]
  %s2 = inlined_call_operand.vmem [shape: f32[1,128], index: 2, kind: input, shape index: {}]
  %s3 = inlined_call_operand.vmem [shape: f32[32,128], index: 3, kind: output, shape index: {}]
  %s4 = sld [smem:[#allocation0]]
  $region22: #{_lambda_.74} parent=0
    _
  %s6 = ssub.s32 1, %s4
  %s7 = scalar_select 0, %s6, %s4
  // Predicated region
  $region2: #{_lambda_.74} parent=0 // pred_check
    _
  $region3: #{_lambda_.74} parent=0 // pred_check_branch
    %9 = sbr.rel (0) target = $region5
  $region4: #{_lambda_.74} parent=0 // pred_region
    _
  $region5: #{_lambda_.74} parent=0 // pred_fallthru
    _
  // Predicated region
  $region6: #{_lambda_.74} parent=0 // pred_check
    _
  $region7: #{_lambda_.74} parent=0 // pred_check_branch
    %11 = sbr.rel (0) target = $region9
  $region8: #{_lambda_.74} parent=0 // pred_region
    _
  $region9: #{_lambda_.74} parent=0 // pred_fallthru
    _
  // Predicated region
  $region10: #{_lambda_.74} parent=0 // pred_check
    _
  $region11: #{_lambda_.74} parent=0 // pred_check_branch
    %13 = sbr.rel (0) target = $region13
  $region12: #{_lambda_.74} parent=0 // pred_region
    _
  $region13: #{_lambda_.74} parent=0 // pred_fallthru
    _
  %v15 = vld [vmem:[%s0] sm:$0xf]
  %v16 = vld [vmem:[%s0 + $0x4] sm:$0xf]
  %v17 = vld [vmem:[%s0 + $0x8] sm:$0xf]
  %v18 = vld [vmem:[%s0 + $0xc] sm:$0xf]
  %v19 = vld [vmem:[%s1] sm:$0xf]
  %v20 = vld [vmem:[%s1 + $0x4] sm:$0xf]
  %v21 = vld [vmem:[%s1 + $0x8] sm:$0xf]
  %v22 = vld [vmem:[%s1 + $0xc] sm:$0xf]
  %v23 = vld [vmem:[%s1 + $0x10] sm:$0xf]
  %v24 = vld [vmem:[%s1 + $0x14] sm:$0xf]
  %v25 = vld [vmem:[%s1 + $0x18] sm:$0xf]
  %v26 = vld [vmem:[%s1 + $0x1c] sm:$0xf]
  %v27 = vld [vmem:[%s1 + $0x20] sm:$0xf]
  %v28 = vld [vmem:[%s1 + $0x24] sm:$0xf]
  %v29 = vld [vmem:[%s1 + $0x28] sm:$0xf]
  %v30 = vld [vmem:[%s1 + $0x2c] sm:$0xf]
  %v31 = vld [vmem:[%s1 + $0x30] sm:$0xf]
  %v32 = vld [vmem:[%s1 + $0x34] sm:$0xf]
  %v33 = vld [vmem:[%s1 + $0x38] sm:$0xf]
  %v34 = vld [vmem:[%s1 + $0x3c] sm:$0xf]
  %v35 = vld [vmem:[%s2] sm:$0x1]
  %v37 = vlaneseq
  %v38 = vshrl.u32 %v37, 7
  %v39 = vsub.s32 0, %v38
  %v40 = vrot.slane %v35, %v39
  %v46 = vunpack.c.l.b16 %v15
  %v47 = vunpack.c.l.b16 %v16
  %v48 = vunpack.c.l.b16 %v17
  %v49 = vunpack.c.l.b16 %v18
  %v50 = vpack.c.b16 %v47, %v46
  %v51 = vpack.c.b16 %v49, %v48
  %v70 = vunpack.c.l.b16 %v19
  %v71 = vunpack.c.l.b16 %v20
  %v72 = vunpack.c.l.b16 %v21
  %v73 = vunpack.c.l.b16 %v22
  %v74 = vunpack.c.l.b16 %v23
  %v75 = vunpack.c.l.b16 %v24
  %v76 = vunpack.c.l.b16 %v25
  %v77 = vunpack.c.l.b16 %v26
  %v78 = vunpack.c.l.b16 %v27
  %v79 = vunpack.c.l.b16 %v28
  %v80 = vunpack.c.l.b16 %v29
  %v81 = vunpack.c.l.b16 %v30
  %v82 = vunpack.c.l.b16 %v31
  %v83 = vunpack.c.l.b16 %v32
  %v84 = vunpack.c.l.b16 %v33
  %v85 = vunpack.c.l.b16 %v34
  %v86 = vpack.c.b16 %v71, %v70
  %v87 = vpack.c.b16 %v73, %v72
  %v88 = vpack.c.b16 %v75, %v74
  %v89 = vpack.c.b16 %v77, %v76
  %v90 = vpack.c.b16 %v79, %v78
  %v91 = vpack.c.b16 %v81, %v80
  %v92 = vpack.c.b16 %v83, %v82
  %v93 = vpack.c.b16 %v85, %v84
  %102 = vmatprep.subr.bf16.mxu0 0
  %103 = vmatpush1.bf16.msra.mxu0 %v86
  %104 = vmatprep.subr.bf16.mxu0 0
  %105 = vmatpush1.bf16.msra.mxu0 %v87
  %106 = vmatprep.subr.bf16.mxu0 0
  %107 = vmatpush1.bf16.msra.mxu0 %v88
  %108 = vmatprep.subr.bf16.mxu0 0
  %109 = vmatpush1.bf16.msra.mxu0 %v89
  %110 = vmatprep.subr.bf16.mxu0 0
  %111 = vmatpush1.bf16.msra.mxu0 %v90
  %112 = vmatprep.subr.bf16.mxu0 0
  %113 = vmatpush1.bf16.msra.mxu0 %v91
  %114 = vmatprep.subr.bf16.mxu0 0
  %115 = vmatpush1.bf16.msra.mxu0 %v92
  %116 = vmatprep.subr.bf16.mxu0 0
  %117 = vmatpush1.bf16.msra.mxu0 %v93
  %118 = vmatprep.subr.bf16.mxu0 0
  %119 = vmatpush1.bf16.msra.mxu0 0
  %120 = vmatprep.subr.bf16.mxu0 0
  %121 = vmatpush1.bf16.msra.mxu0 0
  %122 = vmatprep.subr.bf16.mxu0 0
  %123 = vmatpush1.bf16.msra.mxu0 0
  %124 = vmatprep.subr.bf16.mxu0 0
  %125 = vmatpush1.bf16.msra.mxu0 0
  %126 = vmatprep.subr.bf16.mxu0 0
  %127 = vmatpush1.bf16.msra.mxu0 0
  %128 = vmatprep.subr.bf16.mxu0 0
  %129 = vmatpush1.bf16.msra.mxu0 0
  %130 = vmatprep.subr.bf16.mxu0 0
  %131 = vmatpush1.bf16.msra.mxu0 0
  %132 = vmatprep.subr.bf16.mxu0 0
  %133 = vmatpush1.bf16.msra.mxu0 0
  %134 = vmatprep.mubr.bf16.mxu0 0
  %135 = vmatmul.mubr.bf16.gmra.mrb[0].mxu0 %v50
  %v136 = vpop.f32.mrb[0].mxu0
  %v137 = vadd.f32 %v40, %v136
  %v138 = vpop.f32.mrb[0].mxu0
  %v139 = vpop.f32.mrb[0].mxu0
  %v140 = vadd.f32 %v40, %v139
  %v141 = vpop.f32.mrb[0].mxu0
  %142 = vmatprep.mubr.bf16.mxu0 0
  %143 = vmatmul.mubr.bf16.gmra.mrb[0].mxu0 %v51
  %v144 = vpop.f32.mrb[0].mxu0
  %v145 = vadd.f32 %v40, %v144
  %v146 = vpop.f32.mrb[0].mxu0
  %v147 = vpop.f32.mrb[0].mxu0
  %v148 = vadd.f32 %v40, %v147
  %v149 = vpop.f32.mrb[0].mxu0
  %150 = vdwg.mxu0
  %151 = vst [vmem:[%s3] sm:$0xff] %v137
  %152 = vst [vmem:[%s3 + $0x8] sm:$0xff] %v140
  %153 = vst [vmem:[%s3 + $0x10] sm:$0xff] %v145
  %154 = vst [vmem:[%s3 + $0x18] sm:$0xff] %v148
  // Predicated region
  $region14: #{_lambda_.74} parent=0 // pred_check
    _
  $region15: #{_lambda_.74} parent=0 // pred_check_branch
    %156 = sbr.rel (0) target = $region17
  $region16: #{_lambda_.74} parent=0 // pred_region
    _
  $region17: #{_lambda_.74} parent=0 // pred_fallthru
    _
  // Predicated region
  $region18: #{_lambda_.74} parent=0 // pred_check
    _
  $region19: #{_lambda_.74} parent=0 // pred_check_branch
    %158 = sbr.rel (0) target = $region21
  $region20: #{_lambda_.74} parent=0 // pred_region
    _
  $region21: #{_lambda_.74} parent=0 // pred_fallthru
    _

// kernel: _lambda_.76
$region0: #{_lambda_.76}
  #allocation0 [shape = 'u32[]', space=smem, size = 0x4, offset = 0x4, fixed_abs, tag = 'smem constant byte address 0x4 - core index']
  #allocation1 [shape = 'u32[144,128]{1,0:T(1,128)}', space=vmem, size = 0x12000, scoped, tag = 'internal scratch']
  %s0 = inlined_call_operand.vmem [shape: bf16[32,128], index: 0, kind: input, shape index: {}]
  %s1 = inlined_call_operand.vmem [shape: bf16[128,128], index: 1, kind: input, shape index: {}]
  %s2 = inlined_call_operand.vmem [shape: f32[1,128], index: 2, kind: input, shape index: {}]
  %s3 = inlined_call_operand.vmem [shape: f32[32,128], index: 3, kind: output, shape index: {}]
  %s4 = sld [smem:[#allocation0]]
  $region22: #{_lambda_.76} parent=0
    _
  %s6 = ssub.s32 1, %s4
  %s7 = scalar_select 0, %s6, %s4
  // Predicated region
  $region2: #{_lambda_.76} parent=0 // pred_check
    _
  $region3: #{_lambda_.76} parent=0 // pred_check_branch
    %9 = sbr.rel (0) target = $region5
  $region4: #{_lambda_.76} parent=0 // pred_region
    _
  $region5: #{_lambda_.76} parent=0 // pred_fallthru
    _
  // Predicated region
  $region6: #{_lambda_.76} parent=0 // pred_check
    _
  $region7: #{_lambda_.76} parent=0 // pred_check_branch
    %11 = sbr.rel (0) target = $region9
  $region8: #{_lambda_.76} parent=0 // pred_region
    _
  $region9: #{_lambda_.76} parent=0 // pred_fallthru
    _
  // Predicated region
  $region10: #{_lambda_.76} parent=0 // pred_check
    _
  $region11: #{_lambda_.76} parent=0 // pred_check_branch
    %13 = sbr.rel (0) target = $region13
  $region12: #{_lambda_.76} parent=0 // pred_region
    _
  $region13: #{_lambda_.76} parent=0 // pred_fallthru
    _
  %v15 = vld [vmem:[%s0] sm:$0xf]
  %v16 = vld [vmem:[%s0 + $0x4] sm:$0xf]
  %v17 = vld [vmem:[%s0 + $0x8] sm:$0xf]
  %v18 = vld [vmem:[%s0 + $0xc] sm:$0xf]
  %v19 = vld [vmem:[%s1] sm:$0xf]
  %v20 = vld [vmem:[%s1 + $0x4] sm:$0xf]
  %v21 = vld [vmem:[%s1 + $0x8] sm:$0xf]
  %v22 = vld [vmem:[%s1 + $0xc] sm:$0xf]
  %v23 = vld [vmem:[%s1 + $0x10] sm:$0xf]
  %v24 = vld [vmem:[%s1 + $0x14] sm:$0xf]
  %v25 = vld [vmem:[%s1 + $0x18] sm:$0xf]
  %v26 = vld [vmem:[%s1 + $0x1c] sm:$0xf]
  %v27 = vld [vmem:[%s1 + $0x20] sm:$0xf]
  %v28 = vld [vmem:[%s1 + $0x24] sm:$0xf]
  %v29 = vld [vmem:[%s1 + $0x28] sm:$0xf]
  %v30 = vld [vmem:[%s1 + $0x2c] sm:$0xf]
  %v31 = vld [vmem:[%s1 + $0x30] sm:$0xf]
  %v32 = vld [vmem:[%s1 + $0x34] sm:$0xf]
  %v33 = vld [vmem:[%s1 + $0x38] sm:$0xf]
  %v34 = vld [vmem:[%s1 + $0x3c] sm:$0xf]
  %v35 = vld [vmem:[%s2] sm:$0x1]
  %v37 = vlaneseq
  %v38 = vshrl.u32 %v37, 7
  %v39 = vsub.s32 0, %v38
  %v40 = vrot.slane %v35, %v39
  %v46 = vunpack.c.l.b16 %v15
  %v47 = vunpack.c.l.b16 %v16
  %v48 = vunpack.c.l.b16 %v17
  %v49 = vunpack.c.l.b16 %v18
  %v50 = vpack.c.b16 %v47, %v46
  %v51 = vpack.c.b16 %v49, %v48
  %v70 = vunpack.c.l.b16 %v19
  %v71 = vunpack.c.l.b16 %v20
  %v72 = vunpack.c.l.b16 %v21
  %v73 = vunpack.c.l.b16 %v22
  %v74 = vunpack.c.l.b16 %v23
  %v75 = vunpack.c.l.b16 %v24
  %v76 = vunpack.c.l.b16 %v25
  %v77 = vunpack.c.l.b16 %v26
  %v78 = vunpack.c.l.b16 %v27
  %v79 = vunpack.c.l.b16 %v28
  %v80 = vunpack.c.l.b16 %v29
  %v81 = vunpack.c.l.b16 %v30
  %v82 = vunpack.c.l.b16 %v31
  %v83 = vunpack.c.l.b16 %v32
  %v84 = vunpack.c.l.b16 %v33
  %v85 = vunpack.c.l.b16 %v34
  %v86 = vpack.c.b16 %v71, %v70
  %v87 = vpack.c.b16 %v73, %v72
  %v88 = vpack.c.b16 %v75, %v74
  %v89 = vpack.c.b16 %v77, %v76
  %v90 = vpack.c.b16 %v79, %v78
  %v91 = vpack.c.b16 %v81, %v80
  %v92 = vpack.c.b16 %v83, %v82
  %v93 = vpack.c.b16 %v85, %v84
  %102 = vmatprep.subr.bf16.mxu0 0
  %103 = vmatpush1.bf16.msra.mxu0 %v86
  %104 = vmatprep.subr.bf16.mxu0 0
  %105 = vmatpush1.bf16.msra.mxu0 %v87
  %106 = vmatprep.subr.bf16.mxu0 0
  %107 = vmatpush1.bf16.msra.mxu0 %v88
  %108 = vmatprep.subr.bf16.mxu0 0
  %109 = vmatpush1.bf16.msra.mxu0 %v89
  %110 = vmatprep.subr.bf16.mxu0 0
  %111 = vmatpush1.bf16.msra.mxu0 %v90
  %112 = vmatprep.subr.bf16.mxu0 0
  %113 = vmatpush1.bf16.msra.mxu0 %v91
  %114 = vmatprep.subr.bf16.mxu0 0
  %115 = vmatpush1.bf16.msra.mxu0 %v92
  %116 = vmatprep.subr.bf16.mxu0 0
  %117 = vmatpush1.bf16.msra.mxu0 %v93
  %118 = vmatprep.subr.bf16.mxu0 0
  %119 = vmatpush1.bf16.msra.mxu0 0
  %120 = vmatprep.subr.bf16.mxu0 0
  %121 = vmatpush1.bf16.msra.mxu0 0
  %122 = vmatprep.subr.bf16.mxu0 0
  %123 = vmatpush1.bf16.msra.mxu0 0
  %124 = vmatprep.subr.bf16.mxu0 0
  %125 = vmatpush1.bf16.msra.mxu0 0
  %126 = vmatprep.subr.bf16.mxu0 0
  %127 = vmatpush1.bf16.msra.mxu0 0
  %128 = vmatprep.subr.bf16.mxu0 0
  %129 = vmatpush1.bf16.msra.mxu0 0
  %130 = vmatprep.subr.bf16.mxu0 0
  %131 = vmatpush1.bf16.msra.mxu0 0
  %132 = vmatprep.subr.bf16.mxu0 0
  %133 = vmatpush1.bf16.msra.mxu0 0
  %134 = vmatprep.mubr.bf16.mxu0 0
  %135 = vmatmul.mubr.bf16.gmra.mrb[0].mxu0 %v50
  %v136 = vpop.f32.mrb[0].mxu0
  %v137 = vadd.f32 %v40, %v136
  %v138 = vpop.f32.mrb[0].mxu0
  %v139 = vpop.f32.mrb[0].mxu0
  %v140 = vadd.f32 %v40, %v139
  %v141 = vpop.f32.mrb[0].mxu0
  %142 = vmatprep.mubr.bf16.mxu0 0
  %143 = vmatmul.mubr.bf16.gmra.mrb[0].mxu0 %v51
  %v144 = vpop.f32.mrb[0].mxu0
  %v145 = vadd.f32 %v40, %v144
  %v146 = vpop.f32.mrb[0].mxu0
  %v147 = vpop.f32.mrb[0].mxu0
  %v148 = vadd.f32 %v40, %v147
  %v149 = vpop.f32.mrb[0].mxu0
  %150 = vdwg.mxu0
  %vm151 = vcmp.ge.f32.partialorder %v137, 0.0
  %vm152 = vcmp.ge.f32.partialorder %v140, 0.0
  %vm153 = vcmp.ge.f32.partialorder %v145, 0.0
  %vm154 = vcmp.ge.f32.partialorder %v148, 0.0
  %v155 = vmul.f32 %v137, 0.2
  %v156 = vmul.f32 %v140, 0.2
  %v157 = vmul.f32 %v145, 0.2
  %v158 = vmul.f32 %v148, 0.2
  %v159 = vsel %vm151, %v137, %v155
  %v160 = vsel %vm152, %v140, %v156
  %v161 = vsel %vm153, %v145, %v157
  %v162 = vsel %vm154, %v148, %v158
  %163 = vst [vmem:[%s3] sm:$0xff] %v159
  %164 = vst [vmem:[%s3 + $0x8] sm:$0xff] %v160
  %165 = vst [vmem:[%s3 + $0x10] sm:$0xff] %v161
  %166 = vst [vmem:[%s3 + $0x18] sm:$0xff] %v162
  // Predicated region
  $region14: #{_lambda_.76} parent=0 // pred_check
    _
  $region15: #{_lambda_.76} parent=0 // pred_check_branch
    %168 = sbr.rel (0) target = $region17
  $region16: #{_lambda_.76} parent=0 // pred_region
    _
  $region17: #{_lambda_.76} parent=0 // pred_fallthru
    _
  // Predicated region
  $region18: #{_lambda_.76} parent=0 // pred_check
    _
  $region19: #{_lambda_.76} parent=0 // pred_check_branch
    %170 = sbr.rel (0) target = $region21
  $region20: #{_lambda_.76} parent=0 // pred_region
    _
  $region21: #{_lambda_.76} parent=0 // pred_fallthru
    _

// kernel: _lambda_.75
$region0: #{_lambda_.75}
  #allocation0 [shape = 'u32[]', space=smem, size = 0x4, offset = 0x4, fixed_abs, tag = 'smem constant byte address 0x4 - core index']
  #allocation1 [shape = 'u32[144,128]{1,0:T(1,128)}', space=vmem, size = 0x12000, scoped, tag = 'internal scratch']
  %s0 = inlined_call_operand.vmem [shape: bf16[32,128], index: 0, kind: input, shape index: {}]
  %s1 = inlined_call_operand.vmem [shape: bf16[128,128], index: 1, kind: input, shape index: {}]
  %s2 = inlined_call_operand.vmem [shape: f32[1,128], index: 2, kind: input, shape index: {}]
  %s3 = inlined_call_operand.vmem [shape: f32[32,128], index: 3, kind: input, shape index: {}]
  %s4 = inlined_call_operand.vmem [shape: f32[32,128], index: 4, kind: output, shape index: {}]
  %s5 = sld [smem:[#allocation0]]
  $region26: #{_lambda_.75} parent=0
    _
  %s7 = ssub.s32 1, %s5
  %s8 = scalar_select 0, %s7, %s5
  // Predicated region
  $region2: #{_lambda_.75} parent=0 // pred_check
    _
  $region3: #{_lambda_.75} parent=0 // pred_check_branch
    %10 = sbr.rel (0) target = $region5
  $region4: #{_lambda_.75} parent=0 // pred_region
    _
  $region5: #{_lambda_.75} parent=0 // pred_fallthru
    _
  // Predicated region
  $region6: #{_lambda_.75} parent=0 // pred_check
    _
  $region7: #{_lambda_.75} parent=0 // pred_check_branch
    %12 = sbr.rel (0) target = $region9
  $region8: #{_lambda_.75} parent=0 // pred_region
    _
  $region9: #{_lambda_.75} parent=0 // pred_fallthru
    _
  // Predicated region
  $region10: #{_lambda_.75} parent=0 // pred_check
    _
  $region11: #{_lambda_.75} parent=0 // pred_check_branch
    %14 = sbr.rel (0) target = $region13
  $region12: #{_lambda_.75} parent=0 // pred_region
    _
  $region13: #{_lambda_.75} parent=0 // pred_fallthru
    _
  // Predicated region
  $region14: #{_lambda_.75} parent=0 // pred_check
    _
  $region15: #{_lambda_.75} parent=0 // pred_check_branch
    %16 = sbr.rel (0) target = $region17
  $region16: #{_lambda_.75} parent=0 // pred_region
    _
  $region17: #{_lambda_.75} parent=0 // pred_fallthru
    _
  %v18 = vld [vmem:[%s0] sm:$0xf]
  %v19 = vld [vmem:[%s0 + $0x4] sm:$0xf]
  %v20 = vld [vmem:[%s0 + $0x8] sm:$0xf]
  %v21 = vld [vmem:[%s0 + $0xc] sm:$0xf]
  %v22 = vld [vmem:[%s1] sm:$0xf]
  %v23 = vld [vmem:[%s1 + $0x4] sm:$0xf]
  %v24 = vld [vmem:[%s1 + $0x8] sm:$0xf]
  %v25 = vld [vmem:[%s1 + $0xc] sm:$0xf]
  %v26 = vld [vmem:[%s1 + $0x10] sm:$0xf]
  %v27 = vld [vmem:[%s1 + $0x14] sm:$0xf]
  %v28 = vld [vmem:[%s1 + $0x18] sm:$0xf]
  %v29 = vld [vmem:[%s1 + $0x1c] sm:$0xf]
  %v30 = vld [vmem:[%s1 + $0x20] sm:$0xf]
  %v31 = vld [vmem:[%s1 + $0x24] sm:$0xf]
  %v32 = vld [vmem:[%s1 + $0x28] sm:$0xf]
  %v33 = vld [vmem:[%s1 + $0x2c] sm:$0xf]
  %v34 = vld [vmem:[%s1 + $0x30] sm:$0xf]
  %v35 = vld [vmem:[%s1 + $0x34] sm:$0xf]
  %v36 = vld [vmem:[%s1 + $0x38] sm:$0xf]
  %v37 = vld [vmem:[%s1 + $0x3c] sm:$0xf]
  %v38 = vld [vmem:[%s2] sm:$0x1]
  %v40 = vlaneseq
  %v41 = vshrl.u32 %v40, 7
  %v42 = vsub.s32 0, %v41
  %v43 = vrot.slane %v38, %v42
  %v49 = vunpack.c.l.b16 %v18
  %v50 = vunpack.c.l.b16 %v19
  %v51 = vunpack.c.l.b16 %v20
  %v52 = vunpack.c.l.b16 %v21
  %v53 = vpack.c.b16 %v50, %v49
  %v54 = vpack.c.b16 %v52, %v51
  %v73 = vunpack.c.l.b16 %v22
  %v74 = vunpack.c.l.b16 %v23
  %v75 = vunpack.c.l.b16 %v24
  %v76 = vunpack.c.l.b16 %v25
  %v77 = vunpack.c.l.b16 %v26
  %v78 = vunpack.c.l.b16 %v27
  %v79 = vunpack.c.l.b16 %v28
  %v80 = vunpack.c.l.b16 %v29
  %v81 = vunpack.c.l.b16 %v30
  %v82 = vunpack.c.l.b16 %v31
  %v83 = vunpack.c.l.b16 %v32
  %v84 = vunpack.c.l.b16 %v33
  %v85 = vunpack.c.l.b16 %v34
  %v86 = vunpack.c.l.b16 %v35
  %v87 = vunpack.c.l.b16 %v36
  %v88 = vunpack.c.l.b16 %v37
  %v89 = vpack.c.b16 %v74, %v73
  %v90 = vpack.c.b16 %v76, %v75
  %v91 = vpack.c.b16 %v78, %v77
  %v92 = vpack.c.b16 %v80, %v79
  %v93 = vpack.c.b16 %v82, %v81
  %v94 = vpack.c.b16 %v84, %v83
  %v95 = vpack.c.b16 %v86, %v85
  %v96 = vpack.c.b16 %v88, %v87
  %105 = vmatprep.subr.bf16.mxu0 0
  %106 = vmatpush1.bf16.msra.mxu0 %v89
  %107 = vmatprep.subr.bf16.mxu0 0
  %108 = vmatpush1.bf16.msra.mxu0 %v90
  %109 = vmatprep.subr.bf16.mxu0 0
  %110 = vmatpush1.bf16.msra.mxu0 %v91
  %111 = vmatprep.subr.bf16.mxu0 0
  %112 = vmatpush1.bf16.msra.mxu0 %v92
  %113 = vmatprep.subr.bf16.mxu0 0
  %114 = vmatpush1.bf16.msra.mxu0 %v93
  %115 = vmatprep.subr.bf16.mxu0 0
  %116 = vmatpush1.bf16.msra.mxu0 %v94
  %117 = vmatprep.subr.bf16.mxu0 0
  %118 = vmatpush1.bf16.msra.mxu0 %v95
  %119 = vmatprep.subr.bf16.mxu0 0
  %120 = vmatpush1.bf16.msra.mxu0 %v96
  %121 = vmatprep.subr.bf16.mxu0 0
  %122 = vmatpush1.bf16.msra.mxu0 0
  %123 = vmatprep.subr.bf16.mxu0 0
  %124 = vmatpush1.bf16.msra.mxu0 0
  %125 = vmatprep.subr.bf16.mxu0 0
  %126 = vmatpush1.bf16.msra.mxu0 0
  %127 = vmatprep.subr.bf16.mxu0 0
  %128 = vmatpush1.bf16.msra.mxu0 0
  %129 = vmatprep.subr.bf16.mxu0 0
  %130 = vmatpush1.bf16.msra.mxu0 0
  %131 = vmatprep.subr.bf16.mxu0 0
  %132 = vmatpush1.bf16.msra.mxu0 0
  %133 = vmatprep.subr.bf16.mxu0 0
  %134 = vmatpush1.bf16.msra.mxu0 0
  %135 = vmatprep.subr.bf16.mxu0 0
  %136 = vmatpush1.bf16.msra.mxu0 0
  %137 = vmatprep.mubr.bf16.mxu0 0
  %138 = vmatmul.mubr.bf16.gmra.mrb[0].mxu0 %v53
  %v139 = vpop.f32.mrb[0].mxu0
  %v140 = vadd.f32 %v43, %v139
  %v141 = vpop.f32.mrb[0].mxu0
  %v142 = vpop.f32.mrb[0].mxu0
  %v143 = vadd.f32 %v43, %v142
  %v144 = vpop.f32.mrb[0].mxu0
  %145 = vmatprep.mubr.bf16.mxu0 0
  %146 = vmatmul.mubr.bf16.gmra.mrb[0].mxu0 %v54
  %v147 = vpop.f32.mrb[0].mxu0
  %v148 = vadd.f32 %v43, %v147
  %v149 = vpop.f32.mrb[0].mxu0
  %v150 = vpop.f32.mrb[0].mxu0
  %v151 = vadd.f32 %v43, %v150
  %v152 = vpop.f32.mrb[0].mxu0
  %153 = vdwg.mxu0
  %v154 = vld [vmem:[%s3] sm:$0xff]
  %v155 = vld [vmem:[%s3 + $0x8] sm:$0xff]
  %v156 = vld [vmem:[%s3 + $0x10] sm:$0xff]
  %v157 = vld [vmem:[%s3 + $0x18] sm:$0xff]
  %v158 = vadd.f32 %v140, %v154
  %v159 = vadd.f32 %v143, %v155
  %v160 = vadd.f32 %v148, %v156
  %v161 = vadd.f32 %v151, %v157
  %vm162 = vcmp.ge.f32.partialorder %v158, 0.0
  %vm163 = vcmp.ge.f32.partialorder %v159, 0.0
  %vm164 = vcmp.ge.f32.partialorder %v160, 0.0
  %vm165 = vcmp.ge.f32.partialorder %v161, 0.0
  %v166 = vmul.f32 %v158, 0.2
  %v167 = vmul.f32 %v159, 0.2
  %v168 = vmul.f32 %v160, 0.2
  %v169 = vmul.f32 %v161, 0.2
  %v170 = vsel %vm162, %v158, %v166
  %v171 = vsel %vm163, %v159, %v167
  %v172 = vsel %vm164, %v160, %v168
  %v173 = vsel %vm165, %v161, %v169
  %174 = vst [vmem:[%s4] sm:$0xff] %v170
  %175 = vst [vmem:[%s4 + $0x8] sm:$0xff] %v171
  %176 = vst [vmem:[%s4 + $0x10] sm:$0xff] %v172
  %177 = vst [vmem:[%s4 + $0x18] sm:$0xff] %v173
  // Predicated region
  $region18: #{_lambda_.75} parent=0 // pred_check
    _
  $region19: #{_lambda_.75} parent=0 // pred_check_branch
    %179 = sbr.rel (0) target = $region21
  $region20: #{_lambda_.75} parent=0 // pred_region
    _
  $region21: #{_lambda_.75} parent=0 // pred_fallthru
    _
  // Predicated region
  $region22: #{_lambda_.75} parent=0 // pred_check
    _
  $region23: #{_lambda_.75} parent=0 // pred_check_branch
    %181 = sbr.rel (0) target = $region25
  $region24: #{_lambda_.75} parent=0 // pred_region
    _
  $region25: #{_lambda_.75} parent=0 // pred_fallthru
    _

// kernel: _lambda_.73
$region0: #{_lambda_.73}
  #allocation0 [shape = 'u32[]', space=smem, size = 0x4, offset = 0x4, fixed_abs, tag = 'smem constant byte address 0x4 - core index']
  #allocation1 [shape = 'u32[144,128]{1,0:T(1,128)}', space=vmem, size = 0x12000, scoped, tag = 'internal scratch']
  %s0 = inlined_call_operand.vmem [shape: bf16[32,384], index: 0, kind: input, shape index: {}]
  %s1 = inlined_call_operand.vmem [shape: bf16[384,128], index: 1, kind: input, shape index: {}]
  %s2 = inlined_call_operand.vmem [shape: f32[1,128], index: 2, kind: input, shape index: {}]
  %s3 = inlined_call_operand.vmem [shape: f32[32,128], index: 3, kind: output, shape index: {}]
  %s4 = sld [smem:[#allocation0]]
  $region22: #{_lambda_.73} parent=0
    _
  %s6 = ssub.s32 1, %s4
  %s7 = scalar_select 0, %s6, %s4
  // Predicated region
  $region2: #{_lambda_.73} parent=0 // pred_check
    _
  $region3: #{_lambda_.73} parent=0 // pred_check_branch
    %9 = sbr.rel (0) target = $region5
  $region4: #{_lambda_.73} parent=0 // pred_region
    _
  $region5: #{_lambda_.73} parent=0 // pred_fallthru
    _
  // Predicated region
  $region6: #{_lambda_.73} parent=0 // pred_check
    _
  $region7: #{_lambda_.73} parent=0 // pred_check_branch
    %11 = sbr.rel (0) target = $region9
  $region8: #{_lambda_.73} parent=0 // pred_region
    _
  $region9: #{_lambda_.73} parent=0 // pred_fallthru
    _
  // Predicated region
  $region10: #{_lambda_.73} parent=0 // pred_check
    _
  $region11: #{_lambda_.73} parent=0 // pred_check_branch
    %13 = sbr.rel (0) target = $region13
  $region12: #{_lambda_.73} parent=0 // pred_region
    _
  $region13: #{_lambda_.73} parent=0 // pred_fallthru
    _
  %v15 = vld [vmem:[%s0] sm:$0xff]
  %v16 = vld [vmem:[%s0 + $0x8] sm:$0xf]
  %v17 = vld [vmem:[%s0 + $0xc] sm:$0xff]
  %v18 = vld [vmem:[%s0 + $0x14] sm:$0xf]
  %v19 = vld [vmem:[%s0 + $0x18] sm:$0xff]
  %v20 = vld [vmem:[%s0 + $0x20] sm:$0xf]
  %v21 = vld [vmem:[%s0 + $0x24] sm:$0xff]
  %v22 = vld [vmem:[%s0 + $0x2c] sm:$0xf]
  %v23 = vld [vmem:[%s1] sm:$0xf]
  %v24 = vld [vmem:[%s1 + $0x4] sm:$0xf]
  %v25 = vld [vmem:[%s1 + $0x8] sm:$0xf]
  %v26 = vld [vmem:[%s1 + $0xc] sm:$0xf]
  %v27 = vld [vmem:[%s1 + $0x10] sm:$0xf]
  %v28 = vld [vmem:[%s1 + $0x14] sm:$0xf]
  %v29 = vld [vmem:[%s1 + $0x18] sm:$0xf]
  %v30 = vld [vmem:[%s1 + $0x1c] sm:$0xf]
  %v31 = vld [vmem:[%s1 + $0x20] sm:$0xf]
  %v32 = vld [vmem:[%s1 + $0x24] sm:$0xf]
  %v33 = vld [vmem:[%s1 + $0x28] sm:$0xf]
  %v34 = vld [vmem:[%s1 + $0x2c] sm:$0xf]
  %v35 = vld [vmem:[%s1 + $0x30] sm:$0xf]
  %v36 = vld [vmem:[%s1 + $0x34] sm:$0xf]
  %v37 = vld [vmem:[%s1 + $0x38] sm:$0xf]
  %v38 = vld [vmem:[%s1 + $0x3c] sm:$0xf]
  %v39 = vld [vmem:[%s1 + $0x40] sm:$0xf]
  %v40 = vld [vmem:[%s1 + $0x44] sm:$0xf]
  %v41 = vld [vmem:[%s1 + $0x48] sm:$0xf]
  %v42 = vld [vmem:[%s1 + $0x4c] sm:$0xf]
  %v43 = vld [vmem:[%s1 + $0x50] sm:$0xf]
  %v44 = vld [vmem:[%s1 + $0x54] sm:$0xf]
  %v45 = vld [vmem:[%s1 + $0x58] sm:$0xf]
  %v46 = vld [vmem:[%s1 + $0x5c] sm:$0xf]
  %v47 = vld [vmem:[%s1 + $0x60] sm:$0xf]
  %v48 = vld [vmem:[%s1 + $0x64] sm:$0xf]
  %v49 = vld [vmem:[%s1 + $0x68] sm:$0xf]
  %v50 = vld [vmem:[%s1 + $0x6c] sm:$0xf]
  %v51 = vld [vmem:[%s1 + $0x70] sm:$0xf]
  %v52 = vld [vmem:[%s1 + $0x74] sm:$0xf]
  %v53 = vld [vmem:[%s1 + $0x78] sm:$0xf]
  %v54 = vld [vmem:[%s1 + $0x7c] sm:$0xf]
  %v55 = vld [vmem:[%s1 + $0x80] sm:$0xf]
  %v56 = vld [vmem:[%s1 + $0x84] sm:$0xf]
  %v57 = vld [vmem:[%s1 + $0x88] sm:$0xf]
  %v58 = vld [vmem:[%s1 + $0x8c] sm:$0xf]
  %v59 = vld [vmem:[%s1 + $0x90] sm:$0xf]
  %v60 = vld [vmem:[%s1 + $0x94] sm:$0xf]
  %v61 = vld [vmem:[%s1 + $0x98] sm:$0xf]
  %v62 = vld [vmem:[%s1 + $0x9c] sm:$0xf]
  %v63 = vld [vmem:[%s1 + $0xa0] sm:$0xf]
  %v64 = vld [vmem:[%s1 + $0xa4] sm:$0xf]
  %v65 = vld [vmem:[%s1 + $0xa8] sm:$0xf]
  %v66 = vld [vmem:[%s1 + $0xac] sm:$0xf]
  %v67 = vld [vmem:[%s1 + $0xb0] sm:$0xf]
  %v68 = vld [vmem:[%s1 + $0xb4] sm:$0xf]
  %v69 = vld [vmem:[%s1 + $0xb8] sm:$0xf]
  %v70 = vld [vmem:[%s1 + $0xbc] sm:$0xf]
  %v71 = vld [vmem:[%s2] sm:$0x1]
  %v73 = vlaneseq
  %v74 = vshrl.u32 %v73, 7
  %v75 = vsub.s32 0, %v74
  %v76 = vrot.slane %v71, %v75
  %v86 = vunpack.c.l.b16 %v15
  %v87 = vunpack.c.h.b16 %v15
  %v88 = vunpack.c.l.b16 %v16
  %v89 = vunpack.c.l.b16 %v17
  %v90 = vunpack.c.h.b16 %v17
  %v91 = vunpack.c.l.b16 %v18
  %v92 = vunpack.c.l.b16 %v19
  %v93 = vunpack.c.h.b16 %v19
  %v94 = vunpack.c.l.b16 %v20
  %v95 = vunpack.c.l.b16 %v21
  %v96 = vunpack.c.h.b16 %v21
  %v97 = vunpack.c.l.b16 %v22
  %v98 = vpack.c.b16 %v89, %v86
  %v99 = vpack.c.b16 %v90, %v87
  %v100 = vpack.c.b16 %v91, %v88
  %v101 = vpack.c.b16 %v95, %v92
  %v102 = vpack.c.b16 %v96, %v93
  %v103 = vpack.c.b16 %v97, %v94
  %v158 = vunpack.c.l.b16 %v23
  %v159 = vunpack.c.l.b16 %v24
  %v160 = vunpack.c.l.b16 %v25
  %v161 = vunpack.c.l.b16 %v26
  %v162 = vunpack.c.l.b16 %v27
  %v163 = vunpack.c.l.b16 %v28
  %v164 = vunpack.c.l.b16 %v29
  %v165 = vunpack.c.l.b16 %v30
  %v166 = vunpack.c.l.b16 %v31
  %v167 = vunpack.c.l.b16 %v32
  %v168 = vunpack.c.l.b16 %v33
  %v169 = vunpack.c.l.b16 %v34
  %v170 = vunpack.c.l.b16 %v35
  %v171 = vunpack.c.l.b16 %v36
  %v172 = vunpack.c.l.b16 %v37
  %v173 = vunpack.c.l.b16 %v38
  %v174 = vunpack.c.l.b16 %v39
  %v175 = vunpack.c.l.b16 %v40
  %v176 = vunpack.c.l.b16 %v41
  %v177 = vunpack.c.l.b16 %v42
  %v178 = vunpack.c.l.b16 %v43
  %v179 = vunpack.c.l.b16 %v44
  %v180 = vunpack.c.l.b16 %v45
  %v181 = vunpack.c.l.b16 %v46
  %v182 = vunpack.c.l.b16 %v47
  %v183 = vunpack.c.l.b16 %v48
  %v184 = vunpack.c.l.b16 %v49
  %v185 = vunpack.c.l.b16 %v50
  %v186 = vunpack.c.l.b16 %v51
  %v187 = vunpack.c.l.b16 %v52
  %v188 = vunpack.c.l.b16 %v53
  %v189 = vunpack.c.l.b16 %v54
  %v190 = vunpack.c.l.b16 %v55
  %v191 = vunpack.c.l.b16 %v56
  %v192 = vunpack.c.l.b16 %v57
  %v193 = vunpack.c.l.b16 %v58
  %v194 = vunpack.c.l.b16 %v59
  %v195 = vunpack.c.l.b16 %v60
  %v196 = vunpack.c.l.b16 %v61
  %v197 = vunpack.c.l.b16 %v62
  %v198 = vunpack.c.l.b16 %v63
  %v199 = vunpack.c.l.b16 %v64
  %v200 = vunpack.c.l.b16 %v65
  %v201 = vunpack.c.l.b16 %v66
  %v202 = vunpack.c.l.b16 %v67
  %v203 = vunpack.c.l.b16 %v68
  %v204 = vunpack.c.l.b16 %v69
  %v205 = vunpack.c.l.b16 %v70
  %v206 = vpack.c.b16 %v159, %v158
  %v207 = vpack.c.b16 %v161, %v160
  %v208 = vpack.c.b16 %v163, %v162
  %v209 = vpack.c.b16 %v165, %v164
  %v210 = vpack.c.b16 %v167, %v166
  %v211 = vpack.c.b16 %v169, %v168
  %v212 = vpack.c.b16 %v171, %v170
  %v213 = vpack.c.b16 %v173, %v172
  %v214 = vpack.c.b16 %v175, %v174
  %v215 = vpack.c.b16 %v177, %v176
  %v216 = vpack.c.b16 %v179, %v178
  %v217 = vpack.c.b16 %v181, %v180
  %v218 = vpack.c.b16 %v183, %v182
  %v219 = vpack.c.b16 %v185, %v184
  %v220 = vpack.c.b16 %v187, %v186
  %v221 = vpack.c.b16 %v189, %v188
  %v222 = vpack.c.b16 %v191, %v190
  %v223 = vpack.c.b16 %v193, %v192
  %v224 = vpack.c.b16 %v195, %v194
  %v225 = vpack.c.b16 %v197, %v196
  %v226 = vpack.c.b16 %v199, %v198
  %v227 = vpack.c.b16 %v201, %v200
  %v228 = vpack.c.b16 %v203, %v202
  %v229 = vpack.c.b16 %v205, %v204
  %254 = vmatprep.subr.bf16.mxu0 0
  %255 = vmatpush1.bf16.msra.mxu0 %v206
  %256 = vmatprep.subr.bf16.mxu0 0
  %257 = vmatpush1.bf16.msra.mxu0 %v207
  %258 = vmatprep.subr.bf16.mxu0 0
  %259 = vmatpush1.bf16.msra.mxu0 %v208
  %260 = vmatprep.subr.bf16.mxu0 0
  %261 = vmatpush1.bf16.msra.mxu0 %v209
  %262 = vmatprep.subr.bf16.mxu0 0
  %263 = vmatpush1.bf16.msra.mxu0 %v210
  %264 = vmatprep.subr.bf16.mxu0 0
  %265 = vmatpush1.bf16.msra.mxu0 %v211
  %266 = vmatprep.subr.bf16.mxu0 0
  %267 = vmatpush1.bf16.msra.mxu0 %v212
  %268 = vmatprep.subr.bf16.mxu0 0
  %269 = vmatpush1.bf16.msra.mxu0 %v213
  %270 = vmatprep.subr.bf16.mxu0 0
  %271 = vmatpush1.bf16.msra.mxu0 %v214
  %272 = vmatprep.subr.bf16.mxu0 0
  %273 = vmatpush1.bf16.msra.mxu0 %v215
  %274 = vmatprep.subr.bf16.mxu0 0
  %275 = vmatpush1.bf16.msra.mxu0 %v216
  %276 = vmatprep.subr.bf16.mxu0 0
  %277 = vmatpush1.bf16.msra.mxu0 %v217
  %278 = vmatprep.subr.bf16.mxu0 0
  %279 = vmatpush1.bf16.msra.mxu0 %v218
  %280 = vmatprep.subr.bf16.mxu0 0
  %281 = vmatpush1.bf16.msra.mxu0 %v219
  %282 = vmatprep.subr.bf16.mxu0 0
  %283 = vmatpush1.bf16.msra.mxu0 %v220
  %284 = vmatprep.subr.bf16.mxu0 0
  %285 = vmatpush1.bf16.msra.mxu0 %v221
  %286 = vmatprep.mubr.bf16.mxu0 %v99
  %287 = vmatmul.mubr.bf16.gmra.mrb[0].mxu0 %v98
  %v288 = vpop.f32.mrb[0].mxu0
  %v289 = vadd.f32 %v76, %v288
  %v290 = vpop.f32.mrb[0].mxu0
  %v291 = vpop.f32.mrb[0].mxu0
  %v292 = vadd.f32 %v76, %v291
  %v293 = vpop.f32.mrb[0].mxu0
  %294 = vmatprep.mubr.bf16.mxu0 %v102
  %295 = vmatmul.mubr.bf16.gmra.mrb[0].mxu0 %v101
  %v296 = vpop.f32.mrb[0].mxu0
  %v297 = vadd.f32 %v76, %v296
  %v298 = vpop.f32.mrb[0].mxu0
  %v299 = vpop.f32.mrb[0].mxu0
  %v300 = vadd.f32 %v76, %v299
  %v301 = vpop.f32.mrb[0].mxu0
  %302 = vdwg.mxu0
  %303 = vmatprep.subr.bf16.mxu0 0
  %304 = vmatpush1.bf16.msra.mxu0 %v222
  %305 = vmatprep.subr.bf16.mxu0 0
  %306 = vmatpush1.bf16.msra.mxu0 %v223
  %307 = vmatprep.subr.bf16.mxu0 0
  %308 = vmatpush1.bf16.msra.mxu0 %v224
  %309 = vmatprep.subr.bf16.mxu0 0
  %310 = vmatpush1.bf16.msra.mxu0 %v225
  %311 = vmatprep.subr.bf16.mxu0 0
  %312 = vmatpush1.bf16.msra.mxu0 %v226
  %313 = vmatprep.subr.bf16.mxu0 0
  %314 = vmatpush1.bf16.msra.mxu0 %v227
  %315 = vmatprep.subr.bf16.mxu0 0
  %316 = vmatpush1.bf16.msra.mxu0 %v228
  %317 = vmatprep.subr.bf16.mxu0 0
  %318 = vmatpush1.bf16.msra.mxu0 %v229
  %319 = vmatprep.subr.bf16.mxu0 0
  %320 = vmatpush1.bf16.msra.mxu0 0
  %321 = vmatprep.subr.bf16.mxu0 0
  %322 = vmatpush1.bf16.msra.mxu0 0
  %323 = vmatprep.subr.bf16.mxu0 0
  %324 = vmatpush1.bf16.msra.mxu0 0
  %325 = vmatprep.subr.bf16.mxu0 0
  %326 = vmatpush1.bf16.msra.mxu0 0
  %327 = vmatprep.subr.bf16.mxu0 0
  %328 = vmatpush1.bf16.msra.mxu0 0
  %329 = vmatprep.subr.bf16.mxu0 0
  %330 = vmatpush1.bf16.msra.mxu0 0
  %331 = vmatprep.subr.bf16.mxu0 0
  %332 = vmatpush1.bf16.msra.mxu0 0
  %333 = vmatprep.subr.bf16.mxu0 0
  %334 = vmatpush1.bf16.msra.mxu0 0
  %335 = vmatprep.mubr.bf16.mxu0 0
  %336 = vmatmul.mubr.bf16.gmra.mrb[0].mxu0 %v100
  %v337 = vpop.f32.mrb[0].mxu0
  %v338 = vadd.f32 %v289, %v337
  %v339 = vpop.f32.mrb[0].mxu0
  %v340 = vpop.f32.mrb[0].mxu0
  %v341 = vadd.f32 %v292, %v340
  %v342 = vpop.f32.mrb[0].mxu0
  %343 = vmatprep.mubr.bf16.mxu0 0
  %344 = vmatmul.mubr.bf16.gmra.mrb[0].mxu0 %v103
  %v345 = vpop.f32.mrb[0].mxu0
  %v346 = vadd.f32 %v297, %v345
  %v347 = vpop.f32.mrb[0].mxu0
  %v348 = vpop.f32.mrb[0].mxu0
  %v349 = vadd.f32 %v300, %v348
  %v350 = vpop.f32.mrb[0].mxu0
  %351 = vdwg.mxu0
  %vm352 = vcmp.ge.f32.partialorder %v338, 0.0
  %vm353 = vcmp.ge.f32.partialorder %v341, 0.0
  %vm354 = vcmp.ge.f32.partialorder %v346, 0.0
  %vm355 = vcmp.ge.f32.partialorder %v349, 0.0
  %v356 = vmul.f32 %v338, 0.2
  %v357 = vmul.f32 %v341, 0.2
  %v358 = vmul.f32 %v346, 0.2
  %v359 = vmul.f32 %v349, 0.2
  %v360 = vsel %vm352, %v338, %v356
  %v361 = vsel %vm353, %v341, %v357
  %v362 = vsel %vm354, %v346, %v358
  %v363 = vsel %vm355, %v349, %v359
  %364 = vst [vmem:[%s3] sm:$0xff] %v360
  %365 = vst [vmem:[%s3 + $0x8] sm:$0xff] %v361
  %366 = vst [vmem:[%s3 + $0x10] sm:$0xff] %v362
  %367 = vst [vmem:[%s3 + $0x18] sm:$0xff] %v363
  // Predicated region
  $region14: #{_lambda_.73} parent=0 // pred_check
    _
  $region15: #{_lambda_.73} parent=0 // pred_check_branch
    %369 = sbr.rel (0) target = $region17
  $region16: #{_lambda_.73} parent=0 // pred_region
    _
  $region17: #{_lambda_.73} parent=0 // pred_fallthru
    _
  // Predicated region
  $region18: #{_lambda_.73} parent=0 // pred_check
    _
  $region19: #{_lambda_.73} parent=0 // pred_check_branch
    %371 = sbr.rel (0) target = $region21
  $region20: #{_lambda_.73} parent=0 // pred_region
    _
  $region21: #{_lambda_.73} parent=0 // pred_fallthru
    _

// kernel: _lambda_.84
$region0: #{_lambda_.84}
  #allocation0 [shape = 'u32[]', space=smem, size = 0x4, offset = 0x4, fixed_abs, tag = 'smem constant byte address 0x4 - core index']
  #allocation1 [shape = 'u32[144,128]{1,0:T(1,128)}', space=vmem, size = 0x12000, scoped, tag = 'internal scratch']
  %s0 = inlined_call_operand.vmem [shape: bf16[16,128], index: 0, kind: input, shape index: {}]
  %s1 = inlined_call_operand.vmem [shape: bf16[128,256], index: 1, kind: input, shape index: {}]
  %s2 = inlined_call_operand.vmem [shape: f32[1,256], index: 2, kind: input, shape index: {}]
  %s3 = inlined_call_operand.vmem [shape: f32[16,256], index: 3, kind: output, shape index: {}]
  %s4 = sld [smem:[#allocation0]]
  $region22: #{_lambda_.84} parent=0
    _
  %s6 = ssub.s32 1, %s4
  %s7 = scalar_select 0, %s6, %s4
  // Predicated region
  $region2: #{_lambda_.84} parent=0 // pred_check
    _
  $region3: #{_lambda_.84} parent=0 // pred_check_branch
    %9 = sbr.rel (0) target = $region5
  $region4: #{_lambda_.84} parent=0 // pred_region
    _
  $region5: #{_lambda_.84} parent=0 // pred_fallthru
    _
  // Predicated region
  $region6: #{_lambda_.84} parent=0 // pred_check
    _
  $region7: #{_lambda_.84} parent=0 // pred_check_branch
    %11 = sbr.rel (0) target = $region9
  $region8: #{_lambda_.84} parent=0 // pred_region
    _
  $region9: #{_lambda_.84} parent=0 // pred_fallthru
    _
  // Predicated region
  $region10: #{_lambda_.84} parent=0 // pred_check
    _
  $region11: #{_lambda_.84} parent=0 // pred_check_branch
    %13 = sbr.rel (0) target = $region13
  $region12: #{_lambda_.84} parent=0 // pred_region
    _
  $region13: #{_lambda_.84} parent=0 // pred_fallthru
    _
  %v15 = vld [vmem:[%s0] sm:$0xf]
  %v16 = vld [vmem:[%s0 + $0x4] sm:$0xf]
  %v17 = vld [vmem:[%s1] sm:$0xff]
  %v18 = vld [vmem:[%s1 + $0x8] sm:$0xff]
  %v19 = vld [vmem:[%s1 + $0x10] sm:$0xff]
  %v20 = vld [vmem:[%s1 + $0x18] sm:$0xff]
  %v21 = vld [vmem:[%s1 + $0x20] sm:$0xff]
  %v22 = vld [vmem:[%s1 + $0x28] sm:$0xff]
  %v23 = vld [vmem:[%s1 + $0x30] sm:$0xff]
  %v24 = vld [vmem:[%s1 + $0x38] sm:$0xff]
  %v25 = vld [vmem:[%s1 + $0x40] sm:$0xff]
  %v26 = vld [vmem:[%s1 + $0x48] sm:$0xff]
  %v27 = vld [vmem:[%s1 + $0x50] sm:$0xff]
  %v28 = vld [vmem:[%s1 + $0x58] sm:$0xff]
  %v29 = vld [vmem:[%s1 + $0x60] sm:$0xff]
  %v30 = vld [vmem:[%s1 + $0x68] sm:$0xff]
  %v31 = vld [vmem:[%s1 + $0x70] sm:$0xff]
  %v32 = vld [vmem:[%s1 + $0x78] sm:$0xff]
  %v33 = vld [vmem:[%s2] sm:$0x3]
  %v35 = vlaneseq
  %v36 = vshrl.u32 %v35, 7
  %v37 = vsub.s32 0, %v36
  %v38 = vrot.slane %v33, %v37
  %v39 = vlaneseq
  %v40 = vshrl.u32 %v39, 7
  %v41 = vsub.s32 1, %v40
  %v42 = vrot.slane %v33, %v41
  %v47 = vunpack.c.l.b16 %v15
  %v48 = vunpack.c.l.b16 %v16
  %v49 = vpack.c.b16 %v48, %v47
  %v67 = vunpack.c.l.b16 %v17
  %v68 = vunpack.c.h.b16 %v17
  %v69 = vunpack.c.l.b16 %v18
  %v70 = vunpack.c.h.b16 %v18
  %v71 = vunpack.c.l.b16 %v19
  %v72 = vunpack.c.h.b16 %v19
  %v73 = vunpack.c.l.b16 %v20
  %v74 = vunpack.c.h.b16 %v20
  %v75 = vunpack.c.l.b16 %v21
  %v76 = vunpack.c.h.b16 %v21
  %v77 = vunpack.c.l.b16 %v22
  %v78 = vunpack.c.h.b16 %v22
  %v79 = vunpack.c.l.b16 %v23
  %v80 = vunpack.c.h.b16 %v23
  %v81 = vunpack.c.l.b16 %v24
  %v82 = vunpack.c.h.b16 %v24
  %v83 = vunpack.c.l.b16 %v25
  %v84 = vunpack.c.h.b16 %v25
  %v85 = vunpack.c.l.b16 %v26
  %v86 = vunpack.c.h.b16 %v26
  %v87 = vunpack.c.l.b16 %v27
  %v88 = vunpack.c.h.b16 %v27
  %v89 = vunpack.c.l.b16 %v28
  %v90 = vunpack.c.h.b16 %v28
  %v91 = vunpack.c.l.b16 %v29
  %v92 = vunpack.c.h.b16 %v29
  %v93 = vunpack.c.l.b16 %v30
  %v94 = vunpack.c.h.b16 %v30
  %v95 = vunpack.c.l.b16 %v31
  %v96 = vunpack.c.h.b16 %v31
  %v97 = vunpack.c.l.b16 %v32
  %v98 = vunpack.c.h.b16 %v32
  %v99 = vpack.c.b16 %v69, %v67
  %v100 = vpack.c.b16 %v70, %v68
  %v101 = vpack.c.b16 %v73, %v71
  %v102 = vpack.c.b16 %v74, %v72
  %v103 = vpack.c.b16 %v77, %v75
  %v104 = vpack.c.b16 %v78, %v76
  %v105 = vpack.c.b16 %v81, %v79
  %v106 = vpack.c.b16 %v82, %v80
  %v107 = vpack.c.b16 %v85, %v83
  %v108 = vpack.c.b16 %v86, %v84
  %v109 = vpack.c.b16 %v89, %v87
  %v110 = vpack.c.b16 %v90, %v88
  %v111 = vpack.c.b16 %v93, %v91
  %v112 = vpack.c.b16 %v94, %v92
  %v113 = vpack.c.b16 %v97, %v95
  %v114 = vpack.c.b16 %v98, %v96
  %131 = vmatprep.subr.bf16.mxu0 %v100
  %132 = vmatpush1.bf16.msra.mxu0 %v99
  %133 = vmatprep.subr.bf16.mxu0 %v102
  %134 = vmatpush1.bf16.msra.mxu0 %v101
  %135 = vmatprep.subr.bf16.mxu0 %v104
  %136 = vmatpush1.bf16.msra.mxu0 %v103
  %137 = vmatprep.subr.bf16.mxu0 %v106
  %138 = vmatpush1.bf16.msra.mxu0 %v105
  %139 = vmatprep.subr.bf16.mxu0 %v108
  %140 = vmatpush1.bf16.msra.mxu0 %v107
  %141 = vmatprep.subr.bf16.mxu0 %v110
  %142 = vmatpush1.bf16.msra.mxu0 %v109
  %143 = vmatprep.subr.bf16.mxu0 %v112
  %144 = vmatpush1.bf16.msra.mxu0 %v111
  %145 = vmatprep.subr.bf16.mxu0 %v114
  %146 = vmatpush1.bf16.msra.mxu0 %v113
  %147 = vmatprep.subr.bf16.mxu0 0
  %148 = vmatpush1.bf16.msra.mxu0 0
  %149 = vmatprep.subr.bf16.mxu0 0
  %150 = vmatpush1.bf16.msra.mxu0 0
  %151 = vmatprep.subr.bf16.mxu0 0
  %152 = vmatpush1.bf16.msra.mxu0 0
  %153 = vmatprep.subr.bf16.mxu0 0
  %154 = vmatpush1.bf16.msra.mxu0 0
  %155 = vmatprep.subr.bf16.mxu0 0
  %156 = vmatpush1.bf16.msra.mxu0 0
  %157 = vmatprep.subr.bf16.mxu0 0
  %158 = vmatpush1.bf16.msra.mxu0 0
  %159 = vmatprep.subr.bf16.mxu0 0
  %160 = vmatpush1.bf16.msra.mxu0 0
  %161 = vmatprep.subr.bf16.mxu0 0
  %162 = vmatpush1.bf16.msra.mxu0 0
  %163 = vmatprep.mubr.bf16.mxu0 0
  %164 = vmatmul.mubr.bf16.gmra.mrb[0].mxu0 %v49
  %v165 = vpop.f32.mrb[0].mxu0
  %v166 = vadd.f32 %v38, %v165
  %v167 = vpop.f32.mrb[0].mxu0
  %v168 = vadd.f32 %v42, %v167
  %v169 = vpop.f32.mrb[0].mxu0
  %v170 = vadd.f32 %v38, %v169
  %v171 = vpop.f32.mrb[0].mxu0
  %v172 = vadd.f32 %v42, %v171
  %173 = vdwg.mxu0
  %174 = vst [vmem:[%s3] sm:$0xff] %v166
  %175 = vst [vmem:[%s3 + $0x8] sm:$0xff] %v168
  %176 = vst [vmem:[%s3 + $0x10] sm:$0xff] %v170
  %177 = vst [vmem:[%s3 + $0x18] sm:$0xff] %v172
  // Predicated region
  $region14: #{_lambda_.84} parent=0 // pred_check
    _
  $region15: #{_lambda_.84} parent=0 // pred_check_branch
    %179 = sbr.rel (0) target = $region17
  $region16: #{_lambda_.84} parent=0 // pred_region
    _
  $region17: #{_lambda_.84} parent=0 // pred_fallthru
    _
  // Predicated region
  $region18: #{_lambda_.84} parent=0 // pred_check
    _
  $region19: #{_lambda_.84} parent=0 // pred_check_branch
    %181 = sbr.rel (0) target = $region21
  $region20: #{_lambda_.84} parent=0 // pred_region
    _
  $region21: #{_lambda_.84} parent=0 // pred_fallthru
    _

// kernel: _lambda_.83
$region0: #{_lambda_.83}
  #allocation0 [shape = 'u32[]', space=smem, size = 0x4, offset = 0x4, fixed_abs, tag = 'smem constant byte address 0x4 - core index']
  #allocation1 [shape = 'u32[144,128]{1,0:T(1,128)}', space=vmem, size = 0x12000, scoped, tag = 'internal scratch']
  %s0 = inlined_call_operand.vmem [shape: bf16[16,640], index: 0, kind: input, shape index: {}]
  %s1 = inlined_call_operand.vmem [shape: bf16[640,128], index: 1, kind: input, shape index: {}]
  %s2 = inlined_call_operand.vmem [shape: f32[1,128], index: 2, kind: input, shape index: {}]
  %s3 = inlined_call_operand.vmem [shape: f32[16,128], index: 3, kind: output, shape index: {}]
  %s4 = sld [smem:[#allocation0]]
  $region22: #{_lambda_.83} parent=0
    _
  %s6 = ssub.s32 1, %s4
  %s7 = scalar_select 0, %s6, %s4
  // Predicated region
  $region2: #{_lambda_.83} parent=0 // pred_check
    _
  $region3: #{_lambda_.83} parent=0 // pred_check_branch
    %9 = sbr.rel (0) target = $region5
  $region4: #{_lambda_.83} parent=0 // pred_region
    _
  $region5: #{_lambda_.83} parent=0 // pred_fallthru
    _
  // Predicated region
  $region6: #{_lambda_.83} parent=0 // pred_check
    _
  $region7: #{_lambda_.83} parent=0 // pred_check_branch
    %11 = sbr.rel (0) target = $region9
  $region8: #{_lambda_.83} parent=0 // pred_region
    _
  $region9: #{_lambda_.83} parent=0 // pred_fallthru
    _
  // Predicated region
  $region10: #{_lambda_.83} parent=0 // pred_check
    _
  $region11: #{_lambda_.83} parent=0 // pred_check_branch
    %13 = sbr.rel (0) target = $region13
  $region12: #{_lambda_.83} parent=0 // pred_region
    _
  $region13: #{_lambda_.83} parent=0 // pred_fallthru
    _
  %v15 = vld [vmem:[%s0] sm:$0xff]
  %v16 = vld [vmem:[%s0 + $0x8] sm:$0xff]
  %v17 = vld [vmem:[%s0 + $0x10] sm:$0xf]
  %v18 = vld [vmem:[%s0 + $0x14] sm:$0xff]
  %v19 = vld [vmem:[%s0 + $0x1c] sm:$0xff]
  %v20 = vld [vmem:[%s0 + $0x24] sm:$0xf]
  %v21 = vld [vmem:[%s1] sm:$0xf]
  %v22 = vld [vmem:[%s1 + $0x4] sm:$0xf]
  %v23 = vld [vmem:[%s1 + $0x8] sm:$0xf]
  %v24 = vld [vmem:[%s1 + $0xc] sm:$0xf]
  %v25 = vld [vmem:[%s1 + $0x10] sm:$0xf]
  %v26 = vld [vmem:[%s1 + $0x14] sm:$0xf]
  %v27 = vld [vmem:[%s1 + $0x18] sm:$0xf]
  %v28 = vld [vmem:[%s1 + $0x1c] sm:$0xf]
  %v29 = vld [vmem:[%s1 + $0x20] sm:$0xf]
  %v30 = vld [vmem:[%s1 + $0x24] sm:$0xf]
  %v31 = vld [vmem:[%s1 + $0x28] sm:$0xf]
  %v32 = vld [vmem:[%s1 + $0x2c] sm:$0xf]
  %v33 = vld [vmem:[%s1 + $0x30] sm:$0xf]
  %v34 = vld [vmem:[%s1 + $0x34] sm:$0xf]
  %v35 = vld [vmem:[%s1 + $0x38] sm:$0xf]
  %v36 = vld [vmem:[%s1 + $0x3c] sm:$0xf]
  %v37 = vld [vmem:[%s1 + $0x40] sm:$0xf]
  %v38 = vld [vmem:[%s1 + $0x44] sm:$0xf]
  %v39 = vld [vmem:[%s1 + $0x48] sm:$0xf]
  %v40 = vld [vmem:[%s1 + $0x4c] sm:$0xf]
  %v41 = vld [vmem:[%s1 + $0x50] sm:$0xf]
  %v42 = vld [vmem:[%s1 + $0x54] sm:$0xf]
  %v43 = vld [vmem:[%s1 + $0x58] sm:$0xf]
  %v44 = vld [vmem:[%s1 + $0x5c] sm:$0xf]
  %v45 = vld [vmem:[%s1 + $0x60] sm:$0xf]
  %v46 = vld [vmem:[%s1 + $0x64] sm:$0xf]
  %v47 = vld [vmem:[%s1 + $0x68] sm:$0xf]
  %v48 = vld [vmem:[%s1 + $0x6c] sm:$0xf]
  %v49 = vld [vmem:[%s1 + $0x70] sm:$0xf]
  %v50 = vld [vmem:[%s1 + $0x74] sm:$0xf]
  %v51 = vld [vmem:[%s1 + $0x78] sm:$0xf]
  %v52 = vld [vmem:[%s1 + $0x7c] sm:$0xf]
  %v53 = vld [vmem:[%s1 + $0x80] sm:$0xf]
  %v54 = vld [vmem:[%s1 + $0x84] sm:$0xf]
  %v55 = vld [vmem:[%s1 + $0x88] sm:$0xf]
  %v56 = vld [vmem:[%s1 + $0x8c] sm:$0xf]
  %v57 = vld [vmem:[%s1 + $0x90] sm:$0xf]
  %v58 = vld [vmem:[%s1 + $0x94] sm:$0xf]
  %v59 = vld [vmem:[%s1 + $0x98] sm:$0xf]
  %v60 = vld [vmem:[%s1 + $0x9c] sm:$0xf]
  %v61 = vld [vmem:[%s1 + $0xa0] sm:$0xf]
  %v62 = vld [vmem:[%s1 + $0xa4] sm:$0xf]
  %v63 = vld [vmem:[%s1 + $0xa8] sm:$0xf]
  %v64 = vld [vmem:[%s1 + $0xac] sm:$0xf]
  %v65 = vld [vmem:[%s1 + $0xb0] sm:$0xf]
  %v66 = vld [vmem:[%s1 + $0xb4] sm:$0xf]
  %v67 = vld [vmem:[%s1 + $0xb8] sm:$0xf]
  %v68 = vld [vmem:[%s1 + $0xbc] sm:$0xf]
  %v69 = vld [vmem:[%s1 + $0xc0] sm:$0xf]
  %v70 = vld [vmem:[%s1 + $0xc4] sm:$0xf]
  %v71 = vld [vmem:[%s1 + $0xc8] sm:$0xf]
  %v72 = vld [vmem:[%s1 + $0xcc] sm:$0xf]
  %v73 = vld [vmem:[%s1 + $0xd0] sm:$0xf]
  %v74 = vld [vmem:[%s1 + $0xd4] sm:$0xf]
  %v75 = vld [vmem:[%s1 + $0xd8] sm:$0xf]
  %v76 = vld [vmem:[%s1 + $0xdc] sm:$0xf]
  %v77 = vld [vmem:[%s1 + $0xe0] sm:$0xf]
  %v78 = vld [vmem:[%s1 + $0xe4] sm:$0xf]
  %v79 = vld [vmem:[%s1 + $0xe8] sm:$0xf]
  %v80 = vld [vmem:[%s1 + $0xec] sm:$0xf]
  %v81 = vld [vmem:[%s1 + $0xf0] sm:$0xf]
  %v82 = vld [vmem:[%s1 + $0xf4] sm:$0xf]
  %v83 = vld [vmem:[%s1 + $0xf8] sm:$0xf]
  %v84 = vld [vmem:[%s1 + $0xfc] sm:$0xf]
  %v85 = vld [vmem:[%s1 + $0x100] sm:$0xf]
  %v86 = vld [vmem:[%s1 + $0x104] sm:$0xf]
  %v87 = vld [vmem:[%s1 + $0x108] sm:$0xf]
  %v88 = vld [vmem:[%s1 + $0x10c] sm:$0xf]
  %v89 = vld [vmem:[%s1 + $0x110] sm:$0xf]
  %v90 = vld [vmem:[%s1 + $0x114] sm:$0xf]
  %v91 = vld [vmem:[%s1 + $0x118] sm:$0xf]
  %v92 = vld [vmem:[%s1 + $0x11c] sm:$0xf]
  %v93 = vld [vmem:[%s1 + $0x120] sm:$0xf]
  %v94 = vld [vmem:[%s1 + $0x124] sm:$0xf]
  %v95 = vld [vmem:[%s1 + $0x128] sm:$0xf]
  %v96 = vld [vmem:[%s1 + $0x12c] sm:$0xf]
  %v97 = vld [vmem:[%s1 + $0x130] sm:$0xf]
  %v98 = vld [vmem:[%s1 + $0x134] sm:$0xf]
  %v99 = vld [vmem:[%s1 + $0x138] sm:$0xf]
  %v100 = vld [vmem:[%s1 + $0x13c] sm:$0xf]
  %v101 = vld [vmem:[%s2] sm:$0x1]
  %v103 = vlaneseq
  %v104 = vshrl.u32 %v103, 7
  %v105 = vsub.s32 0, %v104
  %v106 = vrot.slane %v101, %v105
  %v114 = vunpack.c.l.b16 %v15
  %v115 = vunpack.c.h.b16 %v15
  %v116 = vunpack.c.l.b16 %v16
  %v117 = vunpack.c.h.b16 %v16
  %v118 = vunpack.c.l.b16 %v17
  %v119 = vunpack.c.l.b16 %v18
  %v120 = vunpack.c.h.b16 %v18
  %v121 = vunpack.c.l.b16 %v19
  %v122 = vunpack.c.h.b16 %v19
  %v123 = vunpack.c.l.b16 %v20
  %v124 = vpack.c.b16 %v119, %v114
  %v125 = vpack.c.b16 %v120, %v115
  %v126 = vpack.c.b16 %v121, %v116
  %v127 = vpack.c.b16 %v122, %v117
  %v128 = vpack.c.b16 %v123, %v118
  %v214 = vunpack.c.l.b16 %v21
  %v215 = vunpack.c.l.b16 %v22
  %v216 = vunpack.c.l.b16 %v23
  %v217 = vunpack.c.l.b16 %v24
  %v218 = vunpack.c.l.b16 %v25
  %v219 = vunpack.c.l.b16 %v26
  %v220 = vunpack.c.l.b16 %v27
  %v221 = vunpack.c.l.b16 %v28
  %v222 = vunpack.c.l.b16 %v29
  %v223 = vunpack.c.l.b16 %v30
  %v224 = vunpack.c.l.b16 %v31
  %v225 = vunpack.c.l.b16 %v32
  %v226 = vunpack.c.l.b16 %v33
  %v227 = vunpack.c.l.b16 %v34
  %v228 = vunpack.c.l.b16 %v35
  %v229 = vunpack.c.l.b16 %v36
  %v230 = vunpack.c.l.b16 %v37
  %v231 = vunpack.c.l.b16 %v38
  %v232 = vunpack.c.l.b16 %v39
  %v233 = vunpack.c.l.b16 %v40
  %v234 = vunpack.c.l.b16 %v41
  %v235 = vunpack.c.l.b16 %v42
  %v236 = vunpack.c.l.b16 %v43
  %v237 = vunpack.c.l.b16 %v44
  %v238 = vunpack.c.l.b16 %v45
  %v239 = vunpack.c.l.b16 %v46
  %v240 = vunpack.c.l.b16 %v47
  %v241 = vunpack.c.l.b16 %v48
  %v242 = vunpack.c.l.b16 %v49
  %v243 = vunpack.c.l.b16 %v50
  %v244 = vunpack.c.l.b16 %v51
  %v245 = vunpack.c.l.b16 %v52
  %v246 = vunpack.c.l.b16 %v53
  %v247 = vunpack.c.l.b16 %v54
  %v248 = vunpack.c.l.b16 %v55
  %v249 = vunpack.c.l.b16 %v56
  %v250 = vunpack.c.l.b16 %v57
  %v251 = vunpack.c.l.b16 %v58
  %v252 = vunpack.c.l.b16 %v59
  %v253 = vunpack.c.l.b16 %v60
  %v254 = vunpack.c.l.b16 %v61
  %v255 = vunpack.c.l.b16 %v62
  %v256 = vunpack.c.l.b16 %v63
  %v257 = vunpack.c.l.b16 %v64
  %v258 = vunpack.c.l.b16 %v65
  %v259 = vunpack.c.l.b16 %v66
  %v260 = vunpack.c.l.b16 %v67
  %v261 = vunpack.c.l.b16 %v68
  %v262 = vunpack.c.l.b16 %v69
  %v263 = vunpack.c.l.b16 %v70
  %v264 = vunpack.c.l.b16 %v71
  %v265 = vunpack.c.l.b16 %v72
  %v266 = vunpack.c.l.b16 %v73
  %v267 = vunpack.c.l.b16 %v74
  %v268 = vunpack.c.l.b16 %v75
  %v269 = vunpack.c.l.b16 %v76
  %v270 = vunpack.c.l.b16 %v77
  %v271 = vunpack.c.l.b16 %v78
  %v272 = vunpack.c.l.b16 %v79
  %v273 = vunpack.c.l.b16 %v80
  %v274 = vunpack.c.l.b16 %v81
  %v275 = vunpack.c.l.b16 %v82
  %v276 = vunpack.c.l.b16 %v83
  %v277 = vunpack.c.l.b16 %v84
  %v278 = vunpack.c.l.b16 %v85
  %v279 = vunpack.c.l.b16 %v86
  %v280 = vunpack.c.l.b16 %v87
  %v281 = vunpack.c.l.b16 %v88
  %v282 = vunpack.c.l.b16 %v89
  %v283 = vunpack.c.l.b16 %v90
  %v284 = vunpack.c.l.b16 %v91
  %v285 = vunpack.c.l.b16 %v92
  %v286 = vunpack.c.l.b16 %v93
  %v287 = vunpack.c.l.b16 %v94
  %v288 = vunpack.c.l.b16 %v95
  %v289 = vunpack.c.l.b16 %v96
  %v290 = vunpack.c.l.b16 %v97
  %v291 = vunpack.c.l.b16 %v98
  %v292 = vunpack.c.l.b16 %v99
  %v293 = vunpack.c.l.b16 %v100
  %v294 = vpack.c.b16 %v215, %v214
  %v295 = vpack.c.b16 %v217, %v216
  %v296 = vpack.c.b16 %v219, %v218
  %v297 = vpack.c.b16 %v221, %v220
  %v298 = vpack.c.b16 %v223, %v222
  %v299 = vpack.c.b16 %v225, %v224
  %v300 = vpack.c.b16 %v227, %v226
  %v301 = vpack.c.b16 %v229, %v228
  %v302 = vpack.c.b16 %v231, %v230
  %v303 = vpack.c.b16 %v233, %v232
  %v304 = vpack.c.b16 %v235, %v234
  %v305 = vpack.c.b16 %v237, %v236
  %v306 = vpack.c.b16 %v239, %v238
  %v307 = vpack.c.b16 %v241, %v240
  %v308 = vpack.c.b16 %v243, %v242
  %v309 = vpack.c.b16 %v245, %v244
  %v310 = vpack.c.b16 %v247, %v246
  %v311 = vpack.c.b16 %v249, %v248
  %v312 = vpack.c.b16 %v251, %v250
  %v313 = vpack.c.b16 %v253, %v252
  %v314 = vpack.c.b16 %v255, %v254
  %v315 = vpack.c.b16 %v257, %v256
  %v316 = vpack.c.b16 %v259, %v258
  %v317 = vpack.c.b16 %v261, %v260
  %v318 = vpack.c.b16 %v263, %v262
  %v319 = vpack.c.b16 %v265, %v264
  %v320 = vpack.c.b16 %v267, %v266
  %v321 = vpack.c.b16 %v269, %v268
  %v322 = vpack.c.b16 %v271, %v270
  %v323 = vpack.c.b16 %v273, %v272
  %v324 = vpack.c.b16 %v275, %v274
  %v325 = vpack.c.b16 %v277, %v276
  %v326 = vpack.c.b16 %v279, %v278
  %v327 = vpack.c.b16 %v281, %v280
  %v328 = vpack.c.b16 %v283, %v282
  %v329 = vpack.c.b16 %v285, %v284
  %v330 = vpack.c.b16 %v287, %v286
  %v331 = vpack.c.b16 %v289, %v288
  %v332 = vpack.c.b16 %v291, %v290
  %v333 = vpack.c.b16 %v293, %v292
  %374 = vmatprep.subr.bf16.mxu0 0
  %375 = vmatpush1.bf16.msra.mxu0 %v294
  %376 = vmatprep.subr.bf16.mxu0 0
  %377 = vmatpush1.bf16.msra.mxu0 %v295
  %378 = vmatprep.subr.bf16.mxu0 0
  %379 = vmatpush1.bf16.msra.mxu0 %v296
  %380 = vmatprep.subr.bf16.mxu0 0
  %381 = vmatpush1.bf16.msra.mxu0 %v297
  %382 = vmatprep.subr.bf16.mxu0 0
  %383 = vmatpush1.bf16.msra.mxu0 %v298
  %384 = vmatprep.subr.bf16.mxu0 0
  %385 = vmatpush1.bf16.msra.mxu0 %v299
  %386 = vmatprep.subr.bf16.mxu0 0
  %387 = vmatpush1.bf16.msra.mxu0 %v300
  %388 = vmatprep.subr.bf16.mxu0 0
  %389 = vmatpush1.bf16.msra.mxu0 %v301
  %390 = vmatprep.subr.bf16.mxu0 0
  %391 = vmatpush1.bf16.msra.mxu0 %v302
  %392 = vmatprep.subr.bf16.mxu0 0
  %393 = vmatpush1.bf16.msra.mxu0 %v303
  %394 = vmatprep.subr.bf16.mxu0 0
  %395 = vmatpush1.bf16.msra.mxu0 %v304
  %396 = vmatprep.subr.bf16.mxu0 0
  %397 = vmatpush1.bf16.msra.mxu0 %v305
  %398 = vmatprep.subr.bf16.mxu0 0
  %399 = vmatpush1.bf16.msra.mxu0 %v306
  %400 = vmatprep.subr.bf16.mxu0 0
  %401 = vmatpush1.bf16.msra.mxu0 %v307
  %402 = vmatprep.subr.bf16.mxu0 0
  %403 = vmatpush1.bf16.msra.mxu0 %v308
  %404 = vmatprep.subr.bf16.mxu0 0
  %405 = vmatpush1.bf16.msra.mxu0 %v309
  %406 = vmatprep.mubr.bf16.mxu0 %v125
  %407 = vmatmul.mubr.bf16.gmra.mrb[0].mxu0 %v124
  %v408 = vpop.f32.mrb[0].mxu0
  %v409 = vadd.f32 %v106, %v408
  %v410 = vpop.f32.mrb[0].mxu0
  %v411 = vpop.f32.mrb[0].mxu0
  %v412 = vadd.f32 %v106, %v411
  %v413 = vpop.f32.mrb[0].mxu0
  %414 = vdwg.mxu0
  %415 = vmatprep.subr.bf16.mxu0 0
  %416 = vmatpush1.bf16.msra.mxu0 %v310
  %417 = vmatprep.subr.bf16.mxu0 0
  %418 = vmatpush1.bf16.msra.mxu0 %v311
  %419 = vmatprep.subr.bf16.mxu0 0
  %420 = vmatpush1.bf16.msra.mxu0 %v312
  %421 = vmatprep.subr.bf16.mxu0 0
  %422 = vmatpush1.bf16.msra.mxu0 %v313
  %423 = vmatprep.subr.bf16.mxu0 0
  %424 = vmatpush1.bf16.msra.mxu0 %v314
  %425 = vmatprep.subr.bf16.mxu0 0
  %426 = vmatpush1.bf16.msra.mxu0 %v315
  %427 = vmatprep.subr.bf16.mxu0 0
  %428 = vmatpush1.bf16.msra.mxu0 %v316
  %429 = vmatprep.subr.bf16.mxu0 0
  %430 = vmatpush1.bf16.msra.mxu0 %v317
  %431 = vmatprep.subr.bf16.mxu0 0
  %432 = vmatpush1.bf16.msra.mxu0 %v318
  %433 = vmatprep.subr.bf16.mxu0 0
  %434 = vmatpush1.bf16.msra.mxu0 %v319
  %435 = vmatprep.subr.bf16.mxu0 0
  %436 = vmatpush1.bf16.msra.mxu0 %v320
  %437 = vmatprep.subr.bf16.mxu0 0
  %438 = vmatpush1.bf16.msra.mxu0 %v321
  %439 = vmatprep.subr.bf16.mxu0 0
  %440 = vmatpush1.bf16.msra.mxu0 %v322
  %441 = vmatprep.subr.bf16.mxu0 0
  %442 = vmatpush1.bf16.msra.mxu0 %v323
  %443 = vmatprep.subr.bf16.mxu0 0
  %444 = vmatpush1.bf16.msra.mxu0 %v324
  %445 = vmatprep.subr.bf16.mxu0 0
  %446 = vmatpush1.bf16.msra.mxu0 %v325
  %447 = vmatprep.mubr.bf16.mxu0 %v127
  %448 = vmatmul.mubr.bf16.gmra.mrb[0].mxu0 %v126
  %v449 = vpop.f32.mrb[0].mxu0
  %v450 = vadd.f32 %v409, %v449
  %v451 = vpop.f32.mrb[0].mxu0
  %v452 = vpop.f32.mrb[0].mxu0
  %v453 = vadd.f32 %v412, %v452
  %v454 = vpop.f32.mrb[0].mxu0
  %455 = vdwg.mxu0
  %456 = vmatprep.subr.bf16.mxu0 0
  %457 = vmatpush1.bf16.msra.mxu0 %v326
  %458 = vmatprep.subr.bf16.mxu0 0
  %459 = vmatpush1.bf16.msra.mxu0 %v327
  %460 = vmatprep.subr.bf16.mxu0 0
  %461 = vmatpush1.bf16.msra.mxu0 %v328
  %462 = vmatprep.subr.bf16.mxu0 0
  %463 = vmatpush1.bf16.msra.mxu0 %v329
  %464 = vmatprep.subr.bf16.mxu0 0
  %465 = vmatpush1.bf16.msra.mxu0 %v330
  %466 = vmatprep.subr.bf16.mxu0 0
  %467 = vmatpush1.bf16.msra.mxu0 %v331
  %468 = vmatprep.subr.bf16.mxu0 0
  %469 = vmatpush1.bf16.msra.mxu0 %v332
  %470 = vmatprep.subr.bf16.mxu0 0
  %471 = vmatpush1.bf16.msra.mxu0 %v333
  %472 = vmatprep.subr.bf16.mxu0 0
  %473 = vmatpush1.bf16.msra.mxu0 0
  %474 = vmatprep.subr.bf16.mxu0 0
  %475 = vmatpush1.bf16.msra.mxu0 0
  %476 = vmatprep.subr.bf16.mxu0 0
  %477 = vmatpush1.bf16.msra.mxu0 0
  %478 = vmatprep.subr.bf16.mxu0 0
  %479 = vmatpush1.bf16.msra.mxu0 0
  %480 = vmatprep.subr.bf16.mxu0 0
  %481 = vmatpush1.bf16.msra.mxu0 0
  %482 = vmatprep.subr.bf16.mxu0 0
  %483 = vmatpush1.bf16.msra.mxu0 0
  %484 = vmatprep.subr.bf16.mxu0 0
  %485 = vmatpush1.bf16.msra.mxu0 0
  %486 = vmatprep.subr.bf16.mxu0 0
  %487 = vmatpush1.bf16.msra.mxu0 0
  %488 = vmatprep.mubr.bf16.mxu0 0
  %489 = vmatmul.mubr.bf16.gmra.mrb[0].mxu0 %v128
  %v490 = vpop.f32.mrb[0].mxu0
  %v491 = vadd.f32 %v450, %v490
  %v492 = vpop.f32.mrb[0].mxu0
  %v493 = vpop.f32.mrb[0].mxu0
  %v494 = vadd.f32 %v453, %v493
  %v495 = vpop.f32.mrb[0].mxu0
  %496 = vdwg.mxu0
  %vm497 = vcmp.ge.f32.partialorder %v491, 0.0
  %vm498 = vcmp.ge.f32.partialorder %v494, 0.0
  %v499 = vmul.f32 %v491, 0.2
  %v500 = vmul.f32 %v494, 0.2
  %v501 = vsel %vm497, %v491, %v499
  %v502 = vsel %vm498, %v494, %v500
  %503 = vst [vmem:[%s3] sm:$0xff] %v501
  %504 = vst [vmem:[%s3 + $0x8] sm:$0xff] %v502
  // Predicated region
  $region14: #{_lambda_.83} parent=0 // pred_check
    _
  $region15: #{_lambda_.83} parent=0 // pred_check_branch
    %506 = sbr.rel (0) target = $region17
  $region16: #{_lambda_.83} parent=0 // pred_region
    _
  $region17: #{_lambda_.83} parent=0 // pred_fallthru
    _
  // Predicated region
  $region18: #{_lambda_.83} parent=0 // pred_check
    _
  $region19: #{_lambda_.83} parent=0 // pred_check_branch
    %508 = sbr.rel (0) target = $region21
  $region20: #{_lambda_.83} parent=0 // pred_region
    _
  $region21: #{_lambda_.83} parent=0 // pred_fallthru
    _

// kernel: _lambda_.86
$region0: #{_lambda_.86}
  #allocation0 [shape = 'u32[]', space=smem, size = 0x4, offset = 0x4, fixed_abs, tag = 'smem constant byte address 0x4 - core index']
  #allocation1 [shape = 'u32[144,128]{1,0:T(1,128)}', space=vmem, size = 0x12000, scoped, tag = 'internal scratch']
  %s0 = inlined_call_operand.vmem [shape: bf16[16,256], index: 0, kind: input, shape index: {}]
  %s1 = inlined_call_operand.vmem [shape: bf16[256,128], index: 1, kind: input, shape index: {}]
  %s2 = inlined_call_operand.vmem [shape: f32[1,128], index: 2, kind: input, shape index: {}]
  %s3 = inlined_call_operand.vmem [shape: f32[16,128], index: 3, kind: output, shape index: {}]
  %s4 = sld [smem:[#allocation0]]
  $region22: #{_lambda_.86} parent=0
    _
  %s6 = ssub.s32 1, %s4
  %s7 = scalar_select 0, %s6, %s4
  // Predicated region
  $region2: #{_lambda_.86} parent=0 // pred_check
    _
  $region3: #{_lambda_.86} parent=0 // pred_check_branch
    %9 = sbr.rel (0) target = $region5
  $region4: #{_lambda_.86} parent=0 // pred_region
    _
  $region5: #{_lambda_.86} parent=0 // pred_fallthru
    _
  // Predicated region
  $region6: #{_lambda_.86} parent=0 // pred_check
    _
  $region7: #{_lambda_.86} parent=0 // pred_check_branch
    %11 = sbr.rel (0) target = $region9
  $region8: #{_lambda_.86} parent=0 // pred_region
    _
  $region9: #{_lambda_.86} parent=0 // pred_fallthru
    _
  // Predicated region
  $region10: #{_lambda_.86} parent=0 // pred_check
    _
  $region11: #{_lambda_.86} parent=0 // pred_check_branch
    %13 = sbr.rel (0) target = $region13
  $region12: #{_lambda_.86} parent=0 // pred_region
    _
  $region13: #{_lambda_.86} parent=0 // pred_fallthru
    _
  %v15 = vld [vmem:[%s0] sm:$0xff]
  %v16 = vld [vmem:[%s0 + $0x8] sm:$0xff]
  %v17 = vld [vmem:[%s1] sm:$0xf]
  %v18 = vld [vmem:[%s1 + $0x4] sm:$0xf]
  %v19 = vld [vmem:[%s1 + $0x8] sm:$0xf]
  %v20 = vld [vmem:[%s1 + $0xc] sm:$0xf]
  %v21 = vld [vmem:[%s1 + $0x10] sm:$0xf]
  %v22 = vld [vmem:[%s1 + $0x14] sm:$0xf]
  %v23 = vld [vmem:[%s1 + $0x18] sm:$0xf]
  %v24 = vld [vmem:[%s1 + $0x1c] sm:$0xf]
  %v25 = vld [vmem:[%s1 + $0x20] sm:$0xf]
  %v26 = vld [vmem:[%s1 + $0x24] sm:$0xf]
  %v27 = vld [vmem:[%s1 + $0x28] sm:$0xf]
  %v28 = vld [vmem:[%s1 + $0x2c] sm:$0xf]
  %v29 = vld [vmem:[%s1 + $0x30] sm:$0xf]
  %v30 = vld [vmem:[%s1 + $0x34] sm:$0xf]
  %v31 = vld [vmem:[%s1 + $0x38] sm:$0xf]
  %v32 = vld [vmem:[%s1 + $0x3c] sm:$0xf]
  %v33 = vld [vmem:[%s1 + $0x40] sm:$0xf]
  %v34 = vld [vmem:[%s1 + $0x44] sm:$0xf]
  %v35 = vld [vmem:[%s1 + $0x48] sm:$0xf]
  %v36 = vld [vmem:[%s1 + $0x4c] sm:$0xf]
  %v37 = vld [vmem:[%s1 + $0x50] sm:$0xf]
  %v38 = vld [vmem:[%s1 + $0x54] sm:$0xf]
  %v39 = vld [vmem:[%s1 + $0x58] sm:$0xf]
  %v40 = vld [vmem:[%s1 + $0x5c] sm:$0xf]
  %v41 = vld [vmem:[%s1 + $0x60] sm:$0xf]
  %v42 = vld [vmem:[%s1 + $0x64] sm:$0xf]
  %v43 = vld [vmem:[%s1 + $0x68] sm:$0xf]
  %v44 = vld [vmem:[%s1 + $0x6c] sm:$0xf]
  %v45 = vld [vmem:[%s1 + $0x70] sm:$0xf]
  %v46 = vld [vmem:[%s1 + $0x74] sm:$0xf]
  %v47 = vld [vmem:[%s1 + $0x78] sm:$0xf]
  %v48 = vld [vmem:[%s1 + $0x7c] sm:$0xf]
  %v49 = vld [vmem:[%s2] sm:$0x1]
  %v51 = vlaneseq
  %v52 = vshrl.u32 %v51, 7
  %v53 = vsub.s32 0, %v52
  %v54 = vrot.slane %v49, %v53
  %v58 = vunpack.c.l.b16 %v15
  %v59 = vunpack.c.h.b16 %v15
  %v60 = vunpack.c.l.b16 %v16
  %v61 = vunpack.c.h.b16 %v16
  %v62 = vpack.c.b16 %v60, %v58
  %v63 = vpack.c.b16 %v61, %v59
  %v98 = vunpack.c.l.b16 %v17
  %v99 = vunpack.c.l.b16 %v18
  %v100 = vunpack.c.l.b16 %v19
  %v101 = vunpack.c.l.b16 %v20
  %v102 = vunpack.c.l.b16 %v21
  %v103 = vunpack.c.l.b16 %v22
  %v104 = vunpack.c.l.b16 %v23
  %v105 = vunpack.c.l.b16 %v24
  %v106 = vunpack.c.l.b16 %v25
  %v107 = vunpack.c.l.b16 %v26
  %v108 = vunpack.c.l.b16 %v27
  %v109 = vunpack.c.l.b16 %v28
  %v110 = vunpack.c.l.b16 %v29
  %v111 = vunpack.c.l.b16 %v30
  %v112 = vunpack.c.l.b16 %v31
  %v113 = vunpack.c.l.b16 %v32
  %v114 = vunpack.c.l.b16 %v33
  %v115 = vunpack.c.l.b16 %v34
  %v116 = vunpack.c.l.b16 %v35
  %v117 = vunpack.c.l.b16 %v36
  %v118 = vunpack.c.l.b16 %v37
  %v119 = vunpack.c.l.b16 %v38
  %v120 = vunpack.c.l.b16 %v39
  %v121 = vunpack.c.l.b16 %v40
  %v122 = vunpack.c.l.b16 %v41
  %v123 = vunpack.c.l.b16 %v42
  %v124 = vunpack.c.l.b16 %v43
  %v125 = vunpack.c.l.b16 %v44
  %v126 = vunpack.c.l.b16 %v45
  %v127 = vunpack.c.l.b16 %v46
  %v128 = vunpack.c.l.b16 %v47
  %v129 = vunpack.c.l.b16 %v48
  %v130 = vpack.c.b16 %v99, %v98
  %v131 = vpack.c.b16 %v101, %v100
  %v132 = vpack.c.b16 %v103, %v102
  %v133 = vpack.c.b16 %v105, %v104
  %v134 = vpack.c.b16 %v107, %v106
  %v135 = vpack.c.b16 %v109, %v108
  %v136 = vpack.c.b16 %v111, %v110
  %v137 = vpack.c.b16 %v113, %v112
  %v138 = vpack.c.b16 %v115, %v114
  %v139 = vpack.c.b16 %v117, %v116
  %v140 = vpack.c.b16 %v119, %v118
  %v141 = vpack.c.b16 %v121, %v120
  %v142 = vpack.c.b16 %v123, %v122
  %v143 = vpack.c.b16 %v125, %v124
  %v144 = vpack.c.b16 %v127, %v126
  %v145 = vpack.c.b16 %v129, %v128
  %162 = vmatprep.subr.bf16.mxu0 0
  %163 = vmatpush1.bf16.msra.mxu0 %v130
  %164 = vmatprep.subr.bf16.mxu0 0
  %165 = vmatpush1.bf16.msra.mxu0 %v131
  %166 = vmatprep.subr.bf16.mxu0 0
  %167 = vmatpush1.bf16.msra.mxu0 %v132
  %168 = vmatprep.subr.bf16.mxu0 0
  %169 = vmatpush1.bf16.msra.mxu0 %v133
  %170 = vmatprep.subr.bf16.mxu0 0
  %171 = vmatpush1.bf16.msra.mxu0 %v134
  %172 = vmatprep.subr.bf16.mxu0 0
  %173 = vmatpush1.bf16.msra.mxu0 %v135
  %174 = vmatprep.subr.bf16.mxu0 0
  %175 = vmatpush1.bf16.msra.mxu0 %v136
  %176 = vmatprep.subr.bf16.mxu0 0
  %177 = vmatpush1.bf16.msra.mxu0 %v137
  %178 = vmatprep.subr.bf16.mxu0 0
  %179 = vmatpush1.bf16.msra.mxu0 %v138
  %180 = vmatprep.subr.bf16.mxu0 0
  %181 = vmatpush1.bf16.msra.mxu0 %v139
  %182 = vmatprep.subr.bf16.mxu0 0
  %183 = vmatpush1.bf16.msra.mxu0 %v140
  %184 = vmatprep.subr.bf16.mxu0 0
  %185 = vmatpush1.bf16.msra.mxu0 %v141
  %186 = vmatprep.subr.bf16.mxu0 0
  %187 = vmatpush1.bf16.msra.mxu0 %v142
  %188 = vmatprep.subr.bf16.mxu0 0
  %189 = vmatpush1.bf16.msra.mxu0 %v143
  %190 = vmatprep.subr.bf16.mxu0 0
  %191 = vmatpush1.bf16.msra.mxu0 %v144
  %192 = vmatprep.subr.bf16.mxu0 0
  %193 = vmatpush1.bf16.msra.mxu0 %v145
  %194 = vmatprep.mubr.bf16.mxu0 %v63
  %195 = vmatmul.mubr.bf16.gmra.mrb[0].mxu0 %v62
  %v196 = vpop.f32.mrb[0].mxu0
  %v197 = vadd.f32 %v54, %v196
  %v198 = vpop.f32.mrb[0].mxu0
  %v199 = vpop.f32.mrb[0].mxu0
  %v200 = vadd.f32 %v54, %v199
  %v201 = vpop.f32.mrb[0].mxu0
  %202 = vdwg.mxu0
  %vm203 = vcmp.ge.f32.partialorder %v197, 0.0
  %vm204 = vcmp.ge.f32.partialorder %v200, 0.0
  %v205 = vmul.f32 %v197, 0.2
  %v206 = vmul.f32 %v200, 0.2
  %v207 = vsel %vm203, %v197, %v205
  %v208 = vsel %vm204, %v200, %v206
  %209 = vst [vmem:[%s3] sm:$0xff] %v207
  %210 = vst [vmem:[%s3 + $0x8] sm:$0xff] %v208
  // Predicated region
  $region14: #{_lambda_.86} parent=0 // pred_check
    _
  $region15: #{_lambda_.86} parent=0 // pred_check_branch
    %212 = sbr.rel (0) target = $region17
  $region16: #{_lambda_.86} parent=0 // pred_region
    _
  $region17: #{_lambda_.86} parent=0 // pred_fallthru
    _
  // Predicated region
  $region18: #{_lambda_.86} parent=0 // pred_check
    _
  $region19: #{_lambda_.86} parent=0 // pred_check_branch
    %214 = sbr.rel (0) target = $region21
  $region20: #{_lambda_.86} parent=0 // pred_region
    _
  $region21: #{_lambda_.86} parent=0 // pred_fallthru
    _

// kernel: _lambda_.85
$region0: #{_lambda_.85}
  #allocation0 [shape = 'u32[]', space=smem, size = 0x4, offset = 0x4, fixed_abs, tag = 'smem constant byte address 0x4 - core index']
  #allocation1 [shape = 'u32[144,128]{1,0:T(1,128)}', space=vmem, size = 0x12000, scoped, tag = 'internal scratch']
  %s0 = inlined_call_operand.vmem [shape: bf16[16,128], index: 0, kind: input, shape index: {}]
  %s1 = inlined_call_operand.vmem [shape: bf16[128,256], index: 1, kind: input, shape index: {}]
  %s2 = inlined_call_operand.vmem [shape: f32[1,256], index: 2, kind: input, shape index: {}]
  %s3 = inlined_call_operand.vmem [shape: f32[16,256], index: 3, kind: input, shape index: {}]
  %s4 = inlined_call_operand.vmem [shape: f32[16,256], index: 4, kind: output, shape index: {}]
  %s5 = sld [smem:[#allocation0]]
  $region26: #{_lambda_.85} parent=0
    _
  %s7 = ssub.s32 1, %s5
  %s8 = scalar_select 0, %s7, %s5
  // Predicated region
  $region2: #{_lambda_.85} parent=0 // pred_check
    _
  $region3: #{_lambda_.85} parent=0 // pred_check_branch
    %10 = sbr.rel (0) target = $region5
  $region4: #{_lambda_.85} parent=0 // pred_region
    _
  $region5: #{_lambda_.85} parent=0 // pred_fallthru
    _
  // Predicated region
  $region6: #{_lambda_.85} parent=0 // pred_check
    _
  $region7: #{_lambda_.85} parent=0 // pred_check_branch
    %12 = sbr.rel (0) target = $region9
  $region8: #{_lambda_.85} parent=0 // pred_region
    _
  $region9: #{_lambda_.85} parent=0 // pred_fallthru
    _
  // Predicated region
  $region10: #{_lambda_.85} parent=0 // pred_check
    _
  $region11: #{_lambda_.85} parent=0 // pred_check_branch
    %14 = sbr.rel (0) target = $region13
  $region12: #{_lambda_.85} parent=0 // pred_region
    _
  $region13: #{_lambda_.85} parent=0 // pred_fallthru
    _
  // Predicated region
  $region14: #{_lambda_.85} parent=0 // pred_check
    _
  $region15: #{_lambda_.85} parent=0 // pred_check_branch
    %16 = sbr.rel (0) target = $region17
  $region16: #{_lambda_.85} parent=0 // pred_region
    _
  $region17: #{_lambda_.85} parent=0 // pred_fallthru
    _
  %v18 = vld [vmem:[%s0] sm:$0xf]
  %v19 = vld [vmem:[%s0 + $0x4] sm:$0xf]
  %v20 = vld [vmem:[%s1] sm:$0xff]
  %v21 = vld [vmem:[%s1 + $0x8] sm:$0xff]
  %v22 = vld [vmem:[%s1 + $0x10] sm:$0xff]
  %v23 = vld [vmem:[%s1 + $0x18] sm:$0xff]
  %v24 = vld [vmem:[%s1 + $0x20] sm:$0xff]
  %v25 = vld [vmem:[%s1 + $0x28] sm:$0xff]
  %v26 = vld [vmem:[%s1 + $0x30] sm:$0xff]
  %v27 = vld [vmem:[%s1 + $0x38] sm:$0xff]
  %v28 = vld [vmem:[%s1 + $0x40] sm:$0xff]
  %v29 = vld [vmem:[%s1 + $0x48] sm:$0xff]
  %v30 = vld [vmem:[%s1 + $0x50] sm:$0xff]
  %v31 = vld [vmem:[%s1 + $0x58] sm:$0xff]
  %v32 = vld [vmem:[%s1 + $0x60] sm:$0xff]
  %v33 = vld [vmem:[%s1 + $0x68] sm:$0xff]
  %v34 = vld [vmem:[%s1 + $0x70] sm:$0xff]
  %v35 = vld [vmem:[%s1 + $0x78] sm:$0xff]
  %v36 = vld [vmem:[%s2] sm:$0x3]
  %v38 = vlaneseq
  %v39 = vshrl.u32 %v38, 7
  %v40 = vsub.s32 0, %v39
  %v41 = vrot.slane %v36, %v40
  %v42 = vlaneseq
  %v43 = vshrl.u32 %v42, 7
  %v44 = vsub.s32 1, %v43
  %v45 = vrot.slane %v36, %v44
  %v50 = vunpack.c.l.b16 %v18
  %v51 = vunpack.c.l.b16 %v19
  %v52 = vpack.c.b16 %v51, %v50
  %v70 = vunpack.c.l.b16 %v20
  %v71 = vunpack.c.h.b16 %v20
  %v72 = vunpack.c.l.b16 %v21
  %v73 = vunpack.c.h.b16 %v21
  %v74 = vunpack.c.l.b16 %v22
  %v75 = vunpack.c.h.b16 %v22
  %v76 = vunpack.c.l.b16 %v23
  %v77 = vunpack.c.h.b16 %v23
  %v78 = vunpack.c.l.b16 %v24
  %v79 = vunpack.c.h.b16 %v24
  %v80 = vunpack.c.l.b16 %v25
  %v81 = vunpack.c.h.b16 %v25
  %v82 = vunpack.c.l.b16 %v26
  %v83 = vunpack.c.h.b16 %v26
  %v84 = vunpack.c.l.b16 %v27
  %v85 = vunpack.c.h.b16 %v27
  %v86 = vunpack.c.l.b16 %v28
  %v87 = vunpack.c.h.b16 %v28
  %v88 = vunpack.c.l.b16 %v29
  %v89 = vunpack.c.h.b16 %v29
  %v90 = vunpack.c.l.b16 %v30
  %v91 = vunpack.c.h.b16 %v30
  %v92 = vunpack.c.l.b16 %v31
  %v93 = vunpack.c.h.b16 %v31
  %v94 = vunpack.c.l.b16 %v32
  %v95 = vunpack.c.h.b16 %v32
  %v96 = vunpack.c.l.b16 %v33
  %v97 = vunpack.c.h.b16 %v33
  %v98 = vunpack.c.l.b16 %v34
  %v99 = vunpack.c.h.b16 %v34
  %v100 = vunpack.c.l.b16 %v35
  %v101 = vunpack.c.h.b16 %v35
  %v102 = vpack.c.b16 %v72, %v70
  %v103 = vpack.c.b16 %v73, %v71
  %v104 = vpack.c.b16 %v76, %v74
  %v105 = vpack.c.b16 %v77, %v75
  %v106 = vpack.c.b16 %v80, %v78
  %v107 = vpack.c.b16 %v81, %v79
  %v108 = vpack.c.b16 %v84, %v82
  %v109 = vpack.c.b16 %v85, %v83
  %v110 = vpack.c.b16 %v88, %v86
  %v111 = vpack.c.b16 %v89, %v87
  %v112 = vpack.c.b16 %v92, %v90
  %v113 = vpack.c.b16 %v93, %v91
  %v114 = vpack.c.b16 %v96, %v94
  %v115 = vpack.c.b16 %v97, %v95
  %v116 = vpack.c.b16 %v100, %v98
  %v117 = vpack.c.b16 %v101, %v99
  %134 = vmatprep.subr.bf16.mxu0 %v103
  %135 = vmatpush1.bf16.msra.mxu0 %v102
  %136 = vmatprep.subr.bf16.mxu0 %v105
  %137 = vmatpush1.bf16.msra.mxu0 %v104
  %138 = vmatprep.subr.bf16.mxu0 %v107
  %139 = vmatpush1.bf16.msra.mxu0 %v106
  %140 = vmatprep.subr.bf16.mxu0 %v109
  %141 = vmatpush1.bf16.msra.mxu0 %v108
  %142 = vmatprep.subr.bf16.mxu0 %v111
  %143 = vmatpush1.bf16.msra.mxu0 %v110
  %144 = vmatprep.subr.bf16.mxu0 %v113
  %145 = vmatpush1.bf16.msra.mxu0 %v112
  %146 = vmatprep.subr.bf16.mxu0 %v115
  %147 = vmatpush1.bf16.msra.mxu0 %v114
  %148 = vmatprep.subr.bf16.mxu0 %v117
  %149 = vmatpush1.bf16.msra.mxu0 %v116
  %150 = vmatprep.subr.bf16.mxu0 0
  %151 = vmatpush1.bf16.msra.mxu0 0
  %152 = vmatprep.subr.bf16.mxu0 0
  %153 = vmatpush1.bf16.msra.mxu0 0
  %154 = vmatprep.subr.bf16.mxu0 0
  %155 = vmatpush1.bf16.msra.mxu0 0
  %156 = vmatprep.subr.bf16.mxu0 0
  %157 = vmatpush1.bf16.msra.mxu0 0
  %158 = vmatprep.subr.bf16.mxu0 0
  %159 = vmatpush1.bf16.msra.mxu0 0
  %160 = vmatprep.subr.bf16.mxu0 0
  %161 = vmatpush1.bf16.msra.mxu0 0
  %162 = vmatprep.subr.bf16.mxu0 0
  %163 = vmatpush1.bf16.msra.mxu0 0
  %164 = vmatprep.subr.bf16.mxu0 0
  %165 = vmatpush1.bf16.msra.mxu0 0
  %166 = vmatprep.mubr.bf16.mxu0 0
  %167 = vmatmul.mubr.bf16.gmra.mrb[0].mxu0 %v52
  %v168 = vpop.f32.mrb[0].mxu0
  %v169 = vadd.f32 %v41, %v168
  %v170 = vpop.f32.mrb[0].mxu0
  %v171 = vadd.f32 %v45, %v170
  %v172 = vpop.f32.mrb[0].mxu0
  %v173 = vadd.f32 %v41, %v172
  %v174 = vpop.f32.mrb[0].mxu0
  %v175 = vadd.f32 %v45, %v174
  %176 = vdwg.mxu0
  %v177 = vld [vmem:[%s3] sm:$0xff]
  %v178 = vld [vmem:[%s3 + $0x8] sm:$0xff]
  %v179 = vld [vmem:[%s3 + $0x10] sm:$0xff]
  %v180 = vld [vmem:[%s3 + $0x18] sm:$0xff]
  %v181 = vadd.f32 %v169, %v177
  %v182 = vadd.f32 %v171, %v178
  %v183 = vadd.f32 %v173, %v179
  %v184 = vadd.f32 %v175, %v180
  %vm185 = vcmp.ge.f32.partialorder %v181, 0.0
  %vm186 = vcmp.ge.f32.partialorder %v182, 0.0
  %vm187 = vcmp.ge.f32.partialorder %v183, 0.0
  %vm188 = vcmp.ge.f32.partialorder %v184, 0.0
  %v189 = vmul.f32 %v181, 0.2
  %v190 = vmul.f32 %v182, 0.2
  %v191 = vmul.f32 %v183, 0.2
  %v192 = vmul.f32 %v184, 0.2
  %v193 = vsel %vm185, %v181, %v189
  %v194 = vsel %vm186, %v182, %v190
  %v195 = vsel %vm187, %v183, %v191
  %v196 = vsel %vm188, %v184, %v192
  %197 = vst [vmem:[%s4] sm:$0xff] %v193
  %198 = vst [vmem:[%s4 + $0x8] sm:$0xff] %v194
  %199 = vst [vmem:[%s4 + $0x10] sm:$0xff] %v195
  %200 = vst [vmem:[%s4 + $0x18] sm:$0xff] %v196
  // Predicated region
  $region18: #{_lambda_.85} parent=0 // pred_check
    _
  $region19: #{_lambda_.85} parent=0 // pred_check_branch
    %202 = sbr.rel (0) target = $region21
  $region20: #{_lambda_.85} parent=0 // pred_region
    _
  $region21: #{_lambda_.85} parent=0 // pred_fallthru
    _
  // Predicated region
  $region22: #{_lambda_.85} parent=0 // pred_check
    _
  $region23: #{_lambda_.85} parent=0 // pred_check_branch
    %204 = sbr.rel (0) target = $region25
  $region24: #{_lambda_.85} parent=0 // pred_region
    _
  $region25: #{_lambda_.85} parent=0 // pred_fallthru
    _

// kernel: _lambda_.94
$region0: #{_lambda_.94}
  #allocation0 [shape = 'u32[]', space=smem, size = 0x4, offset = 0x4, fixed_abs, tag = 'smem constant byte address 0x4 - core index']
  #allocation1 [shape = 'u32[144,128]{1,0:T(1,128)}', space=vmem, size = 0x12000, scoped, tag = 'internal scratch']
  %s0 = inlined_call_operand.vmem [shape: bf16[16,256], index: 0, kind: input, shape index: {}]
  %s1 = inlined_call_operand.vmem [shape: bf16[256,512], index: 1, kind: input, shape index: {}]
  %s2 = inlined_call_operand.vmem [shape: f32[1,512], index: 2, kind: input, shape index: {}]
  %s3 = inlined_call_operand.vmem [shape: f32[16,512], index: 3, kind: output, shape index: {}]
  %s4 = sld [smem:[#allocation0]]
  $region102: #{_lambda_.94} parent=0
    _
  %s6 = ssub.s32 1, %s4
  %s7 = scalar_select 0, %s6, %s4
  $region1: #{_lambda_.94} parent=0
    #allocation2 [shape = 'u8[262144]{0}', space=vmem, size = 0x40000, scoped, tag = 'input window, operand 1']
    #allocation3 [shape = 'u8[32768]{0}', space=vmem, size = 0x8000, scoped, tag = 'output window, operand 0']
    loop: start=0, step=1, limit=4
    $region2: #{_lambda_.94} parent=1 // loop_pre_header
      _
    $region3: #{_lambda_.94} parent=1 // loop_header
      %s9 = sphi 0, %s13
      %p10 = scmp.ge.s32.totalorder %s9, 4
      %s16 = sphi 0, %s28
      %s17 = sphi 0, %s24
      %s18 = sphi 0, %s16
      %s19 = sphi 0, %s17
      %s20 = sphi 0, %s18
      %s21 = sphi 0, %s19
      %s31 = sphi 0, %s33
      %s34 = sphi 0, %s31
      %s35 = sphi 0, %s34
      %s51 = sphi 0, %s35
      %s57 = sphi 0, %s59
      %s60 = sphi 0, %s57
      %s61 = sphi 0, %s60
      %s77 = sphi 0, %s61
      %s83 = sphi 0, %s85
      %s86 = sphi 0, %s83
      %s87 = sphi 0, %s86
      %s103 = sphi 0, %s87
      %s111 = sphi 0, %s113
      %s114 = sphi 0, %s111
      %s115 = sphi 0, %s114
      %s131 = sphi 0, %s115
    $region4: #{_lambda_.94} parent=1 // loop_header_branch
      %12 = sbr.rel (%p10) target = $region8
    $region5: #{_lambda_.94} parent=1 // loop_body
      %s14 = ssub.s32 %s9, 1
      %s15 = ssub.s32 %s9, 2
      %s22 = sadd.s32 1, %s17
      %p23 = scmp.ge.s32.totalorder %s22, 2
      %s24 = scalar_select %p23, 0, %s22
      %s25 = sadd.s32 1, %s16
      %s26 = scalar_select %p23, %s25, %s16
      %p27 = scmp.ge.s32.totalorder %s26, 1
      %s28 = scalar_select %p27, 0, %s26
      %s29 = ssub.s32 %s16, %s28
      %p30 = scmp.eq.s32.totalorder %s29, 0
      %s32 = sadd.s32 %s31, 1
      %s33 = scalar_select %p30, %s31, %s32
      %p36 = pneg %p30
      %p37 = scmp.eq.s32.totalorder %s9, 1
      %p38 = por %p36, %p37
      %p39 = scmp.ne.s32.totalorder %s31, %s34
      %p40 = scmp.eq.s32.totalorder %s9, 0
      %p41 = por %p39, %p40
      %p42 = scmp.ne.s32.totalorder %s31, %s34
      %p43 = scmp.eq.s32.totalorder %s14, 1
      %p44 = por %p42, %p43
      %p45 = scmp.ne.s32.totalorder %s34, %s35
      %p46 = scmp.eq.s32.totalorder %s14, 0
      %p47 = por %p45, %p46
      %p48 = scmp.ne.s32.totalorder %s34, %s35
      %p49 = scmp.eq.s32.totalorder %s15, 1
      %p50 = por %p48, %p49
      %p52 = scmp.ne.s32.totalorder %s35, %s51
      %p53 = scmp.eq.s32.totalorder %s15, 0
      %p54 = por %p52, %p53
      %s55 = ssub.s32 %s17, %s24
      %p56 = scmp.eq.s32.totalorder %s55, 0
      %s58 = sadd.s32 %s57, 1
      %s59 = scalar_select %p56, %s57, %s58
      %p62 = pneg %p56
      %p63 = scmp.eq.s32.totalorder %s9, 1
      %p64 = por %p62, %p63
      %p65 = scmp.ne.s32.totalorder %s57, %s60
      %p66 = scmp.eq.s32.totalorder %s9, 0
      %p67 = por %p65, %p66
      %p68 = scmp.ne.s32.totalorder %s57, %s60
      %p69 = scmp.eq.s32.totalorder %s14, 1
      %p70 = por %p68, %p69
      %p71 = scmp.ne.s32.totalorder %s60, %s61
      %p72 = scmp.eq.s32.totalorder %s14, 0
      %p73 = por %p71, %p72
      %p74 = scmp.ne.s32.totalorder %s60, %s61
      %p75 = scmp.eq.s32.totalorder %s15, 1
      %p76 = por %p74, %p75
      %p78 = scmp.ne.s32.totalorder %s61, %s77
      %p79 = scmp.eq.s32.totalorder %s15, 0
      %p80 = por %p78, %p79
      %s81 = ssub.s32 %s17, %s24
      %p82 = scmp.eq.s32.totalorder %s81, 0
      %s84 = sadd.s32 %s83, 1
      %s85 = scalar_select %p82, %s83, %s84
      %p88 = pneg %p82
      %p89 = scmp.eq.s32.totalorder %s9, 1
      %p90 = por %p88, %p89
      %p91 = scmp.ne.s32.totalorder %s83, %s86
      %p92 = scmp.eq.s32.totalorder %s9, 0
      %p93 = por %p91, %p92
      %p94 = scmp.ne.s32.totalorder %s83, %s86
      %p95 = scmp.eq.s32.totalorder %s14, 1
      %p96 = por %p94, %p95
      %p97 = scmp.ne.s32.totalorder %s86, %s87
      %p98 = scmp.eq.s32.totalorder %s14, 0
      %p99 = por %p97, %p98
      %p100 = scmp.ne.s32.totalorder %s86, %s87
      %p101 = scmp.eq.s32.totalorder %s15, 1
      %p102 = por %p100, %p101
      %p104 = scmp.ne.s32.totalorder %s87, %s103
      %p105 = scmp.eq.s32.totalorder %s15, 0
      %p106 = por %p104, %p105
      %s107 = ssub.s32 %s16, %s28
      %s108 = ssub.s32 %s17, %s24
      %s109 = sor.u32 %s107, %s108
      %p110 = scmp.eq.s32.totalorder %s109, 0
      %s112 = sadd.s32 %s111, 1
      %s113 = scalar_select %p110, %s111, %s112
      %p116 = pneg %p110
      %p117 = scmp.eq.s32.totalorder %s9, 1
      %p118 = por %p116, %p117
      %p119 = scmp.ne.s32.totalorder %s111, %s114
      %p120 = scmp.eq.s32.totalorder %s9, 0
      %p121 = por %p119, %p120
      %p122 = scmp.ne.s32.totalorder %s111, %s114
      %p123 = scmp.eq.s32.totalorder %s14, 1
      %p124 = por %p122, %p123
      %p125 = scmp.ne.s32.totalorder %s114, %s115
      %p126 = scmp.eq.s32.totalorder %s14, 0
      %p127 = por %p125, %p126
      %p128 = scmp.ne.s32.totalorder %s114, %s115
      %p129 = scmp.eq.s32.totalorder %s15, 1
      %p130 = por %p128, %p129
      %p132 = scmp.ne.s32.totalorder %s115, %s131
      %p133 = scmp.eq.s32.totalorder %s15, 0
      %p134 = por %p132, %p133
      %p135 = scmp.le.s32.totalorder 1, %s9
      %p136 = scmp.lt.s32.totalorder %s9, 3
      %p137 = pnand %p135, %p136
      %p138 = pneg %p137
      // Predicated region
      $region9: #{_lambda_.94} parent=5 // pred_check
        _
      $region10: #{_lambda_.94} parent=5 // pred_check_branch
        %140 = sbr.rel (%p137) target = $region12
      $region11: #{_lambda_.94} parent=5 // pred_region
        %s141 = ssub.s32 %s9, 1
        // Predicated region
        $region13: #{_lambda_.94} parent=11 // pred_check
          %p142 = pneg %p47
        $region14: #{_lambda_.94} parent=11 // pred_check_branch
          %144 = sbr.rel (%p142) target = $region16
        $region15: #{_lambda_.94} parent=11 // pred_region
          %s145 = smul.u32 2, %s18
          %p146 = scmp.lt.s32.totalorder %s145, 1
          %s147 = scalar_select %p146, %s145, 1
          %s148 = smul.addr %s147, 2
          %s149 = smul.addr %s148, 4
          %s150 = scalar_lea.vmem %s0, %s149
          %s151 = smul.u32 2, %s18
        $region16: #{_lambda_.94} parent=11 // pred_fallthru
          _
      $region12: #{_lambda_.94} parent=5 // pred_fallthru
        _
      %p152 = scmp.lt.s32.totalorder %s9, 2
      // Predicated region
      $region17: #{_lambda_.94} parent=5 // pred_check
        %p153 = pneg %p152
      $region18: #{_lambda_.94} parent=5 // pred_check_branch
        %155 = sbr.rel (%p153) target = $region20
      $region19: #{_lambda_.94} parent=5 // pred_region
        // Predicated region
        $region21: #{_lambda_.94} parent=19 // pred_check
          %p156 = pneg %p67
        $region22: #{_lambda_.94} parent=19 // pred_check_branch
          %158 = sbr.rel (%p156) target = $region24
        $region23: #{_lambda_.94} parent=19 // pred_region
          %s159 = sand.u32 %s57, 1
          %s160 = sand.u32 %s57, 1
          %s161 = smul.addr %s160, 256
          %s162 = scalar_lea.vmem [#allocation2], %s161
          %s163 = smul.u32 2, %s17
          %s164 = smul.addr %s163, 4
          %s165 = scalar_lea.vmem %s1, %s164
          // Predicated region
          $region25: #{_lambda_.94} parent=23 // pred_check
            _
          $region26: #{_lambda_.94} parent=23 // pred_check_branch
            %167 = sbr.rel (0) target = $region28
          $region27: #{_lambda_.94} parent=23 // pred_region
            // Predicated region
            $region29: #{_lambda_.94} parent=27 // pred_check
              _
            $region30: #{_lambda_.94} parent=27 // pred_check_branch
              %169 = sbr.rel (0) target = $region32
            $region31: #{_lambda_.94} parent=27 // pred_region
              // Predicated region
              $region44: #{_lambda_.94} parent=31 // pred_check
                _
              $region45: #{_lambda_.94} parent=31 // pred_check_branch
                %246 = sbr.rel (0) target = $region47
              $region46: #{_lambda_.94} parent=31 // pred_region
                loop: start=0, step=1, limit=1
                $region48: #{_lambda_.94} parent=46 // loop_pre_header
                  _
                $region49: #{_lambda_.94} parent=46 // loop_header
                  %s248 = sphi 0, %s252
                  %p249 = scmp.ge.s32.totalorder %s248, 1
                  %s253 = sphi %s165, %s165
                  %s254 = sphi %s162, %s162
                $region50: #{_lambda_.94} parent=46 // loop_header_branch
                  %251 = sbr.rel (%p249) target = $region54
                $region51: #{_lambda_.94} parent=46 // loop_body
                  %v255 = vld [vmem:[%s253] sm:$0xff]
                  %256 = vst [vmem:[%s254] sm:$0xff] %v255
                  %v257 = vld [vmem:[%s253 + $0x10] sm:$0xff]
                  %258 = vst [vmem:[%s254 + $0x8] sm:$0xff] %v257
                  %v259 = vld [vmem:[%s253 + $0x20] sm:$0xff]
                  %260 = vst [vmem:[%s254 + $0x10] sm:$0xff] %v259
                  %v261 = vld [vmem:[%s253 + $0x30] sm:$0xff]
                  %262 = vst [vmem:[%s254 + $0x18] sm:$0xff] %v261
                  %v263 = vld [vmem:[%s253 + $0x40] sm:$0xff]
                  %264 = vst [vmem:[%s254 + $0x20] sm:$0xff] %v263
                  %v265 = vld [vmem:[%s253 + $0x50] sm:$0xff]
                  %266 = vst [vmem:[%s254 + $0x28] sm:$0xff] %v265
                  %v267 = vld [vmem:[%s253 + $0x60] sm:$0xff]
                  %268 = vst [vmem:[%s254 + $0x30] sm:$0xff] %v267
                  %v269 = vld [vmem:[%s253 + $0x70] sm:$0xff]
                  %270 = vst [vmem:[%s254 + $0x38] sm:$0xff] %v269
                  %v271 = vld [vmem:[%s253 + $0x80] sm:$0xff]
                  %272 = vst [vmem:[%s254 + $0x40] sm:$0xff] %v271
                  %v273 = vld [vmem:[%s253 + $0x90] sm:$0xff]
                  %274 = vst [vmem:[%s254 + $0x48] sm:$0xff] %v273
                  %v275 = vld [vmem:[%s253 + $0xa0] sm:$0xff]
                  %276 = vst [vmem:[%s254 + $0x50] sm:$0xff] %v275
                  %v277 = vld [vmem:[%s253 + $0xb0] sm:$0xff]
                  %278 = vst [vmem:[%s254 + $0x58] sm:$0xff] %v277
                  %v279 = vld [vmem:[%s253 + $0xc0] sm:$0xff]
                  %280 = vst [vmem:[%s254 + $0x60] sm:$0xff] %v279
                  %v281 = vld [vmem:[%s253 + $0xd0] sm:$0xff]
                  %282 = vst [vmem:[%s254 + $0x68] sm:$0xff] %v281
                  %v283 = vld [vmem:[%s253 + $0xe0] sm:$0xff]
                  %284 = vst [vmem:[%s254 + $0x70] sm:$0xff] %v283
                  %v285 = vld [vmem:[%s253 + $0xf0] sm:$0xff]
                  %286 = vst [vmem:[%s254 + $0x78] sm:$0xff] %v285
                  %v287 = vld [vmem:[%s253 + $0x100] sm:$0xff]
                  %288 = vst [vmem:[%s254 + $0x80] sm:$0xff] %v287
                  %v289 = vld [vmem:[%s253 + $0x110] sm:$0xff]
                  %290 = vst [vmem:[%s254 + $0x88] sm:$0xff] %v289
                  %v291 = vld [vmem:[%s253 + $0x120] sm:$0xff]
                  %292 = vst [vmem:[%s254 + $0x90] sm:$0xff] %v291
                  %v293 = vld [vmem:[%s253 + $0x130] sm:$0xff]
                  %294 = vst [vmem:[%s254 + $0x98] sm:$0xff] %v293
                  %v295 = vld [vmem:[%s253 + $0x140] sm:$0xff]
                  %296 = vst [vmem:[%s254 + $0xa0] sm:$0xff] %v295
                  %v297 = vld [vmem:[%s253 + $0x150] sm:$0xff]
                  %298 = vst [vmem:[%s254 + $0xa8] sm:$0xff] %v297
                  %v299 = vld [vmem:[%s253 + $0x160] sm:$0xff]
                  %300 = vst [vmem:[%s254 + $0xb0] sm:$0xff] %v299
                  %v301 = vld [vmem:[%s253 + $0x170] sm:$0xff]
                  %302 = vst [vmem:[%s254 + $0xb8] sm:$0xff] %v301
                  %v303 = vld [vmem:[%s253 + $0x180] sm:$0xff]
                  %304 = vst [vmem:[%s254 + $0xc0] sm:$0xff] %v303
                  %v305 = vld [vmem:[%s253 + $0x190] sm:$0xff]
                  %306 = vst [vmem:[%s254 + $0xc8] sm:$0xff] %v305
                  %v307 = vld [vmem:[%s253 + $0x1a0] sm:$0xff]
                  %308 = vst [vmem:[%s254 + $0xd0] sm:$0xff] %v307
                  %v309 = vld [vmem:[%s253 + $0x1b0] sm:$0xff]
                  %310 = vst [vmem:[%s254 + $0xd8] sm:$0xff] %v309
                  %v311 = vld [vmem:[%s253 + $0x1c0] sm:$0xff]
                  %312 = vst [vmem:[%s254 + $0xe0] sm:$0xff] %v311
                  %v313 = vld [vmem:[%s253 + $0x1d0] sm:$0xff]
                  %314 = vst [vmem:[%s254 + $0xe8] sm:$0xff] %v313
                  %v315 = vld [vmem:[%s253 + $0x1e0] sm:$0xff]
                  %316 = vst [vmem:[%s254 + $0xf0] sm:$0xff] %v315
                  %v317 = vld [vmem:[%s253 + $0x1f0] sm:$0xff]
                  %318 = vst [vmem:[%s254 + $0xf8] sm:$0xff] %v317
                $region52: #{_lambda_.94} parent=46 // loop_footer
                  %s252 = sadd.s32 1, %s248
                $region53: #{_lambda_.94} parent=46 // loop_footer_branch
                  %247 = sbr.rel target = $region49
                $region54: #{_lambda_.94} parent=46 // loop_exit
                  _
              $region47: #{_lambda_.94} parent=31 // pred_fallthru
                _
              // Predicated region
              $region55: #{_lambda_.94} parent=31 // pred_check
                _
              $region56: #{_lambda_.94} parent=31 // pred_check_branch
                %320 = sbr.rel target = $region58
              $region57: #{_lambda_.94} parent=31 // pred_region
                _
              $region58: #{_lambda_.94} parent=31 // pred_fallthru
                _
            $region32: #{_lambda_.94} parent=27 // pred_fallthru
              _
            // Predicated region
            $region33: #{_lambda_.94} parent=27 // pred_check
              _
            $region34: #{_lambda_.94} parent=27 // pred_check_branch
              %171 = sbr.rel target = $region36
            $region35: #{_lambda_.94} parent=27 // pred_region
              loop: start=0, step=1, limit=1
              $region37: #{_lambda_.94} parent=35 // loop_pre_header
                _
              $region38: #{_lambda_.94} parent=35 // loop_header
                %s174 = sphi 0, %s178
                %p175 = scmp.ge.s32.totalorder %s174, 1
                %s179 = sphi %s165, %s165
                %s180 = sphi %s162, %s162
              $region39: #{_lambda_.94} parent=35 // loop_header_branch
                %177 = sbr.rel (%p175) target = $region43
              $region40: #{_lambda_.94} parent=35 // loop_body
                %v181 = vld [vmem:[%s179] sm:$0xff]
                %182 = vst [vmem:[%s180] sm:$0xff] %v181
                %v183 = vld [vmem:[%s179 + $0x10] sm:$0xff]
                %184 = vst [vmem:[%s180 + $0x8] sm:$0xff] %v183
                %v185 = vld [vmem:[%s179 + $0x20] sm:$0xff]
                %186 = vst [vmem:[%s180 + $0x10] sm:$0xff] %v185
                %v187 = vld [vmem:[%s179 + $0x30] sm:$0xff]
                %188 = vst [vmem:[%s180 + $0x18] sm:$0xff] %v187
                %v189 = vld [vmem:[%s179 + $0x40] sm:$0xff]
                %190 = vst [vmem:[%s180 + $0x20] sm:$0xff] %v189
                %v191 = vld [vmem:[%s179 + $0x50] sm:$0xff]
                %192 = vst [vmem:[%s180 + $0x28] sm:$0xff] %v191
                %v193 = vld [vmem:[%s179 + $0x60] sm:$0xff]
                %194 = vst [vmem:[%s180 + $0x30] sm:$0xff] %v193
                %v195 = vld [vmem:[%s179 + $0x70] sm:$0xff]
                %196 = vst [vmem:[%s180 + $0x38] sm:$0xff] %v195
                %v197 = vld [vmem:[%s179 + $0x80] sm:$0xff]
                %198 = vst [vmem:[%s180 + $0x40] sm:$0xff] %v197
                %v199 = vld [vmem:[%s179 + $0x90] sm:$0xff]
                %200 = vst [vmem:[%s180 + $0x48] sm:$0xff] %v199
                %v201 = vld [vmem:[%s179 + $0xa0] sm:$0xff]
                %202 = vst [vmem:[%s180 + $0x50] sm:$0xff] %v201
                %v203 = vld [vmem:[%s179 + $0xb0] sm:$0xff]
                %204 = vst [vmem:[%s180 + $0x58] sm:$0xff] %v203
                %v205 = vld [vmem:[%s179 + $0xc0] sm:$0xff]
                %206 = vst [vmem:[%s180 + $0x60] sm:$0xff] %v205
                %v207 = vld [vmem:[%s179 + $0xd0] sm:$0xff]
                %208 = vst [vmem:[%s180 + $0x68] sm:$0xff] %v207
                %v209 = vld [vmem:[%s179 + $0xe0] sm:$0xff]
                %210 = vst [vmem:[%s180 + $0x70] sm:$0xff] %v209
                %v211 = vld [vmem:[%s179 + $0xf0] sm:$0xff]
                %212 = vst [vmem:[%s180 + $0x78] sm:$0xff] %v211
                %v213 = vld [vmem:[%s179 + $0x100] sm:$0xff]
                %214 = vst [vmem:[%s180 + $0x80] sm:$0xff] %v213
                %v215 = vld [vmem:[%s179 + $0x110] sm:$0xff]
                %216 = vst [vmem:[%s180 + $0x88] sm:$0xff] %v215
                %v217 = vld [vmem:[%s179 + $0x120] sm:$0xff]
                %218 = vst [vmem:[%s180 + $0x90] sm:$0xff] %v217
                %v219 = vld [vmem:[%s179 + $0x130] sm:$0xff]
                %220 = vst [vmem:[%s180 + $0x98] sm:$0xff] %v219
                %v221 = vld [vmem:[%s179 + $0x140] sm:$0xff]
                %222 = vst [vmem:[%s180 + $0xa0] sm:$0xff] %v221
                %v223 = vld [vmem:[%s179 + $0x150] sm:$0xff]
                %224 = vst [vmem:[%s180 + $0xa8] sm:$0xff] %v223
                %v225 = vld [vmem:[%s179 + $0x160] sm:$0xff]
                %226 = vst [vmem:[%s180 + $0xb0] sm:$0xff] %v225
                %v227 = vld [vmem:[%s179 + $0x170] sm:$0xff]
                %228 = vst [vmem:[%s180 + $0xb8] sm:$0xff] %v227
                %v229 = vld [vmem:[%s179 + $0x180] sm:$0xff]
                %230 = vst [vmem:[%s180 + $0xc0] sm:$0xff] %v229
                %v231 = vld [vmem:[%s179 + $0x190] sm:$0xff]
                %232 = vst [vmem:[%s180 + $0xc8] sm:$0xff] %v231
                %v233 = vld [vmem:[%s179 + $0x1a0] sm:$0xff]
                %234 = vst [vmem:[%s180 + $0xd0] sm:$0xff] %v233
                %v235 = vld [vmem:[%s179 + $0x1b0] sm:$0xff]
                %236 = vst [vmem:[%s180 + $0xd8] sm:$0xff] %v235
                %v237 = vld [vmem:[%s179 + $0x1c0] sm:$0xff]
                %238 = vst [vmem:[%s180 + $0xe0] sm:$0xff] %v237
                %v239 = vld [vmem:[%s179 + $0x1d0] sm:$0xff]
                %240 = vst [vmem:[%s180 + $0xe8] sm:$0xff] %v239
                %v241 = vld [vmem:[%s179 + $0x1e0] sm:$0xff]
                %242 = vst [vmem:[%s180 + $0xf0] sm:$0xff] %v241
                %v243 = vld [vmem:[%s179 + $0x1f0] sm:$0xff]
                %244 = vst [vmem:[%s180 + $0xf8] sm:$0xff] %v243
              $region41: #{_lambda_.94} parent=35 // loop_footer
                %s178 = sadd.s32 1, %s174
              $region42: #{_lambda_.94} parent=35 // loop_footer_branch
                %173 = sbr.rel target = $region38
              $region43: #{_lambda_.94} parent=35 // loop_exit
                _
            $region36: #{_lambda_.94} parent=27 // pred_fallthru
              _
          $region28: #{_lambda_.94} parent=23 // pred_fallthru
            _
          %321 = vnop
        $region24: #{_lambda_.94} parent=19 // pred_fallthru
          _
        // Predicated region
        $region59: #{_lambda_.94} parent=19 // pred_check
          %p322 = pneg %p93
        $region60: #{_lambda_.94} parent=19 // pred_check_branch
          %324 = sbr.rel (%p322) target = $region62
        $region61: #{_lambda_.94} parent=19 // pred_region
          %s325 = smul.u32 2, %s17
          %p326 = scmp.lt.s32.totalorder %s325, 3
          %s327 = scalar_select %p326, %s325, 3
          %s328 = scalar_lea.vmem %s2, %s327
          %s329 = smul.u32 2, %s17
        $region62: #{_lambda_.94} parent=19 // pred_fallthru
          _
      $region20: #{_lambda_.94} parent=5 // pred_fallthru
        _
      %p330 = scmp.le.s32.totalorder 1, %s9
      %p331 = scmp.lt.s32.totalorder %s9, 3
      %p332 = pnand %p330, %p331
      %p333 = pneg %p332
      // Predicated region
      $region63: #{_lambda_.94} parent=5 // pred_check
        _
      $region64: #{_lambda_.94} parent=5 // pred_check_branch
        %335 = sbr.rel (%p332) target = $region66
      $region65: #{_lambda_.94} parent=5 // pred_region
        %s336 = ssub.s32 %s9, 1
        %s337 = sand.u32 %s60, 1
        %s338 = sand.u32 %s60, 1
        %s339 = smul.addr %s338, 256
        %s340 = scalar_lea.vmem [#allocation2], %s339
        // Predicated region
        $region67: #{_lambda_.94} parent=65 // pred_check
          %p341 = pneg %p73
        $region68: #{_lambda_.94} parent=65 // pred_check_branch
          %343 = sbr.rel (%p341) target = $region70
        $region69: #{_lambda_.94} parent=65 // pred_region
          _
        $region70: #{_lambda_.94} parent=65 // pred_fallthru
          _
        %s344 = smul.u32 2, %s18
        %p345 = scmp.lt.s32.totalorder %s344, 1
        %s346 = scalar_select %p345, %s344, 1
        %s347 = smul.addr %s346, 2
        %s348 = smul.addr %s347, 4
        %s349 = scalar_lea.vmem %s0, %s348
        %p350 = pneg %p47
        %p351 = pneg %p44
        %s352 = sand.u32 %s60, 1
        %s353 = sand.u32 %s60, 1
        %s354 = smul.addr %s353, 256
        %s355 = scalar_lea.vmem [#allocation2], %s354
        %p356 = pneg %p73
        %p357 = pneg %p70
        %s358 = smul.u32 2, %s19
        %p359 = scmp.lt.s32.totalorder %s358, 3
        %s360 = scalar_select %p359, %s358, 3
        %s361 = scalar_lea.vmem %s2, %s360
        %p362 = pneg %p99
        %p363 = pneg %p96
        %p364 = pneg %p127
        %p365 = pneg %p124
        %s366 = sand.u32 %s114, 1
        %s367 = sand.u32 %s114, 1
        %s368 = smul.addr %s367, 32
        %s369 = scalar_lea.vmem [#allocation3], %s368
        %s370 = smul.u32 2, %s18
        %p371 = scmp.lt.s32.totalorder %s370, 1
        %s372 = scalar_select %p371, %s370, 1
        %s373 = smul.addr %s372, 2
        %s374 = smul.addr %s373, 4
        %s375 = scalar_lea.vmem %s0, %s374
        %s376 = smul.u32 2, %s18
        %s377 = smul.u32 2, %s19
        %s378 = smul.u32 2, %s19
        %p379 = scmp.lt.s32.totalorder %s378, 3
        %s380 = scalar_select %p379, %s378, 3
        %s381 = scalar_lea.vmem %s2, %s380
        %s382 = smul.u32 2, %s19
        %s383 = smul.u32 2, %s18
        %s384 = smul.u32 2, %s19
        %v385 = vld [vmem:[%s375] sm:$0xff]
        %v386 = vld [vmem:[%s375 + $0x8] sm:$0xff]
        %v387 = vld [vmem:[%s340] sm:$0xff]
        %v388 = vld [vmem:[%s340 + $0x8] sm:$0xff]
        %v389 = vld [vmem:[%s340 + $0x10] sm:$0xff]
        %v390 = vld [vmem:[%s340 + $0x18] sm:$0xff]
        %v391 = vld [vmem:[%s340 + $0x20] sm:$0xff]
        %v392 = vld [vmem:[%s340 + $0x28] sm:$0xff]
        %v393 = vld [vmem:[%s340 + $0x30] sm:$0xff]
        %v394 = vld [vmem:[%s340 + $0x38] sm:$0xff]
        %v395 = vld [vmem:[%s340 + $0x40] sm:$0xff]
        %v396 = vld [vmem:[%s340 + $0x48] sm:$0xff]
        %v397 = vld [vmem:[%s340 + $0x50] sm:$0xff]
        %v398 = vld [vmem:[%s340 + $0x58] sm:$0xff]
        %v399 = vld [vmem:[%s340 + $0x60] sm:$0xff]
        %v400 = vld [vmem:[%s340 + $0x68] sm:$0xff]
        %v401 = vld [vmem:[%s340 + $0x70] sm:$0xff]
        %v402 = vld [vmem:[%s340 + $0x78] sm:$0xff]
        %v403 = vld [vmem:[%s340 + $0x80] sm:$0xff]
        %v404 = vld [vmem:[%s340 + $0x88] sm:$0xff]
        %v405 = vld [vmem:[%s340 + $0x90] sm:$0xff]
        %v406 = vld [vmem:[%s340 + $0x98] sm:$0xff]
        %v407 = vld [vmem:[%s340 + $0xa0] sm:$0xff]
        %v408 = vld [vmem:[%s340 + $0xa8] sm:$0xff]
        %v409 = vld [vmem:[%s340 + $0xb0] sm:$0xff]
        %v410 = vld [vmem:[%s340 + $0xb8] sm:$0xff]
        %v411 = vld [vmem:[%s340 + $0xc0] sm:$0xff]
        %v412 = vld [vmem:[%s340 + $0xc8] sm:$0xff]
        %v413 = vld [vmem:[%s340 + $0xd0] sm:$0xff]
        %v414 = vld [vmem:[%s340 + $0xd8] sm:$0xff]
        %v415 = vld [vmem:[%s340 + $0xe0] sm:$0xff]
        %v416 = vld [vmem:[%s340 + $0xe8] sm:$0xff]
        %v417 = vld [vmem:[%s340 + $0xf0] sm:$0xff]
        %v418 = vld [vmem:[%s340 + $0xf8] sm:$0xff]
        %v419 = vld [vmem:[%s381] sm:$0x3]
        %v421 = vlaneseq
        %v422 = vshrl.u32 %v421, 7
        %v423 = vsub.s32 0, %v422
        %v424 = vrot.slane %v419, %v423
        %v425 = vlaneseq
        %v426 = vshrl.u32 %v425, 7
        %v427 = vsub.s32 1, %v426
        %v428 = vrot.slane %v419, %v427
        %v433 = vunpack.c.l.b16 %v385
        %v434 = vunpack.c.h.b16 %v385
        %v435 = vunpack.c.l.b16 %v386
        %v436 = vunpack.c.h.b16 %v386
        %v437 = vpack.c.b16 %v435, %v433
        %v438 = vpack.c.b16 %v436, %v434
        %v473 = vunpack.c.l.b16 %v387
        %v474 = vunpack.c.h.b16 %v387
        %v475 = vunpack.c.l.b16 %v388
        %v476 = vunpack.c.h.b16 %v388
        %v477 = vunpack.c.l.b16 %v389
        %v478 = vunpack.c.h.b16 %v389
        %v479 = vunpack.c.l.b16 %v390
        %v480 = vunpack.c.h.b16 %v390
        %v481 = vunpack.c.l.b16 %v391
        %v482 = vunpack.c.h.b16 %v391
        %v483 = vunpack.c.l.b16 %v392
        %v484 = vunpack.c.h.b16 %v392
        %v485 = vunpack.c.l.b16 %v393
        %v486 = vunpack.c.h.b16 %v393
        %v487 = vunpack.c.l.b16 %v394
        %v488 = vunpack.c.h.b16 %v394
        %v489 = vunpack.c.l.b16 %v395
        %v490 = vunpack.c.h.b16 %v395
        %v491 = vunpack.c.l.b16 %v396
        %v492 = vunpack.c.h.b16 %v396
        %v493 = vunpack.c.l.b16 %v397
        %v494 = vunpack.c.h.b16 %v397
        %v495 = vunpack.c.l.b16 %v398
        %v496 = vunpack.c.h.b16 %v398
        %v497 = vunpack.c.l.b16 %v399
        %v498 = vunpack.c.h.b16 %v399
        %v499 = vunpack.c.l.b16 %v400
        %v500 = vunpack.c.h.b16 %v400
        %v501 = vunpack.c.l.b16 %v401
        %v502 = vunpack.c.h.b16 %v401
        %v503 = vunpack.c.l.b16 %v402
        %v504 = vunpack.c.h.b16 %v402
        %v505 = vunpack.c.l.b16 %v403
        %v506 = vunpack.c.h.b16 %v403
        %v507 = vunpack.c.l.b16 %v404
        %v508 = vunpack.c.h.b16 %v404
        %v509 = vunpack.c.l.b16 %v405
        %v510 = vunpack.c.h.b16 %v405
        %v511 = vunpack.c.l.b16 %v406
        %v512 = vunpack.c.h.b16 %v406
        %v513 = vunpack.c.l.b16 %v407
        %v514 = vunpack.c.h.b16 %v407
        %v515 = vunpack.c.l.b16 %v408
        %v516 = vunpack.c.h.b16 %v408
        %v517 = vunpack.c.l.b16 %v409
        %v518 = vunpack.c.h.b16 %v409
        %v519 = vunpack.c.l.b16 %v410
        %v520 = vunpack.c.h.b16 %v410
        %v521 = vunpack.c.l.b16 %v411
        %v522 = vunpack.c.h.b16 %v411
        %v523 = vunpack.c.l.b16 %v412
        %v524 = vunpack.c.h.b16 %v412
        %v525 = vunpack.c.l.b16 %v413
        %v526 = vunpack.c.h.b16 %v413
        %v527 = vunpack.c.l.b16 %v414
        %v528 = vunpack.c.h.b16 %v414
        %v529 = vunpack.c.l.b16 %v415
        %v530 = vunpack.c.h.b16 %v415
        %v531 = vunpack.c.l.b16 %v416
        %v532 = vunpack.c.h.b16 %v416
        %v533 = vunpack.c.l.b16 %v417
        %v534 = vunpack.c.h.b16 %v417
        %v535 = vunpack.c.l.b16 %v418
        %v536 = vunpack.c.h.b16 %v418
        %v537 = vpack.c.b16 %v475, %v473
        %v538 = vpack.c.b16 %v476, %v474
        %v539 = vpack.c.b16 %v479, %v477
        %v540 = vpack.c.b16 %v480, %v478
        %v541 = vpack.c.b16 %v483, %v481
        %v542 = vpack.c.b16 %v484, %v482
        %v543 = vpack.c.b16 %v487, %v485
        %v544 = vpack.c.b16 %v488, %v486
        %v545 = vpack.c.b16 %v491, %v489
        %v546 = vpack.c.b16 %v492, %v490
        %v547 = vpack.c.b16 %v495, %v493
        %v548 = vpack.c.b16 %v496, %v494
        %v549 = vpack.c.b16 %v499, %v497
        %v550 = vpack.c.b16 %v500, %v498
        %v551 = vpack.c.b16 %v503, %v501
        %v552 = vpack.c.b16 %v504, %v502
        %v553 = vpack.c.b16 %v507, %v505
        %v554 = vpack.c.b16 %v508, %v506
        %v555 = vpack.c.b16 %v511, %v509
        %v556 = vpack.c.b16 %v512, %v510
        %v557 = vpack.c.b16 %v515, %v513
        %v558 = vpack.c.b16 %v516, %v514
        %v559 = vpack.c.b16 %v519, %v517
        %v560 = vpack.c.b16 %v520, %v518
        %v561 = vpack.c.b16 %v523, %v521
        %v562 = vpack.c.b16 %v524, %v522
        %v563 = vpack.c.b16 %v527, %v525
        %v564 = vpack.c.b16 %v528, %v526
        %v565 = vpack.c.b16 %v531, %v529
        %v566 = vpack.c.b16 %v532, %v530
        %v567 = vpack.c.b16 %v535, %v533
        %v568 = vpack.c.b16 %v536, %v534
        %601 = vmatprep.subr.bf16.mxu0 %v538
        %602 = vmatpush1.bf16.msra.mxu0 %v537
        %603 = vmatprep.subr.bf16.mxu0 %v540
        %604 = vmatpush1.bf16.msra.mxu0 %v539
        %605 = vmatprep.subr.bf16.mxu0 %v542
        %606 = vmatpush1.bf16.msra.mxu0 %v541
        %607 = vmatprep.subr.bf16.mxu0 %v544
        %608 = vmatpush1.bf16.msra.mxu0 %v543
        %609 = vmatprep.subr.bf16.mxu0 %v546
        %610 = vmatpush1.bf16.msra.mxu0 %v545
        %611 = vmatprep.subr.bf16.mxu0 %v548
        %612 = vmatpush1.bf16.msra.mxu0 %v547
        %613 = vmatprep.subr.bf16.mxu0 %v550
        %614 = vmatpush1.bf16.msra.mxu0 %v549
        %615 = vmatprep.subr.bf16.mxu0 %v552
        %616 = vmatpush1.bf16.msra.mxu0 %v551
        %617 = vmatprep.subr.bf16.mxu0 %v554
        %618 = vmatpush1.bf16.msra.mxu0 %v553
        %619 = vmatprep.subr.bf16.mxu0 %v556
        %620 = vmatpush1.bf16.msra.mxu0 %v555
        %621 = vmatprep.subr.bf16.mxu0 %v558
        %622 = vmatpush1.bf16.msra.mxu0 %v557
        %623 = vmatprep.subr.bf16.mxu0 %v560
        %624 = vmatpush1.bf16.msra.mxu0 %v559
        %625 = vmatprep.subr.bf16.mxu0 %v562
        %626 = vmatpush1.bf16.msra.mxu0 %v561
        %627 = vmatprep.subr.bf16.mxu0 %v564
        %628 = vmatpush1.bf16.msra.mxu0 %v563
        %629 = vmatprep.subr.bf16.mxu0 %v566
        %630 = vmatpush1.bf16.msra.mxu0 %v565
        %631 = vmatprep.subr.bf16.mxu0 %v568
        %632 = vmatpush1.bf16.msra.mxu0 %v567
        %633 = vmatprep.mubr.bf16.mxu0 %v438
        %634 = vmatmul.mubr.bf16.gmra.mrb[0].mxu0 %v437
        %v635 = vpop.f32.mrb[0].mxu0
        %v636 = vadd.f32 %v424, %v635
        %v637 = vpop.f32.mrb[0].mxu0
        %v638 = vadd.f32 %v428, %v637
        %v639 = vpop.f32.mrb[0].mxu0
        %v640 = vadd.f32 %v424, %v639
        %v641 = vpop.f32.mrb[0].mxu0
        %v642 = vadd.f32 %v428, %v641
        %643 = vdwg.mxu0
        %644 = vst [vmem:[%s369] sm:$0xff] %v636
        %645 = vst [vmem:[%s369 + $0x8] sm:$0xff] %v638
        %646 = vst [vmem:[%s369 + $0x10] sm:$0xff] %v640
        %647 = vst [vmem:[%s369 + $0x18] sm:$0xff] %v642
        %s648 = sand.u32 %s114, 1
        %s649 = sand.u32 %s114, 1
        %s650 = smul.addr %s649, 32
        %s651 = scalar_lea.vmem [#allocation3], %s650
        // Predicated region
        $region71: #{_lambda_.94} parent=65 // pred_check
          %p652 = pneg %p124
        $region72: #{_lambda_.94} parent=65 // pred_check_branch
          %654 = sbr.rel (%p652) target = $region74
        $region73: #{_lambda_.94} parent=65 // pred_region
          %s655 = smul.u32 2, %s18
          %s656 = smul.u32 2, %s19
          %s657 = smul.addr %s655, 4
          %s658 = sadd.s32 %s656, %s657
          %s659 = smul.addr %s658, 8
          %s660 = scalar_lea.vmem %s3, %s659
          // Predicated region
          $region75: #{_lambda_.94} parent=73 // pred_check
            _
          $region76: #{_lambda_.94} parent=73 // pred_check_branch
            %662 = sbr.rel (0) target = $region78
          $region77: #{_lambda_.94} parent=73 // pred_region
            // Predicated region
            $region79: #{_lambda_.94} parent=77 // pred_check
              _
            $region80: #{_lambda_.94} parent=77 // pred_check_branch
              %664 = sbr.rel (0) target = $region82
            $region81: #{_lambda_.94} parent=77 // pred_region
              loop: start=0, step=1, limit=1
              $region83: #{_lambda_.94} parent=81 // loop_pre_header
                _
              $region84: #{_lambda_.94} parent=81 // loop_header
                %s666 = sphi 0, %s670
                %p667 = scmp.ge.s32.totalorder %s666, 1
                %s671 = sphi %s651, %s651
                %s672 = sphi %s660, %s660
              $region85: #{_lambda_.94} parent=81 // loop_header_branch
                %669 = sbr.rel (%p667) target = $region89
              $region86: #{_lambda_.94} parent=81 // loop_body
                %v673 = vld [vmem:[%s671] sm:$0xff]
                %674 = vst [vmem:[%s672] sm:$0xff] %v673
                %v675 = vld [vmem:[%s671 + $0x8] sm:$0xff]
                %676 = vst [vmem:[%s672 + $0x8] sm:$0xff] %v675
                %v677 = vld [vmem:[%s671 + $0x10] sm:$0xff]
                %678 = vst [vmem:[%s672 + $0x20] sm:$0xff] %v677
                %v679 = vld [vmem:[%s671 + $0x18] sm:$0xff]
                %680 = vst [vmem:[%s672 + $0x28] sm:$0xff] %v679
              $region87: #{_lambda_.94} parent=81 // loop_footer
                %s670 = sadd.s32 1, %s666
              $region88: #{_lambda_.94} parent=81 // loop_footer_branch
                %665 = sbr.rel target = $region84
              $region89: #{_lambda_.94} parent=81 // loop_exit
                _
            $region82: #{_lambda_.94} parent=77 // pred_fallthru
              _
            // Predicated region
            $region90: #{_lambda_.94} parent=77 // pred_check
              _
            $region91: #{_lambda_.94} parent=77 // pred_check_branch
              %682 = sbr.rel target = $region93
            $region92: #{_lambda_.94} parent=77 // pred_region
              _
            $region93: #{_lambda_.94} parent=77 // pred_fallthru
              _
          $region78: #{_lambda_.94} parent=73 // pred_fallthru
            _
          %683 = vnop
        $region74: #{_lambda_.94} parent=65 // pred_fallthru
          _
      $region66: #{_lambda_.94} parent=5 // pred_fallthru
        _
      %p684 = scmp.le.s32.totalorder 2, %s9
      // Predicated region
      $region94: #{_lambda_.94} parent=5 // pred_check
        %p685 = pneg %p684
      $region95: #{_lambda_.94} parent=5 // pred_check_branch
        %687 = sbr.rel (%p685) target = $region97
      $region96: #{_lambda_.94} parent=5 // pred_region
        %s688 = ssub.s32 %s9, 2
        // Predicated region
        $region98: #{_lambda_.94} parent=96 // pred_check
          %p689 = pneg %p130
        $region99: #{_lambda_.94} parent=96 // pred_check_branch
          %691 = sbr.rel (%p689) target = $region101
        $region100: #{_lambda_.94} parent=96 // pred_region
          %s692 = sand.u32 %s115, 1
          %s693 = sand.u32 %s115, 1
          %s694 = smul.addr %s693, 32
          %s695 = scalar_lea.vmem [#allocation3], %s694
        $region101: #{_lambda_.94} parent=96 // pred_fallthru
          _
      $region97: #{_lambda_.94} parent=5 // pred_fallthru
        _
    $region6: #{_lambda_.94} parent=1 // loop_footer
      %s13 = sadd.s32 1, %s9
    $region7: #{_lambda_.94} parent=1 // loop_footer_branch
      %8 = sbr.rel target = $region3
    $region8: #{_lambda_.94} parent=1 // loop_exit
      _

// kernel: _lambda_.95
$region0: #{_lambda_.95}
  #allocation0 [shape = 'u32[]', space=smem, size = 0x4, offset = 0x4, fixed_abs, tag = 'smem constant byte address 0x4 - core index']
  #allocation1 [shape = 'u32[144,128]{1,0:T(1,128)}', space=vmem, size = 0x12000, scoped, tag = 'internal scratch']
  %s0 = inlined_call_operand.vmem [shape: bf16[16,128], index: 0, kind: input, shape index: {}]
  %s1 = inlined_call_operand.vmem [shape: bf16[128,512], index: 1, kind: input, shape index: {}]
  %s2 = inlined_call_operand.vmem [shape: f32[1,512], index: 2, kind: input, shape index: {}]
  %s3 = inlined_call_operand.vmem [shape: f32[16,512], index: 3, kind: input, shape index: {}]
  %s4 = inlined_call_operand.vmem [shape: f32[16,512], index: 4, kind: output, shape index: {}]
  %s5 = sld [smem:[#allocation0]]
  $region129: #{_lambda_.95} parent=0
    _
  %s7 = ssub.s32 1, %s5
  %s8 = scalar_select 0, %s7, %s5
  $region1: #{_lambda_.95} parent=0
    #allocation2 [shape = 'u8[131072]{0}', space=vmem, size = 0x20000, scoped, tag = 'input window, operand 1']
    #allocation3 [shape = 'u8[32768]{0}', space=vmem, size = 0x8000, scoped, tag = 'input window, operand 3']
    #allocation4 [shape = 'u8[32768]{0}', space=vmem, size = 0x8000, scoped, tag = 'output window, operand 0']
    loop: start=0, step=1, limit=4
    $region2: #{_lambda_.95} parent=1 // loop_pre_header
      _
    $region3: #{_lambda_.95} parent=1 // loop_header
      %s10 = sphi 0, %s14
      %p11 = scmp.ge.s32.totalorder %s10, 4
      %s17 = sphi 0, %s29
      %s18 = sphi 0, %s25
      %s19 = sphi 0, %s17
      %s20 = sphi 0, %s18
      %s21 = sphi 0, %s19
      %s22 = sphi 0, %s20
      %s32 = sphi 0, %s34
      %s35 = sphi 0, %s32
      %s36 = sphi 0, %s35
      %s52 = sphi 0, %s36
      %s58 = sphi 0, %s60
      %s61 = sphi 0, %s58
      %s62 = sphi 0, %s61
      %s78 = sphi 0, %s62
      %s84 = sphi 0, %s86
      %s87 = sphi 0, %s84
      %s88 = sphi 0, %s87
      %s104 = sphi 0, %s88
      %s112 = sphi 0, %s114
      %s115 = sphi 0, %s112
      %s116 = sphi 0, %s115
      %s132 = sphi 0, %s116
      %s140 = sphi 0, %s142
      %s143 = sphi 0, %s140
      %s144 = sphi 0, %s143
      %s160 = sphi 0, %s144
    $region4: #{_lambda_.95} parent=1 // loop_header_branch
      %13 = sbr.rel (%p11) target = $region8
    $region5: #{_lambda_.95} parent=1 // loop_body
      %s15 = ssub.s32 %s10, 1
      %s16 = ssub.s32 %s10, 2
      %s23 = sadd.s32 1, %s18
      %p24 = scmp.ge.s32.totalorder %s23, 2
      %s25 = scalar_select %p24, 0, %s23
      %s26 = sadd.s32 1, %s17
      %s27 = scalar_select %p24, %s26, %s17
      %p28 = scmp.ge.s32.totalorder %s27, 1
      %s29 = scalar_select %p28, 0, %s27
      %s30 = ssub.s32 %s17, %s29
      %p31 = scmp.eq.s32.totalorder %s30, 0
      %s33 = sadd.s32 %s32, 1
      %s34 = scalar_select %p31, %s32, %s33
      %p37 = pneg %p31
      %p38 = scmp.eq.s32.totalorder %s10, 1
      %p39 = por %p37, %p38
      %p40 = scmp.ne.s32.totalorder %s32, %s35
      %p41 = scmp.eq.s32.totalorder %s10, 0
      %p42 = por %p40, %p41
      %p43 = scmp.ne.s32.totalorder %s32, %s35
      %p44 = scmp.eq.s32.totalorder %s15, 1
      %p45 = por %p43, %p44
      %p46 = scmp.ne.s32.totalorder %s35, %s36
      %p47 = scmp.eq.s32.totalorder %s15, 0
      %p48 = por %p46, %p47
      %p49 = scmp.ne.s32.totalorder %s35, %s36
      %p50 = scmp.eq.s32.totalorder %s16, 1
      %p51 = por %p49, %p50
      %p53 = scmp.ne.s32.totalorder %s36, %s52
      %p54 = scmp.eq.s32.totalorder %s16, 0
      %p55 = por %p53, %p54
      %s56 = ssub.s32 %s18, %s25
      %p57 = scmp.eq.s32.totalorder %s56, 0
      %s59 = sadd.s32 %s58, 1
      %s60 = scalar_select %p57, %s58, %s59
      %p63 = pneg %p57
      %p64 = scmp.eq.s32.totalorder %s10, 1
      %p65 = por %p63, %p64
      %p66 = scmp.ne.s32.totalorder %s58, %s61
      %p67 = scmp.eq.s32.totalorder %s10, 0
      %p68 = por %p66, %p67
      %p69 = scmp.ne.s32.totalorder %s58, %s61
      %p70 = scmp.eq.s32.totalorder %s15, 1
      %p71 = por %p69, %p70
      %p72 = scmp.ne.s32.totalorder %s61, %s62
      %p73 = scmp.eq.s32.totalorder %s15, 0
      %p74 = por %p72, %p73
      %p75 = scmp.ne.s32.totalorder %s61, %s62
      %p76 = scmp.eq.s32.totalorder %s16, 1
      %p77 = por %p75, %p76
      %p79 = scmp.ne.s32.totalorder %s62, %s78
      %p80 = scmp.eq.s32.totalorder %s16, 0
      %p81 = por %p79, %p80
      %s82 = ssub.s32 %s18, %s25
      %p83 = scmp.eq.s32.totalorder %s82, 0
      %s85 = sadd.s32 %s84, 1
      %s86 = scalar_select %p83, %s84, %s85
      %p89 = pneg %p83
      %p90 = scmp.eq.s32.totalorder %s10, 1
      %p91 = por %p89, %p90
      %p92 = scmp.ne.s32.totalorder %s84, %s87
      %p93 = scmp.eq.s32.totalorder %s10, 0
      %p94 = por %p92, %p93
      %p95 = scmp.ne.s32.totalorder %s84, %s87
      %p96 = scmp.eq.s32.totalorder %s15, 1
      %p97 = por %p95, %p96
      %p98 = scmp.ne.s32.totalorder %s87, %s88
      %p99 = scmp.eq.s32.totalorder %s15, 0
      %p100 = por %p98, %p99
      %p101 = scmp.ne.s32.totalorder %s87, %s88
      %p102 = scmp.eq.s32.totalorder %s16, 1
      %p103 = por %p101, %p102
      %p105 = scmp.ne.s32.totalorder %s88, %s104
      %p106 = scmp.eq.s32.totalorder %s16, 0
      %p107 = por %p105, %p106
      %s108 = ssub.s32 %s17, %s29
      %s109 = ssub.s32 %s18, %s25
      %s110 = sor.u32 %s108, %s109
      %p111 = scmp.eq.s32.totalorder %s110, 0
      %s113 = sadd.s32 %s112, 1
      %s114 = scalar_select %p111, %s112, %s113
      %p117 = pneg %p111
      %p118 = scmp.eq.s32.totalorder %s10, 1
      %p119 = por %p117, %p118
      %p120 = scmp.ne.s32.totalorder %s112, %s115
      %p121 = scmp.eq.s32.totalorder %s10, 0
      %p122 = por %p120, %p121
      %p123 = scmp.ne.s32.totalorder %s112, %s115
      %p124 = scmp.eq.s32.totalorder %s15, 1
      %p125 = por %p123, %p124
      %p126 = scmp.ne.s32.totalorder %s115, %s116
      %p127 = scmp.eq.s32.totalorder %s15, 0
      %p128 = por %p126, %p127
      %p129 = scmp.ne.s32.totalorder %s115, %s116
      %p130 = scmp.eq.s32.totalorder %s16, 1
      %p131 = por %p129, %p130
      %p133 = scmp.ne.s32.totalorder %s116, %s132
      %p134 = scmp.eq.s32.totalorder %s16, 0
      %p135 = por %p133, %p134
      %s136 = ssub.s32 %s17, %s29
      %s137 = ssub.s32 %s18, %s25
      %s138 = sor.u32 %s136, %s137
      %p139 = scmp.eq.s32.totalorder %s138, 0
      %s141 = sadd.s32 %s140, 1
      %s142 = scalar_select %p139, %s140, %s141
      %p145 = pneg %p139
      %p146 = scmp.eq.s32.totalorder %s10, 1
      %p147 = por %p145, %p146
      %p148 = scmp.ne.s32.totalorder %s140, %s143
      %p149 = scmp.eq.s32.totalorder %s10, 0
      %p150 = por %p148, %p149
      %p151 = scmp.ne.s32.totalorder %s140, %s143
      %p152 = scmp.eq.s32.totalorder %s15, 1
      %p153 = por %p151, %p152
      %p154 = scmp.ne.s32.totalorder %s143, %s144
      %p155 = scmp.eq.s32.totalorder %s15, 0
      %p156 = por %p154, %p155
      %p157 = scmp.ne.s32.totalorder %s143, %s144
      %p158 = scmp.eq.s32.totalorder %s16, 1
      %p159 = por %p157, %p158
      %p161 = scmp.ne.s32.totalorder %s144, %s160
      %p162 = scmp.eq.s32.totalorder %s16, 0
      %p163 = por %p161, %p162
      %p164 = scmp.le.s32.totalorder 1, %s10
      %p165 = scmp.lt.s32.totalorder %s10, 3
      %p166 = pnand %p164, %p165
      %p167 = pneg %p166
      // Predicated region
      $region9: #{_lambda_.95} parent=5 // pred_check
        _
      $region10: #{_lambda_.95} parent=5 // pred_check_branch
        %169 = sbr.rel (%p166) target = $region12
      $region11: #{_lambda_.95} parent=5 // pred_region
        %s170 = ssub.s32 %s10, 1
        // Predicated region
        $region13: #{_lambda_.95} parent=11 // pred_check
          %p171 = pneg %p48
        $region14: #{_lambda_.95} parent=11 // pred_check_branch
          %173 = sbr.rel (%p171) target = $region16
        $region15: #{_lambda_.95} parent=11 // pred_region
          %s174 = smul.u32 2, %s19
          %p175 = scmp.lt.s32.totalorder %s174, 1
          %s176 = scalar_select %p175, %s174, 1
          %s177 = smul.addr %s176, 4
          %s178 = scalar_lea.vmem %s0, %s177
          %s179 = smul.u32 2, %s19
        $region16: #{_lambda_.95} parent=11 // pred_fallthru
          _
      $region12: #{_lambda_.95} parent=5 // pred_fallthru
        _
      %p180 = scmp.lt.s32.totalorder %s10, 2
      // Predicated region
      $region17: #{_lambda_.95} parent=5 // pred_check
        %p181 = pneg %p180
      $region18: #{_lambda_.95} parent=5 // pred_check_branch
        %183 = sbr.rel (%p181) target = $region20
      $region19: #{_lambda_.95} parent=5 // pred_region
        // Predicated region
        $region21: #{_lambda_.95} parent=19 // pred_check
          %p184 = pneg %p68
        $region22: #{_lambda_.95} parent=19 // pred_check_branch
          %186 = sbr.rel (%p184) target = $region24
        $region23: #{_lambda_.95} parent=19 // pred_region
          %s187 = sand.u32 %s58, 1
          %s188 = sand.u32 %s58, 1
          %s189 = smul.addr %s188, 128
          %s190 = scalar_lea.vmem [#allocation2], %s189
          %s191 = smul.u32 2, %s18
          %s192 = smul.addr %s191, 4
          %s193 = scalar_lea.vmem %s1, %s192
          // Predicated region
          $region25: #{_lambda_.95} parent=23 // pred_check
            _
          $region26: #{_lambda_.95} parent=23 // pred_check_branch
            %195 = sbr.rel (0) target = $region28
          $region27: #{_lambda_.95} parent=23 // pred_region
            // Predicated region
            $region29: #{_lambda_.95} parent=27 // pred_check
              _
            $region30: #{_lambda_.95} parent=27 // pred_check_branch
              %197 = sbr.rel (0) target = $region32
            $region31: #{_lambda_.95} parent=27 // pred_region
              // Predicated region
              $region44: #{_lambda_.95} parent=31 // pred_check
                _
              $region45: #{_lambda_.95} parent=31 // pred_check_branch
                %242 = sbr.rel (0) target = $region47
              $region46: #{_lambda_.95} parent=31 // pred_region
                loop: start=0, step=1, limit=1
                $region48: #{_lambda_.95} parent=46 // loop_pre_header
                  _
                $region49: #{_lambda_.95} parent=46 // loop_header
                  %s244 = sphi 0, %s248
                  %p245 = scmp.ge.s32.totalorder %s244, 1
                  %s249 = sphi %s193, %s193
                  %s250 = sphi %s190, %s190
                $region50: #{_lambda_.95} parent=46 // loop_header_branch
                  %247 = sbr.rel (%p245) target = $region54
                $region51: #{_lambda_.95} parent=46 // loop_body
                  %v251 = vld [vmem:[%s249] sm:$0xff]
                  %252 = vst [vmem:[%s250] sm:$0xff] %v251
                  %v253 = vld [vmem:[%s249 + $0x10] sm:$0xff]
                  %254 = vst [vmem:[%s250 + $0x8] sm:$0xff] %v253
                  %v255 = vld [vmem:[%s249 + $0x20] sm:$0xff]
                  %256 = vst [vmem:[%s250 + $0x10] sm:$0xff] %v255
                  %v257 = vld [vmem:[%s249 + $0x30] sm:$0xff]
                  %258 = vst [vmem:[%s250 + $0x18] sm:$0xff] %v257
                  %v259 = vld [vmem:[%s249 + $0x40] sm:$0xff]
                  %260 = vst [vmem:[%s250 + $0x20] sm:$0xff] %v259
                  %v261 = vld [vmem:[%s249 + $0x50] sm:$0xff]
                  %262 = vst [vmem:[%s250 + $0x28] sm:$0xff] %v261
                  %v263 = vld [vmem:[%s249 + $0x60] sm:$0xff]
                  %264 = vst [vmem:[%s250 + $0x30] sm:$0xff] %v263
                  %v265 = vld [vmem:[%s249 + $0x70] sm:$0xff]
                  %266 = vst [vmem:[%s250 + $0x38] sm:$0xff] %v265
                  %v267 = vld [vmem:[%s249 + $0x80] sm:$0xff]
                  %268 = vst [vmem:[%s250 + $0x40] sm:$0xff] %v267
                  %v269 = vld [vmem:[%s249 + $0x90] sm:$0xff]
                  %270 = vst [vmem:[%s250 + $0x48] sm:$0xff] %v269
                  %v271 = vld [vmem:[%s249 + $0xa0] sm:$0xff]
                  %272 = vst [vmem:[%s250 + $0x50] sm:$0xff] %v271
                  %v273 = vld [vmem:[%s249 + $0xb0] sm:$0xff]
                  %274 = vst [vmem:[%s250 + $0x58] sm:$0xff] %v273
                  %v275 = vld [vmem:[%s249 + $0xc0] sm:$0xff]
                  %276 = vst [vmem:[%s250 + $0x60] sm:$0xff] %v275
                  %v277 = vld [vmem:[%s249 + $0xd0] sm:$0xff]
                  %278 = vst [vmem:[%s250 + $0x68] sm:$0xff] %v277
                  %v279 = vld [vmem:[%s249 + $0xe0] sm:$0xff]
                  %280 = vst [vmem:[%s250 + $0x70] sm:$0xff] %v279
                  %v281 = vld [vmem:[%s249 + $0xf0] sm:$0xff]
                  %282 = vst [vmem:[%s250 + $0x78] sm:$0xff] %v281
                $region52: #{_lambda_.95} parent=46 // loop_footer
                  %s248 = sadd.s32 1, %s244
                $region53: #{_lambda_.95} parent=46 // loop_footer_branch
                  %243 = sbr.rel target = $region49
                $region54: #{_lambda_.95} parent=46 // loop_exit
                  _
              $region47: #{_lambda_.95} parent=31 // pred_fallthru
                _
              // Predicated region
              $region55: #{_lambda_.95} parent=31 // pred_check
                _
              $region56: #{_lambda_.95} parent=31 // pred_check_branch
                %284 = sbr.rel target = $region58
              $region57: #{_lambda_.95} parent=31 // pred_region
                _
              $region58: #{_lambda_.95} parent=31 // pred_fallthru
                _
            $region32: #{_lambda_.95} parent=27 // pred_fallthru
              _
            // Predicated region
            $region33: #{_lambda_.95} parent=27 // pred_check
              _
            $region34: #{_lambda_.95} parent=27 // pred_check_branch
              %199 = sbr.rel target = $region36
            $region35: #{_lambda_.95} parent=27 // pred_region
              loop: start=0, step=1, limit=1
              $region37: #{_lambda_.95} parent=35 // loop_pre_header
                _
              $region38: #{_lambda_.95} parent=35 // loop_header
                %s202 = sphi 0, %s206
                %p203 = scmp.ge.s32.totalorder %s202, 1
                %s207 = sphi %s193, %s193
                %s208 = sphi %s190, %s190
              $region39: #{_lambda_.95} parent=35 // loop_header_branch
                %205 = sbr.rel (%p203) target = $region43
              $region40: #{_lambda_.95} parent=35 // loop_body
                %v209 = vld [vmem:[%s207] sm:$0xff]
                %210 = vst [vmem:[%s208] sm:$0xff] %v209
                %v211 = vld [vmem:[%s207 + $0x10] sm:$0xff]
                %212 = vst [vmem:[%s208 + $0x8] sm:$0xff] %v211
                %v213 = vld [vmem:[%s207 + $0x20] sm:$0xff]
                %214 = vst [vmem:[%s208 + $0x10] sm:$0xff] %v213
                %v215 = vld [vmem:[%s207 + $0x30] sm:$0xff]
                %216 = vst [vmem:[%s208 + $0x18] sm:$0xff] %v215
                %v217 = vld [vmem:[%s207 + $0x40] sm:$0xff]
                %218 = vst [vmem:[%s208 + $0x20] sm:$0xff] %v217
                %v219 = vld [vmem:[%s207 + $0x50] sm:$0xff]
                %220 = vst [vmem:[%s208 + $0x28] sm:$0xff] %v219
                %v221 = vld [vmem:[%s207 + $0x60] sm:$0xff]
                %222 = vst [vmem:[%s208 + $0x30] sm:$0xff] %v221
                %v223 = vld [vmem:[%s207 + $0x70] sm:$0xff]
                %224 = vst [vmem:[%s208 + $0x38] sm:$0xff] %v223
                %v225 = vld [vmem:[%s207 + $0x80] sm:$0xff]
                %226 = vst [vmem:[%s208 + $0x40] sm:$0xff] %v225
                %v227 = vld [vmem:[%s207 + $0x90] sm:$0xff]
                %228 = vst [vmem:[%s208 + $0x48] sm:$0xff] %v227
                %v229 = vld [vmem:[%s207 + $0xa0] sm:$0xff]
                %230 = vst [vmem:[%s208 + $0x50] sm:$0xff] %v229
                %v231 = vld [vmem:[%s207 + $0xb0] sm:$0xff]
                %232 = vst [vmem:[%s208 + $0x58] sm:$0xff] %v231
                %v233 = vld [vmem:[%s207 + $0xc0] sm:$0xff]
                %234 = vst [vmem:[%s208 + $0x60] sm:$0xff] %v233
                %v235 = vld [vmem:[%s207 + $0xd0] sm:$0xff]
                %236 = vst [vmem:[%s208 + $0x68] sm:$0xff] %v235
                %v237 = vld [vmem:[%s207 + $0xe0] sm:$0xff]
                %238 = vst [vmem:[%s208 + $0x70] sm:$0xff] %v237
                %v239 = vld [vmem:[%s207 + $0xf0] sm:$0xff]
                %240 = vst [vmem:[%s208 + $0x78] sm:$0xff] %v239
              $region41: #{_lambda_.95} parent=35 // loop_footer
                %s206 = sadd.s32 1, %s202
              $region42: #{_lambda_.95} parent=35 // loop_footer_branch
                %201 = sbr.rel target = $region38
              $region43: #{_lambda_.95} parent=35 // loop_exit
                _
            $region36: #{_lambda_.95} parent=27 // pred_fallthru
              _
          $region28: #{_lambda_.95} parent=23 // pred_fallthru
            _
          %285 = vnop
        $region24: #{_lambda_.95} parent=19 // pred_fallthru
          _
        // Predicated region
        $region59: #{_lambda_.95} parent=19 // pred_check
          %p286 = pneg %p94
        $region60: #{_lambda_.95} parent=19 // pred_check_branch
          %288 = sbr.rel (%p286) target = $region62
        $region61: #{_lambda_.95} parent=19 // pred_region
          %s289 = smul.u32 2, %s18
          %p290 = scmp.lt.s32.totalorder %s289, 3
          %s291 = scalar_select %p290, %s289, 3
          %s292 = scalar_lea.vmem %s2, %s291
          %s293 = smul.u32 2, %s18
        $region62: #{_lambda_.95} parent=19 // pred_fallthru
          _
        // Predicated region
        $region63: #{_lambda_.95} parent=19 // pred_check
          %p294 = pneg %p122
        $region64: #{_lambda_.95} parent=19 // pred_check_branch
          %296 = sbr.rel (%p294) target = $region66
        $region65: #{_lambda_.95} parent=19 // pred_region
          %s297 = sand.u32 %s112, 1
          %s298 = sand.u32 %s112, 1
          %s299 = smul.addr %s298, 32
          %s300 = scalar_lea.vmem [#allocation3], %s299
          %s301 = smul.u32 2, %s17
          %s302 = smul.u32 2, %s18
          %s303 = smul.addr %s301, 4
          %s304 = sadd.s32 %s302, %s303
          %s305 = smul.addr %s304, 8
          %s306 = scalar_lea.vmem %s3, %s305
          // Predicated region
          $region67: #{_lambda_.95} parent=65 // pred_check
            _
          $region68: #{_lambda_.95} parent=65 // pred_check_branch
            %308 = sbr.rel (0) target = $region70
          $region69: #{_lambda_.95} parent=65 // pred_region
            // Predicated region
            $region71: #{_lambda_.95} parent=69 // pred_check
              _
            $region72: #{_lambda_.95} parent=69 // pred_check_branch
              %310 = sbr.rel (0) target = $region74
            $region73: #{_lambda_.95} parent=69 // pred_region
              loop: start=0, step=1, limit=1
              $region75: #{_lambda_.95} parent=73 // loop_pre_header
                _
              $region76: #{_lambda_.95} parent=73 // loop_header
                %s312 = sphi 0, %s316
                %p313 = scmp.ge.s32.totalorder %s312, 1
                %s317 = sphi %s306, %s306
                %s318 = sphi %s300, %s300
              $region77: #{_lambda_.95} parent=73 // loop_header_branch
                %315 = sbr.rel (%p313) target = $region81
              $region78: #{_lambda_.95} parent=73 // loop_body
                %v319 = vld [vmem:[%s317] sm:$0xff]
                %320 = vst [vmem:[%s318] sm:$0xff] %v319
                %v321 = vld [vmem:[%s317 + $0x8] sm:$0xff]
                %322 = vst [vmem:[%s318 + $0x8] sm:$0xff] %v321
                %v323 = vld [vmem:[%s317 + $0x20] sm:$0xff]
                %324 = vst [vmem:[%s318 + $0x10] sm:$0xff] %v323
                %v325 = vld [vmem:[%s317 + $0x28] sm:$0xff]
                %326 = vst [vmem:[%s318 + $0x18] sm:$0xff] %v325
              $region79: #{_lambda_.95} parent=73 // loop_footer
                %s316 = sadd.s32 1, %s312
              $region80: #{_lambda_.95} parent=73 // loop_footer_branch
                %311 = sbr.rel target = $region76
              $region81: #{_lambda_.95} parent=73 // loop_exit
                _
            $region74: #{_lambda_.95} parent=69 // pred_fallthru
              _
            // Predicated region
            $region82: #{_lambda_.95} parent=69 // pred_check
              _
            $region83: #{_lambda_.95} parent=69 // pred_check_branch
              %328 = sbr.rel target = $region85
            $region84: #{_lambda_.95} parent=69 // pred_region
              _
            $region85: #{_lambda_.95} parent=69 // pred_fallthru
              _
          $region70: #{_lambda_.95} parent=65 // pred_fallthru
            _
          %329 = vnop
        $region66: #{_lambda_.95} parent=19 // pred_fallthru
          _
      $region20: #{_lambda_.95} parent=5 // pred_fallthru
        _
      %p330 = scmp.le.s32.totalorder 1, %s10
      %p331 = scmp.lt.s32.totalorder %s10, 3
      %p332 = pnand %p330, %p331
      %p333 = pneg %p332
      // Predicated region
      $region86: #{_lambda_.95} parent=5 // pred_check
        _
      $region87: #{_lambda_.95} parent=5 // pred_check_branch
        %335 = sbr.rel (%p332) target = $region89
      $region88: #{_lambda_.95} parent=5 // pred_region
        %s336 = ssub.s32 %s10, 1
        %s337 = sand.u32 %s61, 1
        %s338 = sand.u32 %s61, 1
        %s339 = smul.addr %s338, 128
        %s340 = scalar_lea.vmem [#allocation2], %s339
        // Predicated region
        $region90: #{_lambda_.95} parent=88 // pred_check
          %p341 = pneg %p74
        $region91: #{_lambda_.95} parent=88 // pred_check_branch
          %343 = sbr.rel (%p341) target = $region93
        $region92: #{_lambda_.95} parent=88 // pred_region
          _
        $region93: #{_lambda_.95} parent=88 // pred_fallthru
          _
        %s344 = sand.u32 %s115, 1
        %s345 = sand.u32 %s115, 1
        %s346 = smul.addr %s345, 32
        %s347 = scalar_lea.vmem [#allocation3], %s346
        // Predicated region
        $region94: #{_lambda_.95} parent=88 // pred_check
          %p348 = pneg %p128
        $region95: #{_lambda_.95} parent=88 // pred_check_branch
          %350 = sbr.rel (%p348) target = $region97
        $region96: #{_lambda_.95} parent=88 // pred_region
          _
        $region97: #{_lambda_.95} parent=88 // pred_fallthru
          _
        %s351 = smul.u32 2, %s19
        %p352 = scmp.lt.s32.totalorder %s351, 1
        %s353 = scalar_select %p352, %s351, 1
        %s354 = smul.addr %s353, 4
        %s355 = scalar_lea.vmem %s0, %s354
        %p356 = pneg %p48
        %p357 = pneg %p45
        %s358 = sand.u32 %s61, 1
        %s359 = sand.u32 %s61, 1
        %s360 = smul.addr %s359, 128
        %s361 = scalar_lea.vmem [#allocation2], %s360
        %p362 = pneg %p74
        %p363 = pneg %p71
        %s364 = smul.u32 2, %s20
        %p365 = scmp.lt.s32.totalorder %s364, 3
        %s366 = scalar_select %p365, %s364, 3
        %s367 = scalar_lea.vmem %s2, %s366
        %p368 = pneg %p100
        %p369 = pneg %p97
        %s370 = sand.u32 %s115, 1
        %s371 = sand.u32 %s115, 1
        %s372 = smul.addr %s371, 32
        %s373 = scalar_lea.vmem [#allocation3], %s372
        %p374 = pneg %p128
        %p375 = pneg %p125
        %p376 = pneg %p156
        %p377 = pneg %p153
        %s378 = sand.u32 %s143, 1
        %s379 = sand.u32 %s143, 1
        %s380 = smul.addr %s379, 32
        %s381 = scalar_lea.vmem [#allocation4], %s380
        %s382 = smul.u32 2, %s19
        %p383 = scmp.lt.s32.totalorder %s382, 1
        %s384 = scalar_select %p383, %s382, 1
        %s385 = smul.addr %s384, 4
        %s386 = scalar_lea.vmem %s0, %s385
        %s387 = smul.u32 2, %s19
        %s388 = smul.u32 2, %s20
        %s389 = smul.u32 2, %s20
        %p390 = scmp.lt.s32.totalorder %s389, 3
        %s391 = scalar_select %p390, %s389, 3
        %s392 = scalar_lea.vmem %s2, %s391
        %s393 = smul.u32 2, %s20
        %s394 = smul.u32 2, %s19
        %s395 = smul.u32 2, %s20
        %s396 = smul.u32 2, %s19
        %s397 = smul.u32 2, %s20
        %v399 = vld [vmem:[%s386] sm:$0xf]
        %v400 = vld [vmem:[%s386 + $0x4] sm:$0xf]
        %v401 = vld [vmem:[%s340] sm:$0xff]
        %v402 = vld [vmem:[%s340 + $0x8] sm:$0xff]
        %v403 = vld [vmem:[%s340 + $0x10] sm:$0xff]
        %v404 = vld [vmem:[%s340 + $0x18] sm:$0xff]
        %v405 = vld [vmem:[%s340 + $0x20] sm:$0xff]
        %v406 = vld [vmem:[%s340 + $0x28] sm:$0xff]
        %v407 = vld [vmem:[%s340 + $0x30] sm:$0xff]
        %v408 = vld [vmem:[%s340 + $0x38] sm:$0xff]
        %v409 = vld [vmem:[%s340 + $0x40] sm:$0xff]
        %v410 = vld [vmem:[%s340 + $0x48] sm:$0xff]
        %v411 = vld [vmem:[%s340 + $0x50] sm:$0xff]
        %v412 = vld [vmem:[%s340 + $0x58] sm:$0xff]
        %v413 = vld [vmem:[%s340 + $0x60] sm:$0xff]
        %v414 = vld [vmem:[%s340 + $0x68] sm:$0xff]
        %v415 = vld [vmem:[%s340 + $0x70] sm:$0xff]
        %v416 = vld [vmem:[%s340 + $0x78] sm:$0xff]
        %v417 = vld [vmem:[%s392] sm:$0x3]
        %v419 = vlaneseq
        %v420 = vshrl.u32 %v419, 7
        %v421 = vsub.s32 0, %v420
        %v422 = vrot.slane %v417, %v421
        %v423 = vlaneseq
        %v424 = vshrl.u32 %v423, 7
        %v425 = vsub.s32 1, %v424
        %v426 = vrot.slane %v417, %v425
        %v431 = vunpack.c.l.b16 %v399
        %v432 = vunpack.c.l.b16 %v400
        %v433 = vpack.c.b16 %v432, %v431
        %v451 = vunpack.c.l.b16 %v401
        %v452 = vunpack.c.h.b16 %v401
        %v453 = vunpack.c.l.b16 %v402
        %v454 = vunpack.c.h.b16 %v402
        %v455 = vunpack.c.l.b16 %v403
        %v456 = vunpack.c.h.b16 %v403
        %v457 = vunpack.c.l.b16 %v404
        %v458 = vunpack.c.h.b16 %v404
        %v459 = vunpack.c.l.b16 %v405
        %v460 = vunpack.c.h.b16 %v405
        %v461 = vunpack.c.l.b16 %v406
        %v462 = vunpack.c.h.b16 %v406
        %v463 = vunpack.c.l.b16 %v407
        %v464 = vunpack.c.h.b16 %v407
        %v465 = vunpack.c.l.b16 %v408
        %v466 = vunpack.c.h.b16 %v408
        %v467 = vunpack.c.l.b16 %v409
        %v468 = vunpack.c.h.b16 %v409
        %v469 = vunpack.c.l.b16 %v410
        %v470 = vunpack.c.h.b16 %v410
        %v471 = vunpack.c.l.b16 %v411
        %v472 = vunpack.c.h.b16 %v411
        %v473 = vunpack.c.l.b16 %v412
        %v474 = vunpack.c.h.b16 %v412
        %v475 = vunpack.c.l.b16 %v413
        %v476 = vunpack.c.h.b16 %v413
        %v477 = vunpack.c.l.b16 %v414
        %v478 = vunpack.c.h.b16 %v414
        %v479 = vunpack.c.l.b16 %v415
        %v480 = vunpack.c.h.b16 %v415
        %v481 = vunpack.c.l.b16 %v416
        %v482 = vunpack.c.h.b16 %v416
        %v483 = vpack.c.b16 %v453, %v451
        %v484 = vpack.c.b16 %v454, %v452
        %v485 = vpack.c.b16 %v457, %v455
        %v486 = vpack.c.b16 %v458, %v456
        %v487 = vpack.c.b16 %v461, %v459
        %v488 = vpack.c.b16 %v462, %v460
        %v489 = vpack.c.b16 %v465, %v463
        %v490 = vpack.c.b16 %v466, %v464
        %v491 = vpack.c.b16 %v469, %v467
        %v492 = vpack.c.b16 %v470, %v468
        %v493 = vpack.c.b16 %v473, %v471
        %v494 = vpack.c.b16 %v474, %v472
        %v495 = vpack.c.b16 %v477, %v475
        %v496 = vpack.c.b16 %v478, %v476
        %v497 = vpack.c.b16 %v481, %v479
        %v498 = vpack.c.b16 %v482, %v480
        %515 = vmatprep.subr.bf16.mxu0 %v484
        %516 = vmatpush1.bf16.msra.mxu0 %v483
        %517 = vmatprep.subr.bf16.mxu0 %v486
        %518 = vmatpush1.bf16.msra.mxu0 %v485
        %519 = vmatprep.subr.bf16.mxu0 %v488
        %520 = vmatpush1.bf16.msra.mxu0 %v487
        %521 = vmatprep.subr.bf16.mxu0 %v490
        %522 = vmatpush1.bf16.msra.mxu0 %v489
        %523 = vmatprep.subr.bf16.mxu0 %v492
        %524 = vmatpush1.bf16.msra.mxu0 %v491
        %525 = vmatprep.subr.bf16.mxu0 %v494
        %526 = vmatpush1.bf16.msra.mxu0 %v493
        %527 = vmatprep.subr.bf16.mxu0 %v496
        %528 = vmatpush1.bf16.msra.mxu0 %v495
        %529 = vmatprep.subr.bf16.mxu0 %v498
        %530 = vmatpush1.bf16.msra.mxu0 %v497
        %531 = vmatprep.subr.bf16.mxu0 0
        %532 = vmatpush1.bf16.msra.mxu0 0
        %533 = vmatprep.subr.bf16.mxu0 0
        %534 = vmatpush1.bf16.msra.mxu0 0
        %535 = vmatprep.subr.bf16.mxu0 0
        %536 = vmatpush1.bf16.msra.mxu0 0
        %537 = vmatprep.subr.bf16.mxu0 0
        %538 = vmatpush1.bf16.msra.mxu0 0
        %539 = vmatprep.subr.bf16.mxu0 0
        %540 = vmatpush1.bf16.msra.mxu0 0
        %541 = vmatprep.subr.bf16.mxu0 0
        %542 = vmatpush1.bf16.msra.mxu0 0
        %543 = vmatprep.subr.bf16.mxu0 0
        %544 = vmatpush1.bf16.msra.mxu0 0
        %545 = vmatprep.subr.bf16.mxu0 0
        %546 = vmatpush1.bf16.msra.mxu0 0
        %547 = vmatprep.mubr.bf16.mxu0 0
        %548 = vmatmul.mubr.bf16.gmra.mrb[0].mxu0 %v433
        %v549 = vpop.f32.mrb[0].mxu0
        %v550 = vadd.f32 %v422, %v549
        %v551 = vpop.f32.mrb[0].mxu0
        %v552 = vadd.f32 %v426, %v551
        %v553 = vpop.f32.mrb[0].mxu0
        %v554 = vadd.f32 %v422, %v553
        %v555 = vpop.f32.mrb[0].mxu0
        %v556 = vadd.f32 %v426, %v555
        %557 = vdwg.mxu0
        %v558 = vld [vmem:[%s347] sm:$0xff]
        %v559 = vld [vmem:[%s347 + $0x8] sm:$0xff]
        %v560 = vld [vmem:[%s347 + $0x10] sm:$0xff]
        %v561 = vld [vmem:[%s347 + $0x18] sm:$0xff]
        %v562 = vadd.f32 %v550, %v558
        %v563 = vadd.f32 %v552, %v559
        %v564 = vadd.f32 %v554, %v560
        %v565 = vadd.f32 %v556, %v561
        %vm566 = vcmp.ge.f32.partialorder %v562, 0.0
        %vm567 = vcmp.ge.f32.partialorder %v563, 0.0
        %vm568 = vcmp.ge.f32.partialorder %v564, 0.0
        %vm569 = vcmp.ge.f32.partialorder %v565, 0.0
        %v570 = vmul.f32 %v562, 0.2
        %v571 = vmul.f32 %v563, 0.2
        %v572 = vmul.f32 %v564, 0.2
        %v573 = vmul.f32 %v565, 0.2
        %v574 = vsel %vm566, %v562, %v570
        %v575 = vsel %vm567, %v563, %v571
        %v576 = vsel %vm568, %v564, %v572
        %v577 = vsel %vm569, %v565, %v573
        %578 = vst [vmem:[%s381] sm:$0xff] %v574
        %579 = vst [vmem:[%s381 + $0x8] sm:$0xff] %v575
        %580 = vst [vmem:[%s381 + $0x10] sm:$0xff] %v576
        %581 = vst [vmem:[%s381 + $0x18] sm:$0xff] %v577
        %s582 = sand.u32 %s143, 1
        %s583 = sand.u32 %s143, 1
        %s584 = smul.addr %s583, 32
        %s585 = scalar_lea.vmem [#allocation4], %s584
        // Predicated region
        $region98: #{_lambda_.95} parent=88 // pred_check
          %p586 = pneg %p153
        $region99: #{_lambda_.95} parent=88 // pred_check_branch
          %588 = sbr.rel (%p586) target = $region101
        $region100: #{_lambda_.95} parent=88 // pred_region
          %s589 = smul.u32 2, %s19
          %s590 = smul.u32 2, %s20
          %s591 = smul.addr %s589, 4
          %s592 = sadd.s32 %s590, %s591
          %s593 = smul.addr %s592, 8
          %s594 = scalar_lea.vmem %s4, %s593
          // Predicated region
          $region102: #{_lambda_.95} parent=100 // pred_check
            _
          $region103: #{_lambda_.95} parent=100 // pred_check_branch
            %596 = sbr.rel (0) target = $region105
          $region104: #{_lambda_.95} parent=100 // pred_region
            // Predicated region
            $region106: #{_lambda_.95} parent=104 // pred_check
              _
            $region107: #{_lambda_.95} parent=104 // pred_check_branch
              %598 = sbr.rel (0) target = $region109
            $region108: #{_lambda_.95} parent=104 // pred_region
              loop: start=0, step=1, limit=1
              $region110: #{_lambda_.95} parent=108 // loop_pre_header
                _
              $region111: #{_lambda_.95} parent=108 // loop_header
                %s600 = sphi 0, %s604
                %p601 = scmp.ge.s32.totalorder %s600, 1
                %s605 = sphi %s585, %s585
                %s606 = sphi %s594, %s594
              $region112: #{_lambda_.95} parent=108 // loop_header_branch
                %603 = sbr.rel (%p601) target = $region116
              $region113: #{_lambda_.95} parent=108 // loop_body
                %v607 = vld [vmem:[%s605] sm:$0xff]
                %608 = vst [vmem:[%s606] sm:$0xff] %v607
                %v609 = vld [vmem:[%s605 + $0x8] sm:$0xff]
                %610 = vst [vmem:[%s606 + $0x8] sm:$0xff] %v609
                %v611 = vld [vmem:[%s605 + $0x10] sm:$0xff]
                %612 = vst [vmem:[%s606 + $0x20] sm:$0xff] %v611
                %v613 = vld [vmem:[%s605 + $0x18] sm:$0xff]
                %614 = vst [vmem:[%s606 + $0x28] sm:$0xff] %v613
              $region114: #{_lambda_.95} parent=108 // loop_footer
                %s604 = sadd.s32 1, %s600
              $region115: #{_lambda_.95} parent=108 // loop_footer_branch
                %599 = sbr.rel target = $region111
              $region116: #{_lambda_.95} parent=108 // loop_exit
                _
            $region109: #{_lambda_.95} parent=104 // pred_fallthru
              _
            // Predicated region
            $region117: #{_lambda_.95} parent=104 // pred_check
              _
            $region118: #{_lambda_.95} parent=104 // pred_check_branch
              %616 = sbr.rel target = $region120
            $region119: #{_lambda_.95} parent=104 // pred_region
              _
            $region120: #{_lambda_.95} parent=104 // pred_fallthru
              _
          $region105: #{_lambda_.95} parent=100 // pred_fallthru
            _
          %617 = vnop
        $region101: #{_lambda_.95} parent=88 // pred_fallthru
          _
      $region89: #{_lambda_.95} parent=5 // pred_fallthru
        _
      %p618 = scmp.le.s32.totalorder 2, %s10
      // Predicated region
      $region121: #{_lambda_.95} parent=5 // pred_check
        %p619 = pneg %p618
      $region122: #{_lambda_.95} parent=5 // pred_check_branch
        %621 = sbr.rel (%p619) target = $region124
      $region123: #{_lambda_.95} parent=5 // pred_region
        %s622 = ssub.s32 %s10, 2
        // Predicated region
        $region125: #{_lambda_.95} parent=123 // pred_check
          %p623 = pneg %p159
        $region126: #{_lambda_.95} parent=123 // pred_check_branch
          %625 = sbr.rel (%p623) target = $region128
        $region127: #{_lambda_.95} parent=123 // pred_region
          %s626 = sand.u32 %s144, 1
          %s627 = sand.u32 %s144, 1
          %s628 = smul.addr %s627, 32
          %s629 = scalar_lea.vmem [#allocation4], %s628
        $region128: #{_lambda_.95} parent=123 // pred_fallthru
          _
      $region124: #{_lambda_.95} parent=5 // pred_fallthru
        _
    $region6: #{_lambda_.95} parent=1 // loop_footer
      %s14 = sadd.s32 1, %s10
    $region7: #{_lambda_.95} parent=1 // loop_footer_branch
      %9 = sbr.rel target = $region3
    $region8: #{_lambda_.95} parent=1 // loop_exit
      _

// kernel: _lambda_.96
$region0: #{_lambda_.96}
  #allocation0 [shape = 'u32[]', space=smem, size = 0x4, offset = 0x4, fixed_abs, tag = 'smem constant byte address 0x4 - core index']
  #allocation1 [shape = 'u32[144,128]{1,0:T(1,128)}', space=vmem, size = 0x12000, scoped, tag = 'internal scratch']
  %s0 = inlined_call_operand.vmem [shape: bf16[16,512], index: 0, kind: input, shape index: {}]
  %s1 = inlined_call_operand.vmem [shape: bf16[512,128], index: 1, kind: input, shape index: {}]
  %s2 = inlined_call_operand.vmem [shape: f32[1,128], index: 2, kind: input, shape index: {}]
  %s3 = inlined_call_operand.vmem [shape: f32[16,128], index: 3, kind: output, shape index: {}]
  %s4 = sld [smem:[#allocation0]]
  $region22: #{_lambda_.96} parent=0
    _
  %s6 = ssub.s32 1, %s4
  %s7 = scalar_select 0, %s6, %s4
  // Predicated region
  $region2: #{_lambda_.96} parent=0 // pred_check
    _
  $region3: #{_lambda_.96} parent=0 // pred_check_branch
    %9 = sbr.rel (0) target = $region5
  $region4: #{_lambda_.96} parent=0 // pred_region
    _
  $region5: #{_lambda_.96} parent=0 // pred_fallthru
    _
  // Predicated region
  $region6: #{_lambda_.96} parent=0 // pred_check
    _
  $region7: #{_lambda_.96} parent=0 // pred_check_branch
    %11 = sbr.rel (0) target = $region9
  $region8: #{_lambda_.96} parent=0 // pred_region
    _
  $region9: #{_lambda_.96} parent=0 // pred_fallthru
    _
  // Predicated region
  $region10: #{_lambda_.96} parent=0 // pred_check
    _
  $region11: #{_lambda_.96} parent=0 // pred_check_branch
    %13 = sbr.rel (0) target = $region13
  $region12: #{_lambda_.96} parent=0 // pred_region
    _
  $region13: #{_lambda_.96} parent=0 // pred_fallthru
    _
  %v15 = vld [vmem:[%s0] sm:$0xff]
  %v16 = vld [vmem:[%s0 + $0x8] sm:$0xff]
  %v17 = vld [vmem:[%s0 + $0x10] sm:$0xff]
  %v18 = vld [vmem:[%s0 + $0x18] sm:$0xff]
  %v19 = vld [vmem:[%s1] sm:$0xf]
  %v20 = vld [vmem:[%s1 + $0x4] sm:$0xf]
  %v21 = vld [vmem:[%s1 + $0x8] sm:$0xf]
  %v22 = vld [vmem:[%s1 + $0xc] sm:$0xf]
  %v23 = vld [vmem:[%s1 + $0x10] sm:$0xf]
  %v24 = vld [vmem:[%s1 + $0x14] sm:$0xf]
  %v25 = vld [vmem:[%s1 + $0x18] sm:$0xf]
  %v26 = vld [vmem:[%s1 + $0x1c] sm:$0xf]
  %v27 = vld [vmem:[%s1 + $0x20] sm:$0xf]
  %v28 = vld [vmem:[%s1 + $0x24] sm:$0xf]
  %v29 = vld [vmem:[%s1 + $0x28] sm:$0xf]
  %v30 = vld [vmem:[%s1 + $0x2c] sm:$0xf]
  %v31 = vld [vmem:[%s1 + $0x30] sm:$0xf]
  %v32 = vld [vmem:[%s1 + $0x34] sm:$0xf]
  %v33 = vld [vmem:[%s1 + $0x38] sm:$0xf]
  %v34 = vld [vmem:[%s1 + $0x3c] sm:$0xf]
  %v35 = vld [vmem:[%s1 + $0x40] sm:$0xf]
  %v36 = vld [vmem:[%s1 + $0x44] sm:$0xf]
  %v37 = vld [vmem:[%s1 + $0x48] sm:$0xf]
  %v38 = vld [vmem:[%s1 + $0x4c] sm:$0xf]
  %v39 = vld [vmem:[%s1 + $0x50] sm:$0xf]
  %v40 = vld [vmem:[%s1 + $0x54] sm:$0xf]
  %v41 = vld [vmem:[%s1 + $0x58] sm:$0xf]
  %v42 = vld [vmem:[%s1 + $0x5c] sm:$0xf]
  %v43 = vld [vmem:[%s1 + $0x60] sm:$0xf]
  %v44 = vld [vmem:[%s1 + $0x64] sm:$0xf]
  %v45 = vld [vmem:[%s1 + $0x68] sm:$0xf]
  %v46 = vld [vmem:[%s1 + $0x6c] sm:$0xf]
  %v47 = vld [vmem:[%s1 + $0x70] sm:$0xf]
  %v48 = vld [vmem:[%s1 + $0x74] sm:$0xf]
  %v49 = vld [vmem:[%s1 + $0x78] sm:$0xf]
  %v50 = vld [vmem:[%s1 + $0x7c] sm:$0xf]
  %v51 = vld [vmem:[%s1 + $0x80] sm:$0xf]
  %v52 = vld [vmem:[%s1 + $0x84] sm:$0xf]
  %v53 = vld [vmem:[%s1 + $0x88] sm:$0xf]
  %v54 = vld [vmem:[%s1 + $0x8c] sm:$0xf]
  %v55 = vld [vmem:[%s1 + $0x90] sm:$0xf]
  %v56 = vld [vmem:[%s1 + $0x94] sm:$0xf]
  %v57 = vld [vmem:[%s1 + $0x98] sm:$0xf]
  %v58 = vld [vmem:[%s1 + $0x9c] sm:$0xf]
  %v59 = vld [vmem:[%s1 + $0xa0] sm:$0xf]
  %v60 = vld [vmem:[%s1 + $0xa4] sm:$0xf]
  %v61 = vld [vmem:[%s1 + $0xa8] sm:$0xf]
  %v62 = vld [vmem:[%s1 + $0xac] sm:$0xf]
  %v63 = vld [vmem:[%s1 + $0xb0] sm:$0xf]
  %v64 = vld [vmem:[%s1 + $0xb4] sm:$0xf]
  %v65 = vld [vmem:[%s1 + $0xb8] sm:$0xf]
  %v66 = vld [vmem:[%s1 + $0xbc] sm:$0xf]
  %v67 = vld [vmem:[%s1 + $0xc0] sm:$0xf]
  %v68 = vld [vmem:[%s1 + $0xc4] sm:$0xf]
  %v69 = vld [vmem:[%s1 + $0xc8] sm:$0xf]
  %v70 = vld [vmem:[%s1 + $0xcc] sm:$0xf]
  %v71 = vld [vmem:[%s1 + $0xd0] sm:$0xf]
  %v72 = vld [vmem:[%s1 + $0xd4] sm:$0xf]
  %v73 = vld [vmem:[%s1 + $0xd8] sm:$0xf]
  %v74 = vld [vmem:[%s1 + $0xdc] sm:$0xf]
  %v75 = vld [vmem:[%s1 + $0xe0] sm:$0xf]
  %v76 = vld [vmem:[%s1 + $0xe4] sm:$0xf]
  %v77 = vld [vmem:[%s1 + $0xe8] sm:$0xf]
  %v78 = vld [vmem:[%s1 + $0xec] sm:$0xf]
  %v79 = vld [vmem:[%s1 + $0xf0] sm:$0xf]
  %v80 = vld [vmem:[%s1 + $0xf4] sm:$0xf]
  %v81 = vld [vmem:[%s1 + $0xf8] sm:$0xf]
  %v82 = vld [vmem:[%s1 + $0xfc] sm:$0xf]
  %v83 = vld [vmem:[%s2] sm:$0x1]
  %v85 = vlaneseq
  %v86 = vshrl.u32 %v85, 7
  %v87 = vsub.s32 0, %v86
  %v88 = vrot.slane %v83, %v87
  %v94 = vunpack.c.l.b16 %v15
  %v95 = vunpack.c.h.b16 %v15
  %v96 = vunpack.c.l.b16 %v16
  %v97 = vunpack.c.h.b16 %v16
  %v98 = vunpack.c.l.b16 %v17
  %v99 = vunpack.c.h.b16 %v17
  %v100 = vunpack.c.l.b16 %v18
  %v101 = vunpack.c.h.b16 %v18
  %v102 = vpack.c.b16 %v98, %v94
  %v103 = vpack.c.b16 %v99, %v95
  %v104 = vpack.c.b16 %v100, %v96
  %v105 = vpack.c.b16 %v101, %v97
  %v174 = vunpack.c.l.b16 %v19
  %v175 = vunpack.c.l.b16 %v20
  %v176 = vunpack.c.l.b16 %v21
  %v177 = vunpack.c.l.b16 %v22
  %v178 = vunpack.c.l.b16 %v23
  %v179 = vunpack.c.l.b16 %v24
  %v180 = vunpack.c.l.b16 %v25
  %v181 = vunpack.c.l.b16 %v26
  %v182 = vunpack.c.l.b16 %v27
  %v183 = vunpack.c.l.b16 %v28
  %v184 = vunpack.c.l.b16 %v29
  %v185 = vunpack.c.l.b16 %v30
  %v186 = vunpack.c.l.b16 %v31
  %v187 = vunpack.c.l.b16 %v32
  %v188 = vunpack.c.l.b16 %v33
  %v189 = vunpack.c.l.b16 %v34
  %v190 = vunpack.c.l.b16 %v35
  %v191 = vunpack.c.l.b16 %v36
  %v192 = vunpack.c.l.b16 %v37
  %v193 = vunpack.c.l.b16 %v38
  %v194 = vunpack.c.l.b16 %v39
  %v195 = vunpack.c.l.b16 %v40
  %v196 = vunpack.c.l.b16 %v41
  %v197 = vunpack.c.l.b16 %v42
  %v198 = vunpack.c.l.b16 %v43
  %v199 = vunpack.c.l.b16 %v44
  %v200 = vunpack.c.l.b16 %v45
  %v201 = vunpack.c.l.b16 %v46
  %v202 = vunpack.c.l.b16 %v47
  %v203 = vunpack.c.l.b16 %v48
  %v204 = vunpack.c.l.b16 %v49
  %v205 = vunpack.c.l.b16 %v50
  %v206 = vunpack.c.l.b16 %v51
  %v207 = vunpack.c.l.b16 %v52
  %v208 = vunpack.c.l.b16 %v53
  %v209 = vunpack.c.l.b16 %v54
  %v210 = vunpack.c.l.b16 %v55
  %v211 = vunpack.c.l.b16 %v56
  %v212 = vunpack.c.l.b16 %v57
  %v213 = vunpack.c.l.b16 %v58
  %v214 = vunpack.c.l.b16 %v59
  %v215 = vunpack.c.l.b16 %v60
  %v216 = vunpack.c.l.b16 %v61
  %v217 = vunpack.c.l.b16 %v62
  %v218 = vunpack.c.l.b16 %v63
  %v219 = vunpack.c.l.b16 %v64
  %v220 = vunpack.c.l.b16 %v65
  %v221 = vunpack.c.l.b16 %v66
  %v222 = vunpack.c.l.b16 %v67
  %v223 = vunpack.c.l.b16 %v68
  %v224 = vunpack.c.l.b16 %v69
  %v225 = vunpack.c.l.b16 %v70
  %v226 = vunpack.c.l.b16 %v71
  %v227 = vunpack.c.l.b16 %v72
  %v228 = vunpack.c.l.b16 %v73
  %v229 = vunpack.c.l.b16 %v74
  %v230 = vunpack.c.l.b16 %v75
  %v231 = vunpack.c.l.b16 %v76
  %v232 = vunpack.c.l.b16 %v77
  %v233 = vunpack.c.l.b16 %v78
  %v234 = vunpack.c.l.b16 %v79
  %v235 = vunpack.c.l.b16 %v80
  %v236 = vunpack.c.l.b16 %v81
  %v237 = vunpack.c.l.b16 %v82
  %v238 = vpack.c.b16 %v175, %v174
  %v239 = vpack.c.b16 %v177, %v176
  %v240 = vpack.c.b16 %v179, %v178
  %v241 = vpack.c.b16 %v181, %v180
  %v242 = vpack.c.b16 %v183, %v182
  %v243 = vpack.c.b16 %v185, %v184
  %v244 = vpack.c.b16 %v187, %v186
  %v245 = vpack.c.b16 %v189, %v188
  %v246 = vpack.c.b16 %v191, %v190
  %v247 = vpack.c.b16 %v193, %v192
  %v248 = vpack.c.b16 %v195, %v194
  %v249 = vpack.c.b16 %v197, %v196
  %v250 = vpack.c.b16 %v199, %v198
  %v251 = vpack.c.b16 %v201, %v200
  %v252 = vpack.c.b16 %v203, %v202
  %v253 = vpack.c.b16 %v205, %v204
  %v254 = vpack.c.b16 %v207, %v206
  %v255 = vpack.c.b16 %v209, %v208
  %v256 = vpack.c.b16 %v211, %v210
  %v257 = vpack.c.b16 %v213, %v212
  %v258 = vpack.c.b16 %v215, %v214
  %v259 = vpack.c.b16 %v217, %v216
  %v260 = vpack.c.b16 %v219, %v218
  %v261 = vpack.c.b16 %v221, %v220
  %v262 = vpack.c.b16 %v223, %v222
  %v263 = vpack.c.b16 %v225, %v224
  %v264 = vpack.c.b16 %v227, %v226
  %v265 = vpack.c.b16 %v229, %v228
  %v266 = vpack.c.b16 %v231, %v230
  %v267 = vpack.c.b16 %v233, %v232
  %v268 = vpack.c.b16 %v235, %v234
  %v269 = vpack.c.b16 %v237, %v236
  %302 = vmatprep.subr.bf16.mxu0 0
  %303 = vmatpush1.bf16.msra.mxu0 %v238
  %304 = vmatprep.subr.bf16.mxu0 0
  %305 = vmatpush1.bf16.msra.mxu0 %v239
  %306 = vmatprep.subr.bf16.mxu0 0
  %307 = vmatpush1.bf16.msra.mxu0 %v240
  %308 = vmatprep.subr.bf16.mxu0 0
  %309 = vmatpush1.bf16.msra.mxu0 %v241
  %310 = vmatprep.subr.bf16.mxu0 0
  %311 = vmatpush1.bf16.msra.mxu0 %v242
  %312 = vmatprep.subr.bf16.mxu0 0
  %313 = vmatpush1.bf16.msra.mxu0 %v243
  %314 = vmatprep.subr.bf16.mxu0 0
  %315 = vmatpush1.bf16.msra.mxu0 %v244
  %316 = vmatprep.subr.bf16.mxu0 0
  %317 = vmatpush1.bf16.msra.mxu0 %v245
  %318 = vmatprep.subr.bf16.mxu0 0
  %319 = vmatpush1.bf16.msra.mxu0 %v246
  %320 = vmatprep.subr.bf16.mxu0 0
  %321 = vmatpush1.bf16.msra.mxu0 %v247
  %322 = vmatprep.subr.bf16.mxu0 0
  %323 = vmatpush1.bf16.msra.mxu0 %v248
  %324 = vmatprep.subr.bf16.mxu0 0
  %325 = vmatpush1.bf16.msra.mxu0 %v249
  %326 = vmatprep.subr.bf16.mxu0 0
  %327 = vmatpush1.bf16.msra.mxu0 %v250
  %328 = vmatprep.subr.bf16.mxu0 0
  %329 = vmatpush1.bf16.msra.mxu0 %v251
  %330 = vmatprep.subr.bf16.mxu0 0
  %331 = vmatpush1.bf16.msra.mxu0 %v252
  %332 = vmatprep.subr.bf16.mxu0 0
  %333 = vmatpush1.bf16.msra.mxu0 %v253
  %334 = vmatprep.mubr.bf16.mxu0 %v103
  %335 = vmatmul.mubr.bf16.gmra.mrb[0].mxu0 %v102
  %v336 = vpop.f32.mrb[0].mxu0
  %v337 = vadd.f32 %v88, %v336
  %v338 = vpop.f32.mrb[0].mxu0
  %v339 = vpop.f32.mrb[0].mxu0
  %v340 = vadd.f32 %v88, %v339
  %v341 = vpop.f32.mrb[0].mxu0
  %342 = vdwg.mxu0
  %343 = vmatprep.subr.bf16.mxu0 0
  %344 = vmatpush1.bf16.msra.mxu0 %v254
  %345 = vmatprep.subr.bf16.mxu0 0
  %346 = vmatpush1.bf16.msra.mxu0 %v255
  %347 = vmatprep.subr.bf16.mxu0 0
  %348 = vmatpush1.bf16.msra.mxu0 %v256
  %349 = vmatprep.subr.bf16.mxu0 0
  %350 = vmatpush1.bf16.msra.mxu0 %v257
  %351 = vmatprep.subr.bf16.mxu0 0
  %352 = vmatpush1.bf16.msra.mxu0 %v258
  %353 = vmatprep.subr.bf16.mxu0 0
  %354 = vmatpush1.bf16.msra.mxu0 %v259
  %355 = vmatprep.subr.bf16.mxu0 0
  %356 = vmatpush1.bf16.msra.mxu0 %v260
  %357 = vmatprep.subr.bf16.mxu0 0
  %358 = vmatpush1.bf16.msra.mxu0 %v261
  %359 = vmatprep.subr.bf16.mxu0 0
  %360 = vmatpush1.bf16.msra.mxu0 %v262
  %361 = vmatprep.subr.bf16.mxu0 0
  %362 = vmatpush1.bf16.msra.mxu0 %v263
  %363 = vmatprep.subr.bf16.mxu0 0
  %364 = vmatpush1.bf16.msra.mxu0 %v264
  %365 = vmatprep.subr.bf16.mxu0 0
  %366 = vmatpush1.bf16.msra.mxu0 %v265
  %367 = vmatprep.subr.bf16.mxu0 0
  %368 = vmatpush1.bf16.msra.mxu0 %v266
  %369 = vmatprep.subr.bf16.mxu0 0
  %370 = vmatpush1.bf16.msra.mxu0 %v267
  %371 = vmatprep.subr.bf16.mxu0 0
  %372 = vmatpush1.bf16.msra.mxu0 %v268
  %373 = vmatprep.subr.bf16.mxu0 0
  %374 = vmatpush1.bf16.msra.mxu0 %v269
  %375 = vmatprep.mubr.bf16.mxu0 %v105
  %376 = vmatmul.mubr.bf16.gmra.mrb[0].mxu0 %v104
  %v377 = vpop.f32.mrb[0].mxu0
  %v378 = vadd.f32 %v337, %v377
  %v379 = vpop.f32.mrb[0].mxu0
  %v380 = vpop.f32.mrb[0].mxu0
  %v381 = vadd.f32 %v340, %v380
  %v382 = vpop.f32.mrb[0].mxu0
  %383 = vdwg.mxu0
  %vm384 = vcmp.ge.f32.partialorder %v378, 0.0
  %vm385 = vcmp.ge.f32.partialorder %v381, 0.0
  %v386 = vmul.f32 %v378, 0.2
  %v387 = vmul.f32 %v381, 0.2
  %v388 = vsel %vm384, %v378, %v386
  %v389 = vsel %vm385, %v381, %v387
  %390 = vst [vmem:[%s3] sm:$0xff] %v388
  %391 = vst [vmem:[%s3 + $0x8] sm:$0xff] %v389
  // Predicated region
  $region14: #{_lambda_.96} parent=0 // pred_check
    _
  $region15: #{_lambda_.96} parent=0 // pred_check_branch
    %393 = sbr.rel (0) target = $region17
  $region16: #{_lambda_.96} parent=0 // pred_region
    _
  $region17: #{_lambda_.96} parent=0 // pred_fallthru
    _
  // Predicated region
  $region18: #{_lambda_.96} parent=0 // pred_check
    _
  $region19: #{_lambda_.96} parent=0 // pred_check_branch
    %395 = sbr.rel (0) target = $region21
  $region20: #{_lambda_.96} parent=0 // pred_region
    _
  $region21: #{_lambda_.96} parent=0 // pred_fallthru
    _

// kernel: _lambda_.93
$region0: #{_lambda_.93}
  #allocation0 [shape = 'u32[]', space=smem, size = 0x4, offset = 0x4, fixed_abs, tag = 'smem constant byte address 0x4 - core index']
  #allocation1 [shape = 'u32[144,128]{1,0:T(1,128)}', space=vmem, size = 0x12000, scoped, tag = 'internal scratch']
  %s0 = inlined_call_operand.vmem [shape: bf16[16,1152], index: 0, kind: input, shape index: {}]
  %s1 = inlined_call_operand.vmem [shape: bf16[1152,128], index: 1, kind: input, shape index: {}]
  %s2 = inlined_call_operand.vmem [shape: f32[1,128], index: 2, kind: input, shape index: {}]
  %s3 = inlined_call_operand.vmem [shape: f32[16,128], index: 3, kind: output, shape index: {}]
  %s4 = sld [smem:[#allocation0]]
  $region22: #{_lambda_.93} parent=0
    _
  %s6 = ssub.s32 1, %s4
  %s7 = scalar_select 0, %s6, %s4
  // Predicated region
  $region2: #{_lambda_.93} parent=0 // pred_check
    _
  $region3: #{_lambda_.93} parent=0 // pred_check_branch
    %9 = sbr.rel (0) target = $region5
  $region4: #{_lambda_.93} parent=0 // pred_region
    _
  $region5: #{_lambda_.93} parent=0 // pred_fallthru
    _
  // Predicated region
  $region6: #{_lambda_.93} parent=0 // pred_check
    _
  $region7: #{_lambda_.93} parent=0 // pred_check_branch
    %11 = sbr.rel (0) target = $region9
  $region8: #{_lambda_.93} parent=0 // pred_region
    _
  $region9: #{_lambda_.93} parent=0 // pred_fallthru
    _
  // Predicated region
  $region10: #{_lambda_.93} parent=0 // pred_check
    _
  $region11: #{_lambda_.93} parent=0 // pred_check_branch
    %13 = sbr.rel (0) target = $region13
  $region12: #{_lambda_.93} parent=0 // pred_region
    _
  $region13: #{_lambda_.93} parent=0 // pred_fallthru
    _
  %v15 = vld [vmem:[%s0] sm:$0xff]
  %v16 = vld [vmem:[%s0 + $0x8] sm:$0xff]
  %v17 = vld [vmem:[%s0 + $0x10] sm:$0xff]
  %v18 = vld [vmem:[%s0 + $0x18] sm:$0xff]
  %v19 = vld [vmem:[%s0 + $0x20] sm:$0xf]
  %v20 = vld [vmem:[%s0 + $0x24] sm:$0xff]
  %v21 = vld [vmem:[%s0 + $0x2c] sm:$0xff]
  %v22 = vld [vmem:[%s0 + $0x34] sm:$0xff]
  %v23 = vld [vmem:[%s0 + $0x3c] sm:$0xff]
  %v24 = vld [vmem:[%s0 + $0x44] sm:$0xf]
  %v25 = vld [vmem:[%s1] sm:$0xf]
  %v26 = vld [vmem:[%s1 + $0x4] sm:$0xf]
  %v27 = vld [vmem:[%s1 + $0x8] sm:$0xf]
  %v28 = vld [vmem:[%s1 + $0xc] sm:$0xf]
  %v29 = vld [vmem:[%s1 + $0x10] sm:$0xf]
  %v30 = vld [vmem:[%s1 + $0x14] sm:$0xf]
  %v31 = vld [vmem:[%s1 + $0x18] sm:$0xf]
  %v32 = vld [vmem:[%s1 + $0x1c] sm:$0xf]
  %v33 = vld [vmem:[%s1 + $0x20] sm:$0xf]
  %v34 = vld [vmem:[%s1 + $0x24] sm:$0xf]
  %v35 = vld [vmem:[%s1 + $0x28] sm:$0xf]
  %v36 = vld [vmem:[%s1 + $0x2c] sm:$0xf]
  %v37 = vld [vmem:[%s1 + $0x30] sm:$0xf]
  %v38 = vld [vmem:[%s1 + $0x34] sm:$0xf]
  %v39 = vld [vmem:[%s1 + $0x38] sm:$0xf]
  %v40 = vld [vmem:[%s1 + $0x3c] sm:$0xf]
  %v41 = vld [vmem:[%s1 + $0x40] sm:$0xf]
  %v42 = vld [vmem:[%s1 + $0x44] sm:$0xf]
  %v43 = vld [vmem:[%s1 + $0x48] sm:$0xf]
  %v44 = vld [vmem:[%s1 + $0x4c] sm:$0xf]
  %v45 = vld [vmem:[%s1 + $0x50] sm:$0xf]
  %v46 = vld [vmem:[%s1 + $0x54] sm:$0xf]
  %v47 = vld [vmem:[%s1 + $0x58] sm:$0xf]
  %v48 = vld [vmem:[%s1 + $0x5c] sm:$0xf]
  %v49 = vld [vmem:[%s1 + $0x60] sm:$0xf]
  %v50 = vld [vmem:[%s1 + $0x64] sm:$0xf]
  %v51 = vld [vmem:[%s1 + $0x68] sm:$0xf]
  %v52 = vld [vmem:[%s1 + $0x6c] sm:$0xf]
  %v53 = vld [vmem:[%s1 + $0x70] sm:$0xf]
  %v54 = vld [vmem:[%s1 + $0x74] sm:$0xf]
  %v55 = vld [vmem:[%s1 + $0x78] sm:$0xf]
  %v56 = vld [vmem:[%s1 + $0x7c] sm:$0xf]
  %v57 = vld [vmem:[%s1 + $0x80] sm:$0xf]
  %v58 = vld [vmem:[%s1 + $0x84] sm:$0xf]
  %v59 = vld [vmem:[%s1 + $0x88] sm:$0xf]
  %v60 = vld [vmem:[%s1 + $0x8c] sm:$0xf]
  %v61 = vld [vmem:[%s1 + $0x90] sm:$0xf]
  %v62 = vld [vmem:[%s1 + $0x94] sm:$0xf]
  %v63 = vld [vmem:[%s1 + $0x98] sm:$0xf]
  %v64 = vld [vmem:[%s1 + $0x9c] sm:$0xf]
  %v65 = vld [vmem:[%s1 + $0xa0] sm:$0xf]
  %v66 = vld [vmem:[%s1 + $0xa4] sm:$0xf]
  %v67 = vld [vmem:[%s1 + $0xa8] sm:$0xf]
  %v68 = vld [vmem:[%s1 + $0xac] sm:$0xf]
  %v69 = vld [vmem:[%s1 + $0xb0] sm:$0xf]
  %v70 = vld [vmem:[%s1 + $0xb4] sm:$0xf]
  %v71 = vld [vmem:[%s1 + $0xb8] sm:$0xf]
  %v72 = vld [vmem:[%s1 + $0xbc] sm:$0xf]
  %v73 = vld [vmem:[%s1 + $0xc0] sm:$0xf]
  %v74 = vld [vmem:[%s1 + $0xc4] sm:$0xf]
  %v75 = vld [vmem:[%s1 + $0xc8] sm:$0xf]
  %v76 = vld [vmem:[%s1 + $0xcc] sm:$0xf]
  %v77 = vld [vmem:[%s1 + $0xd0] sm:$0xf]
  %v78 = vld [vmem:[%s1 + $0xd4] sm:$0xf]
  %v79 = vld [vmem:[%s1 + $0xd8] sm:$0xf]
  %v80 = vld [vmem:[%s1 + $0xdc] sm:$0xf]
  %v81 = vld [vmem:[%s1 + $0xe0] sm:$0xf]
  %v82 = vld [vmem:[%s1 + $0xe4] sm:$0xf]
  %v83 = vld [vmem:[%s1 + $0xe8] sm:$0xf]
  %v84 = vld [vmem:[%s1 + $0xec] sm:$0xf]
  %v85 = vld [vmem:[%s1 + $0xf0] sm:$0xf]
  %v86 = vld [vmem:[%s1 + $0xf4] sm:$0xf]
  %v87 = vld [vmem:[%s1 + $0xf8] sm:$0xf]
  %v88 = vld [vmem:[%s1 + $0xfc] sm:$0xf]
  %v89 = vld [vmem:[%s1 + $0x100] sm:$0xf]
  %v90 = vld [vmem:[%s1 + $0x104] sm:$0xf]
  %v91 = vld [vmem:[%s1 + $0x108] sm:$0xf]
  %v92 = vld [vmem:[%s1 + $0x10c] sm:$0xf]
  %v93 = vld [vmem:[%s1 + $0x110] sm:$0xf]
  %v94 = vld [vmem:[%s1 + $0x114] sm:$0xf]
  %v95 = vld [vmem:[%s1 + $0x118] sm:$0xf]
  %v96 = vld [vmem:[%s1 + $0x11c] sm:$0xf]
  %v97 = vld [vmem:[%s1 + $0x120] sm:$0xf]
  %v98 = vld [vmem:[%s1 + $0x124] sm:$0xf]
  %v99 = vld [vmem:[%s1 + $0x128] sm:$0xf]
  %v100 = vld [vmem:[%s1 + $0x12c] sm:$0xf]
  %v101 = vld [vmem:[%s1 + $0x130] sm:$0xf]
  %v102 = vld [vmem:[%s1 + $0x134] sm:$0xf]
  %v103 = vld [vmem:[%s1 + $0x138] sm:$0xf]
  %v104 = vld [vmem:[%s1 + $0x13c] sm:$0xf]
  %v105 = vld [vmem:[%s1 + $0x140] sm:$0xf]
  %v106 = vld [vmem:[%s1 + $0x144] sm:$0xf]
  %v107 = vld [vmem:[%s1 + $0x148] sm:$0xf]
  %v108 = vld [vmem:[%s1 + $0x14c] sm:$0xf]
  %v109 = vld [vmem:[%s1 + $0x150] sm:$0xf]
  %v110 = vld [vmem:[%s1 + $0x154] sm:$0xf]
  %v111 = vld [vmem:[%s1 + $0x158] sm:$0xf]
  %v112 = vld [vmem:[%s1 + $0x15c] sm:$0xf]
  %v113 = vld [vmem:[%s1 + $0x160] sm:$0xf]
  %v114 = vld [vmem:[%s1 + $0x164] sm:$0xf]
  %v115 = vld [vmem:[%s1 + $0x168] sm:$0xf]
  %v116 = vld [vmem:[%s1 + $0x16c] sm:$0xf]
  %v117 = vld [vmem:[%s1 + $0x170] sm:$0xf]
  %v118 = vld [vmem:[%s1 + $0x174] sm:$0xf]
  %v119 = vld [vmem:[%s1 + $0x178] sm:$0xf]
  %v120 = vld [vmem:[%s1 + $0x17c] sm:$0xf]
  %v121 = vld [vmem:[%s1 + $0x180] sm:$0xf]
  %v122 = vld [vmem:[%s1 + $0x184] sm:$0xf]
  %v123 = vld [vmem:[%s1 + $0x188] sm:$0xf]
  %v124 = vld [vmem:[%s1 + $0x18c] sm:$0xf]
  %v125 = vld [vmem:[%s1 + $0x190] sm:$0xf]
  %v126 = vld [vmem:[%s1 + $0x194] sm:$0xf]
  %v127 = vld [vmem:[%s1 + $0x198] sm:$0xf]
  %v128 = vld [vmem:[%s1 + $0x19c] sm:$0xf]
  %v129 = vld [vmem:[%s1 + $0x1a0] sm:$0xf]
  %v130 = vld [vmem:[%s1 + $0x1a4] sm:$0xf]
  %v131 = vld [vmem:[%s1 + $0x1a8] sm:$0xf]
  %v132 = vld [vmem:[%s1 + $0x1ac] sm:$0xf]
  %v133 = vld [vmem:[%s1 + $0x1b0] sm:$0xf]
  %v134 = vld [vmem:[%s1 + $0x1b4] sm:$0xf]
  %v135 = vld [vmem:[%s1 + $0x1b8] sm:$0xf]
  %v136 = vld [vmem:[%s1 + $0x1bc] sm:$0xf]
  %v137 = vld [vmem:[%s1 + $0x1c0] sm:$0xf]
  %v138 = vld [vmem:[%s1 + $0x1c4] sm:$0xf]
  %v139 = vld [vmem:[%s1 + $0x1c8] sm:$0xf]
  %v140 = vld [vmem:[%s1 + $0x1cc] sm:$0xf]
  %v141 = vld [vmem:[%s1 + $0x1d0] sm:$0xf]
  %v142 = vld [vmem:[%s1 + $0x1d4] sm:$0xf]
  %v143 = vld [vmem:[%s1 + $0x1d8] sm:$0xf]
  %v144 = vld [vmem:[%s1 + $0x1dc] sm:$0xf]
  %v145 = vld [vmem:[%s1 + $0x1e0] sm:$0xf]
  %v146 = vld [vmem:[%s1 + $0x1e4] sm:$0xf]
  %v147 = vld [vmem:[%s1 + $0x1e8] sm:$0xf]
  %v148 = vld [vmem:[%s1 + $0x1ec] sm:$0xf]
  %v149 = vld [vmem:[%s1 + $0x1f0] sm:$0xf]
  %v150 = vld [vmem:[%s1 + $0x1f4] sm:$0xf]
  %v151 = vld [vmem:[%s1 + $0x1f8] sm:$0xf]
  %v152 = vld [vmem:[%s1 + $0x1fc] sm:$0xf]
  %v153 = vld [vmem:[%s1 + $0x200] sm:$0xf]
  %v154 = vld [vmem:[%s1 + $0x204] sm:$0xf]
  %v155 = vld [vmem:[%s1 + $0x208] sm:$0xf]
  %v156 = vld [vmem:[%s1 + $0x20c] sm:$0xf]
  %v157 = vld [vmem:[%s1 + $0x210] sm:$0xf]
  %v158 = vld [vmem:[%s1 + $0x214] sm:$0xf]
  %v159 = vld [vmem:[%s1 + $0x218] sm:$0xf]
  %v160 = vld [vmem:[%s1 + $0x21c] sm:$0xf]
  %v161 = vld [vmem:[%s1 + $0x220] sm:$0xf]
  %v162 = vld [vmem:[%s1 + $0x224] sm:$0xf]
  %v163 = vld [vmem:[%s1 + $0x228] sm:$0xf]
  %v164 = vld [vmem:[%s1 + $0x22c] sm:$0xf]
  %v165 = vld [vmem:[%s1 + $0x230] sm:$0xf]
  %v166 = vld [vmem:[%s1 + $0x234] sm:$0xf]
  %v167 = vld [vmem:[%s1 + $0x238] sm:$0xf]
  %v168 = vld [vmem:[%s1 + $0x23c] sm:$0xf]
  %v169 = vld [vmem:[%s2] sm:$0x1]
  %v171 = vlaneseq
  %v172 = vshrl.u32 %v171, 7
  %v173 = vsub.s32 0, %v172
  %v174 = vrot.slane %v169, %v173
  %v186 = vunpack.c.l.b16 %v15
  %v187 = vunpack.c.h.b16 %v15
  %v188 = vunpack.c.l.b16 %v16
  %v189 = vunpack.c.h.b16 %v16
  %v190 = vunpack.c.l.b16 %v17
  %v191 = vunpack.c.h.b16 %v17
  %v192 = vunpack.c.l.b16 %v18
  %v193 = vunpack.c.h.b16 %v18
  %v194 = vunpack.c.l.b16 %v19
  %v195 = vunpack.c.l.b16 %v20
  %v196 = vunpack.c.h.b16 %v20
  %v197 = vunpack.c.l.b16 %v21
  %v198 = vunpack.c.h.b16 %v21
  %v199 = vunpack.c.l.b16 %v22
  %v200 = vunpack.c.h.b16 %v22
  %v201 = vunpack.c.l.b16 %v23
  %v202 = vunpack.c.h.b16 %v23
  %v203 = vunpack.c.l.b16 %v24
  %v204 = vpack.c.b16 %v195, %v186
  %v205 = vpack.c.b16 %v196, %v187
  %v206 = vpack.c.b16 %v197, %v188
  %v207 = vpack.c.b16 %v198, %v189
  %v208 = vpack.c.b16 %v199, %v190
  %v209 = vpack.c.b16 %v200, %v191
  %v210 = vpack.c.b16 %v201, %v192
  %v211 = vpack.c.b16 %v202, %v193
  %v212 = vpack.c.b16 %v203, %v194
  %v366 = vunpack.c.l.b16 %v25
  %v367 = vunpack.c.l.b16 %v26
  %v368 = vunpack.c.l.b16 %v27
  %v369 = vunpack.c.l.b16 %v28
  %v370 = vunpack.c.l.b16 %v29
  %v371 = vunpack.c.l.b16 %v30
  %v372 = vunpack.c.l.b16 %v31
  %v373 = vunpack.c.l.b16 %v32
  %v374 = vunpack.c.l.b16 %v33
  %v375 = vunpack.c.l.b16 %v34
  %v376 = vunpack.c.l.b16 %v35
  %v377 = vunpack.c.l.b16 %v36
  %v378 = vunpack.c.l.b16 %v37
  %v379 = vunpack.c.l.b16 %v38
  %v380 = vunpack.c.l.b16 %v39
  %v381 = vunpack.c.l.b16 %v40
  %v382 = vunpack.c.l.b16 %v41
  %v383 = vunpack.c.l.b16 %v42
  %v384 = vunpack.c.l.b16 %v43
  %v385 = vunpack.c.l.b16 %v44
  %v386 = vunpack.c.l.b16 %v45
  %v387 = vunpack.c.l.b16 %v46
  %v388 = vunpack.c.l.b16 %v47
  %v389 = vunpack.c.l.b16 %v48
  %v390 = vunpack.c.l.b16 %v49
  %v391 = vunpack.c.l.b16 %v50
  %v392 = vunpack.c.l.b16 %v51
  %v393 = vunpack.c.l.b16 %v52
  %v394 = vunpack.c.l.b16 %v53
  %v395 = vunpack.c.l.b16 %v54
  %v396 = vunpack.c.l.b16 %v55
  %v397 = vunpack.c.l.b16 %v56
  %v398 = vunpack.c.l.b16 %v57
  %v399 = vunpack.c.l.b16 %v58
  %v400 = vunpack.c.l.b16 %v59
  %v401 = vunpack.c.l.b16 %v60
  %v402 = vunpack.c.l.b16 %v61
  %v403 = vunpack.c.l.b16 %v62
  %v404 = vunpack.c.l.b16 %v63
  %v405 = vunpack.c.l.b16 %v64
  %v406 = vunpack.c.l.b16 %v65
  %v407 = vunpack.c.l.b16 %v66
  %v408 = vunpack.c.l.b16 %v67
  %v409 = vunpack.c.l.b16 %v68
  %v410 = vunpack.c.l.b16 %v69
  %v411 = vunpack.c.l.b16 %v70
  %v412 = vunpack.c.l.b16 %v71
  %v413 = vunpack.c.l.b16 %v72
  %v414 = vunpack.c.l.b16 %v73
  %v415 = vunpack.c.l.b16 %v74
  %v416 = vunpack.c.l.b16 %v75
  %v417 = vunpack.c.l.b16 %v76
  %v418 = vunpack.c.l.b16 %v77
  %v419 = vunpack.c.l.b16 %v78
  %v420 = vunpack.c.l.b16 %v79
  %v421 = vunpack.c.l.b16 %v80
  %v422 = vunpack.c.l.b16 %v81
  %v423 = vunpack.c.l.b16 %v82
  %v424 = vunpack.c.l.b16 %v83
  %v425 = vunpack.c.l.b16 %v84
  %v426 = vunpack.c.l.b16 %v85
  %v427 = vunpack.c.l.b16 %v86
  %v428 = vunpack.c.l.b16 %v87
  %v429 = vunpack.c.l.b16 %v88
  %v430 = vunpack.c.l.b16 %v89
  %v431 = vunpack.c.l.b16 %v90
  %v432 = vunpack.c.l.b16 %v91
  %v433 = vunpack.c.l.b16 %v92
  %v434 = vunpack.c.l.b16 %v93
  %v435 = vunpack.c.l.b16 %v94
  %v436 = vunpack.c.l.b16 %v95
  %v437 = vunpack.c.l.b16 %v96
  %v438 = vunpack.c.l.b16 %v97
  %v439 = vunpack.c.l.b16 %v98
  %v440 = vunpack.c.l.b16 %v99
  %v441 = vunpack.c.l.b16 %v100
  %v442 = vunpack.c.l.b16 %v101
  %v443 = vunpack.c.l.b16 %v102
  %v444 = vunpack.c.l.b16 %v103
  %v445 = vunpack.c.l.b16 %v104
  %v446 = vunpack.c.l.b16 %v105
  %v447 = vunpack.c.l.b16 %v106
  %v448 = vunpack.c.l.b16 %v107
  %v449 = vunpack.c.l.b16 %v108
  %v450 = vunpack.c.l.b16 %v109
  %v451 = vunpack.c.l.b16 %v110
  %v452 = vunpack.c.l.b16 %v111
  %v453 = vunpack.c.l.b16 %v112
  %v454 = vunpack.c.l.b16 %v113
  %v455 = vunpack.c.l.b16 %v114
  %v456 = vunpack.c.l.b16 %v115
  %v457 = vunpack.c.l.b16 %v116
  %v458 = vunpack.c.l.b16 %v117
  %v459 = vunpack.c.l.b16 %v118
  %v460 = vunpack.c.l.b16 %v119
  %v461 = vunpack.c.l.b16 %v120
  %v462 = vunpack.c.l.b16 %v121
  %v463 = vunpack.c.l.b16 %v122
  %v464 = vunpack.c.l.b16 %v123
  %v465 = vunpack.c.l.b16 %v124
  %v466 = vunpack.c.l.b16 %v125
  %v467 = vunpack.c.l.b16 %v126
  %v468 = vunpack.c.l.b16 %v127
  %v469 = vunpack.c.l.b16 %v128
  %v470 = vunpack.c.l.b16 %v129
  %v471 = vunpack.c.l.b16 %v130
  %v472 = vunpack.c.l.b16 %v131
  %v473 = vunpack.c.l.b16 %v132
  %v474 = vunpack.c.l.b16 %v133
  %v475 = vunpack.c.l.b16 %v134
  %v476 = vunpack.c.l.b16 %v135
  %v477 = vunpack.c.l.b16 %v136
  %v478 = vunpack.c.l.b16 %v137
  %v479 = vunpack.c.l.b16 %v138
  %v480 = vunpack.c.l.b16 %v139
  %v481 = vunpack.c.l.b16 %v140
  %v482 = vunpack.c.l.b16 %v141
  %v483 = vunpack.c.l.b16 %v142
  %v484 = vunpack.c.l.b16 %v143
  %v485 = vunpack.c.l.b16 %v144
  %v486 = vunpack.c.l.b16 %v145
  %v487 = vunpack.c.l.b16 %v146
  %v488 = vunpack.c.l.b16 %v147
  %v489 = vunpack.c.l.b16 %v148
  %v490 = vunpack.c.l.b16 %v149
  %v491 = vunpack.c.l.b16 %v150
  %v492 = vunpack.c.l.b16 %v151
  %v493 = vunpack.c.l.b16 %v152
  %v494 = vunpack.c.l.b16 %v153
  %v495 = vunpack.c.l.b16 %v154
  %v496 = vunpack.c.l.b16 %v155
  %v497 = vunpack.c.l.b16 %v156
  %v498 = vunpack.c.l.b16 %v157
  %v499 = vunpack.c.l.b16 %v158
  %v500 = vunpack.c.l.b16 %v159
  %v501 = vunpack.c.l.b16 %v160
  %v502 = vunpack.c.l.b16 %v161
  %v503 = vunpack.c.l.b16 %v162
  %v504 = vunpack.c.l.b16 %v163
  %v505 = vunpack.c.l.b16 %v164
  %v506 = vunpack.c.l.b16 %v165
  %v507 = vunpack.c.l.b16 %v166
  %v508 = vunpack.c.l.b16 %v167
  %v509 = vunpack.c.l.b16 %v168
  %v510 = vpack.c.b16 %v367, %v366
  %v511 = vpack.c.b16 %v369, %v368
  %v512 = vpack.c.b16 %v371, %v370
  %v513 = vpack.c.b16 %v373, %v372
  %v514 = vpack.c.b16 %v375, %v374
  %v515 = vpack.c.b16 %v377, %v376
  %v516 = vpack.c.b16 %v379, %v378
  %v517 = vpack.c.b16 %v381, %v380
  %v518 = vpack.c.b16 %v383, %v382
  %v519 = vpack.c.b16 %v385, %v384
  %v520 = vpack.c.b16 %v387, %v386
  %v521 = vpack.c.b16 %v389, %v388
  %v522 = vpack.c.b16 %v391, %v390
  %v523 = vpack.c.b16 %v393, %v392
  %v524 = vpack.c.b16 %v395, %v394
  %v525 = vpack.c.b16 %v397, %v396
  %v526 = vpack.c.b16 %v399, %v398
  %v527 = vpack.c.b16 %v401, %v400
  %v528 = vpack.c.b16 %v403, %v402
  %v529 = vpack.c.b16 %v405, %v404
  %v530 = vpack.c.b16 %v407, %v406
  %v531 = vpack.c.b16 %v409, %v408
  %v532 = vpack.c.b16 %v411, %v410
  %v533 = vpack.c.b16 %v413, %v412
  %v534 = vpack.c.b16 %v415, %v414
  %v535 = vpack.c.b16 %v417, %v416
  %v536 = vpack.c.b16 %v419, %v418
  %v537 = vpack.c.b16 %v421, %v420
  %v538 = vpack.c.b16 %v423, %v422
  %v539 = vpack.c.b16 %v425, %v424
  %v540 = vpack.c.b16 %v427, %v426
  %v541 = vpack.c.b16 %v429, %v428
  %v542 = vpack.c.b16 %v431, %v430
  %v543 = vpack.c.b16 %v433, %v432
  %v544 = vpack.c.b16 %v435, %v434
  %v545 = vpack.c.b16 %v437, %v436
  %v546 = vpack.c.b16 %v439, %v438
  %v547 = vpack.c.b16 %v441, %v440
  %v548 = vpack.c.b16 %v443, %v442
  %v549 = vpack.c.b16 %v445, %v444
  %v550 = vpack.c.b16 %v447, %v446
  %v551 = vpack.c.b16 %v449, %v448
  %v552 = vpack.c.b16 %v451, %v450
  %v553 = vpack.c.b16 %v453, %v452
  %v554 = vpack.c.b16 %v455, %v454
  %v555 = vpack.c.b16 %v457, %v456
  %v556 = vpack.c.b16 %v459, %v458
  %v557 = vpack.c.b16 %v461, %v460
  %v558 = vpack.c.b16 %v463, %v462
  %v559 = vpack.c.b16 %v465, %v464
  %v560 = vpack.c.b16 %v467, %v466
  %v561 = vpack.c.b16 %v469, %v468
  %v562 = vpack.c.b16 %v471, %v470
  %v563 = vpack.c.b16 %v473, %v472
  %v564 = vpack.c.b16 %v475, %v474
  %v565 = vpack.c.b16 %v477, %v476
  %v566 = vpack.c.b16 %v479, %v478
  %v567 = vpack.c.b16 %v481, %v480
  %v568 = vpack.c.b16 %v483, %v482
  %v569 = vpack.c.b16 %v485, %v484
  %v570 = vpack.c.b16 %v487, %v486
  %v571 = vpack.c.b16 %v489, %v488
  %v572 = vpack.c.b16 %v491, %v490
  %v573 = vpack.c.b16 %v493, %v492
  %v574 = vpack.c.b16 %v495, %v494
  %v575 = vpack.c.b16 %v497, %v496
  %v576 = vpack.c.b16 %v499, %v498
  %v577 = vpack.c.b16 %v501, %v500
  %v578 = vpack.c.b16 %v503, %v502
  %v579 = vpack.c.b16 %v505, %v504
  %v580 = vpack.c.b16 %v507, %v506
  %v581 = vpack.c.b16 %v509, %v508
  %654 = vmatprep.subr.bf16.mxu0 0
  %655 = vmatpush1.bf16.msra.mxu0 %v510
  %656 = vmatprep.subr.bf16.mxu0 0
  %657 = vmatpush1.bf16.msra.mxu0 %v511
  %658 = vmatprep.subr.bf16.mxu0 0
  %659 = vmatpush1.bf16.msra.mxu0 %v512
  %660 = vmatprep.subr.bf16.mxu0 0
  %661 = vmatpush1.bf16.msra.mxu0 %v513
  %662 = vmatprep.subr.bf16.mxu0 0
  %663 = vmatpush1.bf16.msra.mxu0 %v514
  %664 = vmatprep.subr.bf16.mxu0 0
  %665 = vmatpush1.bf16.msra.mxu0 %v515
  %666 = vmatprep.subr.bf16.mxu0 0
  %667 = vmatpush1.bf16.msra.mxu0 %v516
  %668 = vmatprep.subr.bf16.mxu0 0
  %669 = vmatpush1.bf16.msra.mxu0 %v517
  %670 = vmatprep.subr.bf16.mxu0 0
  %671 = vmatpush1.bf16.msra.mxu0 %v518
  %672 = vmatprep.subr.bf16.mxu0 0
  %673 = vmatpush1.bf16.msra.mxu0 %v519
  %674 = vmatprep.subr.bf16.mxu0 0
  %675 = vmatpush1.bf16.msra.mxu0 %v520
  %676 = vmatprep.subr.bf16.mxu0 0
  %677 = vmatpush1.bf16.msra.mxu0 %v521
  %678 = vmatprep.subr.bf16.mxu0 0
  %679 = vmatpush1.bf16.msra.mxu0 %v522
  %680 = vmatprep.subr.bf16.mxu0 0
  %681 = vmatpush1.bf16.msra.mxu0 %v523
  %682 = vmatprep.subr.bf16.mxu0 0
  %683 = vmatpush1.bf16.msra.mxu0 %v524
  %684 = vmatprep.subr.bf16.mxu0 0
  %685 = vmatpush1.bf16.msra.mxu0 %v525
  %686 = vmatprep.mubr.bf16.mxu0 %v205
  %687 = vmatmul.mubr.bf16.gmra.mrb[0].mxu0 %v204
  %v688 = vpop.f32.mrb[0].mxu0
  %v689 = vadd.f32 %v174, %v688
  %v690 = vpop.f32.mrb[0].mxu0
  %v691 = vpop.f32.mrb[0].mxu0
  %v692 = vadd.f32 %v174, %v691
  %v693 = vpop.f32.mrb[0].mxu0
  %694 = vdwg.mxu0
  %695 = vmatprep.subr.bf16.mxu0 0
  %696 = vmatpush1.bf16.msra.mxu0 %v526
  %697 = vmatprep.subr.bf16.mxu0 0
  %698 = vmatpush1.bf16.msra.mxu0 %v527
  %699 = vmatprep.subr.bf16.mxu0 0
  %700 = vmatpush1.bf16.msra.mxu0 %v528
  %701 = vmatprep.subr.bf16.mxu0 0
  %702 = vmatpush1.bf16.msra.mxu0 %v529
  %703 = vmatprep.subr.bf16.mxu0 0
  %704 = vmatpush1.bf16.msra.mxu0 %v530
  %705 = vmatprep.subr.bf16.mxu0 0
  %706 = vmatpush1.bf16.msra.mxu0 %v531
  %707 = vmatprep.subr.bf16.mxu0 0
  %708 = vmatpush1.bf16.msra.mxu0 %v532
  %709 = vmatprep.subr.bf16.mxu0 0
  %710 = vmatpush1.bf16.msra.mxu0 %v533
  %711 = vmatprep.subr.bf16.mxu0 0
  %712 = vmatpush1.bf16.msra.mxu0 %v534
  %713 = vmatprep.subr.bf16.mxu0 0
  %714 = vmatpush1.bf16.msra.mxu0 %v535
  %715 = vmatprep.subr.bf16.mxu0 0
  %716 = vmatpush1.bf16.msra.mxu0 %v536
  %717 = vmatprep.subr.bf16.mxu0 0
  %718 = vmatpush1.bf16.msra.mxu0 %v537
  %719 = vmatprep.subr.bf16.mxu0 0
  %720 = vmatpush1.bf16.msra.mxu0 %v538
  %721 = vmatprep.subr.bf16.mxu0 0
  %722 = vmatpush1.bf16.msra.mxu0 %v539
  %723 = vmatprep.subr.bf16.mxu0 0
  %724 = vmatpush1.bf16.msra.mxu0 %v540
  %725 = vmatprep.subr.bf16.mxu0 0
  %726 = vmatpush1.bf16.msra.mxu0 %v541
  %727 = vmatprep.mubr.bf16.mxu0 %v207
  %728 = vmatmul.mubr.bf16.gmra.mrb[0].mxu0 %v206
  %v729 = vpop.f32.mrb[0].mxu0
  %v730 = vadd.f32 %v689, %v729
  %v731 = vpop.f32.mrb[0].mxu0
  %v732 = vpop.f32.mrb[0].mxu0
  %v733 = vadd.f32 %v692, %v732
  %v734 = vpop.f32.mrb[0].mxu0
  %735 = vdwg.mxu0
  %736 = vmatprep.subr.bf16.mxu0 0
  %737 = vmatpush1.bf16.msra.mxu0 %v542
  %738 = vmatprep.subr.bf16.mxu0 0
  %739 = vmatpush1.bf16.msra.mxu0 %v543
  %740 = vmatprep.subr.bf16.mxu0 0
  %741 = vmatpush1.bf16.msra.mxu0 %v544
  %742 = vmatprep.subr.bf16.mxu0 0
  %743 = vmatpush1.bf16.msra.mxu0 %v545
  %744 = vmatprep.subr.bf16.mxu0 0
  %745 = vmatpush1.bf16.msra.mxu0 %v546
  %746 = vmatprep.subr.bf16.mxu0 0
  %747 = vmatpush1.bf16.msra.mxu0 %v547
  %748 = vmatprep.subr.bf16.mxu0 0
  %749 = vmatpush1.bf16.msra.mxu0 %v548
  %750 = vmatprep.subr.bf16.mxu0 0
  %751 = vmatpush1.bf16.msra.mxu0 %v549
  %752 = vmatprep.subr.bf16.mxu0 0
  %753 = vmatpush1.bf16.msra.mxu0 %v550
  %754 = vmatprep.subr.bf16.mxu0 0
  %755 = vmatpush1.bf16.msra.mxu0 %v551
  %756 = vmatprep.subr.bf16.mxu0 0
  %757 = vmatpush1.bf16.msra.mxu0 %v552
  %758 = vmatprep.subr.bf16.mxu0 0
  %759 = vmatpush1.bf16.msra.mxu0 %v553
  %760 = vmatprep.subr.bf16.mxu0 0
  %761 = vmatpush1.bf16.msra.mxu0 %v554
  %762 = vmatprep.subr.bf16.mxu0 0
  %763 = vmatpush1.bf16.msra.mxu0 %v555
  %764 = vmatprep.subr.bf16.mxu0 0
  %765 = vmatpush1.bf16.msra.mxu0 %v556
  %766 = vmatprep.subr.bf16.mxu0 0
  %767 = vmatpush1.bf16.msra.mxu0 %v557
  %768 = vmatprep.mubr.bf16.mxu0 %v209
  %769 = vmatmul.mubr.bf16.gmra.mrb[0].mxu0 %v208
  %v770 = vpop.f32.mrb[0].mxu0
  %v771 = vadd.f32 %v730, %v770
  %v772 = vpop.f32.mrb[0].mxu0
  %v773 = vpop.f32.mrb[0].mxu0
  %v774 = vadd.f32 %v733, %v773
  %v775 = vpop.f32.mrb[0].mxu0
  %776 = vdwg.mxu0
  %777 = vmatprep.subr.bf16.mxu0 0
  %778 = vmatpush1.bf16.msra.mxu0 %v558
  %779 = vmatprep.subr.bf16.mxu0 0
  %780 = vmatpush1.bf16.msra.mxu0 %v559
  %781 = vmatprep.subr.bf16.mxu0 0
  %782 = vmatpush1.bf16.msra.mxu0 %v560
  %783 = vmatprep.subr.bf16.mxu0 0
  %784 = vmatpush1.bf16.msra.mxu0 %v561
  %785 = vmatprep.subr.bf16.mxu0 0
  %786 = vmatpush1.bf16.msra.mxu0 %v562
  %787 = vmatprep.subr.bf16.mxu0 0
  %788 = vmatpush1.bf16.msra.mxu0 %v563
  %789 = vmatprep.subr.bf16.mxu0 0
  %790 = vmatpush1.bf16.msra.mxu0 %v564
  %791 = vmatprep.subr.bf16.mxu0 0
  %792 = vmatpush1.bf16.msra.mxu0 %v565
  %793 = vmatprep.subr.bf16.mxu0 0
  %794 = vmatpush1.bf16.msra.mxu0 %v566
  %795 = vmatprep.subr.bf16.mxu0 0
  %796 = vmatpush1.bf16.msra.mxu0 %v567
  %797 = vmatprep.subr.bf16.mxu0 0
  %798 = vmatpush1.bf16.msra.mxu0 %v568
  %799 = vmatprep.subr.bf16.mxu0 0
  %800 = vmatpush1.bf16.msra.mxu0 %v569
  %801 = vmatprep.subr.bf16.mxu0 0
  %802 = vmatpush1.bf16.msra.mxu0 %v570
  %803 = vmatprep.subr.bf16.mxu0 0
  %804 = vmatpush1.bf16.msra.mxu0 %v571
  %805 = vmatprep.subr.bf16.mxu0 0
  %806 = vmatpush1.bf16.msra.mxu0 %v572
  %807 = vmatprep.subr.bf16.mxu0 0
  %808 = vmatpush1.bf16.msra.mxu0 %v573
  %809 = vmatprep.mubr.bf16.mxu0 %v211
  %810 = vmatmul.mubr.bf16.gmra.mrb[0].mxu0 %v210
  %v811 = vpop.f32.mrb[0].mxu0
  %v812 = vadd.f32 %v771, %v811
  %v813 = vpop.f32.mrb[0].mxu0
  %v814 = vpop.f32.mrb[0].mxu0
  %v815 = vadd.f32 %v774, %v814
  %v816 = vpop.f32.mrb[0].mxu0
  %817 = vdwg.mxu0
  %818 = vmatprep.subr.bf16.mxu0 0
  %819 = vmatpush1.bf16.msra.mxu0 %v574
  %820 = vmatprep.subr.bf16.mxu0 0
  %821 = vmatpush1.bf16.msra.mxu0 %v575
  %822 = vmatprep.subr.bf16.mxu0 0
  %823 = vmatpush1.bf16.msra.mxu0 %v576
  %824 = vmatprep.subr.bf16.mxu0 0
  %825 = vmatpush1.bf16.msra.mxu0 %v577
  %826 = vmatprep.subr.bf16.mxu0 0
  %827 = vmatpush1.bf16.msra.mxu0 %v578
  %828 = vmatprep.subr.bf16.mxu0 0
  %829 = vmatpush1.bf16.msra.mxu0 %v579
  %830 = vmatprep.subr.bf16.mxu0 0
  %831 = vmatpush1.bf16.msra.mxu0 %v580
  %832 = vmatprep.subr.bf16.mxu0 0
  %833 = vmatpush1.bf16.msra.mxu0 %v581
  %834 = vmatprep.subr.bf16.mxu0 0
  %835 = vmatpush1.bf16.msra.mxu0 0
  %836 = vmatprep.subr.bf16.mxu0 0
  %837 = vmatpush1.bf16.msra.mxu0 0
  %838 = vmatprep.subr.bf16.mxu0 0
  %839 = vmatpush1.bf16.msra.mxu0 0
  %840 = vmatprep.subr.bf16.mxu0 0
  %841 = vmatpush1.bf16.msra.mxu0 0
  %842 = vmatprep.subr.bf16.mxu0 0
  %843 = vmatpush1.bf16.msra.mxu0 0
  %844 = vmatprep.subr.bf16.mxu0 0
  %845 = vmatpush1.bf16.msra.mxu0 0
  %846 = vmatprep.subr.bf16.mxu0 0
  %847 = vmatpush1.bf16.msra.mxu0 0
  %848 = vmatprep.subr.bf16.mxu0 0
  %849 = vmatpush1.bf16.msra.mxu0 0
  %850 = vmatprep.mubr.bf16.mxu0 0
  %851 = vmatmul.mubr.bf16.gmra.mrb[0].mxu0 %v212
  %v852 = vpop.f32.mrb[0].mxu0
  %v853 = vadd.f32 %v812, %v852
  %v854 = vpop.f32.mrb[0].mxu0
  %v855 = vpop.f32.mrb[0].mxu0
  %v856 = vadd.f32 %v815, %v855
  %v857 = vpop.f32.mrb[0].mxu0
  %858 = vdwg.mxu0
  %vm859 = vcmp.ge.f32.partialorder %v853, 0.0
  %vm860 = vcmp.ge.f32.partialorder %v856, 0.0
  %v861 = vmul.f32 %v853, 0.2
  %v862 = vmul.f32 %v856, 0.2
  %v863 = vsel %vm859, %v853, %v861
  %v864 = vsel %vm860, %v856, %v862
  %865 = vst [vmem:[%s3] sm:$0xff] %v863
  %866 = vst [vmem:[%s3 + $0x8] sm:$0xff] %v864
  // Predicated region
  $region14: #{_lambda_.93} parent=0 // pred_check
    _
  $region15: #{_lambda_.93} parent=0 // pred_check_branch
    %868 = sbr.rel (0) target = $region17
  $region16: #{_lambda_.93} parent=0 // pred_region
    _
  $region17: #{_lambda_.93} parent=0 // pred_fallthru
    _
  // Predicated region
  $region18: #{_lambda_.93} parent=0 // pred_check
    _
  $region19: #{_lambda_.93} parent=0 // pred_check_branch
    %870 = sbr.rel (0) target = $region21
  $region20: #{_lambda_.93} parent=0 // pred_region
    _
  $region21: #{_lambda_.93} parent=0 // pred_fallthru
    _

// kernel: _lambda_.109
$region0: #{_lambda_.109}
  #allocation0 [shape = 'u32[]', space=smem, size = 0x4, offset = 0x4, fixed_abs, tag = 'smem constant byte address 0x4 - core index']
  #allocation1 [shape = 'u32[144,128]{1,0:T(1,128)}', space=vmem, size = 0x12000, scoped, tag = 'internal scratch']
  %s0 = inlined_call_operand.vmem [shape: bf16[16,512], index: 0, kind: input, shape index: {}]
  %s1 = inlined_call_operand.vmem [shape: bf16[512,1024], index: 1, kind: input, shape index: {}]
  %s2 = inlined_call_operand.vmem [shape: f32[1,1024], index: 2, kind: input, shape index: {}]
  %s3 = inlined_call_operand.vmem [shape: f32[16,1024], index: 3, kind: output, shape index: {}]
  %s4 = sld [smem:[#allocation0]]
  $region102: #{_lambda_.109} parent=0
    _
  %s6 = ssub.s32 1, %s4
  %s7 = scalar_select 0, %s6, %s4
  $region1: #{_lambda_.109} parent=0
    #allocation2 [shape = 'u8[524288]{0}', space=vmem, size = 0x80000, scoped, tag = 'input window, operand 1']
    #allocation3 [shape = 'u8[32768]{0}', space=vmem, size = 0x8000, scoped, tag = 'output window, operand 0']
    loop: start=0, step=1, limit=6
    $region2: #{_lambda_.109} parent=1 // loop_pre_header
      _
    $region3: #{_lambda_.109} parent=1 // loop_header
      %s9 = sphi 0, %s13
      %p10 = scmp.ge.s32.totalorder %s9, 6
      %s16 = sphi 0, %s28
      %s17 = sphi 0, %s24
      %s18 = sphi 0, %s16
      %s19 = sphi 0, %s17
      %s20 = sphi 0, %s18
      %s21 = sphi 0, %s19
      %s31 = sphi 0, %s33
      %s34 = sphi 0, %s31
      %s35 = sphi 0, %s34
      %s51 = sphi 0, %s35
      %s57 = sphi 0, %s59
      %s60 = sphi 0, %s57
      %s61 = sphi 0, %s60
      %s77 = sphi 0, %s61
      %s83 = sphi 0, %s85
      %s86 = sphi 0, %s83
      %s87 = sphi 0, %s86
      %s103 = sphi 0, %s87
      %s111 = sphi 0, %s113
      %s114 = sphi 0, %s111
      %s115 = sphi 0, %s114
      %s131 = sphi 0, %s115
    $region4: #{_lambda_.109} parent=1 // loop_header_branch
      %12 = sbr.rel (%p10) target = $region8
    $region5: #{_lambda_.109} parent=1 // loop_body
      %s14 = ssub.s32 %s9, 1
      %s15 = ssub.s32 %s9, 2
      %s22 = sadd.s32 1, %s17
      %p23 = scmp.ge.s32.totalorder %s22, 4
      %s24 = scalar_select %p23, 0, %s22
      %s25 = sadd.s32 1, %s16
      %s26 = scalar_select %p23, %s25, %s16
      %p27 = scmp.ge.s32.totalorder %s26, 1
      %s28 = scalar_select %p27, 0, %s26
      %s29 = ssub.s32 %s16, %s28
      %p30 = scmp.eq.s32.totalorder %s29, 0
      %s32 = sadd.s32 %s31, 1
      %s33 = scalar_select %p30, %s31, %s32
      %p36 = pneg %p30
      %p37 = scmp.eq.s32.totalorder %s9, 3
      %p38 = por %p36, %p37
      %p39 = scmp.ne.s32.totalorder %s31, %s34
      %p40 = scmp.eq.s32.totalorder %s9, 0
      %p41 = por %p39, %p40
      %p42 = scmp.ne.s32.totalorder %s31, %s34
      %p43 = scmp.eq.s32.totalorder %s14, 3
      %p44 = por %p42, %p43
      %p45 = scmp.ne.s32.totalorder %s34, %s35
      %p46 = scmp.eq.s32.totalorder %s14, 0
      %p47 = por %p45, %p46
      %p48 = scmp.ne.s32.totalorder %s34, %s35
      %p49 = scmp.eq.s32.totalorder %s15, 3
      %p50 = por %p48, %p49
      %p52 = scmp.ne.s32.totalorder %s35, %s51
      %p53 = scmp.eq.s32.totalorder %s15, 0
      %p54 = por %p52, %p53
      %s55 = ssub.s32 %s17, %s24
      %p56 = scmp.eq.s32.totalorder %s55, 0
      %s58 = sadd.s32 %s57, 1
      %s59 = scalar_select %p56, %s57, %s58
      %p62 = pneg %p56
      %p63 = scmp.eq.s32.totalorder %s9, 3
      %p64 = por %p62, %p63
      %p65 = scmp.ne.s32.totalorder %s57, %s60
      %p66 = scmp.eq.s32.totalorder %s9, 0
      %p67 = por %p65, %p66
      %p68 = scmp.ne.s32.totalorder %s57, %s60
      %p69 = scmp.eq.s32.totalorder %s14, 3
      %p70 = por %p68, %p69
      %p71 = scmp.ne.s32.totalorder %s60, %s61
      %p72 = scmp.eq.s32.totalorder %s14, 0
      %p73 = por %p71, %p72
      %p74 = scmp.ne.s32.totalorder %s60, %s61
      %p75 = scmp.eq.s32.totalorder %s15, 3
      %p76 = por %p74, %p75
      %p78 = scmp.ne.s32.totalorder %s61, %s77
      %p79 = scmp.eq.s32.totalorder %s15, 0
      %p80 = por %p78, %p79
      %s81 = ssub.s32 %s17, %s24
      %p82 = scmp.eq.s32.totalorder %s81, 0
      %s84 = sadd.s32 %s83, 1
      %s85 = scalar_select %p82, %s83, %s84
      %p88 = pneg %p82
      %p89 = scmp.eq.s32.totalorder %s9, 3
      %p90 = por %p88, %p89
      %p91 = scmp.ne.s32.totalorder %s83, %s86
      %p92 = scmp.eq.s32.totalorder %s9, 0
      %p93 = por %p91, %p92
      %p94 = scmp.ne.s32.totalorder %s83, %s86
      %p95 = scmp.eq.s32.totalorder %s14, 3
      %p96 = por %p94, %p95
      %p97 = scmp.ne.s32.totalorder %s86, %s87
      %p98 = scmp.eq.s32.totalorder %s14, 0
      %p99 = por %p97, %p98
      %p100 = scmp.ne.s32.totalorder %s86, %s87
      %p101 = scmp.eq.s32.totalorder %s15, 3
      %p102 = por %p100, %p101
      %p104 = scmp.ne.s32.totalorder %s87, %s103
      %p105 = scmp.eq.s32.totalorder %s15, 0
      %p106 = por %p104, %p105
      %s107 = ssub.s32 %s16, %s28
      %s108 = ssub.s32 %s17, %s24
      %s109 = sor.u32 %s107, %s108
      %p110 = scmp.eq.s32.totalorder %s109, 0
      %s112 = sadd.s32 %s111, 1
      %s113 = scalar_select %p110, %s111, %s112
      %p116 = pneg %p110
      %p117 = scmp.eq.s32.totalorder %s9, 3
      %p118 = por %p116, %p117
      %p119 = scmp.ne.s32.totalorder %s111, %s114
      %p120 = scmp.eq.s32.totalorder %s9, 0
      %p121 = por %p119, %p120
      %p122 = scmp.ne.s32.totalorder %s111, %s114
      %p123 = scmp.eq.s32.totalorder %s14, 3
      %p124 = por %p122, %p123
      %p125 = scmp.ne.s32.totalorder %s114, %s115
      %p126 = scmp.eq.s32.totalorder %s14, 0
      %p127 = por %p125, %p126
      %p128 = scmp.ne.s32.totalorder %s114, %s115
      %p129 = scmp.eq.s32.totalorder %s15, 3
      %p130 = por %p128, %p129
      %p132 = scmp.ne.s32.totalorder %s115, %s131
      %p133 = scmp.eq.s32.totalorder %s15, 0
      %p134 = por %p132, %p133
      %p135 = scmp.le.s32.totalorder 1, %s9
      %p136 = scmp.lt.s32.totalorder %s9, 5
      %p137 = pnand %p135, %p136
      %p138 = pneg %p137
      // Predicated region
      $region9: #{_lambda_.109} parent=5 // pred_check
        _
      $region10: #{_lambda_.109} parent=5 // pred_check_branch
        %140 = sbr.rel (%p137) target = $region12
      $region11: #{_lambda_.109} parent=5 // pred_region
        %s141 = ssub.s32 %s9, 1
        // Predicated region
        $region13: #{_lambda_.109} parent=11 // pred_check
          %p142 = pneg %p47
        $region14: #{_lambda_.109} parent=11 // pred_check_branch
          %144 = sbr.rel (%p142) target = $region16
        $region15: #{_lambda_.109} parent=11 // pred_region
          %s145 = smul.u32 2, %s18
          %p146 = scmp.lt.s32.totalorder %s145, 1
          %s147 = scalar_select %p146, %s145, 1
          %s148 = smul.addr %s147, 4
          %s149 = smul.addr %s148, 4
          %s150 = scalar_lea.vmem %s0, %s149
          %s151 = smul.u32 2, %s18
        $region16: #{_lambda_.109} parent=11 // pred_fallthru
          _
      $region12: #{_lambda_.109} parent=5 // pred_fallthru
        _
      %p152 = scmp.lt.s32.totalorder %s9, 4
      // Predicated region
      $region17: #{_lambda_.109} parent=5 // pred_check
        %p153 = pneg %p152
      $region18: #{_lambda_.109} parent=5 // pred_check_branch
        %155 = sbr.rel (%p153) target = $region20
      $region19: #{_lambda_.109} parent=5 // pred_region
        // Predicated region
        $region21: #{_lambda_.109} parent=19 // pred_check
          %p156 = pneg %p67
        $region22: #{_lambda_.109} parent=19 // pred_check_branch
          %158 = sbr.rel (%p156) target = $region24
        $region23: #{_lambda_.109} parent=19 // pred_region
          %s159 = sand.u32 %s57, 1
          %s160 = sand.u32 %s57, 1
          %s161 = smul.addr %s160, 512
          %s162 = scalar_lea.vmem [#allocation2], %s161
          %s163 = smul.u32 2, %s17
          %s164 = smul.addr %s163, 4
          %s165 = scalar_lea.vmem %s1, %s164
          // Predicated region
          $region25: #{_lambda_.109} parent=23 // pred_check
            _
          $region26: #{_lambda_.109} parent=23 // pred_check_branch
            %167 = sbr.rel (0) target = $region28
          $region27: #{_lambda_.109} parent=23 // pred_region
            // Predicated region
            $region29: #{_lambda_.109} parent=27 // pred_check
              _
            $region30: #{_lambda_.109} parent=27 // pred_check_branch
              %169 = sbr.rel (0) target = $region32
            $region31: #{_lambda_.109} parent=27 // pred_region
              // Predicated region
              $region44: #{_lambda_.109} parent=31 // pred_check
                _
              $region45: #{_lambda_.109} parent=31 // pred_check_branch
                %310 = sbr.rel (0) target = $region47
              $region46: #{_lambda_.109} parent=31 // pred_region
                loop: start=0, step=1, limit=1
                $region48: #{_lambda_.109} parent=46 // loop_pre_header
                  _
                $region49: #{_lambda_.109} parent=46 // loop_header
                  %s312 = sphi 0, %s316
                  %p313 = scmp.ge.s32.totalorder %s312, 1
                  %s317 = sphi %s165, %s165
                  %s318 = sphi %s162, %s162
                $region50: #{_lambda_.109} parent=46 // loop_header_branch
                  %315 = sbr.rel (%p313) target = $region54
                $region51: #{_lambda_.109} parent=46 // loop_body
                  %v319 = vld [vmem:[%s317] sm:$0xff]
                  %320 = vst [vmem:[%s318] sm:$0xff] %v319
                  %v321 = vld [vmem:[%s317 + $0x20] sm:$0xff]
                  %322 = vst [vmem:[%s318 + $0x8] sm:$0xff] %v321
                  %v323 = vld [vmem:[%s317 + $0x40] sm:$0xff]
                  %324 = vst [vmem:[%s318 + $0x10] sm:$0xff] %v323
                  %v325 = vld [vmem:[%s317 + $0x60] sm:$0xff]
                  %326 = vst [vmem:[%s318 + $0x18] sm:$0xff] %v325
                  %v327 = vld [vmem:[%s317 + $0x80] sm:$0xff]
                  %328 = vst [vmem:[%s318 + $0x20] sm:$0xff] %v327
                  %v329 = vld [vmem:[%s317 + $0xa0] sm:$0xff]
                  %330 = vst [vmem:[%s318 + $0x28] sm:$0xff] %v329
                  %v331 = vld [vmem:[%s317 + $0xc0] sm:$0xff]
                  %332 = vst [vmem:[%s318 + $0x30] sm:$0xff] %v331
                  %v333 = vld [vmem:[%s317 + $0xe0] sm:$0xff]
                  %334 = vst [vmem:[%s318 + $0x38] sm:$0xff] %v333
                  %v335 = vld [vmem:[%s317 + $0x100] sm:$0xff]
                  %336 = vst [vmem:[%s318 + $0x40] sm:$0xff] %v335
                  %v337 = vld [vmem:[%s317 + $0x120] sm:$0xff]
                  %338 = vst [vmem:[%s318 + $0x48] sm:$0xff] %v337
                  %v339 = vld [vmem:[%s317 + $0x140] sm:$0xff]
                  %340 = vst [vmem:[%s318 + $0x50] sm:$0xff] %v339
                  %v341 = vld [vmem:[%s317 + $0x160] sm:$0xff]
                  %342 = vst [vmem:[%s318 + $0x58] sm:$0xff] %v341
                  %v343 = vld [vmem:[%s317 + $0x180] sm:$0xff]
                  %344 = vst [vmem:[%s318 + $0x60] sm:$0xff] %v343
                  %v345 = vld [vmem:[%s317 + $0x1a0] sm:$0xff]
                  %346 = vst [vmem:[%s318 + $0x68] sm:$0xff] %v345
                  %v347 = vld [vmem:[%s317 + $0x1c0] sm:$0xff]
                  %348 = vst [vmem:[%s318 + $0x70] sm:$0xff] %v347
                  %v349 = vld [vmem:[%s317 + $0x1e0] sm:$0xff]
                  %350 = vst [vmem:[%s318 + $0x78] sm:$0xff] %v349
                  %v351 = vld [vmem:[%s317 + $0x200] sm:$0xff]
                  %352 = vst [vmem:[%s318 + $0x80] sm:$0xff] %v351
                  %v353 = vld [vmem:[%s317 + $0x220] sm:$0xff]
                  %354 = vst [vmem:[%s318 + $0x88] sm:$0xff] %v353
                  %v355 = vld [vmem:[%s317 + $0x240] sm:$0xff]
                  %356 = vst [vmem:[%s318 + $0x90] sm:$0xff] %v355
                  %v357 = vld [vmem:[%s317 + $0x260] sm:$0xff]
                  %358 = vst [vmem:[%s318 + $0x98] sm:$0xff] %v357
                  %v359 = vld [vmem:[%s317 + $0x280] sm:$0xff]
                  %360 = vst [vmem:[%s318 + $0xa0] sm:$0xff] %v359
                  %v361 = vld [vmem:[%s317 + $0x2a0] sm:$0xff]
                  %362 = vst [vmem:[%s318 + $0xa8] sm:$0xff] %v361
                  %v363 = vld [vmem:[%s317 + $0x2c0] sm:$0xff]
                  %364 = vst [vmem:[%s318 + $0xb0] sm:$0xff] %v363
                  %v365 = vld [vmem:[%s317 + $0x2e0] sm:$0xff]
                  %366 = vst [vmem:[%s318 + $0xb8] sm:$0xff] %v365
                  %v367 = vld [vmem:[%s317 + $0x300] sm:$0xff]
                  %368 = vst [vmem:[%s318 + $0xc0] sm:$0xff] %v367
                  %v369 = vld [vmem:[%s317 + $0x320] sm:$0xff]
                  %370 = vst [vmem:[%s318 + $0xc8] sm:$0xff] %v369
                  %v371 = vld [vmem:[%s317 + $0x340] sm:$0xff]
                  %372 = vst [vmem:[%s318 + $0xd0] sm:$0xff] %v371
                  %v373 = vld [vmem:[%s317 + $0x360] sm:$0xff]
                  %374 = vst [vmem:[%s318 + $0xd8] sm:$0xff] %v373
                  %v375 = vld [vmem:[%s317 + $0x380] sm:$0xff]
                  %376 = vst [vmem:[%s318 + $0xe0] sm:$0xff] %v375
                  %v377 = vld [vmem:[%s317 + $0x3a0] sm:$0xff]
                  %378 = vst [vmem:[%s318 + $0xe8] sm:$0xff] %v377
                  %v379 = vld [vmem:[%s317 + $0x3c0] sm:$0xff]
                  %380 = vst [vmem:[%s318 + $0xf0] sm:$0xff] %v379
                  %v381 = vld [vmem:[%s317 + $0x3e0] sm:$0xff]
                  %382 = vst [vmem:[%s318 + $0xf8] sm:$0xff] %v381
                  %v383 = vld [vmem:[%s317 + $0x400] sm:$0xff]
                  %384 = vst [vmem:[%s318 + $0x100] sm:$0xff] %v383
                  %v385 = vld [vmem:[%s317 + $0x420] sm:$0xff]
                  %386 = vst [vmem:[%s318 + $0x108] sm:$0xff] %v385
                  %v387 = vld [vmem:[%s317 + $0x440] sm:$0xff]
                  %388 = vst [vmem:[%s318 + $0x110] sm:$0xff] %v387
                  %v389 = vld [vmem:[%s317 + $0x460] sm:$0xff]
                  %390 = vst [vmem:[%s318 + $0x118] sm:$0xff] %v389
                  %v391 = vld [vmem:[%s317 + $0x480] sm:$0xff]
                  %392 = vst [vmem:[%s318 + $0x120] sm:$0xff] %v391
                  %v393 = vld [vmem:[%s317 + $0x4a0] sm:$0xff]
                  %394 = vst [vmem:[%s318 + $0x128] sm:$0xff] %v393
                  %v395 = vld [vmem:[%s317 + $0x4c0] sm:$0xff]
                  %396 = vst [vmem:[%s318 + $0x130] sm:$0xff] %v395
                  %v397 = vld [vmem:[%s317 + $0x4e0] sm:$0xff]
                  %398 = vst [vmem:[%s318 + $0x138] sm:$0xff] %v397
                  %v399 = vld [vmem:[%s317 + $0x500] sm:$0xff]
                  %400 = vst [vmem:[%s318 + $0x140] sm:$0xff] %v399
                  %v401 = vld [vmem:[%s317 + $0x520] sm:$0xff]
                  %402 = vst [vmem:[%s318 + $0x148] sm:$0xff] %v401
                  %v403 = vld [vmem:[%s317 + $0x540] sm:$0xff]
                  %404 = vst [vmem:[%s318 + $0x150] sm:$0xff] %v403
                  %v405 = vld [vmem:[%s317 + $0x560] sm:$0xff]
                  %406 = vst [vmem:[%s318 + $0x158] sm:$0xff] %v405
                  %v407 = vld [vmem:[%s317 + $0x580] sm:$0xff]
                  %408 = vst [vmem:[%s318 + $0x160] sm:$0xff] %v407
                  %v409 = vld [vmem:[%s317 + $0x5a0] sm:$0xff]
                  %410 = vst [vmem:[%s318 + $0x168] sm:$0xff] %v409
                  %v411 = vld [vmem:[%s317 + $0x5c0] sm:$0xff]
                  %412 = vst [vmem:[%s318 + $0x170] sm:$0xff] %v411
                  %v413 = vld [vmem:[%s317 + $0x5e0] sm:$0xff]
                  %414 = vst [vmem:[%s318 + $0x178] sm:$0xff] %v413
                  %v415 = vld [vmem:[%s317 + $0x600] sm:$0xff]
                  %416 = vst [vmem:[%s318 + $0x180] sm:$0xff] %v415
                  %v417 = vld [vmem:[%s317 + $0x620] sm:$0xff]
                  %418 = vst [vmem:[%s318 + $0x188] sm:$0xff] %v417
                  %v419 = vld [vmem:[%s317 + $0x640] sm:$0xff]
                  %420 = vst [vmem:[%s318 + $0x190] sm:$0xff] %v419
                  %v421 = vld [vmem:[%s317 + $0x660] sm:$0xff]
                  %422 = vst [vmem:[%s318 + $0x198] sm:$0xff] %v421
                  %v423 = vld [vmem:[%s317 + $0x680] sm:$0xff]
                  %424 = vst [vmem:[%s318 + $0x1a0] sm:$0xff] %v423
                  %v425 = vld [vmem:[%s317 + $0x6a0] sm:$0xff]
                  %426 = vst [vmem:[%s318 + $0x1a8] sm:$0xff] %v425
                  %v427 = vld [vmem:[%s317 + $0x6c0] sm:$0xff]
                  %428 = vst [vmem:[%s318 + $0x1b0] sm:$0xff] %v427
                  %v429 = vld [vmem:[%s317 + $0x6e0] sm:$0xff]
                  %430 = vst [vmem:[%s318 + $0x1b8] sm:$0xff] %v429
                  %v431 = vld [vmem:[%s317 + $0x700] sm:$0xff]
                  %432 = vst [vmem:[%s318 + $0x1c0] sm:$0xff] %v431
                  %v433 = vld [vmem:[%s317 + $0x720] sm:$0xff]
                  %434 = vst [vmem:[%s318 + $0x1c8] sm:$0xff] %v433
                  %v435 = vld [vmem:[%s317 + $0x740] sm:$0xff]
                  %436 = vst [vmem:[%s318 + $0x1d0] sm:$0xff] %v435
                  %v437 = vld [vmem:[%s317 + $0x760] sm:$0xff]
                  %438 = vst [vmem:[%s318 + $0x1d8] sm:$0xff] %v437
                  %v439 = vld [vmem:[%s317 + $0x780] sm:$0xff]
                  %440 = vst [vmem:[%s318 + $0x1e0] sm:$0xff] %v439
                  %v441 = vld [vmem:[%s317 + $0x7a0] sm:$0xff]
                  %442 = vst [vmem:[%s318 + $0x1e8] sm:$0xff] %v441
                  %v443 = vld [vmem:[%s317 + $0x7c0] sm:$0xff]
                  %444 = vst [vmem:[%s318 + $0x1f0] sm:$0xff] %v443
                  %v445 = vld [vmem:[%s317 + $0x7e0] sm:$0xff]
                  %446 = vst [vmem:[%s318 + $0x1f8] sm:$0xff] %v445
                $region52: #{_lambda_.109} parent=46 // loop_footer
                  %s316 = sadd.s32 1, %s312
                $region53: #{_lambda_.109} parent=46 // loop_footer_branch
                  %311 = sbr.rel target = $region49
                $region54: #{_lambda_.109} parent=46 // loop_exit
                  _
              $region47: #{_lambda_.109} parent=31 // pred_fallthru
                _
              // Predicated region
              $region55: #{_lambda_.109} parent=31 // pred_check
                _
              $region56: #{_lambda_.109} parent=31 // pred_check_branch
                %448 = sbr.rel target = $region58
              $region57: #{_lambda_.109} parent=31 // pred_region
                _
              $region58: #{_lambda_.109} parent=31 // pred_fallthru
                _
            $region32: #{_lambda_.109} parent=27 // pred_fallthru
              _
            // Predicated region
            $region33: #{_lambda_.109} parent=27 // pred_check
              _
            $region34: #{_lambda_.109} parent=27 // pred_check_branch
              %171 = sbr.rel target = $region36
            $region35: #{_lambda_.109} parent=27 // pred_region
              loop: start=0, step=1, limit=1
              $region37: #{_lambda_.109} parent=35 // loop_pre_header
                _
              $region38: #{_lambda_.109} parent=35 // loop_header
                %s174 = sphi 0, %s178
                %p175 = scmp.ge.s32.totalorder %s174, 1
                %s179 = sphi %s165, %s165
                %s180 = sphi %s162, %s162
              $region39: #{_lambda_.109} parent=35 // loop_header_branch
                %177 = sbr.rel (%p175) target = $region43
              $region40: #{_lambda_.109} parent=35 // loop_body
                %v181 = vld [vmem:[%s179] sm:$0xff]
                %182 = vst [vmem:[%s180] sm:$0xff] %v181
                %v183 = vld [vmem:[%s179 + $0x20] sm:$0xff]
                %184 = vst [vmem:[%s180 + $0x8] sm:$0xff] %v183
                %v185 = vld [vmem:[%s179 + $0x40] sm:$0xff]
                %186 = vst [vmem:[%s180 + $0x10] sm:$0xff] %v185
                %v187 = vld [vmem:[%s179 + $0x60] sm:$0xff]
                %188 = vst [vmem:[%s180 + $0x18] sm:$0xff] %v187
                %v189 = vld [vmem:[%s179 + $0x80] sm:$0xff]
                %190 = vst [vmem:[%s180 + $0x20] sm:$0xff] %v189
                %v191 = vld [vmem:[%s179 + $0xa0] sm:$0xff]
                %192 = vst [vmem:[%s180 + $0x28] sm:$0xff] %v191
                %v193 = vld [vmem:[%s179 + $0xc0] sm:$0xff]
                %194 = vst [vmem:[%s180 + $0x30] sm:$0xff] %v193
                %v195 = vld [vmem:[%s179 + $0xe0] sm:$0xff]
                %196 = vst [vmem:[%s180 + $0x38] sm:$0xff] %v195
                %v197 = vld [vmem:[%s179 + $0x100] sm:$0xff]
                %198 = vst [vmem:[%s180 + $0x40] sm:$0xff] %v197
                %v199 = vld [vmem:[%s179 + $0x120] sm:$0xff]
                %200 = vst [vmem:[%s180 + $0x48] sm:$0xff] %v199
                %v201 = vld [vmem:[%s179 + $0x140] sm:$0xff]
                %202 = vst [vmem:[%s180 + $0x50] sm:$0xff] %v201
                %v203 = vld [vmem:[%s179 + $0x160] sm:$0xff]
                %204 = vst [vmem:[%s180 + $0x58] sm:$0xff] %v203
                %v205 = vld [vmem:[%s179 + $0x180] sm:$0xff]
                %206 = vst [vmem:[%s180 + $0x60] sm:$0xff] %v205
                %v207 = vld [vmem:[%s179 + $0x1a0] sm:$0xff]
                %208 = vst [vmem:[%s180 + $0x68] sm:$0xff] %v207
                %v209 = vld [vmem:[%s179 + $0x1c0] sm:$0xff]
                %210 = vst [vmem:[%s180 + $0x70] sm:$0xff] %v209
                %v211 = vld [vmem:[%s179 + $0x1e0] sm:$0xff]
                %212 = vst [vmem:[%s180 + $0x78] sm:$0xff] %v211
                %v213 = vld [vmem:[%s179 + $0x200] sm:$0xff]
                %214 = vst [vmem:[%s180 + $0x80] sm:$0xff] %v213
                %v215 = vld [vmem:[%s179 + $0x220] sm:$0xff]
                %216 = vst [vmem:[%s180 + $0x88] sm:$0xff] %v215
                %v217 = vld [vmem:[%s179 + $0x240] sm:$0xff]
                %218 = vst [vmem:[%s180 + $0x90] sm:$0xff] %v217
                %v219 = vld [vmem:[%s179 + $0x260] sm:$0xff]
                %220 = vst [vmem:[%s180 + $0x98] sm:$0xff] %v219
                %v221 = vld [vmem:[%s179 + $0x280] sm:$0xff]
                %222 = vst [vmem:[%s180 + $0xa0] sm:$0xff] %v221
                %v223 = vld [vmem:[%s179 + $0x2a0] sm:$0xff]
                %224 = vst [vmem:[%s180 + $0xa8] sm:$0xff] %v223
                %v225 = vld [vmem:[%s179 + $0x2c0] sm:$0xff]
                %226 = vst [vmem:[%s180 + $0xb0] sm:$0xff] %v225
                %v227 = vld [vmem:[%s179 + $0x2e0] sm:$0xff]
                %228 = vst [vmem:[%s180 + $0xb8] sm:$0xff] %v227
                %v229 = vld [vmem:[%s179 + $0x300] sm:$0xff]
                %230 = vst [vmem:[%s180 + $0xc0] sm:$0xff] %v229
                %v231 = vld [vmem:[%s179 + $0x320] sm:$0xff]
                %232 = vst [vmem:[%s180 + $0xc8] sm:$0xff] %v231
                %v233 = vld [vmem:[%s179 + $0x340] sm:$0xff]
                %234 = vst [vmem:[%s180 + $0xd0] sm:$0xff] %v233
                %v235 = vld [vmem:[%s179 + $0x360] sm:$0xff]
                %236 = vst [vmem:[%s180 + $0xd8] sm:$0xff] %v235
                %v237 = vld [vmem:[%s179 + $0x380] sm:$0xff]
                %238 = vst [vmem:[%s180 + $0xe0] sm:$0xff] %v237
                %v239 = vld [vmem:[%s179 + $0x3a0] sm:$0xff]
                %240 = vst [vmem:[%s180 + $0xe8] sm:$0xff] %v239
                %v241 = vld [vmem:[%s179 + $0x3c0] sm:$0xff]
                %242 = vst [vmem:[%s180 + $0xf0] sm:$0xff] %v241
                %v243 = vld [vmem:[%s179 + $0x3e0] sm:$0xff]
                %244 = vst [vmem:[%s180 + $0xf8] sm:$0xff] %v243
                %v245 = vld [vmem:[%s179 + $0x400] sm:$0xff]
                %246 = vst [vmem:[%s180 + $0x100] sm:$0xff] %v245
                %v247 = vld [vmem:[%s179 + $0x420] sm:$0xff]
                %248 = vst [vmem:[%s180 + $0x108] sm:$0xff] %v247
                %v249 = vld [vmem:[%s179 + $0x440] sm:$0xff]
                %250 = vst [vmem:[%s180 + $0x110] sm:$0xff] %v249
                %v251 = vld [vmem:[%s179 + $0x460] sm:$0xff]
                %252 = vst [vmem:[%s180 + $0x118] sm:$0xff] %v251
                %v253 = vld [vmem:[%s179 + $0x480] sm:$0xff]
                %254 = vst [vmem:[%s180 + $0x120] sm:$0xff] %v253
                %v255 = vld [vmem:[%s179 + $0x4a0] sm:$0xff]
                %256 = vst [vmem:[%s180 + $0x128] sm:$0xff] %v255
                %v257 = vld [vmem:[%s179 + $0x4c0] sm:$0xff]
                %258 = vst [vmem:[%s180 + $0x130] sm:$0xff] %v257
                %v259 = vld [vmem:[%s179 + $0x4e0] sm:$0xff]
                %260 = vst [vmem:[%s180 + $0x138] sm:$0xff] %v259
                %v261 = vld [vmem:[%s179 + $0x500] sm:$0xff]
                %262 = vst [vmem:[%s180 + $0x140] sm:$0xff] %v261
                %v263 = vld [vmem:[%s179 + $0x520] sm:$0xff]
                %264 = vst [vmem:[%s180 + $0x148] sm:$0xff] %v263
                %v265 = vld [vmem:[%s179 + $0x540] sm:$0xff]
                %266 = vst [vmem:[%s180 + $0x150] sm:$0xff] %v265
                %v267 = vld [vmem:[%s179 + $0x560] sm:$0xff]
                %268 = vst [vmem:[%s180 + $0x158] sm:$0xff] %v267
                %v269 = vld [vmem:[%s179 + $0x580] sm:$0xff]
                %270 = vst [vmem:[%s180 + $0x160] sm:$0xff] %v269
                %v271 = vld [vmem:[%s179 + $0x5a0] sm:$0xff]
                %272 = vst [vmem:[%s180 + $0x168] sm:$0xff] %v271
                %v273 = vld [vmem:[%s179 + $0x5c0] sm:$0xff]
                %274 = vst [vmem:[%s180 + $0x170] sm:$0xff] %v273
                %v275 = vld [vmem:[%s179 + $0x5e0] sm:$0xff]
                %276 = vst [vmem:[%s180 + $0x178] sm:$0xff] %v275
                %v277 = vld [vmem:[%s179 + $0x600] sm:$0xff]
                %278 = vst [vmem:[%s180 + $0x180] sm:$0xff] %v277
                %v279 = vld [vmem:[%s179 + $0x620] sm:$0xff]
                %280 = vst [vmem:[%s180 + $0x188] sm:$0xff] %v279
                %v281 = vld [vmem:[%s179 + $0x640] sm:$0xff]
                %282 = vst [vmem:[%s180 + $0x190] sm:$0xff] %v281
                %v283 = vld [vmem:[%s179 + $0x660] sm:$0xff]
                %284 = vst [vmem:[%s180 + $0x198] sm:$0xff] %v283
                %v285 = vld [vmem:[%s179 + $0x680] sm:$0xff]
                %286 = vst [vmem:[%s180 + $0x1a0] sm:$0xff] %v285
                %v287 = vld [vmem:[%s179 + $0x6a0] sm:$0xff]
                %288 = vst [vmem:[%s180 + $0x1a8] sm:$0xff] %v287
                %v289 = vld [vmem:[%s179 + $0x6c0] sm:$0xff]
                %290 = vst [vmem:[%s180 + $0x1b0] sm:$0xff] %v289
                %v291 = vld [vmem:[%s179 + $0x6e0] sm:$0xff]
                %292 = vst [vmem:[%s180 + $0x1b8] sm:$0xff] %v291
                %v293 = vld [vmem:[%s179 + $0x700] sm:$0xff]
                %294 = vst [vmem:[%s180 + $0x1c0] sm:$0xff] %v293
                %v295 = vld [vmem:[%s179 + $0x720] sm:$0xff]
                %296 = vst [vmem:[%s180 + $0x1c8] sm:$0xff] %v295
                %v297 = vld [vmem:[%s179 + $0x740] sm:$0xff]
                %298 = vst [vmem:[%s180 + $0x1d0] sm:$0xff] %v297
                %v299 = vld [vmem:[%s179 + $0x760] sm:$0xff]
                %300 = vst [vmem:[%s180 + $0x1d8] sm:$0xff] %v299
                %v301 = vld [vmem:[%s179 + $0x780] sm:$0xff]
                %302 = vst [vmem:[%s180 + $0x1e0] sm:$0xff] %v301
                %v303 = vld [vmem:[%s179 + $0x7a0] sm:$0xff]
                %304 = vst [vmem:[%s180 + $0x1e8] sm:$0xff] %v303
                %v305 = vld [vmem:[%s179 + $0x7c0] sm:$0xff]
                %306 = vst [vmem:[%s180 + $0x1f0] sm:$0xff] %v305
                %v307 = vld [vmem:[%s179 + $0x7e0] sm:$0xff]
                %308 = vst [vmem:[%s180 + $0x1f8] sm:$0xff] %v307
              $region41: #{_lambda_.109} parent=35 // loop_footer
                %s178 = sadd.s32 1, %s174
              $region42: #{_lambda_.109} parent=35 // loop_footer_branch
                %173 = sbr.rel target = $region38
              $region43: #{_lambda_.109} parent=35 // loop_exit
                _
            $region36: #{_lambda_.109} parent=27 // pred_fallthru
              _
          $region28: #{_lambda_.109} parent=23 // pred_fallthru
            _
          %449 = vnop
        $region24: #{_lambda_.109} parent=19 // pred_fallthru
          _
        // Predicated region
        $region59: #{_lambda_.109} parent=19 // pred_check
          %p450 = pneg %p93
        $region60: #{_lambda_.109} parent=19 // pred_check_branch
          %452 = sbr.rel (%p450) target = $region62
        $region61: #{_lambda_.109} parent=19 // pred_region
          %s453 = smul.u32 2, %s17
          %p454 = scmp.lt.s32.totalorder %s453, 7
          %s455 = scalar_select %p454, %s453, 7
          %s456 = scalar_lea.vmem %s2, %s455
          %s457 = smul.u32 2, %s17
        $region62: #{_lambda_.109} parent=19 // pred_fallthru
          _
      $region20: #{_lambda_.109} parent=5 // pred_fallthru
        _
      %p458 = scmp.le.s32.totalorder 1, %s9
      %p459 = scmp.lt.s32.totalorder %s9, 5
      %p460 = pnand %p458, %p459
      %p461 = pneg %p460
      // Predicated region
      $region63: #{_lambda_.109} parent=5 // pred_check
        _
      $region64: #{_lambda_.109} parent=5 // pred_check_branch
        %463 = sbr.rel (%p460) target = $region66
      $region65: #{_lambda_.109} parent=5 // pred_region
        %s464 = ssub.s32 %s9, 1
        %s465 = sand.u32 %s60, 1
        %s466 = sand.u32 %s60, 1
        %s467 = smul.addr %s466, 512
        %s468 = scalar_lea.vmem [#allocation2], %s467
        // Predicated region
        $region67: #{_lambda_.109} parent=65 // pred_check
          %p469 = pneg %p73
        $region68: #{_lambda_.109} parent=65 // pred_check_branch
          %471 = sbr.rel (%p469) target = $region70
        $region69: #{_lambda_.109} parent=65 // pred_region
          _
        $region70: #{_lambda_.109} parent=65 // pred_fallthru
          _
        %s472 = smul.u32 2, %s18
        %p473 = scmp.lt.s32.totalorder %s472, 1
        %s474 = scalar_select %p473, %s472, 1
        %s475 = smul.addr %s474, 4
        %s476 = smul.addr %s475, 4
        %s477 = scalar_lea.vmem %s0, %s476
        %p478 = pneg %p47
        %p479 = pneg %p44
        %s480 = sand.u32 %s60, 1
        %s481 = sand.u32 %s60, 1
        %s482 = smul.addr %s481, 512
        %s483 = scalar_lea.vmem [#allocation2], %s482
        %p484 = pneg %p73
        %p485 = pneg %p70
        %s486 = smul.u32 2, %s19
        %p487 = scmp.lt.s32.totalorder %s486, 7
        %s488 = scalar_select %p487, %s486, 7
        %s489 = scalar_lea.vmem %s2, %s488
        %p490 = pneg %p99
        %p491 = pneg %p96
        %p492 = pneg %p127
        %p493 = pneg %p124
        %s494 = sand.u32 %s114, 1
        %s495 = sand.u32 %s114, 1
        %s496 = smul.addr %s495, 32
        %s497 = scalar_lea.vmem [#allocation3], %s496
        %s498 = smul.u32 2, %s18
        %p499 = scmp.lt.s32.totalorder %s498, 1
        %s500 = scalar_select %p499, %s498, 1
        %s501 = smul.addr %s500, 4
        %s502 = smul.addr %s501, 4
        %s503 = scalar_lea.vmem %s0, %s502
        %s504 = smul.u32 2, %s18
        %s505 = smul.u32 2, %s19
        %s506 = smul.u32 2, %s19
        %p507 = scmp.lt.s32.totalorder %s506, 7
        %s508 = scalar_select %p507, %s506, 7
        %s509 = scalar_lea.vmem %s2, %s508
        %s510 = smul.u32 2, %s19
        %s511 = smul.u32 2, %s18
        %s512 = smul.u32 2, %s19
        %v513 = vld [vmem:[%s503] sm:$0xff]
        %v514 = vld [vmem:[%s503 + $0x8] sm:$0xff]
        %v515 = vld [vmem:[%s503 + $0x10] sm:$0xff]
        %v516 = vld [vmem:[%s503 + $0x18] sm:$0xff]
        %v517 = vld [vmem:[%s468] sm:$0xff]
        %v518 = vld [vmem:[%s468 + $0x8] sm:$0xff]
        %v519 = vld [vmem:[%s468 + $0x10] sm:$0xff]
        %v520 = vld [vmem:[%s468 + $0x18] sm:$0xff]
        %v521 = vld [vmem:[%s468 + $0x20] sm:$0xff]
        %v522 = vld [vmem:[%s468 + $0x28] sm:$0xff]
        %v523 = vld [vmem:[%s468 + $0x30] sm:$0xff]
        %v524 = vld [vmem:[%s468 + $0x38] sm:$0xff]
        %v525 = vld [vmem:[%s468 + $0x40] sm:$0xff]
        %v526 = vld [vmem:[%s468 + $0x48] sm:$0xff]
        %v527 = vld [vmem:[%s468 + $0x50] sm:$0xff]
        %v528 = vld [vmem:[%s468 + $0x58] sm:$0xff]
        %v529 = vld [vmem:[%s468 + $0x60] sm:$0xff]
        %v530 = vld [vmem:[%s468 + $0x68] sm:$0xff]
        %v531 = vld [vmem:[%s468 + $0x70] sm:$0xff]
        %v532 = vld [vmem:[%s468 + $0x78] sm:$0xff]
        %v533 = vld [vmem:[%s468 + $0x80] sm:$0xff]
        %v534 = vld [vmem:[%s468 + $0x88] sm:$0xff]
        %v535 = vld [vmem:[%s468 + $0x90] sm:$0xff]
        %v536 = vld [vmem:[%s468 + $0x98] sm:$0xff]
        %v537 = vld [vmem:[%s468 + $0xa0] sm:$0xff]
        %v538 = vld [vmem:[%s468 + $0xa8] sm:$0xff]
        %v539 = vld [vmem:[%s468 + $0xb0] sm:$0xff]
        %v540 = vld [vmem:[%s468 + $0xb8] sm:$0xff]
        %v541 = vld [vmem:[%s468 + $0xc0] sm:$0xff]
        %v542 = vld [vmem:[%s468 + $0xc8] sm:$0xff]
        %v543 = vld [vmem:[%s468 + $0xd0] sm:$0xff]
        %v544 = vld [vmem:[%s468 + $0xd8] sm:$0xff]
        %v545 = vld [vmem:[%s468 + $0xe0] sm:$0xff]
        %v546 = vld [vmem:[%s468 + $0xe8] sm:$0xff]
        %v547 = vld [vmem:[%s468 + $0xf0] sm:$0xff]
        %v548 = vld [vmem:[%s468 + $0xf8] sm:$0xff]
        %v549 = vld [vmem:[%s468 + $0x100] sm:$0xff]
        %v550 = vld [vmem:[%s468 + $0x108] sm:$0xff]
        %v551 = vld [vmem:[%s468 + $0x110] sm:$0xff]
        %v552 = vld [vmem:[%s468 + $0x118] sm:$0xff]
        %v553 = vld [vmem:[%s468 + $0x120] sm:$0xff]
        %v554 = vld [vmem:[%s468 + $0x128] sm:$0xff]
        %v555 = vld [vmem:[%s468 + $0x130] sm:$0xff]
        %v556 = vld [vmem:[%s468 + $0x138] sm:$0xff]
        %v557 = vld [vmem:[%s468 + $0x140] sm:$0xff]
        %v558 = vld [vmem:[%s468 + $0x148] sm:$0xff]
        %v559 = vld [vmem:[%s468 + $0x150] sm:$0xff]
        %v560 = vld [vmem:[%s468 + $0x158] sm:$0xff]
        %v561 = vld [vmem:[%s468 + $0x160] sm:$0xff]
        %v562 = vld [vmem:[%s468 + $0x168] sm:$0xff]
        %v563 = vld [vmem:[%s468 + $0x170] sm:$0xff]
        %v564 = vld [vmem:[%s468 + $0x178] sm:$0xff]
        %v565 = vld [vmem:[%s468 + $0x180] sm:$0xff]
        %v566 = vld [vmem:[%s468 + $0x188] sm:$0xff]
        %v567 = vld [vmem:[%s468 + $0x190] sm:$0xff]
        %v568 = vld [vmem:[%s468 + $0x198] sm:$0xff]
        %v569 = vld [vmem:[%s468 + $0x1a0] sm:$0xff]
        %v570 = vld [vmem:[%s468 + $0x1a8] sm:$0xff]
        %v571 = vld [vmem:[%s468 + $0x1b0] sm:$0xff]
        %v572 = vld [vmem:[%s468 + $0x1b8] sm:$0xff]
        %v573 = vld [vmem:[%s468 + $0x1c0] sm:$0xff]
        %v574 = vld [vmem:[%s468 + $0x1c8] sm:$0xff]
        %v575 = vld [vmem:[%s468 + $0x1d0] sm:$0xff]
        %v576 = vld [vmem:[%s468 + $0x1d8] sm:$0xff]
        %v577 = vld [vmem:[%s468 + $0x1e0] sm:$0xff]
        %v578 = vld [vmem:[%s468 + $0x1e8] sm:$0xff]
        %v579 = vld [vmem:[%s468 + $0x1f0] sm:$0xff]
        %v580 = vld [vmem:[%s468 + $0x1f8] sm:$0xff]
        %v581 = vld [vmem:[%s509] sm:$0x3]
        %v583 = vlaneseq
        %v584 = vshrl.u32 %v583, 7
        %v585 = vsub.s32 0, %v584
        %v586 = vrot.slane %v581, %v585
        %v587 = vlaneseq
        %v588 = vshrl.u32 %v587, 7
        %v589 = vsub.s32 1, %v588
        %v590 = vrot.slane %v581, %v589
        %v597 = vunpack.c.l.b16 %v513
        %v598 = vunpack.c.h.b16 %v513
        %v599 = vunpack.c.l.b16 %v514
        %v600 = vunpack.c.h.b16 %v514
        %v601 = vunpack.c.l.b16 %v515
        %v602 = vunpack.c.h.b16 %v515
        %v603 = vunpack.c.l.b16 %v516
        %v604 = vunpack.c.h.b16 %v516
        %v605 = vpack.c.b16 %v601, %v597
        %v606 = vpack.c.b16 %v602, %v598
        %v607 = vpack.c.b16 %v603, %v599
        %v608 = vpack.c.b16 %v604, %v600
        %v677 = vunpack.c.l.b16 %v517
        %v678 = vunpack.c.h.b16 %v517
        %v679 = vunpack.c.l.b16 %v518
        %v680 = vunpack.c.h.b16 %v518
        %v681 = vunpack.c.l.b16 %v519
        %v682 = vunpack.c.h.b16 %v519
        %v683 = vunpack.c.l.b16 %v520
        %v684 = vunpack.c.h.b16 %v520
        %v685 = vunpack.c.l.b16 %v521
        %v686 = vunpack.c.h.b16 %v521
        %v687 = vunpack.c.l.b16 %v522
        %v688 = vunpack.c.h.b16 %v522
        %v689 = vunpack.c.l.b16 %v523
        %v690 = vunpack.c.h.b16 %v523
        %v691 = vunpack.c.l.b16 %v524
        %v692 = vunpack.c.h.b16 %v524
        %v693 = vunpack.c.l.b16 %v525
        %v694 = vunpack.c.h.b16 %v525
        %v695 = vunpack.c.l.b16 %v526
        %v696 = vunpack.c.h.b16 %v526
        %v697 = vunpack.c.l.b16 %v527
        %v698 = vunpack.c.h.b16 %v527
        %v699 = vunpack.c.l.b16 %v528
        %v700 = vunpack.c.h.b16 %v528
        %v701 = vunpack.c.l.b16 %v529
        %v702 = vunpack.c.h.b16 %v529
        %v703 = vunpack.c.l.b16 %v530
        %v704 = vunpack.c.h.b16 %v530
        %v705 = vunpack.c.l.b16 %v531
        %v706 = vunpack.c.h.b16 %v531
        %v707 = vunpack.c.l.b16 %v532
        %v708 = vunpack.c.h.b16 %v532
        %v709 = vunpack.c.l.b16 %v533
        %v710 = vunpack.c.h.b16 %v533
        %v711 = vunpack.c.l.b16 %v534
        %v712 = vunpack.c.h.b16 %v534
        %v713 = vunpack.c.l.b16 %v535
        %v714 = vunpack.c.h.b16 %v535
        %v715 = vunpack.c.l.b16 %v536
        %v716 = vunpack.c.h.b16 %v536
        %v717 = vunpack.c.l.b16 %v537
        %v718 = vunpack.c.h.b16 %v537
        %v719 = vunpack.c.l.b16 %v538
        %v720 = vunpack.c.h.b16 %v538
        %v721 = vunpack.c.l.b16 %v539
        %v722 = vunpack.c.h.b16 %v539
        %v723 = vunpack.c.l.b16 %v540
        %v724 = vunpack.c.h.b16 %v540
        %v725 = vunpack.c.l.b16 %v541
        %v726 = vunpack.c.h.b16 %v541
        %v727 = vunpack.c.l.b16 %v542
        %v728 = vunpack.c.h.b16 %v542
        %v729 = vunpack.c.l.b16 %v543
        %v730 = vunpack.c.h.b16 %v543
        %v731 = vunpack.c.l.b16 %v544
        %v732 = vunpack.c.h.b16 %v544
        %v733 = vunpack.c.l.b16 %v545
        %v734 = vunpack.c.h.b16 %v545
        %v735 = vunpack.c.l.b16 %v546
        %v736 = vunpack.c.h.b16 %v546
        %v737 = vunpack.c.l.b16 %v547
        %v738 = vunpack.c.h.b16 %v547
        %v739 = vunpack.c.l.b16 %v548
        %v740 = vunpack.c.h.b16 %v548
        %v741 = vunpack.c.l.b16 %v549
        %v742 = vunpack.c.h.b16 %v549
        %v743 = vunpack.c.l.b16 %v550
        %v744 = vunpack.c.h.b16 %v550
        %v745 = vunpack.c.l.b16 %v551
        %v746 = vunpack.c.h.b16 %v551
        %v747 = vunpack.c.l.b16 %v552
        %v748 = vunpack.c.h.b16 %v552
        %v749 = vunpack.c.l.b16 %v553
        %v750 = vunpack.c.h.b16 %v553
        %v751 = vunpack.c.l.b16 %v554
        %v752 = vunpack.c.h.b16 %v554
        %v753 = vunpack.c.l.b16 %v555
        %v754 = vunpack.c.h.b16 %v555
        %v755 = vunpack.c.l.b16 %v556
        %v756 = vunpack.c.h.b16 %v556
        %v757 = vunpack.c.l.b16 %v557
        %v758 = vunpack.c.h.b16 %v557
        %v759 = vunpack.c.l.b16 %v558
        %v760 = vunpack.c.h.b16 %v558
        %v761 = vunpack.c.l.b16 %v559
        %v762 = vunpack.c.h.b16 %v559
        %v763 = vunpack.c.l.b16 %v560
        %v764 = vunpack.c.h.b16 %v560
        %v765 = vunpack.c.l.b16 %v561
        %v766 = vunpack.c.h.b16 %v561
        %v767 = vunpack.c.l.b16 %v562
        %v768 = vunpack.c.h.b16 %v562
        %v769 = vunpack.c.l.b16 %v563
        %v770 = vunpack.c.h.b16 %v563
        %v771 = vunpack.c.l.b16 %v564
        %v772 = vunpack.c.h.b16 %v564
        %v773 = vunpack.c.l.b16 %v565
        %v774 = vunpack.c.h.b16 %v565
        %v775 = vunpack.c.l.b16 %v566
        %v776 = vunpack.c.h.b16 %v566
        %v777 = vunpack.c.l.b16 %v567
        %v778 = vunpack.c.h.b16 %v567
        %v779 = vunpack.c.l.b16 %v568
        %v780 = vunpack.c.h.b16 %v568
        %v781 = vunpack.c.l.b16 %v569
        %v782 = vunpack.c.h.b16 %v569
        %v783 = vunpack.c.l.b16 %v570
        %v784 = vunpack.c.h.b16 %v570
        %v785 = vunpack.c.l.b16 %v571
        %v786 = vunpack.c.h.b16 %v571
        %v787 = vunpack.c.l.b16 %v572
        %v788 = vunpack.c.h.b16 %v572
        %v789 = vunpack.c.l.b16 %v573
        %v790 = vunpack.c.h.b16 %v573
        %v791 = vunpack.c.l.b16 %v574
        %v792 = vunpack.c.h.b16 %v574
        %v793 = vunpack.c.l.b16 %v575
        %v794 = vunpack.c.h.b16 %v575
        %v795 = vunpack.c.l.b16 %v576
        %v796 = vunpack.c.h.b16 %v576
        %v797 = vunpack.c.l.b16 %v577
        %v798 = vunpack.c.h.b16 %v577
        %v799 = vunpack.c.l.b16 %v578
        %v800 = vunpack.c.h.b16 %v578
        %v801 = vunpack.c.l.b16 %v579
        %v802 = vunpack.c.h.b16 %v579
        %v803 = vunpack.c.l.b16 %v580
        %v804 = vunpack.c.h.b16 %v580
        %v805 = vpack.c.b16 %v679, %v677
        %v806 = vpack.c.b16 %v680, %v678
        %v807 = vpack.c.b16 %v683, %v681
        %v808 = vpack.c.b16 %v684, %v682
        %v809 = vpack.c.b16 %v687, %v685
        %v810 = vpack.c.b16 %v688, %v686
        %v811 = vpack.c.b16 %v691, %v689
        %v812 = vpack.c.b16 %v692, %v690
        %v813 = vpack.c.b16 %v695, %v693
        %v814 = vpack.c.b16 %v696, %v694
        %v815 = vpack.c.b16 %v699, %v697
        %v816 = vpack.c.b16 %v700, %v698
        %v817 = vpack.c.b16 %v703, %v701
        %v818 = vpack.c.b16 %v704, %v702
        %v819 = vpack.c.b16 %v707, %v705
        %v820 = vpack.c.b16 %v708, %v706
        %v821 = vpack.c.b16 %v711, %v709
        %v822 = vpack.c.b16 %v712, %v710
        %v823 = vpack.c.b16 %v715, %v713
        %v824 = vpack.c.b16 %v716, %v714
        %v825 = vpack.c.b16 %v719, %v717
        %v826 = vpack.c.b16 %v720, %v718
        %v827 = vpack.c.b16 %v723, %v721
        %v828 = vpack.c.b16 %v724, %v722
        %v829 = vpack.c.b16 %v727, %v725
        %v830 = vpack.c.b16 %v728, %v726
        %v831 = vpack.c.b16 %v731, %v729
        %v832 = vpack.c.b16 %v732, %v730
        %v833 = vpack.c.b16 %v735, %v733
        %v834 = vpack.c.b16 %v736, %v734
        %v835 = vpack.c.b16 %v739, %v737
        %v836 = vpack.c.b16 %v740, %v738
        %v837 = vpack.c.b16 %v743, %v741
        %v838 = vpack.c.b16 %v744, %v742
        %v839 = vpack.c.b16 %v747, %v745
        %v840 = vpack.c.b16 %v748, %v746
        %v841 = vpack.c.b16 %v751, %v749
        %v842 = vpack.c.b16 %v752, %v750
        %v843 = vpack.c.b16 %v755, %v753
        %v844 = vpack.c.b16 %v756, %v754
        %v845 = vpack.c.b16 %v759, %v757
        %v846 = vpack.c.b16 %v760, %v758
        %v847 = vpack.c.b16 %v763, %v761
        %v848 = vpack.c.b16 %v764, %v762
        %v849 = vpack.c.b16 %v767, %v765
        %v850 = vpack.c.b16 %v768, %v766
        %v851 = vpack.c.b16 %v771, %v769
        %v852 = vpack.c.b16 %v772, %v770
        %v853 = vpack.c.b16 %v775, %v773
        %v854 = vpack.c.b16 %v776, %v774
        %v855 = vpack.c.b16 %v779, %v777
        %v856 = vpack.c.b16 %v780, %v778
        %v857 = vpack.c.b16 %v783, %v781
        %v858 = vpack.c.b16 %v784, %v782
        %v859 = vpack.c.b16 %v787, %v785
        %v860 = vpack.c.b16 %v788, %v786
        %v861 = vpack.c.b16 %v791, %v789
        %v862 = vpack.c.b16 %v792, %v790
        %v863 = vpack.c.b16 %v795, %v793
        %v864 = vpack.c.b16 %v796, %v794
        %v865 = vpack.c.b16 %v799, %v797
        %v866 = vpack.c.b16 %v800, %v798
        %v867 = vpack.c.b16 %v803, %v801
        %v868 = vpack.c.b16 %v804, %v802
        %933 = vmatprep.subr.bf16.mxu0 %v806
        %934 = vmatpush1.bf16.msra.mxu0 %v805
        %935 = vmatprep.subr.bf16.mxu0 %v808
        %936 = vmatpush1.bf16.msra.mxu0 %v807
        %937 = vmatprep.subr.bf16.mxu0 %v810
        %938 = vmatpush1.bf16.msra.mxu0 %v809
        %939 = vmatprep.subr.bf16.mxu0 %v812
        %940 = vmatpush1.bf16.msra.mxu0 %v811
        %941 = vmatprep.subr.bf16.mxu0 %v814
        %942 = vmatpush1.bf16.msra.mxu0 %v813
        %943 = vmatprep.subr.bf16.mxu0 %v816
        %944 = vmatpush1.bf16.msra.mxu0 %v815
        %945 = vmatprep.subr.bf16.mxu0 %v818
        %946 = vmatpush1.bf16.msra.mxu0 %v817
        %947 = vmatprep.subr.bf16.mxu0 %v820
        %948 = vmatpush1.bf16.msra.mxu0 %v819
        %949 = vmatprep.subr.bf16.mxu0 %v822
        %950 = vmatpush1.bf16.msra.mxu0 %v821
        %951 = vmatprep.subr.bf16.mxu0 %v824
        %952 = vmatpush1.bf16.msra.mxu0 %v823
        %953 = vmatprep.subr.bf16.mxu0 %v826
        %954 = vmatpush1.bf16.msra.mxu0 %v825
        %955 = vmatprep.subr.bf16.mxu0 %v828
        %956 = vmatpush1.bf16.msra.mxu0 %v827
        %957 = vmatprep.subr.bf16.mxu0 %v830
        %958 = vmatpush1.bf16.msra.mxu0 %v829
        %959 = vmatprep.subr.bf16.mxu0 %v832
        %960 = vmatpush1.bf16.msra.mxu0 %v831
        %961 = vmatprep.subr.bf16.mxu0 %v834
        %962 = vmatpush1.bf16.msra.mxu0 %v833
        %963 = vmatprep.subr.bf16.mxu0 %v836
        %964 = vmatpush1.bf16.msra.mxu0 %v835
        %965 = vmatprep.mubr.bf16.mxu0 %v606
        %966 = vmatmul.mubr.bf16.gmra.mrb[0].mxu0 %v605
        %v967 = vpop.f32.mrb[0].mxu0
        %v968 = vadd.f32 %v586, %v967
        %v969 = vpop.f32.mrb[0].mxu0
        %v970 = vadd.f32 %v590, %v969
        %v971 = vpop.f32.mrb[0].mxu0
        %v972 = vadd.f32 %v586, %v971
        %v973 = vpop.f32.mrb[0].mxu0
        %v974 = vadd.f32 %v590, %v973
        %975 = vdwg.mxu0
        %976 = vmatprep.subr.bf16.mxu0 %v838
        %977 = vmatpush1.bf16.msra.mxu0 %v837
        %978 = vmatprep.subr.bf16.mxu0 %v840
        %979 = vmatpush1.bf16.msra.mxu0 %v839
        %980 = vmatprep.subr.bf16.mxu0 %v842
        %981 = vmatpush1.bf16.msra.mxu0 %v841
        %982 = vmatprep.subr.bf16.mxu0 %v844
        %983 = vmatpush1.bf16.msra.mxu0 %v843
        %984 = vmatprep.subr.bf16.mxu0 %v846
        %985 = vmatpush1.bf16.msra.mxu0 %v845
        %986 = vmatprep.subr.bf16.mxu0 %v848
        %987 = vmatpush1.bf16.msra.mxu0 %v847
        %988 = vmatprep.subr.bf16.mxu0 %v850
        %989 = vmatpush1.bf16.msra.mxu0 %v849
        %990 = vmatprep.subr.bf16.mxu0 %v852
        %991 = vmatpush1.bf16.msra.mxu0 %v851
        %992 = vmatprep.subr.bf16.mxu0 %v854
        %993 = vmatpush1.bf16.msra.mxu0 %v853
        %994 = vmatprep.subr.bf16.mxu0 %v856
        %995 = vmatpush1.bf16.msra.mxu0 %v855
        %996 = vmatprep.subr.bf16.mxu0 %v858
        %997 = vmatpush1.bf16.msra.mxu0 %v857
        %998 = vmatprep.subr.bf16.mxu0 %v860
        %999 = vmatpush1.bf16.msra.mxu0 %v859
        %1000 = vmatprep.subr.bf16.mxu0 %v862
        %1001 = vmatpush1.bf16.msra.mxu0 %v861
        %1002 = vmatprep.subr.bf16.mxu0 %v864
        %1003 = vmatpush1.bf16.msra.mxu0 %v863
        %1004 = vmatprep.subr.bf16.mxu0 %v866
        %1005 = vmatpush1.bf16.msra.mxu0 %v865
        %1006 = vmatprep.subr.bf16.mxu0 %v868
        %1007 = vmatpush1.bf16.msra.mxu0 %v867
        %1008 = vmatprep.mubr.bf16.mxu0 %v608
        %1009 = vmatmul.mubr.bf16.gmra.mrb[0].mxu0 %v607
        %v1010 = vpop.f32.mrb[0].mxu0
        %v1011 = vadd.f32 %v968, %v1010
        %v1012 = vpop.f32.mrb[0].mxu0
        %v1013 = vadd.f32 %v970, %v1012
        %v1014 = vpop.f32.mrb[0].mxu0
        %v1015 = vadd.f32 %v972, %v1014
        %v1016 = vpop.f32.mrb[0].mxu0
        %v1017 = vadd.f32 %v974, %v1016
        %1018 = vdwg.mxu0
        %1019 = vst [vmem:[%s497] sm:$0xff] %v1011
        %1020 = vst [vmem:[%s497 + $0x8] sm:$0xff] %v1013
        %1021 = vst [vmem:[%s497 + $0x10] sm:$0xff] %v1015
        %1022 = vst [vmem:[%s497 + $0x18] sm:$0xff] %v1017
        %s1023 = sand.u32 %s114, 1
        %s1024 = sand.u32 %s114, 1
        %s1025 = smul.addr %s1024, 32
        %s1026 = scalar_lea.vmem [#allocation3], %s1025
        // Predicated region
        $region71: #{_lambda_.109} parent=65 // pred_check
          %p1027 = pneg %p124
        $region72: #{_lambda_.109} parent=65 // pred_check_branch
          %1029 = sbr.rel (%p1027) target = $region74
        $region73: #{_lambda_.109} parent=65 // pred_region
          %s1030 = smul.u32 2, %s18
          %s1031 = smul.u32 2, %s19
          %s1032 = smul.addr %s1030, 8
          %s1033 = sadd.s32 %s1031, %s1032
          %s1034 = smul.addr %s1033, 8
          %s1035 = scalar_lea.vmem %s3, %s1034
          // Predicated region
          $region75: #{_lambda_.109} parent=73 // pred_check
            _
          $region76: #{_lambda_.109} parent=73 // pred_check_branch
            %1037 = sbr.rel (0) target = $region78
          $region77: #{_lambda_.109} parent=73 // pred_region
            // Predicated region
            $region79: #{_lambda_.109} parent=77 // pred_check
              _
            $region80: #{_lambda_.109} parent=77 // pred_check_branch
              %1039 = sbr.rel (0) target = $region82
            $region81: #{_lambda_.109} parent=77 // pred_region
              loop: start=0, step=1, limit=1
              $region83: #{_lambda_.109} parent=81 // loop_pre_header
                _
              $region84: #{_lambda_.109} parent=81 // loop_header
                %s1041 = sphi 0, %s1045
                %p1042 = scmp.ge.s32.totalorder %s1041, 1
                %s1046 = sphi %s1026, %s1026
                %s1047 = sphi %s1035, %s1035
              $region85: #{_lambda_.109} parent=81 // loop_header_branch
                %1044 = sbr.rel (%p1042) target = $region89
              $region86: #{_lambda_.109} parent=81 // loop_body
                %v1048 = vld [vmem:[%s1046] sm:$0xff]
                %1049 = vst [vmem:[%s1047] sm:$0xff] %v1048
                %v1050 = vld [vmem:[%s1046 + $0x8] sm:$0xff]
                %1051 = vst [vmem:[%s1047 + $0x8] sm:$0xff] %v1050
                %v1052 = vld [vmem:[%s1046 + $0x10] sm:$0xff]
                %1053 = vst [vmem:[%s1047 + $0x40] sm:$0xff] %v1052
                %v1054 = vld [vmem:[%s1046 + $0x18] sm:$0xff]
                %1055 = vst [vmem:[%s1047 + $0x48] sm:$0xff] %v1054
              $region87: #{_lambda_.109} parent=81 // loop_footer
                %s1045 = sadd.s32 1, %s1041
              $region88: #{_lambda_.109} parent=81 // loop_footer_branch
                %1040 = sbr.rel target = $region84
              $region89: #{_lambda_.109} parent=81 // loop_exit
                _
            $region82: #{_lambda_.109} parent=77 // pred_fallthru
              _
            // Predicated region
            $region90: #{_lambda_.109} parent=77 // pred_check
              _
            $region91: #{_lambda_.109} parent=77 // pred_check_branch
              %1057 = sbr.rel target = $region93
            $region92: #{_lambda_.109} parent=77 // pred_region
              _
            $region93: #{_lambda_.109} parent=77 // pred_fallthru
              _
          $region78: #{_lambda_.109} parent=73 // pred_fallthru
            _
          %1058 = vnop
        $region74: #{_lambda_.109} parent=65 // pred_fallthru
          _
      $region66: #{_lambda_.109} parent=5 // pred_fallthru
        _
      %p1059 = scmp.le.s32.totalorder 2, %s9
      // Predicated region
      $region94: #{_lambda_.109} parent=5 // pred_check
        %p1060 = pneg %p1059
      $region95: #{_lambda_.109} parent=5 // pred_check_branch
        %1062 = sbr.rel (%p1060) target = $region97
      $region96: #{_lambda_.109} parent=5 // pred_region
        %s1063 = ssub.s32 %s9, 2
        // Predicated region
        $region98: #{_lambda_.109} parent=96 // pred_check
          %p1064 = pneg %p130
        $region99: #{_lambda_.109} parent=96 // pred_check_branch
          %1066 = sbr.rel (%p1064) target = $region101
        $region100: #{_lambda_.109} parent=96 // pred_region
          %s1067 = sand.u32 %s115, 1
          %s1068 = sand.u32 %s115, 1
          %s1069 = smul.addr %s1068, 32
          %s1070 = scalar_lea.vmem [#allocation3], %s1069
        $region101: #{_lambda_.109} parent=96 // pred_fallthru
          _
      $region97: #{_lambda_.109} parent=5 // pred_fallthru
        _
    $region6: #{_lambda_.109} parent=1 // loop_footer
      %s13 = sadd.s32 1, %s9
    $region7: #{_lambda_.109} parent=1 // loop_footer_branch
      %8 = sbr.rel target = $region3
    $region8: #{_lambda_.109} parent=1 // loop_exit
      _

// kernel: _lambda_.104
$region0: #{_lambda_.104}
  #allocation0 [shape = 'u32[]', space=smem, size = 0x4, offset = 0x4, fixed_abs, tag = 'smem constant byte address 0x4 - core index']
  #allocation1 [shape = 'u32[144,128]{1,0:T(1,128)}', space=vmem, size = 0x12000, scoped, tag = 'internal scratch']
  %s0 = inlined_call_operand.vmem [shape: bf16[16,512], index: 0, kind: input, shape index: {}]
  %s1 = inlined_call_operand.vmem [shape: bf16[512,512], index: 1, kind: input, shape index: {}]
  %s2 = inlined_call_operand.vmem [shape: f32[1,512], index: 2, kind: input, shape index: {}]
  %s3 = inlined_call_operand.vmem [shape: f32[16,512], index: 3, kind: output, shape index: {}]
  %s4 = sld [smem:[#allocation0]]
  $region102: #{_lambda_.104} parent=0
    _
  %s6 = ssub.s32 1, %s4
  %s7 = scalar_select 0, %s6, %s4
  $region1: #{_lambda_.104} parent=0
    #allocation2 [shape = 'u8[524288]{0}', space=vmem, size = 0x80000, scoped, tag = 'input window, operand 1']
    #allocation3 [shape = 'u8[32768]{0}', space=vmem, size = 0x8000, scoped, tag = 'output window, operand 0']
    loop: start=0, step=1, limit=4
    $region2: #{_lambda_.104} parent=1 // loop_pre_header
      _
    $region3: #{_lambda_.104} parent=1 // loop_header
      %s9 = sphi 0, %s13
      %p10 = scmp.ge.s32.totalorder %s9, 4
      %s16 = sphi 0, %s28
      %s17 = sphi 0, %s24
      %s18 = sphi 0, %s16
      %s19 = sphi 0, %s17
      %s20 = sphi 0, %s18
      %s21 = sphi 0, %s19
      %s31 = sphi 0, %s33
      %s34 = sphi 0, %s31
      %s35 = sphi 0, %s34
      %s51 = sphi 0, %s35
      %s57 = sphi 0, %s59
      %s60 = sphi 0, %s57
      %s61 = sphi 0, %s60
      %s77 = sphi 0, %s61
      %s83 = sphi 0, %s85
      %s86 = sphi 0, %s83
      %s87 = sphi 0, %s86
      %s103 = sphi 0, %s87
      %s111 = sphi 0, %s113
      %s114 = sphi 0, %s111
      %s115 = sphi 0, %s114
      %s131 = sphi 0, %s115
    $region4: #{_lambda_.104} parent=1 // loop_header_branch
      %12 = sbr.rel (%p10) target = $region8
    $region5: #{_lambda_.104} parent=1 // loop_body
      %s14 = ssub.s32 %s9, 1
      %s15 = ssub.s32 %s9, 2
      %s22 = sadd.s32 1, %s17
      %p23 = scmp.ge.s32.totalorder %s22, 2
      %s24 = scalar_select %p23, 0, %s22
      %s25 = sadd.s32 1, %s16
      %s26 = scalar_select %p23, %s25, %s16
      %p27 = scmp.ge.s32.totalorder %s26, 1
      %s28 = scalar_select %p27, 0, %s26
      %s29 = ssub.s32 %s16, %s28
      %p30 = scmp.eq.s32.totalorder %s29, 0
      %s32 = sadd.s32 %s31, 1
      %s33 = scalar_select %p30, %s31, %s32
      %p36 = pneg %p30
      %p37 = scmp.eq.s32.totalorder %s9, 1
      %p38 = por %p36, %p37
      %p39 = scmp.ne.s32.totalorder %s31, %s34
      %p40 = scmp.eq.s32.totalorder %s9, 0
      %p41 = por %p39, %p40
      %p42 = scmp.ne.s32.totalorder %s31, %s34
      %p43 = scmp.eq.s32.totalorder %s14, 1
      %p44 = por %p42, %p43
      %p45 = scmp.ne.s32.totalorder %s34, %s35
      %p46 = scmp.eq.s32.totalorder %s14, 0
      %p47 = por %p45, %p46
      %p48 = scmp.ne.s32.totalorder %s34, %s35
      %p49 = scmp.eq.s32.totalorder %s15, 1
      %p50 = por %p48, %p49
      %p52 = scmp.ne.s32.totalorder %s35, %s51
      %p53 = scmp.eq.s32.totalorder %s15, 0
      %p54 = por %p52, %p53
      %s55 = ssub.s32 %s17, %s24
      %p56 = scmp.eq.s32.totalorder %s55, 0
      %s58 = sadd.s32 %s57, 1
      %s59 = scalar_select %p56, %s57, %s58
      %p62 = pneg %p56
      %p63 = scmp.eq.s32.totalorder %s9, 1
      %p64 = por %p62, %p63
      %p65 = scmp.ne.s32.totalorder %s57, %s60
      %p66 = scmp.eq.s32.totalorder %s9, 0
      %p67 = por %p65, %p66
      %p68 = scmp.ne.s32.totalorder %s57, %s60
      %p69 = scmp.eq.s32.totalorder %s14, 1
      %p70 = por %p68, %p69
      %p71 = scmp.ne.s32.totalorder %s60, %s61
      %p72 = scmp.eq.s32.totalorder %s14, 0
      %p73 = por %p71, %p72
      %p74 = scmp.ne.s32.totalorder %s60, %s61
      %p75 = scmp.eq.s32.totalorder %s15, 1
      %p76 = por %p74, %p75
      %p78 = scmp.ne.s32.totalorder %s61, %s77
      %p79 = scmp.eq.s32.totalorder %s15, 0
      %p80 = por %p78, %p79
      %s81 = ssub.s32 %s17, %s24
      %p82 = scmp.eq.s32.totalorder %s81, 0
      %s84 = sadd.s32 %s83, 1
      %s85 = scalar_select %p82, %s83, %s84
      %p88 = pneg %p82
      %p89 = scmp.eq.s32.totalorder %s9, 1
      %p90 = por %p88, %p89
      %p91 = scmp.ne.s32.totalorder %s83, %s86
      %p92 = scmp.eq.s32.totalorder %s9, 0
      %p93 = por %p91, %p92
      %p94 = scmp.ne.s32.totalorder %s83, %s86
      %p95 = scmp.eq.s32.totalorder %s14, 1
      %p96 = por %p94, %p95
      %p97 = scmp.ne.s32.totalorder %s86, %s87
      %p98 = scmp.eq.s32.totalorder %s14, 0
      %p99 = por %p97, %p98
      %p100 = scmp.ne.s32.totalorder %s86, %s87
      %p101 = scmp.eq.s32.totalorder %s15, 1
      %p102 = por %p100, %p101
      %p104 = scmp.ne.s32.totalorder %s87, %s103
      %p105 = scmp.eq.s32.totalorder %s15, 0
      %p106 = por %p104, %p105
      %s107 = ssub.s32 %s16, %s28
      %s108 = ssub.s32 %s17, %s24
      %s109 = sor.u32 %s107, %s108
      %p110 = scmp.eq.s32.totalorder %s109, 0
      %s112 = sadd.s32 %s111, 1
      %s113 = scalar_select %p110, %s111, %s112
      %p116 = pneg %p110
      %p117 = scmp.eq.s32.totalorder %s9, 1
      %p118 = por %p116, %p117
      %p119 = scmp.ne.s32.totalorder %s111, %s114
      %p120 = scmp.eq.s32.totalorder %s9, 0
      %p121 = por %p119, %p120
      %p122 = scmp.ne.s32.totalorder %s111, %s114
      %p123 = scmp.eq.s32.totalorder %s14, 1
      %p124 = por %p122, %p123
      %p125 = scmp.ne.s32.totalorder %s114, %s115
      %p126 = scmp.eq.s32.totalorder %s14, 0
      %p127 = por %p125, %p126
      %p128 = scmp.ne.s32.totalorder %s114, %s115
      %p129 = scmp.eq.s32.totalorder %s15, 1
      %p130 = por %p128, %p129
      %p132 = scmp.ne.s32.totalorder %s115, %s131
      %p133 = scmp.eq.s32.totalorder %s15, 0
      %p134 = por %p132, %p133
      %p135 = scmp.le.s32.totalorder 1, %s9
      %p136 = scmp.lt.s32.totalorder %s9, 3
      %p137 = pnand %p135, %p136
      %p138 = pneg %p137
      // Predicated region
      $region9: #{_lambda_.104} parent=5 // pred_check
        _
      $region10: #{_lambda_.104} parent=5 // pred_check_branch
        %140 = sbr.rel (%p137) target = $region12
      $region11: #{_lambda_.104} parent=5 // pred_region
        %s141 = ssub.s32 %s9, 1
        // Predicated region
        $region13: #{_lambda_.104} parent=11 // pred_check
          %p142 = pneg %p47
        $region14: #{_lambda_.104} parent=11 // pred_check_branch
          %144 = sbr.rel (%p142) target = $region16
        $region15: #{_lambda_.104} parent=11 // pred_region
          %s145 = smul.u32 2, %s18
          %p146 = scmp.lt.s32.totalorder %s145, 1
          %s147 = scalar_select %p146, %s145, 1
          %s148 = smul.addr %s147, 4
          %s149 = smul.addr %s148, 4
          %s150 = scalar_lea.vmem %s0, %s149
          %s151 = smul.u32 2, %s18
        $region16: #{_lambda_.104} parent=11 // pred_fallthru
          _
      $region12: #{_lambda_.104} parent=5 // pred_fallthru
        _
      %p152 = scmp.lt.s32.totalorder %s9, 2
      // Predicated region
      $region17: #{_lambda_.104} parent=5 // pred_check
        %p153 = pneg %p152
      $region18: #{_lambda_.104} parent=5 // pred_check_branch
        %155 = sbr.rel (%p153) target = $region20
      $region19: #{_lambda_.104} parent=5 // pred_region
        // Predicated region
        $region21: #{_lambda_.104} parent=19 // pred_check
          %p156 = pneg %p67
        $region22: #{_lambda_.104} parent=19 // pred_check_branch
          %158 = sbr.rel (%p156) target = $region24
        $region23: #{_lambda_.104} parent=19 // pred_region
          %s159 = sand.u32 %s57, 1
          %s160 = sand.u32 %s57, 1
          %s161 = smul.addr %s160, 512
          %s162 = scalar_lea.vmem [#allocation2], %s161
          %s163 = smul.u32 2, %s17
          %s164 = smul.addr %s163, 4
          %s165 = scalar_lea.vmem %s1, %s164
          // Predicated region
          $region25: #{_lambda_.104} parent=23 // pred_check
            _
          $region26: #{_lambda_.104} parent=23 // pred_check_branch
            %167 = sbr.rel (0) target = $region28
          $region27: #{_lambda_.104} parent=23 // pred_region
            // Predicated region
            $region29: #{_lambda_.104} parent=27 // pred_check
              _
            $region30: #{_lambda_.104} parent=27 // pred_check_branch
              %169 = sbr.rel (0) target = $region32
            $region31: #{_lambda_.104} parent=27 // pred_region
              // Predicated region
              $region44: #{_lambda_.104} parent=31 // pred_check
                _
              $region45: #{_lambda_.104} parent=31 // pred_check_branch
                %310 = sbr.rel (0) target = $region47
              $region46: #{_lambda_.104} parent=31 // pred_region
                loop: start=0, step=1, limit=1
                $region48: #{_lambda_.104} parent=46 // loop_pre_header
                  _
                $region49: #{_lambda_.104} parent=46 // loop_header
                  %s312 = sphi 0, %s316
                  %p313 = scmp.ge.s32.totalorder %s312, 1
                  %s317 = sphi %s165, %s165
                  %s318 = sphi %s162, %s162
                $region50: #{_lambda_.104} parent=46 // loop_header_branch
                  %315 = sbr.rel (%p313) target = $region54
                $region51: #{_lambda_.104} parent=46 // loop_body
                  %v319 = vld [vmem:[%s317] sm:$0xff]
                  %320 = vst [vmem:[%s318] sm:$0xff] %v319
                  %v321 = vld [vmem:[%s317 + $0x10] sm:$0xff]
                  %322 = vst [vmem:[%s318 + $0x8] sm:$0xff] %v321
                  %v323 = vld [vmem:[%s317 + $0x20] sm:$0xff]
                  %324 = vst [vmem:[%s318 + $0x10] sm:$0xff] %v323
                  %v325 = vld [vmem:[%s317 + $0x30] sm:$0xff]
                  %326 = vst [vmem:[%s318 + $0x18] sm:$0xff] %v325
                  %v327 = vld [vmem:[%s317 + $0x40] sm:$0xff]
                  %328 = vst [vmem:[%s318 + $0x20] sm:$0xff] %v327
                  %v329 = vld [vmem:[%s317 + $0x50] sm:$0xff]
                  %330 = vst [vmem:[%s318 + $0x28] sm:$0xff] %v329
                  %v331 = vld [vmem:[%s317 + $0x60] sm:$0xff]
                  %332 = vst [vmem:[%s318 + $0x30] sm:$0xff] %v331
                  %v333 = vld [vmem:[%s317 + $0x70] sm:$0xff]
                  %334 = vst [vmem:[%s318 + $0x38] sm:$0xff] %v333
                  %v335 = vld [vmem:[%s317 + $0x80] sm:$0xff]
                  %336 = vst [vmem:[%s318 + $0x40] sm:$0xff] %v335
                  %v337 = vld [vmem:[%s317 + $0x90] sm:$0xff]
                  %338 = vst [vmem:[%s318 + $0x48] sm:$0xff] %v337
                  %v339 = vld [vmem:[%s317 + $0xa0] sm:$0xff]
                  %340 = vst [vmem:[%s318 + $0x50] sm:$0xff] %v339
                  %v341 = vld [vmem:[%s317 + $0xb0] sm:$0xff]
                  %342 = vst [vmem:[%s318 + $0x58] sm:$0xff] %v341
                  %v343 = vld [vmem:[%s317 + $0xc0] sm:$0xff]
                  %344 = vst [vmem:[%s318 + $0x60] sm:$0xff] %v343
                  %v345 = vld [vmem:[%s317 + $0xd0] sm:$0xff]
                  %346 = vst [vmem:[%s318 + $0x68] sm:$0xff] %v345
                  %v347 = vld [vmem:[%s317 + $0xe0] sm:$0xff]
                  %348 = vst [vmem:[%s318 + $0x70] sm:$0xff] %v347
                  %v349 = vld [vmem:[%s317 + $0xf0] sm:$0xff]
                  %350 = vst [vmem:[%s318 + $0x78] sm:$0xff] %v349
                  %v351 = vld [vmem:[%s317 + $0x100] sm:$0xff]
                  %352 = vst [vmem:[%s318 + $0x80] sm:$0xff] %v351
                  %v353 = vld [vmem:[%s317 + $0x110] sm:$0xff]
                  %354 = vst [vmem:[%s318 + $0x88] sm:$0xff] %v353
                  %v355 = vld [vmem:[%s317 + $0x120] sm:$0xff]
                  %356 = vst [vmem:[%s318 + $0x90] sm:$0xff] %v355
                  %v357 = vld [vmem:[%s317 + $0x130] sm:$0xff]
                  %358 = vst [vmem:[%s318 + $0x98] sm:$0xff] %v357
                  %v359 = vld [vmem:[%s317 + $0x140] sm:$0xff]
                  %360 = vst [vmem:[%s318 + $0xa0] sm:$0xff] %v359
                  %v361 = vld [vmem:[%s317 + $0x150] sm:$0xff]
                  %362 = vst [vmem:[%s318 + $0xa8] sm:$0xff] %v361
                  %v363 = vld [vmem:[%s317 + $0x160] sm:$0xff]
                  %364 = vst [vmem:[%s318 + $0xb0] sm:$0xff] %v363
                  %v365 = vld [vmem:[%s317 + $0x170] sm:$0xff]
                  %366 = vst [vmem:[%s318 + $0xb8] sm:$0xff] %v365
                  %v367 = vld [vmem:[%s317 + $0x180] sm:$0xff]
                  %368 = vst [vmem:[%s318 + $0xc0] sm:$0xff] %v367
                  %v369 = vld [vmem:[%s317 + $0x190] sm:$0xff]
                  %370 = vst [vmem:[%s318 + $0xc8] sm:$0xff] %v369
                  %v371 = vld [vmem:[%s317 + $0x1a0] sm:$0xff]
                  %372 = vst [vmem:[%s318 + $0xd0] sm:$0xff] %v371
                  %v373 = vld [vmem:[%s317 + $0x1b0] sm:$0xff]
                  %374 = vst [vmem:[%s318 + $0xd8] sm:$0xff] %v373
                  %v375 = vld [vmem:[%s317 + $0x1c0] sm:$0xff]
                  %376 = vst [vmem:[%s318 + $0xe0] sm:$0xff] %v375
                  %v377 = vld [vmem:[%s317 + $0x1d0] sm:$0xff]
                  %378 = vst [vmem:[%s318 + $0xe8] sm:$0xff] %v377
                  %v379 = vld [vmem:[%s317 + $0x1e0] sm:$0xff]
                  %380 = vst [vmem:[%s318 + $0xf0] sm:$0xff] %v379
                  %v381 = vld [vmem:[%s317 + $0x1f0] sm:$0xff]
                  %382 = vst [vmem:[%s318 + $0xf8] sm:$0xff] %v381
                  %v383 = vld [vmem:[%s317 + $0x200] sm:$0xff]
                  %384 = vst [vmem:[%s318 + $0x100] sm:$0xff] %v383
                  %v385 = vld [vmem:[%s317 + $0x210] sm:$0xff]
                  %386 = vst [vmem:[%s318 + $0x108] sm:$0xff] %v385
                  %v387 = vld [vmem:[%s317 + $0x220] sm:$0xff]
                  %388 = vst [vmem:[%s318 + $0x110] sm:$0xff] %v387
                  %v389 = vld [vmem:[%s317 + $0x230] sm:$0xff]
                  %390 = vst [vmem:[%s318 + $0x118] sm:$0xff] %v389
                  %v391 = vld [vmem:[%s317 + $0x240] sm:$0xff]
                  %392 = vst [vmem:[%s318 + $0x120] sm:$0xff] %v391
                  %v393 = vld [vmem:[%s317 + $0x250] sm:$0xff]
                  %394 = vst [vmem:[%s318 + $0x128] sm:$0xff] %v393
                  %v395 = vld [vmem:[%s317 + $0x260] sm:$0xff]
                  %396 = vst [vmem:[%s318 + $0x130] sm:$0xff] %v395
                  %v397 = vld [vmem:[%s317 + $0x270] sm:$0xff]
                  %398 = vst [vmem:[%s318 + $0x138] sm:$0xff] %v397
                  %v399 = vld [vmem:[%s317 + $0x280] sm:$0xff]
                  %400 = vst [vmem:[%s318 + $0x140] sm:$0xff] %v399
                  %v401 = vld [vmem:[%s317 + $0x290] sm:$0xff]
                  %402 = vst [vmem:[%s318 + $0x148] sm:$0xff] %v401
                  %v403 = vld [vmem:[%s317 + $0x2a0] sm:$0xff]
                  %404 = vst [vmem:[%s318 + $0x150] sm:$0xff] %v403
                  %v405 = vld [vmem:[%s317 + $0x2b0] sm:$0xff]
                  %406 = vst [vmem:[%s318 + $0x158] sm:$0xff] %v405
                  %v407 = vld [vmem:[%s317 + $0x2c0] sm:$0xff]
                  %408 = vst [vmem:[%s318 + $0x160] sm:$0xff] %v407
                  %v409 = vld [vmem:[%s317 + $0x2d0] sm:$0xff]
                  %410 = vst [vmem:[%s318 + $0x168] sm:$0xff] %v409
                  %v411 = vld [vmem:[%s317 + $0x2e0] sm:$0xff]
                  %412 = vst [vmem:[%s318 + $0x170] sm:$0xff] %v411
                  %v413 = vld [vmem:[%s317 + $0x2f0] sm:$0xff]
                  %414 = vst [vmem:[%s318 + $0x178] sm:$0xff] %v413
                  %v415 = vld [vmem:[%s317 + $0x300] sm:$0xff]
                  %416 = vst [vmem:[%s318 + $0x180] sm:$0xff] %v415
                  %v417 = vld [vmem:[%s317 + $0x310] sm:$0xff]
                  %418 = vst [vmem:[%s318 + $0x188] sm:$0xff] %v417
                  %v419 = vld [vmem:[%s317 + $0x320] sm:$0xff]
                  %420 = vst [vmem:[%s318 + $0x190] sm:$0xff] %v419
                  %v421 = vld [vmem:[%s317 + $0x330] sm:$0xff]
                  %422 = vst [vmem:[%s318 + $0x198] sm:$0xff] %v421
                  %v423 = vld [vmem:[%s317 + $0x340] sm:$0xff]
                  %424 = vst [vmem:[%s318 + $0x1a0] sm:$0xff] %v423
                  %v425 = vld [vmem:[%s317 + $0x350] sm:$0xff]
                  %426 = vst [vmem:[%s318 + $0x1a8] sm:$0xff] %v425
                  %v427 = vld [vmem:[%s317 + $0x360] sm:$0xff]
                  %428 = vst [vmem:[%s318 + $0x1b0] sm:$0xff] %v427
                  %v429 = vld [vmem:[%s317 + $0x370] sm:$0xff]
                  %430 = vst [vmem:[%s318 + $0x1b8] sm:$0xff] %v429
                  %v431 = vld [vmem:[%s317 + $0x380] sm:$0xff]
                  %432 = vst [vmem:[%s318 + $0x1c0] sm:$0xff] %v431
                  %v433 = vld [vmem:[%s317 + $0x390] sm:$0xff]
                  %434 = vst [vmem:[%s318 + $0x1c8] sm:$0xff] %v433
                  %v435 = vld [vmem:[%s317 + $0x3a0] sm:$0xff]
                  %436 = vst [vmem:[%s318 + $0x1d0] sm:$0xff] %v435
                  %v437 = vld [vmem:[%s317 + $0x3b0] sm:$0xff]
                  %438 = vst [vmem:[%s318 + $0x1d8] sm:$0xff] %v437
                  %v439 = vld [vmem:[%s317 + $0x3c0] sm:$0xff]
                  %440 = vst [vmem:[%s318 + $0x1e0] sm:$0xff] %v439
                  %v441 = vld [vmem:[%s317 + $0x3d0] sm:$0xff]
                  %442 = vst [vmem:[%s318 + $0x1e8] sm:$0xff] %v441
                  %v443 = vld [vmem:[%s317 + $0x3e0] sm:$0xff]
                  %444 = vst [vmem:[%s318 + $0x1f0] sm:$0xff] %v443
                  %v445 = vld [vmem:[%s317 + $0x3f0] sm:$0xff]
                  %446 = vst [vmem:[%s318 + $0x1f8] sm:$0xff] %v445
                $region52: #{_lambda_.104} parent=46 // loop_footer
                  %s316 = sadd.s32 1, %s312
                $region53: #{_lambda_.104} parent=46 // loop_footer_branch
                  %311 = sbr.rel target = $region49
                $region54: #{_lambda_.104} parent=46 // loop_exit
                  _
              $region47: #{_lambda_.104} parent=31 // pred_fallthru
                _
              // Predicated region
              $region55: #{_lambda_.104} parent=31 // pred_check
                _
              $region56: #{_lambda_.104} parent=31 // pred_check_branch
                %448 = sbr.rel target = $region58
              $region57: #{_lambda_.104} parent=31 // pred_region
                _
              $region58: #{_lambda_.104} parent=31 // pred_fallthru
                _
            $region32: #{_lambda_.104} parent=27 // pred_fallthru
              _
            // Predicated region
            $region33: #{_lambda_.104} parent=27 // pred_check
              _
            $region34: #{_lambda_.104} parent=27 // pred_check_branch
              %171 = sbr.rel target = $region36
            $region35: #{_lambda_.104} parent=27 // pred_region
              loop: start=0, step=1, limit=1
              $region37: #{_lambda_.104} parent=35 // loop_pre_header
                _
              $region38: #{_lambda_.104} parent=35 // loop_header
                %s174 = sphi 0, %s178
                %p175 = scmp.ge.s32.totalorder %s174, 1
                %s179 = sphi %s165, %s165
                %s180 = sphi %s162, %s162
              $region39: #{_lambda_.104} parent=35 // loop_header_branch
                %177 = sbr.rel (%p175) target = $region43
              $region40: #{_lambda_.104} parent=35 // loop_body
                %v181 = vld [vmem:[%s179] sm:$0xff]
                %182 = vst [vmem:[%s180] sm:$0xff] %v181
                %v183 = vld [vmem:[%s179 + $0x10] sm:$0xff]
                %184 = vst [vmem:[%s180 + $0x8] sm:$0xff] %v183
                %v185 = vld [vmem:[%s179 + $0x20] sm:$0xff]
                %186 = vst [vmem:[%s180 + $0x10] sm:$0xff] %v185
                %v187 = vld [vmem:[%s179 + $0x30] sm:$0xff]
                %188 = vst [vmem:[%s180 + $0x18] sm:$0xff] %v187
                %v189 = vld [vmem:[%s179 + $0x40] sm:$0xff]
                %190 = vst [vmem:[%s180 + $0x20] sm:$0xff] %v189
                %v191 = vld [vmem:[%s179 + $0x50] sm:$0xff]
                %192 = vst [vmem:[%s180 + $0x28] sm:$0xff] %v191
                %v193 = vld [vmem:[%s179 + $0x60] sm:$0xff]
                %194 = vst [vmem:[%s180 + $0x30] sm:$0xff] %v193
                %v195 = vld [vmem:[%s179 + $0x70] sm:$0xff]
                %196 = vst [vmem:[%s180 + $0x38] sm:$0xff] %v195
                %v197 = vld [vmem:[%s179 + $0x80] sm:$0xff]
                %198 = vst [vmem:[%s180 + $0x40] sm:$0xff] %v197
                %v199 = vld [vmem:[%s179 + $0x90] sm:$0xff]
                %200 = vst [vmem:[%s180 + $0x48] sm:$0xff] %v199
                %v201 = vld [vmem:[%s179 + $0xa0] sm:$0xff]
                %202 = vst [vmem:[%s180 + $0x50] sm:$0xff] %v201
                %v203 = vld [vmem:[%s179 + $0xb0] sm:$0xff]
                %204 = vst [vmem:[%s180 + $0x58] sm:$0xff] %v203
                %v205 = vld [vmem:[%s179 + $0xc0] sm:$0xff]
                %206 = vst [vmem:[%s180 + $0x60] sm:$0xff] %v205
                %v207 = vld [vmem:[%s179 + $0xd0] sm:$0xff]
                %208 = vst [vmem:[%s180 + $0x68] sm:$0xff] %v207
                %v209 = vld [vmem:[%s179 + $0xe0] sm:$0xff]
                %210 = vst [vmem:[%s180 + $0x70] sm:$0xff] %v209
                %v211 = vld [vmem:[%s179 + $0xf0] sm:$0xff]
                %212 = vst [vmem:[%s180 + $0x78] sm:$0xff] %v211
                %v213 = vld [vmem:[%s179 + $0x100] sm:$0xff]
                %214 = vst [vmem:[%s180 + $0x80] sm:$0xff] %v213
                %v215 = vld [vmem:[%s179 + $0x110] sm:$0xff]
                %216 = vst [vmem:[%s180 + $0x88] sm:$0xff] %v215
                %v217 = vld [vmem:[%s179 + $0x120] sm:$0xff]
                %218 = vst [vmem:[%s180 + $0x90] sm:$0xff] %v217
                %v219 = vld [vmem:[%s179 + $0x130] sm:$0xff]
                %220 = vst [vmem:[%s180 + $0x98] sm:$0xff] %v219
                %v221 = vld [vmem:[%s179 + $0x140] sm:$0xff]
                %222 = vst [vmem:[%s180 + $0xa0] sm:$0xff] %v221
                %v223 = vld [vmem:[%s179 + $0x150] sm:$0xff]
                %224 = vst [vmem:[%s180 + $0xa8] sm:$0xff] %v223
                %v225 = vld [vmem:[%s179 + $0x160] sm:$0xff]
                %226 = vst [vmem:[%s180 + $0xb0] sm:$0xff] %v225
                %v227 = vld [vmem:[%s179 + $0x170] sm:$0xff]
                %228 = vst [vmem:[%s180 + $0xb8] sm:$0xff] %v227
                %v229 = vld [vmem:[%s179 + $0x180] sm:$0xff]
                %230 = vst [vmem:[%s180 + $0xc0] sm:$0xff] %v229
                %v231 = vld [vmem:[%s179 + $0x190] sm:$0xff]
                %232 = vst [vmem:[%s180 + $0xc8] sm:$0xff] %v231
                %v233 = vld [vmem:[%s179 + $0x1a0] sm:$0xff]
                %234 = vst [vmem:[%s180 + $0xd0] sm:$0xff] %v233
                %v235 = vld [vmem:[%s179 + $0x1b0] sm:$0xff]
                %236 = vst [vmem:[%s180 + $0xd8] sm:$0xff] %v235
                %v237 = vld [vmem:[%s179 + $0x1c0] sm:$0xff]
                %238 = vst [vmem:[%s180 + $0xe0] sm:$0xff] %v237
                %v239 = vld [vmem:[%s179 + $0x1d0] sm:$0xff]
                %240 = vst [vmem:[%s180 + $0xe8] sm:$0xff] %v239
                %v241 = vld [vmem:[%s179 + $0x1e0] sm:$0xff]
                %242 = vst [vmem:[%s180 + $0xf0] sm:$0xff] %v241
                %v243 = vld [vmem:[%s179 + $0x1f0] sm:$0xff]
                %244 = vst [vmem:[%s180 + $0xf8] sm:$0xff] %v243
                %v245 = vld [vmem:[%s179 + $0x200] sm:$0xff]
                %246 = vst [vmem:[%s180 + $0x100] sm:$0xff] %v245
                %v247 = vld [vmem:[%s179 + $0x210] sm:$0xff]
                %248 = vst [vmem:[%s180 + $0x108] sm:$0xff] %v247
                %v249 = vld [vmem:[%s179 + $0x220] sm:$0xff]
                %250 = vst [vmem:[%s180 + $0x110] sm:$0xff] %v249
                %v251 = vld [vmem:[%s179 + $0x230] sm:$0xff]
                %252 = vst [vmem:[%s180 + $0x118] sm:$0xff] %v251
                %v253 = vld [vmem:[%s179 + $0x240] sm:$0xff]
                %254 = vst [vmem:[%s180 + $0x120] sm:$0xff] %v253
                %v255 = vld [vmem:[%s179 + $0x250] sm:$0xff]
                %256 = vst [vmem:[%s180 + $0x128] sm:$0xff] %v255
                %v257 = vld [vmem:[%s179 + $0x260] sm:$0xff]
                %258 = vst [vmem:[%s180 + $0x130] sm:$0xff] %v257
                %v259 = vld [vmem:[%s179 + $0x270] sm:$0xff]
                %260 = vst [vmem:[%s180 + $0x138] sm:$0xff] %v259
                %v261 = vld [vmem:[%s179 + $0x280] sm:$0xff]
                %262 = vst [vmem:[%s180 + $0x140] sm:$0xff] %v261
                %v263 = vld [vmem:[%s179 + $0x290] sm:$0xff]
                %264 = vst [vmem:[%s180 + $0x148] sm:$0xff] %v263
                %v265 = vld [vmem:[%s179 + $0x2a0] sm:$0xff]
                %266 = vst [vmem:[%s180 + $0x150] sm:$0xff] %v265
                %v267 = vld [vmem:[%s179 + $0x2b0] sm:$0xff]
                %268 = vst [vmem:[%s180 + $0x158] sm:$0xff] %v267
                %v269 = vld [vmem:[%s179 + $0x2c0] sm:$0xff]
                %270 = vst [vmem:[%s180 + $0x160] sm:$0xff] %v269
                %v271 = vld [vmem:[%s179 + $0x2d0] sm:$0xff]
                %272 = vst [vmem:[%s180 + $0x168] sm:$0xff] %v271
                %v273 = vld [vmem:[%s179 + $0x2e0] sm:$0xff]
                %274 = vst [vmem:[%s180 + $0x170] sm:$0xff] %v273
                %v275 = vld [vmem:[%s179 + $0x2f0] sm:$0xff]
                %276 = vst [vmem:[%s180 + $0x178] sm:$0xff] %v275
                %v277 = vld [vmem:[%s179 + $0x300] sm:$0xff]
                %278 = vst [vmem:[%s180 + $0x180] sm:$0xff] %v277
                %v279 = vld [vmem:[%s179 + $0x310] sm:$0xff]
                %280 = vst [vmem:[%s180 + $0x188] sm:$0xff] %v279
                %v281 = vld [vmem:[%s179 + $0x320] sm:$0xff]
                %282 = vst [vmem:[%s180 + $0x190] sm:$0xff] %v281
                %v283 = vld [vmem:[%s179 + $0x330] sm:$0xff]
                %284 = vst [vmem:[%s180 + $0x198] sm:$0xff] %v283
                %v285 = vld [vmem:[%s179 + $0x340] sm:$0xff]
                %286 = vst [vmem:[%s180 + $0x1a0] sm:$0xff] %v285
                %v287 = vld [vmem:[%s179 + $0x350] sm:$0xff]
                %288 = vst [vmem:[%s180 + $0x1a8] sm:$0xff] %v287
                %v289 = vld [vmem:[%s179 + $0x360] sm:$0xff]
                %290 = vst [vmem:[%s180 + $0x1b0] sm:$0xff] %v289
                %v291 = vld [vmem:[%s179 + $0x370] sm:$0xff]
                %292 = vst [vmem:[%s180 + $0x1b8] sm:$0xff] %v291
                %v293 = vld [vmem:[%s179 + $0x380] sm:$0xff]
                %294 = vst [vmem:[%s180 + $0x1c0] sm:$0xff] %v293
                %v295 = vld [vmem:[%s179 + $0x390] sm:$0xff]
                %296 = vst [vmem:[%s180 + $0x1c8] sm:$0xff] %v295
                %v297 = vld [vmem:[%s179 + $0x3a0] sm:$0xff]
                %298 = vst [vmem:[%s180 + $0x1d0] sm:$0xff] %v297
                %v299 = vld [vmem:[%s179 + $0x3b0] sm:$0xff]
                %300 = vst [vmem:[%s180 + $0x1d8] sm:$0xff] %v299
                %v301 = vld [vmem:[%s179 + $0x3c0] sm:$0xff]
                %302 = vst [vmem:[%s180 + $0x1e0] sm:$0xff] %v301
                %v303 = vld [vmem:[%s179 + $0x3d0] sm:$0xff]
                %304 = vst [vmem:[%s180 + $0x1e8] sm:$0xff] %v303
                %v305 = vld [vmem:[%s179 + $0x3e0] sm:$0xff]
                %306 = vst [vmem:[%s180 + $0x1f0] sm:$0xff] %v305
                %v307 = vld [vmem:[%s179 + $0x3f0] sm:$0xff]
                %308 = vst [vmem:[%s180 + $0x1f8] sm:$0xff] %v307
              $region41: #{_lambda_.104} parent=35 // loop_footer
                %s178 = sadd.s32 1, %s174
              $region42: #{_lambda_.104} parent=35 // loop_footer_branch
                %173 = sbr.rel target = $region38
              $region43: #{_lambda_.104} parent=35 // loop_exit
                _
            $region36: #{_lambda_.104} parent=27 // pred_fallthru
              _
          $region28: #{_lambda_.104} parent=23 // pred_fallthru
            _
          %449 = vnop
        $region24: #{_lambda_.104} parent=19 // pred_fallthru
          _
        // Predicated region
        $region59: #{_lambda_.104} parent=19 // pred_check
          %p450 = pneg %p93
        $region60: #{_lambda_.104} parent=19 // pred_check_branch
          %452 = sbr.rel (%p450) target = $region62
        $region61: #{_lambda_.104} parent=19 // pred_region
          %s453 = smul.u32 2, %s17
          %p454 = scmp.lt.s32.totalorder %s453, 3
          %s455 = scalar_select %p454, %s453, 3
          %s456 = scalar_lea.vmem %s2, %s455
          %s457 = smul.u32 2, %s17
        $region62: #{_lambda_.104} parent=19 // pred_fallthru
          _
      $region20: #{_lambda_.104} parent=5 // pred_fallthru
        _
      %p458 = scmp.le.s32.totalorder 1, %s9
      %p459 = scmp.lt.s32.totalorder %s9, 3
      %p460 = pnand %p458, %p459
      %p461 = pneg %p460
      // Predicated region
      $region63: #{_lambda_.104} parent=5 // pred_check
        _
      $region64: #{_lambda_.104} parent=5 // pred_check_branch
        %463 = sbr.rel (%p460) target = $region66
      $region65: #{_lambda_.104} parent=5 // pred_region
        %s464 = ssub.s32 %s9, 1
        %s465 = sand.u32 %s60, 1
        %s466 = sand.u32 %s60, 1
        %s467 = smul.addr %s466, 512
        %s468 = scalar_lea.vmem [#allocation2], %s467
        // Predicated region
        $region67: #{_lambda_.104} parent=65 // pred_check
          %p469 = pneg %p73
        $region68: #{_lambda_.104} parent=65 // pred_check_branch
          %471 = sbr.rel (%p469) target = $region70
        $region69: #{_lambda_.104} parent=65 // pred_region
          _
        $region70: #{_lambda_.104} parent=65 // pred_fallthru
          _
        %s472 = smul.u32 2, %s18
        %p473 = scmp.lt.s32.totalorder %s472, 1
        %s474 = scalar_select %p473, %s472, 1
        %s475 = smul.addr %s474, 4
        %s476 = smul.addr %s475, 4
        %s477 = scalar_lea.vmem %s0, %s476
        %p478 = pneg %p47
        %p479 = pneg %p44
        %s480 = sand.u32 %s60, 1
        %s481 = sand.u32 %s60, 1
        %s482 = smul.addr %s481, 512
        %s483 = scalar_lea.vmem [#allocation2], %s482
        %p484 = pneg %p73
        %p485 = pneg %p70
        %s486 = smul.u32 2, %s19
        %p487 = scmp.lt.s32.totalorder %s486, 3
        %s488 = scalar_select %p487, %s486, 3
        %s489 = scalar_lea.vmem %s2, %s488
        %p490 = pneg %p99
        %p491 = pneg %p96
        %p492 = pneg %p127
        %p493 = pneg %p124
        %s494 = sand.u32 %s114, 1
        %s495 = sand.u32 %s114, 1
        %s496 = smul.addr %s495, 32
        %s497 = scalar_lea.vmem [#allocation3], %s496
        %s498 = smul.u32 2, %s18
        %p499 = scmp.lt.s32.totalorder %s498, 1
        %s500 = scalar_select %p499, %s498, 1
        %s501 = smul.addr %s500, 4
        %s502 = smul.addr %s501, 4
        %s503 = scalar_lea.vmem %s0, %s502
        %s504 = smul.u32 2, %s18
        %s505 = smul.u32 2, %s19
        %s506 = smul.u32 2, %s19
        %p507 = scmp.lt.s32.totalorder %s506, 3
        %s508 = scalar_select %p507, %s506, 3
        %s509 = scalar_lea.vmem %s2, %s508
        %s510 = smul.u32 2, %s19
        %s511 = smul.u32 2, %s18
        %s512 = smul.u32 2, %s19
        %v513 = vld [vmem:[%s503] sm:$0xff]
        %v514 = vld [vmem:[%s503 + $0x8] sm:$0xff]
        %v515 = vld [vmem:[%s503 + $0x10] sm:$0xff]
        %v516 = vld [vmem:[%s503 + $0x18] sm:$0xff]
        %v517 = vld [vmem:[%s468] sm:$0xff]
        %v518 = vld [vmem:[%s468 + $0x8] sm:$0xff]
        %v519 = vld [vmem:[%s468 + $0x10] sm:$0xff]
        %v520 = vld [vmem:[%s468 + $0x18] sm:$0xff]
        %v521 = vld [vmem:[%s468 + $0x20] sm:$0xff]
        %v522 = vld [vmem:[%s468 + $0x28] sm:$0xff]
        %v523 = vld [vmem:[%s468 + $0x30] sm:$0xff]
        %v524 = vld [vmem:[%s468 + $0x38] sm:$0xff]
        %v525 = vld [vmem:[%s468 + $0x40] sm:$0xff]
        %v526 = vld [vmem:[%s468 + $0x48] sm:$0xff]
        %v527 = vld [vmem:[%s468 + $0x50] sm:$0xff]
        %v528 = vld [vmem:[%s468 + $0x58] sm:$0xff]
        %v529 = vld [vmem:[%s468 + $0x60] sm:$0xff]
        %v530 = vld [vmem:[%s468 + $0x68] sm:$0xff]
        %v531 = vld [vmem:[%s468 + $0x70] sm:$0xff]
        %v532 = vld [vmem:[%s468 + $0x78] sm:$0xff]
        %v533 = vld [vmem:[%s468 + $0x80] sm:$0xff]
        %v534 = vld [vmem:[%s468 + $0x88] sm:$0xff]
        %v535 = vld [vmem:[%s468 + $0x90] sm:$0xff]
        %v536 = vld [vmem:[%s468 + $0x98] sm:$0xff]
        %v537 = vld [vmem:[%s468 + $0xa0] sm:$0xff]
        %v538 = vld [vmem:[%s468 + $0xa8] sm:$0xff]
        %v539 = vld [vmem:[%s468 + $0xb0] sm:$0xff]
        %v540 = vld [vmem:[%s468 + $0xb8] sm:$0xff]
        %v541 = vld [vmem:[%s468 + $0xc0] sm:$0xff]
        %v542 = vld [vmem:[%s468 + $0xc8] sm:$0xff]
        %v543 = vld [vmem:[%s468 + $0xd0] sm:$0xff]
        %v544 = vld [vmem:[%s468 + $0xd8] sm:$0xff]
        %v545 = vld [vmem:[%s468 + $0xe0] sm:$0xff]
        %v546 = vld [vmem:[%s468 + $0xe8] sm:$0xff]
        %v547 = vld [vmem:[%s468 + $0xf0] sm:$0xff]
        %v548 = vld [vmem:[%s468 + $0xf8] sm:$0xff]
        %v549 = vld [vmem:[%s468 + $0x100] sm:$0xff]
        %v550 = vld [vmem:[%s468 + $0x108] sm:$0xff]
        %v551 = vld [vmem:[%s468 + $0x110] sm:$0xff]
        %v552 = vld [vmem:[%s468 + $0x118] sm:$0xff]
        %v553 = vld [vmem:[%s468 + $0x120] sm:$0xff]
        %v554 = vld [vmem:[%s468 + $0x128] sm:$0xff]
        %v555 = vld [vmem:[%s468 + $0x130] sm:$0xff]
        %v556 = vld [vmem:[%s468 + $0x138] sm:$0xff]
        %v557 = vld [vmem:[%s468 + $0x140] sm:$0xff]
        %v558 = vld [vmem:[%s468 + $0x148] sm:$0xff]
        %v559 = vld [vmem:[%s468 + $0x150] sm:$0xff]
        %v560 = vld [vmem:[%s468 + $0x158] sm:$0xff]
        %v561 = vld [vmem:[%s468 + $0x160] sm:$0xff]
        %v562 = vld [vmem:[%s468 + $0x168] sm:$0xff]
        %v563 = vld [vmem:[%s468 + $0x170] sm:$0xff]
        %v564 = vld [vmem:[%s468 + $0x178] sm:$0xff]
        %v565 = vld [vmem:[%s468 + $0x180] sm:$0xff]
        %v566 = vld [vmem:[%s468 + $0x188] sm:$0xff]
        %v567 = vld [vmem:[%s468 + $0x190] sm:$0xff]
        %v568 = vld [vmem:[%s468 + $0x198] sm:$0xff]
        %v569 = vld [vmem:[%s468 + $0x1a0] sm:$0xff]
        %v570 = vld [vmem:[%s468 + $0x1a8] sm:$0xff]
        %v571 = vld [vmem:[%s468 + $0x1b0] sm:$0xff]
        %v572 = vld [vmem:[%s468 + $0x1b8] sm:$0xff]
        %v573 = vld [vmem:[%s468 + $0x1c0] sm:$0xff]
        %v574 = vld [vmem:[%s468 + $0x1c8] sm:$0xff]
        %v575 = vld [vmem:[%s468 + $0x1d0] sm:$0xff]
        %v576 = vld [vmem:[%s468 + $0x1d8] sm:$0xff]
        %v577 = vld [vmem:[%s468 + $0x1e0] sm:$0xff]
        %v578 = vld [vmem:[%s468 + $0x1e8] sm:$0xff]
        %v579 = vld [vmem:[%s468 + $0x1f0] sm:$0xff]
        %v580 = vld [vmem:[%s468 + $0x1f8] sm:$0xff]
        %v581 = vld [vmem:[%s509] sm:$0x3]
        %v583 = vlaneseq
        %v584 = vshrl.u32 %v583, 7
        %v585 = vsub.s32 0, %v584
        %v586 = vrot.slane %v581, %v585
        %v587 = vlaneseq
        %v588 = vshrl.u32 %v587, 7
        %v589 = vsub.s32 1, %v588
        %v590 = vrot.slane %v581, %v589
        %v597 = vunpack.c.l.b16 %v513
        %v598 = vunpack.c.h.b16 %v513
        %v599 = vunpack.c.l.b16 %v514
        %v600 = vunpack.c.h.b16 %v514
        %v601 = vunpack.c.l.b16 %v515
        %v602 = vunpack.c.h.b16 %v515
        %v603 = vunpack.c.l.b16 %v516
        %v604 = vunpack.c.h.b16 %v516
        %v605 = vpack.c.b16 %v601, %v597
        %v606 = vpack.c.b16 %v602, %v598
        %v607 = vpack.c.b16 %v603, %v599
        %v608 = vpack.c.b16 %v604, %v600
        %v677 = vunpack.c.l.b16 %v517
        %v678 = vunpack.c.h.b16 %v517
        %v679 = vunpack.c.l.b16 %v518
        %v680 = vunpack.c.h.b16 %v518
        %v681 = vunpack.c.l.b16 %v519
        %v682 = vunpack.c.h.b16 %v519
        %v683 = vunpack.c.l.b16 %v520
        %v684 = vunpack.c.h.b16 %v520
        %v685 = vunpack.c.l.b16 %v521
        %v686 = vunpack.c.h.b16 %v521
        %v687 = vunpack.c.l.b16 %v522
        %v688 = vunpack.c.h.b16 %v522
        %v689 = vunpack.c.l.b16 %v523
        %v690 = vunpack.c.h.b16 %v523
        %v691 = vunpack.c.l.b16 %v524
        %v692 = vunpack.c.h.b16 %v524
        %v693 = vunpack.c.l.b16 %v525
        %v694 = vunpack.c.h.b16 %v525
        %v695 = vunpack.c.l.b16 %v526
        %v696 = vunpack.c.h.b16 %v526
        %v697 = vunpack.c.l.b16 %v527
        %v698 = vunpack.c.h.b16 %v527
        %v699 = vunpack.c.l.b16 %v528
        %v700 = vunpack.c.h.b16 %v528
        %v701 = vunpack.c.l.b16 %v529
        %v702 = vunpack.c.h.b16 %v529
        %v703 = vunpack.c.l.b16 %v530
        %v704 = vunpack.c.h.b16 %v530
        %v705 = vunpack.c.l.b16 %v531
        %v706 = vunpack.c.h.b16 %v531
        %v707 = vunpack.c.l.b16 %v532
        %v708 = vunpack.c.h.b16 %v532
        %v709 = vunpack.c.l.b16 %v533
        %v710 = vunpack.c.h.b16 %v533
        %v711 = vunpack.c.l.b16 %v534
        %v712 = vunpack.c.h.b16 %v534
        %v713 = vunpack.c.l.b16 %v535
        %v714 = vunpack.c.h.b16 %v535
        %v715 = vunpack.c.l.b16 %v536
        %v716 = vunpack.c.h.b16 %v536
        %v717 = vunpack.c.l.b16 %v537
        %v718 = vunpack.c.h.b16 %v537
        %v719 = vunpack.c.l.b16 %v538
        %v720 = vunpack.c.h.b16 %v538
        %v721 = vunpack.c.l.b16 %v539
        %v722 = vunpack.c.h.b16 %v539
        %v723 = vunpack.c.l.b16 %v540
        %v724 = vunpack.c.h.b16 %v540
        %v725 = vunpack.c.l.b16 %v541
        %v726 = vunpack.c.h.b16 %v541
        %v727 = vunpack.c.l.b16 %v542
        %v728 = vunpack.c.h.b16 %v542
        %v729 = vunpack.c.l.b16 %v543
        %v730 = vunpack.c.h.b16 %v543
        %v731 = vunpack.c.l.b16 %v544
        %v732 = vunpack.c.h.b16 %v544
        %v733 = vunpack.c.l.b16 %v545
        %v734 = vunpack.c.h.b16 %v545
        %v735 = vunpack.c.l.b16 %v546
        %v736 = vunpack.c.h.b16 %v546
        %v737 = vunpack.c.l.b16 %v547
        %v738 = vunpack.c.h.b16 %v547
        %v739 = vunpack.c.l.b16 %v548
        %v740 = vunpack.c.h.b16 %v548
        %v741 = vunpack.c.l.b16 %v549
        %v742 = vunpack.c.h.b16 %v549
        %v743 = vunpack.c.l.b16 %v550
        %v744 = vunpack.c.h.b16 %v550
        %v745 = vunpack.c.l.b16 %v551
        %v746 = vunpack.c.h.b16 %v551
        %v747 = vunpack.c.l.b16 %v552
        %v748 = vunpack.c.h.b16 %v552
        %v749 = vunpack.c.l.b16 %v553
        %v750 = vunpack.c.h.b16 %v553
        %v751 = vunpack.c.l.b16 %v554
        %v752 = vunpack.c.h.b16 %v554
        %v753 = vunpack.c.l.b16 %v555
        %v754 = vunpack.c.h.b16 %v555
        %v755 = vunpack.c.l.b16 %v556
        %v756 = vunpack.c.h.b16 %v556
        %v757 = vunpack.c.l.b16 %v557
        %v758 = vunpack.c.h.b16 %v557
        %v759 = vunpack.c.l.b16 %v558
        %v760 = vunpack.c.h.b16 %v558
        %v761 = vunpack.c.l.b16 %v559
        %v762 = vunpack.c.h.b16 %v559
        %v763 = vunpack.c.l.b16 %v560
        %v764 = vunpack.c.h.b16 %v560
        %v765 = vunpack.c.l.b16 %v561
        %v766 = vunpack.c.h.b16 %v561
        %v767 = vunpack.c.l.b16 %v562
        %v768 = vunpack.c.h.b16 %v562
        %v769 = vunpack.c.l.b16 %v563
        %v770 = vunpack.c.h.b16 %v563
        %v771 = vunpack.c.l.b16 %v564
        %v772 = vunpack.c.h.b16 %v564
        %v773 = vunpack.c.l.b16 %v565
        %v774 = vunpack.c.h.b16 %v565
        %v775 = vunpack.c.l.b16 %v566
        %v776 = vunpack.c.h.b16 %v566
        %v777 = vunpack.c.l.b16 %v567
        %v778 = vunpack.c.h.b16 %v567
        %v779 = vunpack.c.l.b16 %v568
        %v780 = vunpack.c.h.b16 %v568
        %v781 = vunpack.c.l.b16 %v569
        %v782 = vunpack.c.h.b16 %v569
        %v783 = vunpack.c.l.b16 %v570
        %v784 = vunpack.c.h.b16 %v570
        %v785 = vunpack.c.l.b16 %v571
        %v786 = vunpack.c.h.b16 %v571
        %v787 = vunpack.c.l.b16 %v572
        %v788 = vunpack.c.h.b16 %v572
        %v789 = vunpack.c.l.b16 %v573
        %v790 = vunpack.c.h.b16 %v573
        %v791 = vunpack.c.l.b16 %v574
        %v792 = vunpack.c.h.b16 %v574
        %v793 = vunpack.c.l.b16 %v575
        %v794 = vunpack.c.h.b16 %v575
        %v795 = vunpack.c.l.b16 %v576
        %v796 = vunpack.c.h.b16 %v576
        %v797 = vunpack.c.l.b16 %v577
        %v798 = vunpack.c.h.b16 %v577
        %v799 = vunpack.c.l.b16 %v578
        %v800 = vunpack.c.h.b16 %v578
        %v801 = vunpack.c.l.b16 %v579
        %v802 = vunpack.c.h.b16 %v579
        %v803 = vunpack.c.l.b16 %v580
        %v804 = vunpack.c.h.b16 %v580
        %v805 = vpack.c.b16 %v679, %v677
        %v806 = vpack.c.b16 %v680, %v678
        %v807 = vpack.c.b16 %v683, %v681
        %v808 = vpack.c.b16 %v684, %v682
        %v809 = vpack.c.b16 %v687, %v685
        %v810 = vpack.c.b16 %v688, %v686
        %v811 = vpack.c.b16 %v691, %v689
        %v812 = vpack.c.b16 %v692, %v690
        %v813 = vpack.c.b16 %v695, %v693
        %v814 = vpack.c.b16 %v696, %v694
        %v815 = vpack.c.b16 %v699, %v697
        %v816 = vpack.c.b16 %v700, %v698
        %v817 = vpack.c.b16 %v703, %v701
        %v818 = vpack.c.b16 %v704, %v702
        %v819 = vpack.c.b16 %v707, %v705
        %v820 = vpack.c.b16 %v708, %v706
        %v821 = vpack.c.b16 %v711, %v709
        %v822 = vpack.c.b16 %v712, %v710
        %v823 = vpack.c.b16 %v715, %v713
        %v824 = vpack.c.b16 %v716, %v714
        %v825 = vpack.c.b16 %v719, %v717
        %v826 = vpack.c.b16 %v720, %v718
        %v827 = vpack.c.b16 %v723, %v721
        %v828 = vpack.c.b16 %v724, %v722
        %v829 = vpack.c.b16 %v727, %v725
        %v830 = vpack.c.b16 %v728, %v726
        %v831 = vpack.c.b16 %v731, %v729
        %v832 = vpack.c.b16 %v732, %v730
        %v833 = vpack.c.b16 %v735, %v733
        %v834 = vpack.c.b16 %v736, %v734
        %v835 = vpack.c.b16 %v739, %v737
        %v836 = vpack.c.b16 %v740, %v738
        %v837 = vpack.c.b16 %v743, %v741
        %v838 = vpack.c.b16 %v744, %v742
        %v839 = vpack.c.b16 %v747, %v745
        %v840 = vpack.c.b16 %v748, %v746
        %v841 = vpack.c.b16 %v751, %v749
        %v842 = vpack.c.b16 %v752, %v750
        %v843 = vpack.c.b16 %v755, %v753
        %v844 = vpack.c.b16 %v756, %v754
        %v845 = vpack.c.b16 %v759, %v757
        %v846 = vpack.c.b16 %v760, %v758
        %v847 = vpack.c.b16 %v763, %v761
        %v848 = vpack.c.b16 %v764, %v762
        %v849 = vpack.c.b16 %v767, %v765
        %v850 = vpack.c.b16 %v768, %v766
        %v851 = vpack.c.b16 %v771, %v769
        %v852 = vpack.c.b16 %v772, %v770
        %v853 = vpack.c.b16 %v775, %v773
        %v854 = vpack.c.b16 %v776, %v774
        %v855 = vpack.c.b16 %v779, %v777
        %v856 = vpack.c.b16 %v780, %v778
        %v857 = vpack.c.b16 %v783, %v781
        %v858 = vpack.c.b16 %v784, %v782
        %v859 = vpack.c.b16 %v787, %v785
        %v860 = vpack.c.b16 %v788, %v786
        %v861 = vpack.c.b16 %v791, %v789
        %v862 = vpack.c.b16 %v792, %v790
        %v863 = vpack.c.b16 %v795, %v793
        %v864 = vpack.c.b16 %v796, %v794
        %v865 = vpack.c.b16 %v799, %v797
        %v866 = vpack.c.b16 %v800, %v798
        %v867 = vpack.c.b16 %v803, %v801
        %v868 = vpack.c.b16 %v804, %v802
        %933 = vmatprep.subr.bf16.mxu0 %v806
        %934 = vmatpush1.bf16.msra.mxu0 %v805
        %935 = vmatprep.subr.bf16.mxu0 %v808
        %936 = vmatpush1.bf16.msra.mxu0 %v807
        %937 = vmatprep.subr.bf16.mxu0 %v810
        %938 = vmatpush1.bf16.msra.mxu0 %v809
        %939 = vmatprep.subr.bf16.mxu0 %v812
        %940 = vmatpush1.bf16.msra.mxu0 %v811
        %941 = vmatprep.subr.bf16.mxu0 %v814
        %942 = vmatpush1.bf16.msra.mxu0 %v813
        %943 = vmatprep.subr.bf16.mxu0 %v816
        %944 = vmatpush1.bf16.msra.mxu0 %v815
        %945 = vmatprep.subr.bf16.mxu0 %v818
        %946 = vmatpush1.bf16.msra.mxu0 %v817
        %947 = vmatprep.subr.bf16.mxu0 %v820
        %948 = vmatpush1.bf16.msra.mxu0 %v819
        %949 = vmatprep.subr.bf16.mxu0 %v822
        %950 = vmatpush1.bf16.msra.mxu0 %v821
        %951 = vmatprep.subr.bf16.mxu0 %v824
        %952 = vmatpush1.bf16.msra.mxu0 %v823
        %953 = vmatprep.subr.bf16.mxu0 %v826
        %954 = vmatpush1.bf16.msra.mxu0 %v825
        %955 = vmatprep.subr.bf16.mxu0 %v828
        %956 = vmatpush1.bf16.msra.mxu0 %v827
        %957 = vmatprep.subr.bf16.mxu0 %v830
        %958 = vmatpush1.bf16.msra.mxu0 %v829
        %959 = vmatprep.subr.bf16.mxu0 %v832
        %960 = vmatpush1.bf16.msra.mxu0 %v831
        %961 = vmatprep.subr.bf16.mxu0 %v834
        %962 = vmatpush1.bf16.msra.mxu0 %v833
        %963 = vmatprep.subr.bf16.mxu0 %v836
        %964 = vmatpush1.bf16.msra.mxu0 %v835
        %965 = vmatprep.mubr.bf16.mxu0 %v606
        %966 = vmatmul.mubr.bf16.gmra.mrb[0].mxu0 %v605
        %v967 = vpop.f32.mrb[0].mxu0
        %v968 = vadd.f32 %v586, %v967
        %v969 = vpop.f32.mrb[0].mxu0
        %v970 = vadd.f32 %v590, %v969
        %v971 = vpop.f32.mrb[0].mxu0
        %v972 = vadd.f32 %v586, %v971
        %v973 = vpop.f32.mrb[0].mxu0
        %v974 = vadd.f32 %v590, %v973
        %975 = vdwg.mxu0
        %976 = vmatprep.subr.bf16.mxu0 %v838
        %977 = vmatpush1.bf16.msra.mxu0 %v837
        %978 = vmatprep.subr.bf16.mxu0 %v840
        %979 = vmatpush1.bf16.msra.mxu0 %v839
        %980 = vmatprep.subr.bf16.mxu0 %v842
        %981 = vmatpush1.bf16.msra.mxu0 %v841
        %982 = vmatprep.subr.bf16.mxu0 %v844
        %983 = vmatpush1.bf16.msra.mxu0 %v843
        %984 = vmatprep.subr.bf16.mxu0 %v846
        %985 = vmatpush1.bf16.msra.mxu0 %v845
        %986 = vmatprep.subr.bf16.mxu0 %v848
        %987 = vmatpush1.bf16.msra.mxu0 %v847
        %988 = vmatprep.subr.bf16.mxu0 %v850
        %989 = vmatpush1.bf16.msra.mxu0 %v849
        %990 = vmatprep.subr.bf16.mxu0 %v852
        %991 = vmatpush1.bf16.msra.mxu0 %v851
        %992 = vmatprep.subr.bf16.mxu0 %v854
        %993 = vmatpush1.bf16.msra.mxu0 %v853
        %994 = vmatprep.subr.bf16.mxu0 %v856
        %995 = vmatpush1.bf16.msra.mxu0 %v855
        %996 = vmatprep.subr.bf16.mxu0 %v858
        %997 = vmatpush1.bf16.msra.mxu0 %v857
        %998 = vmatprep.subr.bf16.mxu0 %v860
        %999 = vmatpush1.bf16.msra.mxu0 %v859
        %1000 = vmatprep.subr.bf16.mxu0 %v862
        %1001 = vmatpush1.bf16.msra.mxu0 %v861
        %1002 = vmatprep.subr.bf16.mxu0 %v864
        %1003 = vmatpush1.bf16.msra.mxu0 %v863
        %1004 = vmatprep.subr.bf16.mxu0 %v866
        %1005 = vmatpush1.bf16.msra.mxu0 %v865
        %1006 = vmatprep.subr.bf16.mxu0 %v868
        %1007 = vmatpush1.bf16.msra.mxu0 %v867
        %1008 = vmatprep.mubr.bf16.mxu0 %v608
        %1009 = vmatmul.mubr.bf16.gmra.mrb[0].mxu0 %v607
        %v1010 = vpop.f32.mrb[0].mxu0
        %v1011 = vadd.f32 %v968, %v1010
        %v1012 = vpop.f32.mrb[0].mxu0
        %v1013 = vadd.f32 %v970, %v1012
        %v1014 = vpop.f32.mrb[0].mxu0
        %v1015 = vadd.f32 %v972, %v1014
        %v1016 = vpop.f32.mrb[0].mxu0
        %v1017 = vadd.f32 %v974, %v1016
        %1018 = vdwg.mxu0
        %1019 = vst [vmem:[%s497] sm:$0xff] %v1011
        %1020 = vst [vmem:[%s497 + $0x8] sm:$0xff] %v1013
        %1021 = vst [vmem:[%s497 + $0x10] sm:$0xff] %v1015
        %1022 = vst [vmem:[%s497 + $0x18] sm:$0xff] %v1017
        %s1023 = sand.u32 %s114, 1
        %s1024 = sand.u32 %s114, 1
        %s1025 = smul.addr %s1024, 32
        %s1026 = scalar_lea.vmem [#allocation3], %s1025
        // Predicated region
        $region71: #{_lambda_.104} parent=65 // pred_check
          %p1027 = pneg %p124
        $region72: #{_lambda_.104} parent=65 // pred_check_branch
          %1029 = sbr.rel (%p1027) target = $region74
        $region73: #{_lambda_.104} parent=65 // pred_region
          %s1030 = smul.u32 2, %s18
          %s1031 = smul.u32 2, %s19
          %s1032 = smul.addr %s1030, 4
          %s1033 = sadd.s32 %s1031, %s1032
          %s1034 = smul.addr %s1033, 8
          %s1035 = scalar_lea.vmem %s3, %s1034
          // Predicated region
          $region75: #{_lambda_.104} parent=73 // pred_check
            _
          $region76: #{_lambda_.104} parent=73 // pred_check_branch
            %1037 = sbr.rel (0) target = $region78
          $region77: #{_lambda_.104} parent=73 // pred_region
            // Predicated region
            $region79: #{_lambda_.104} parent=77 // pred_check
              _
            $region80: #{_lambda_.104} parent=77 // pred_check_branch
              %1039 = sbr.rel (0) target = $region82
            $region81: #{_lambda_.104} parent=77 // pred_region
              loop: start=0, step=1, limit=1
              $region83: #{_lambda_.104} parent=81 // loop_pre_header
                _
              $region84: #{_lambda_.104} parent=81 // loop_header
                %s1041 = sphi 0, %s1045
                %p1042 = scmp.ge.s32.totalorder %s1041, 1
                %s1046 = sphi %s1026, %s1026
                %s1047 = sphi %s1035, %s1035
              $region85: #{_lambda_.104} parent=81 // loop_header_branch
                %1044 = sbr.rel (%p1042) target = $region89
              $region86: #{_lambda_.104} parent=81 // loop_body
                %v1048 = vld [vmem:[%s1046] sm:$0xff]
                %1049 = vst [vmem:[%s1047] sm:$0xff] %v1048
                %v1050 = vld [vmem:[%s1046 + $0x8] sm:$0xff]
                %1051 = vst [vmem:[%s1047 + $0x8] sm:$0xff] %v1050
                %v1052 = vld [vmem:[%s1046 + $0x10] sm:$0xff]
                %1053 = vst [vmem:[%s1047 + $0x20] sm:$0xff] %v1052
                %v1054 = vld [vmem:[%s1046 + $0x18] sm:$0xff]
                %1055 = vst [vmem:[%s1047 + $0x28] sm:$0xff] %v1054
              $region87: #{_lambda_.104} parent=81 // loop_footer
                %s1045 = sadd.s32 1, %s1041
              $region88: #{_lambda_.104} parent=81 // loop_footer_branch
                %1040 = sbr.rel target = $region84
              $region89: #{_lambda_.104} parent=81 // loop_exit
                _
            $region82: #{_lambda_.104} parent=77 // pred_fallthru
              _
            // Predicated region
            $region90: #{_lambda_.104} parent=77 // pred_check
              _
            $region91: #{_lambda_.104} parent=77 // pred_check_branch
              %1057 = sbr.rel target = $region93
            $region92: #{_lambda_.104} parent=77 // pred_region
              _
            $region93: #{_lambda_.104} parent=77 // pred_fallthru
              _
          $region78: #{_lambda_.104} parent=73 // pred_fallthru
            _
          %1058 = vnop
        $region74: #{_lambda_.104} parent=65 // pred_fallthru
          _
      $region66: #{_lambda_.104} parent=5 // pred_fallthru
        _
      %p1059 = scmp.le.s32.totalorder 2, %s9
      // Predicated region
      $region94: #{_lambda_.104} parent=5 // pred_check
        %p1060 = pneg %p1059
      $region95: #{_lambda_.104} parent=5 // pred_check_branch
        %1062 = sbr.rel (%p1060) target = $region97
      $region96: #{_lambda_.104} parent=5 // pred_region
        %s1063 = ssub.s32 %s9, 2
        // Predicated region
        $region98: #{_lambda_.104} parent=96 // pred_check
          %p1064 = pneg %p130
        $region99: #{_lambda_.104} parent=96 // pred_check_branch
          %1066 = sbr.rel (%p1064) target = $region101
        $region100: #{_lambda_.104} parent=96 // pred_region
          %s1067 = sand.u32 %s115, 1
          %s1068 = sand.u32 %s115, 1
          %s1069 = smul.addr %s1068, 32
          %s1070 = scalar_lea.vmem [#allocation3], %s1069
        $region101: #{_lambda_.104} parent=96 // pred_fallthru
          _
      $region97: #{_lambda_.104} parent=5 // pred_fallthru
        _
    $region6: #{_lambda_.104} parent=1 // loop_footer
      %s13 = sadd.s32 1, %s9
    $region7: #{_lambda_.104} parent=1 // loop_footer_branch
      %8 = sbr.rel target = $region3
    $region8: #{_lambda_.104} parent=1 // loop_exit
      _

</llo_original>
